<compile_context>
chip_gen: v5e
topology: v5e:2x2
jax: 0.10.0
libtpu: 0.0.40
codegen_flags: <defaults>
</compile_context>

<pallas_src>
import functools

import jax
import jax.numpy as jnp
import numpy as np
from jax.experimental import pallas as pl
from jax.experimental.pallas import tpu as pltpu

EPS = 1e-5


def _round_up(a, b):
    return (a + b - 1) // b * b


def _basicblock_kernel(x_ref, wa_ref, wb_ref, ga_ref, ba_ref, gb_ref, bb_ref,
                       mask_ref, out_ref, y_scr, *, wp, rc, inv_cnt):
    # x_ref    : (Rp, Cp) f32   zero-padded input, row = n*Hp*Wp + y_pad*Wp + x_pad
    # wa/wb_ref: (9*Cp, Cp) bf16  per-tap (ky*3+kx) conv weights, channel-padded
    # ga/ba/gb/bb : (1, Cp) f32  BN affine params (zero on padded channels)
    # mask_ref : (Rc, 1) f32    1.0 on interior (n, y, x) output rows, else 0.0
    # out_ref  : (Rc, Cp) f32   conv-output rows (padded-row space rows Wp+1 ..)
    # y_scr    : (Rp, Cp) bf16  persistent scratch: padded conv_a output
    Wp = wp
    Rc = rc
    Rp, Cp = x_ref.shape

    mask = mask_ref[...]                                   # (Rc, 1)
    # Middle row-slice of the input: shared between conv_a's center tap and
    # the residual path (loaded once, in f32).
    x_mid = x_ref[Wp + 1: Wp + 1 + Rc, :]                  # (Rc, Cp) f32
    x_mid_bf = x_mid.astype(jnp.bfloat16)

    def conv(src_ref, w_ref, center_bf16=None):
        # 3x3 conv as 9 accumulating MXU dots; row shift for tap (ky, kx) is
        # ky*Wp + kx in the flattened (n, y_pad, x_pad) row space.
        acc = None
        for k in range(9):
            ky, kx = divmod(k, 3)
            off = ky * Wp + kx
            if center_bf16 is not None and off == Wp + 1:
                op = center_bf16
            else:
                op = src_ref[off: off + Rc, :].astype(jnp.bfloat16)
            w_k = w_ref[k * Cp:(k + 1) * Cp, :]            # (Cp, Cp) bf16
            d = jnp.dot(op, w_k, preferred_element_type=jnp.float32)
            acc = d if acc is None else acc + d            # MRB-friendly chain
        return acc                                          # (Rc, Cp) f32

    def bn(v, g_ref, b_ref):
        # Training-mode BN over the N*H*W interior positions (row mask).
        vm = v * mask
        s = jnp.sum(vm, axis=0, keepdims=True)              # (1, Cp)
        sq = jnp.sum(vm * v, axis=0, keepdims=True)          # (1, Cp)
        mean = s * inv_cnt
        var = jnp.maximum(sq * inv_cnt - mean * mean, 0.0)    # clamp
        scale = g_ref[...] * jax.lax.rsqrt(var + EPS)         # (1, Cp)
        shift = b_ref[...] - mean * scale                     # (1, Cp)
        return v * scale + shift                              # VPU row-broadcast

    # ---- conv_a -> bn_a -> relu; zero padded/garbage rows for conv_b -------
    va = conv(x_ref, wa_ref, x_mid_bf)
    ya = jnp.maximum(bn(va, ga_ref, ba_ref), 0.0) * mask      # (Rc, Cp) f32

    # ---- zero-padded intermediate in VMEM scratch (bf16 = MXU operand) -----
    y_scr[0: Wp + 1, :] = jnp.zeros((Wp + 1, Cp), jnp.bfloat16)
    y_scr[Wp + 1 + Rc: Rp, :] = jnp.zeros((Rp - Wp - 1 - Rc, Cp), jnp.bfloat16)
    y_scr[Wp + 1: Wp + 1 + Rc, :] = ya.astype(jnp.bfloat16)

    # ---- conv_b -> bn_b -> + residual -> relu -------------------------------
    vb = conv(y_scr, wb_ref)
    zb = bn(vb, gb_ref, bb_ref)
    out_ref[...] = jnp.maximum(x_mid + zb, 0.0).astype(out_ref.dtype)


@jax.jit
def resnet_basicblock(x_nchw, wa, ga, ba, wb, gb, bb):
    """x_nchw: (N, C, H, W) f32.  wa/wb: (3, 3, Cin, Cout) HWIO.  Returns NCHW f32."""
    N, Cin, H, W = x_nchw.shape
    Cout = wa.shape[-1]
    assert Cin == Cout, "down_sample=None requires inplanes == planes"
    C = Cout
    Cp = _round_up(C, 128)                   # lane-dense channel axis
    Hp, Wp = H + 2, W + 2
    Rp0 = N * Hp * Wp                        # padded rows actually holding data
    Rc = _round_up(Rp0 - 2 * Wp - 2, 8)      # conv-output rows, 8-sublane aligned
    Rp = _round_up(max(Rp0, 2 * Wp + 2 + Rc), 8)

    # NCHW -> NHWC, spatial zero-pad by 1, channel-pad to Cp, flatten rows.
    x_nhwc = jnp.transpose(x_nchw, (0, 2, 3, 1)).astype(jnp.float32)
    x_pad = jnp.pad(x_nhwc, ((0, 0), (1, 1), (1, 1), (0, Cp - C)))
    x2d = jnp.pad(x_pad.reshape(Rp0, Cp), ((0, Rp - Rp0), (0, 0)))

    def prep_w(w):                           # (3,3,C,C) -> (9*Cp, Cp) bf16
        wf = jnp.pad(jnp.asarray(w, jnp.float32),
                     ((0, 0), (0, 0), (0, Cp - C), (0, Cp - C)))
        return wf.reshape(9 * Cp, Cp).astype(jnp.bfloat16)

    def prep_bn(p):                          # (C,) -> (1, Cp) f32, zero-padded
        return jnp.pad(jnp.asarray(p, jnp.float32).reshape(1, C),
                       ((0, 0), (0, Cp - C)))

    # Interior-position row mask in conv-output row space.
    ro = np.arange(Rc)
    r = ro + Wp + 1
    rem = r % (Hp * Wp)
    yq, xq = rem // Wp, rem % Wp
    interior = (r < Rp0) & (yq >= 1) & (yq <= H) & (xq >= 1) & (xq <= W)
    mask = jnp.asarray(interior.astype(np.float32).reshape(Rc, 1))

    kernel = functools.partial(_basicblock_kernel, wp=Wp, rc=Rc,
                               inv_cnt=1.0 / float(N * H * W))

    out2d = pl.pallas_call(
        kernel,
        out_shape=jax.ShapeDtypeStruct((Rc, Cp), jnp.float32),
        scratch_shapes=[pltpu.VMEM((Rp, Cp), jnp.bfloat16)],
    )(x2d, prep_w(wa), prep_w(wb), prep_bn(ga), prep_bn(ba),
      prep_bn(gb), prep_bn(bb), mask)

    # Back to NCHW: re-add border rows, reshape, crop interior, transpose.
    pad_lo = Wp + 1
    pad_hi = Rp0 - pad_lo - Rc
    if pad_hi < 0:
        out2d = out2d[:Rc + pad_hi, :]
        pad_hi = 0
    out_full = jnp.pad(out2d, ((pad_lo, pad_hi), (0, 0)))     # (Rp0, Cp)
    out_nhwc = out_full.reshape(N, Hp, Wp, Cp)[:, 1:H + 1, 1:W + 1, :C]
    return jnp.transpose(out_nhwc, (0, 3, 1, 2))


# ---------------------------- pure-JAX reference -----------------------------
def _reference(x_nchw, wa, ga, ba, wb, gb, bb):
    x = jnp.transpose(x_nchw, (0, 2, 3, 1))

    def conv(x, w):
        return jax.lax.conv_general_dilated(
            x, w, window_strides=(1, 1), padding="SAME",
            dimension_numbers=("NHWC", "HWIO", "NHWC"))

    def bn(y, g, b):
        m = jnp.mean(y, axis=(0, 1, 2), keepdims=True)
        v = jnp.mean((y - m) ** 2, axis=(0, 1, 2), keepdims=True)
        return (y - m) * jax.lax.rsqrt(v + EPS) * g + b

    y = jax.nn.relu(bn(conv(x, wa), ga, ba))
    z = bn(conv(y, wb), gb, bb)
    out = jax.nn.relu(x + z)
    return jnp.transpose(out, (0, 3, 1, 2))


if __name__ == "__main__":
    # Small shapes consistent with the module: N=2, inplanes=planes=4, 16x16.
    N, C, H, W = 2, 4, 16, 16
    key = jax.random.PRNGKey(0)
    kx, kwa, kwb, kga, kba, kgb, kbb = jax.random.split(key, 7)

    x = jax.random.normal(kx, (N, C, H, W), jnp.float32)

    fan_in = C * 3 * 3
    wa = jax.random.normal(kwa, (3, 3, C, C), jnp.float32) / np.sqrt(fan_in)
    wb = jax.random.normal(kwb, (3, 3, C, C), jnp.float32) / np.sqrt(fan_in)
    # BN affine params (perturbed away from gamma=1 / beta=0).
    ga = 1.0 + 0.1 * jax.random.normal(kga, (C,), jnp.float32)
    ba = 0.1 * jax.random.normal(kba, (C,), jnp.float32)
    gb = 1.0 + 0.1 * jax.random.normal(kgb, (C,), jnp.float32)
    bb = 0.1 * jax.random.normal(kbb, (C,), jnp.float32)

    out = jax.block_until_ready(resnet_basicblock(x, wa, ga, ba, wb, gb, bb))
    ref = jax.block_until_ready(_reference(x, wa, ga, ba, wb, gb, bb))

    # Tolerance accommodates bf16 MXU operands (f32 accumulation / epilogue)
    # for both convolutions vs. the pure-f32 reference.
    np.testing.assert_allclose(np.asarray(out), np.asarray(ref),
                               rtol=5e-2, atol=5e-2)

    print("KERNEL_OK")
</pallas_src>

<mosaic_0001>
module attributes {stable_mosaic.version = 11 : i64} {
  func.func @_basicblock_kernel(%arg0: memref<656x128xf32, #tpu.memory_space<vmem>>, %arg1: memref<1152x128xbf16, #tpu.memory_space<vmem>>, %arg2: memref<1152x128xbf16, #tpu.memory_space<vmem>>, %arg3: memref<1x128xf32, #tpu.memory_space<vmem>>, %arg4: memref<1x128xf32, #tpu.memory_space<vmem>>, %arg5: memref<1x128xf32, #tpu.memory_space<vmem>>, %arg6: memref<1x128xf32, #tpu.memory_space<vmem>>, %arg7: memref<616x1xf32, #tpu.memory_space<vmem>>, %arg8: memref<616x128xf32, #tpu.memory_space<vmem>>, %arg9: memref<656x128xbf16, #tpu.memory_space<vmem>>) attributes {dimension_semantics = [], scalar_prefetch = 0 : i64, scratch_operands = 1 : i64, tpu.core_type = #tpu.core_type<tc>} {
    %c0 = arith.constant 0 : index
    %c0_0 = arith.constant 0 : index
    %0 = vector.load %arg7[%c0, %c0_0] : memref<616x1xf32, #tpu.memory_space<vmem>>, vector<616x1xf32>
    %c19 = arith.constant 19 : index
    %c0_1 = arith.constant 0 : index
    %1 = vector.load %arg0[%c19, %c0_1] : memref<656x128xf32, #tpu.memory_space<vmem>>, vector<616x128xf32>
    %2 = arith.truncf %1 : vector<616x128xf32> to vector<616x128xbf16>
    %c0_2 = arith.constant 0 : index
    %c0_3 = arith.constant 0 : index
    %3 = vector.load %arg0[%c0_2, %c0_3] : memref<656x128xf32, #tpu.memory_space<vmem>>, vector<616x128xf32>
    %4 = arith.truncf %3 : vector<616x128xf32> to vector<616x128xbf16>
    %c0_4 = arith.constant 0 : index
    %c0_5 = arith.constant 0 : index
    %5 = vector.load %arg1[%c0_4, %c0_5] : memref<1152x128xbf16, #tpu.memory_space<vmem>>, vector<128x128xbf16>
    %cst = arith.constant dense<0.000000e+00> : vector<616x128xf32>
    %6 = tpu.matmul %4, %5, %cst {dimension_numbers = #tpu.dot_dimension_numbers<[1], [0], [0], [1], [0, 0, 1, 1], [], []>} : vector<616x128xbf16>, vector<128x128xbf16>, vector<616x128xf32> -> vector<616x128xf32>
    %c1 = arith.constant 1 : index
    %c0_6 = arith.constant 0 : index
    %7 = vector.load %arg0[%c1, %c0_6] : memref<656x128xf32, #tpu.memory_space<vmem>>, vector<616x128xf32>
    %8 = arith.truncf %7 : vector<616x128xf32> to vector<616x128xbf16>
    %c128 = arith.constant 128 : index
    %c0_7 = arith.constant 0 : index
    %9 = vector.load %arg1[%c128, %c0_7] : memref<1152x128xbf16, #tpu.memory_space<vmem>>, vector<128x128xbf16>
    %cst_8 = arith.constant dense<0.000000e+00> : vector<616x128xf32>
    %10 = tpu.matmul %8, %9, %cst_8 {dimension_numbers = #tpu.dot_dimension_numbers<[1], [0], [0], [1], [0, 0, 1, 1], [], []>} : vector<616x128xbf16>, vector<128x128xbf16>, vector<616x128xf32> -> vector<616x128xf32>
    %11 = arith.addf %6, %10 : vector<616x128xf32>
    %c2 = arith.constant 2 : index
    %c0_9 = arith.constant 0 : index
    %12 = vector.load %arg0[%c2, %c0_9] : memref<656x128xf32, #tpu.memory_space<vmem>>, vector<616x128xf32>
    %13 = arith.truncf %12 : vector<616x128xf32> to vector<616x128xbf16>
    %c256 = arith.constant 256 : index
    %c0_10 = arith.constant 0 : index
    %14 = vector.load %arg1[%c256, %c0_10] : memref<1152x128xbf16, #tpu.memory_space<vmem>>, vector<128x128xbf16>
    %cst_11 = arith.constant dense<0.000000e+00> : vector<616x128xf32>
    %15 = tpu.matmul %13, %14, %cst_11 {dimension_numbers = #tpu.dot_dimension_numbers<[1], [0], [0], [1], [0, 0, 1, 1], [], []>} : vector<616x128xbf16>, vector<128x128xbf16>, vector<616x128xf32> -> vector<616x128xf32>
    %16 = arith.addf %11, %15 : vector<616x128xf32>
    %c18 = arith.constant 18 : index
    %c0_12 = arith.constant 0 : index
    %17 = vector.load %arg0[%c18, %c0_12] : memref<656x128xf32, #tpu.memory_space<vmem>>, vector<616x128xf32>
    %18 = arith.truncf %17 : vector<616x128xf32> to vector<616x128xbf16>
    %c384 = arith.constant 384 : index
    %c0_13 = arith.constant 0 : index
    %19 = vector.load %arg1[%c384, %c0_13] : memref<1152x128xbf16, #tpu.memory_space<vmem>>, vector<128x128xbf16>
    %cst_14 = arith.constant dense<0.000000e+00> : vector<616x128xf32>
    %20 = tpu.matmul %18, %19, %cst_14 {dimension_numbers = #tpu.dot_dimension_numbers<[1], [0], [0], [1], [0, 0, 1, 1], [], []>} : vector<616x128xbf16>, vector<128x128xbf16>, vector<616x128xf32> -> vector<616x128xf32>
    %21 = arith.addf %16, %20 : vector<616x128xf32>
    %c512 = arith.constant 512 : index
    %c0_15 = arith.constant 0 : index
    %22 = vector.load %arg1[%c512, %c0_15] : memref<1152x128xbf16, #tpu.memory_space<vmem>>, vector<128x128xbf16>
    %cst_16 = arith.constant dense<0.000000e+00> : vector<616x128xf32>
    %23 = tpu.matmul %2, %22, %cst_16 {dimension_numbers = #tpu.dot_dimension_numbers<[1], [0], [0], [1], [0, 0, 1, 1], [], []>} : vector<616x128xbf16>, vector<128x128xbf16>, vector<616x128xf32> -> vector<616x128xf32>
    %24 = arith.addf %21, %23 : vector<616x128xf32>
    %c20 = arith.constant 20 : index
    %c0_17 = arith.constant 0 : index
    %25 = vector.load %arg0[%c20, %c0_17] : memref<656x128xf32, #tpu.memory_space<vmem>>, vector<616x128xf32>
    %26 = arith.truncf %25 : vector<616x128xf32> to vector<616x128xbf16>
    %c640 = arith.constant 640 : index
    %c0_18 = arith.constant 0 : index
    %27 = vector.load %arg1[%c640, %c0_18] : memref<1152x128xbf16, #tpu.memory_space<vmem>>, vector<128x128xbf16>
    %cst_19 = arith.constant dense<0.000000e+00> : vector<616x128xf32>
    %28 = tpu.matmul %26, %27, %cst_19 {dimension_numbers = #tpu.dot_dimension_numbers<[1], [0], [0], [1], [0, 0, 1, 1], [], []>} : vector<616x128xbf16>, vector<128x128xbf16>, vector<616x128xf32> -> vector<616x128xf32>
    %29 = arith.addf %24, %28 : vector<616x128xf32>
    %c36 = arith.constant 36 : index
    %c0_20 = arith.constant 0 : index
    %30 = vector.load %arg0[%c36, %c0_20] : memref<656x128xf32, #tpu.memory_space<vmem>>, vector<616x128xf32>
    %31 = arith.truncf %30 : vector<616x128xf32> to vector<616x128xbf16>
    %c768 = arith.constant 768 : index
    %c0_21 = arith.constant 0 : index
    %32 = vector.load %arg1[%c768, %c0_21] : memref<1152x128xbf16, #tpu.memory_space<vmem>>, vector<128x128xbf16>
    %cst_22 = arith.constant dense<0.000000e+00> : vector<616x128xf32>
    %33 = tpu.matmul %31, %32, %cst_22 {dimension_numbers = #tpu.dot_dimension_numbers<[1], [0], [0], [1], [0, 0, 1, 1], [], []>} : vector<616x128xbf16>, vector<128x128xbf16>, vector<616x128xf32> -> vector<616x128xf32>
    %34 = arith.addf %29, %33 : vector<616x128xf32>
    %c37 = arith.constant 37 : index
    %c0_23 = arith.constant 0 : index
    %35 = vector.load %arg0[%c37, %c0_23] : memref<656x128xf32, #tpu.memory_space<vmem>>, vector<616x128xf32>
    %36 = arith.truncf %35 : vector<616x128xf32> to vector<616x128xbf16>
    %c896 = arith.constant 896 : index
    %c0_24 = arith.constant 0 : index
    %37 = vector.load %arg1[%c896, %c0_24] : memref<1152x128xbf16, #tpu.memory_space<vmem>>, vector<128x128xbf16>
    %cst_25 = arith.constant dense<0.000000e+00> : vector<616x128xf32>
    %38 = tpu.matmul %36, %37, %cst_25 {dimension_numbers = #tpu.dot_dimension_numbers<[1], [0], [0], [1], [0, 0, 1, 1], [], []>} : vector<616x128xbf16>, vector<128x128xbf16>, vector<616x128xf32> -> vector<616x128xf32>
    %39 = arith.addf %34, %38 : vector<616x128xf32>
    %c38 = arith.constant 38 : index
    %c0_26 = arith.constant 0 : index
    %40 = vector.load %arg0[%c38, %c0_26] : memref<656x128xf32, #tpu.memory_space<vmem>>, vector<616x128xf32>
    %41 = arith.truncf %40 : vector<616x128xf32> to vector<616x128xbf16>
    %c1024 = arith.constant 1024 : index
    %c0_27 = arith.constant 0 : index
    %42 = vector.load %arg1[%c1024, %c0_27] : memref<1152x128xbf16, #tpu.memory_space<vmem>>, vector<128x128xbf16>
    %cst_28 = arith.constant dense<0.000000e+00> : vector<616x128xf32>
    %43 = tpu.matmul %41, %42, %cst_28 {dimension_numbers = #tpu.dot_dimension_numbers<[1], [0], [0], [1], [0, 0, 1, 1], [], []>} : vector<616x128xbf16>, vector<128x128xbf16>, vector<616x128xf32> -> vector<616x128xf32>
    %44 = arith.addf %39, %43 : vector<616x128xf32>
    %45 = vector.broadcast %0 : vector<616x1xf32> to vector<616x128xf32>
    %46 = arith.mulf %44, %45 : vector<616x128xf32>
    %cst_29 = arith.constant dense<0.000000e+00> : vector<128xf32>
    %47 = vector.multi_reduction <add>, %46, %cst_29 [0] : vector<616x128xf32> to vector<128xf32>
    %48 = vector.shape_cast %47 : vector<128xf32> to vector<1x128xf32>
    %49 = arith.mulf %46, %44 : vector<616x128xf32>
    %cst_30 = arith.constant dense<0.000000e+00> : vector<128xf32>
    %50 = vector.multi_reduction <add>, %49, %cst_30 [0] : vector<616x128xf32> to vector<128xf32>
    %51 = vector.shape_cast %50 : vector<128xf32> to vector<1x128xf32>
    %cst_31 = arith.constant 0.001953125 : f32
    %52 = vector.broadcast %cst_31 : f32 to vector<1x128xf32>
    %53 = arith.mulf %48, %52 : vector<1x128xf32>
    %cst_32 = arith.constant 0.001953125 : f32
    %54 = vector.broadcast %cst_32 : f32 to vector<1x128xf32>
    %55 = arith.mulf %51, %54 : vector<1x128xf32>
    %56 = arith.mulf %53, %53 : vector<1x128xf32>
    %57 = arith.subf %55, %56 : vector<1x128xf32>
    %cst_33 = arith.constant 0.000000e+00 : f32
    %58 = vector.broadcast %cst_33 : f32 to vector<1x128xf32>
    %59 = arith.maximumf %57, %58 : vector<1x128xf32>
    %c0_34 = arith.constant 0 : index
    %c0_35 = arith.constant 0 : index
    %60 = vector.load %arg3[%c0_34, %c0_35] : memref<1x128xf32, #tpu.memory_space<vmem>>, vector<1x128xf32>
    %cst_36 = arith.constant 9.99999974E-6 : f32
    %61 = vector.broadcast %cst_36 : f32 to vector<1x128xf32>
    %62 = arith.addf %59, %61 : vector<1x128xf32>
    %63 = math.rsqrt %62 : vector<1x128xf32>
    %64 = arith.mulf %60, %63 : vector<1x128xf32>
    %c0_37 = arith.constant 0 : index
    %c0_38 = arith.constant 0 : index
    %65 = vector.load %arg4[%c0_37, %c0_38] : memref<1x128xf32, #tpu.memory_space<vmem>>, vector<1x128xf32>
    %66 = arith.mulf %53, %64 : vector<1x128xf32>
    %67 = arith.subf %65, %66 : vector<1x128xf32>
    %68 = vector.broadcast %64 : vector<1x128xf32> to vector<616x128xf32>
    %69 = arith.mulf %44, %68 : vector<616x128xf32>
    %70 = vector.broadcast %67 : vector<1x128xf32> to vector<616x128xf32>
    %71 = arith.addf %69, %70 : vector<616x128xf32>
    %cst_39 = arith.constant 0.000000e+00 : f32
    %72 = vector.broadcast %cst_39 : f32 to vector<616x128xf32>
    %73 = arith.maximumf %71, %72 : vector<616x128xf32>
    %74 = vector.broadcast %0 : vector<616x1xf32> to vector<616x128xf32>
    %75 = arith.mulf %73, %74 : vector<616x128xf32>
    %cst_40 = arith.constant 0.000000e+00 : bf16
    %76 = vector.broadcast %cst_40 : bf16 to vector<19x128xbf16>
    %c0_41 = arith.constant 0 : index
    %c0_42 = arith.constant 0 : index
    %77 = vector.load %arg9[%c0_41, %c0_42] : memref<656x128xbf16, #tpu.memory_space<vmem>>, vector<19x128xbf16>
    tpu.vector_store %arg9[%c0_41, %c0_42], %76 {strides = array<i32>} : memref<656x128xbf16, #tpu.memory_space<vmem>>, vector<19x128xbf16>,
    %cst_43 = arith.constant 0.000000e+00 : bf16
    %78 = vector.broadcast %cst_43 : bf16 to vector<21x128xbf16>
    %c635 = arith.constant 635 : index
    %c0_44 = arith.constant 0 : index
    %79 = vector.load %arg9[%c635, %c0_44] : memref<656x128xbf16, #tpu.memory_space<vmem>>, vector<21x128xbf16>
    tpu.vector_store %arg9[%c635, %c0_44], %78 {strides = array<i32>} : memref<656x128xbf16, #tpu.memory_space<vmem>>, vector<21x128xbf16>,
    %80 = arith.truncf %75 : vector<616x128xf32> to vector<616x128xbf16>
    %c19_45 = arith.constant 19 : index
    %c0_46 = arith.constant 0 : index
    %81 = vector.load %arg9[%c19_45, %c0_46] : memref<656x128xbf16, #tpu.memory_space<vmem>>, vector<616x128xbf16>
    tpu.vector_store %arg9[%c19_45, %c0_46], %80 {strides = array<i32>} : memref<656x128xbf16, #tpu.memory_space<vmem>>, vector<616x128xbf16>,
    %c0_47 = arith.constant 0 : index
    %c0_48 = arith.constant 0 : index
    %82 = vector.load %arg9[%c0_47, %c0_48] : memref<656x128xbf16, #tpu.memory_space<vmem>>, vector<616x128xbf16>
    %c0_49 = arith.constant 0 : index
    %c0_50 = arith.constant 0 : index
    %83 = vector.load %arg2[%c0_49, %c0_50] : memref<1152x128xbf16, #tpu.memory_space<vmem>>, vector<128x128xbf16>
    %cst_51 = arith.constant dense<0.000000e+00> : vector<616x128xf32>
    %84 = tpu.matmul %82, %83, %cst_51 {dimension_numbers = #tpu.dot_dimension_numbers<[1], [0], [0], [1], [0, 0, 1, 1], [], []>} : vector<616x128xbf16>, vector<128x128xbf16>, vector<616x128xf32> -> vector<616x128xf32>
    %c1_52 = arith.constant 1 : index
    %c0_53 = arith.constant 0 : index
    %85 = vector.load %arg9[%c1_52, %c0_53] : memref<656x128xbf16, #tpu.memory_space<vmem>>, vector<616x128xbf16>
    %c128_54 = arith.constant 128 : index
    %c0_55 = arith.constant 0 : index
    %86 = vector.load %arg2[%c128_54, %c0_55] : memref<1152x128xbf16, #tpu.memory_space<vmem>>, vector<128x128xbf16>
    %cst_56 = arith.constant dense<0.000000e+00> : vector<616x128xf32>
    %87 = tpu.matmul %85, %86, %cst_56 {dimension_numbers = #tpu.dot_dimension_numbers<[1], [0], [0], [1], [0, 0, 1, 1], [], []>} : vector<616x128xbf16>, vector<128x128xbf16>, vector<616x128xf32> -> vector<616x128xf32>
    %88 = arith.addf %84, %87 : vector<616x128xf32>
    %c2_57 = arith.constant 2 : index
    %c0_58 = arith.constant 0 : index
    %89 = vector.load %arg9[%c2_57, %c0_58] : memref<656x128xbf16, #tpu.memory_space<vmem>>, vector<616x128xbf16>
    %c256_59 = arith.constant 256 : index
    %c0_60 = arith.constant 0 : index
    %90 = vector.load %arg2[%c256_59, %c0_60] : memref<1152x128xbf16, #tpu.memory_space<vmem>>, vector<128x128xbf16>
    %cst_61 = arith.constant dense<0.000000e+00> : vector<616x128xf32>
    %91 = tpu.matmul %89, %90, %cst_61 {dimension_numbers = #tpu.dot_dimension_numbers<[1], [0], [0], [1], [0, 0, 1, 1], [], []>} : vector<616x128xbf16>, vector<128x128xbf16>, vector<616x128xf32> -> vector<616x128xf32>
    %92 = arith.addf %88, %91 : vector<616x128xf32>
    %c18_62 = arith.constant 18 : index
    %c0_63 = arith.constant 0 : index
    %93 = vector.load %arg9[%c18_62, %c0_63] : memref<656x128xbf16, #tpu.memory_space<vmem>>, vector<616x128xbf16>
    %c384_64 = arith.constant 384 : index
    %c0_65 = arith.constant 0 : index
    %94 = vector.load %arg2[%c384_64, %c0_65] : memref<1152x128xbf16, #tpu.memory_space<vmem>>, vector<128x128xbf16>
    %cst_66 = arith.constant dense<0.000000e+00> : vector<616x128xf32>
    %95 = tpu.matmul %93, %94, %cst_66 {dimension_numbers = #tpu.dot_dimension_numbers<[1], [0], [0], [1], [0, 0, 1, 1], [], []>} : vector<616x128xbf16>, vector<128x128xbf16>, vector<616x128xf32> -> vector<616x128xf32>
    %96 = arith.addf %92, %95 : vector<616x128xf32>
    %c19_67 = arith.constant 19 : index
    %c0_68 = arith.constant 0 : index
    %97 = vector.load %arg9[%c19_67, %c0_68] : memref<656x128xbf16, #tpu.memory_space<vmem>>, vector<616x128xbf16>
    %c512_69 = arith.constant 512 : index
    %c0_70 = arith.constant 0 : index
    %98 = vector.load %arg2[%c512_69, %c0_70] : memref<1152x128xbf16, #tpu.memory_space<vmem>>, vector<128x128xbf16>
    %cst_71 = arith.constant dense<0.000000e+00> : vector<616x128xf32>
    %99 = tpu.matmul %97, %98, %cst_71 {dimension_numbers = #tpu.dot_dimension_numbers<[1], [0], [0], [1], [0, 0, 1, 1], [], []>} : vector<616x128xbf16>, vector<128x128xbf16>, vector<616x128xf32> -> vector<616x128xf32>
    %100 = arith.addf %96, %99 : vector<616x128xf32>
    %c20_72 = arith.constant 20 : index
    %c0_73 = arith.constant 0 : index
    %101 = vector.load %arg9[%c20_72, %c0_73] : memref<656x128xbf16, #tpu.memory_space<vmem>>, vector<616x128xbf16>
    %c640_74 = arith.constant 640 : index
    %c0_75 = arith.constant 0 : index
    %102 = vector.load %arg2[%c640_74, %c0_75] : memref<1152x128xbf16, #tpu.memory_space<vmem>>, vector<128x128xbf16>
    %cst_76 = arith.constant dense<0.000000e+00> : vector<616x128xf32>
    %103 = tpu.matmul %101, %102, %cst_76 {dimension_numbers = #tpu.dot_dimension_numbers<[1], [0], [0], [1], [0, 0, 1, 1], [], []>} : vector<616x128xbf16>, vector<128x128xbf16>, vector<616x128xf32> -> vector<616x128xf32>
    %104 = arith.addf %100, %103 : vector<616x128xf32>
    %c36_77 = arith.constant 36 : index
    %c0_78 = arith.constant 0 : index
    %105 = vector.load %arg9[%c36_77, %c0_78] : memref<656x128xbf16, #tpu.memory_space<vmem>>, vector<616x128xbf16>
    %c768_79 = arith.constant 768 : index
    %c0_80 = arith.constant 0 : index
    %106 = vector.load %arg2[%c768_79, %c0_80] : memref<1152x128xbf16, #tpu.memory_space<vmem>>, vector<128x128xbf16>
    %cst_81 = arith.constant dense<0.000000e+00> : vector<616x128xf32>
    %107 = tpu.matmul %105, %106, %cst_81 {dimension_numbers = #tpu.dot_dimension_numbers<[1], [0], [0], [1], [0, 0, 1, 1], [], []>} : vector<616x128xbf16>, vector<128x128xbf16>, vector<616x128xf32> -> vector<616x128xf32>
    %108 = arith.addf %104, %107 : vector<616x128xf32>
    %c37_82 = arith.constant 37 : index
    %c0_83 = arith.constant 0 : index
    %109 = vector.load %arg9[%c37_82, %c0_83] : memref<656x128xbf16, #tpu.memory_space<vmem>>, vector<616x128xbf16>
    %c896_84 = arith.constant 896 : index
    %c0_85 = arith.constant 0 : index
    %110 = vector.load %arg2[%c896_84, %c0_85] : memref<1152x128xbf16, #tpu.memory_space<vmem>>, vector<128x128xbf16>
    %cst_86 = arith.constant dense<0.000000e+00> : vector<616x128xf32>
    %111 = tpu.matmul %109, %110, %cst_86 {dimension_numbers = #tpu.dot_dimension_numbers<[1], [0], [0], [1], [0, 0, 1, 1], [], []>} : vector<616x128xbf16>, vector<128x128xbf16>, vector<616x128xf32> -> vector<616x128xf32>
    %112 = arith.addf %108, %111 : vector<616x128xf32>
    %c38_87 = arith.constant 38 : index
    %c0_88 = arith.constant 0 : index
    %113 = vector.load %arg9[%c38_87, %c0_88] : memref<656x128xbf16, #tpu.memory_space<vmem>>, vector<616x128xbf16>
    %c1024_89 = arith.constant 1024 : index
    %c0_90 = arith.constant 0 : index
    %114 = vector.load %arg2[%c1024_89, %c0_90] : memref<1152x128xbf16, #tpu.memory_space<vmem>>, vector<128x128xbf16>
    %cst_91 = arith.constant dense<0.000000e+00> : vector<616x128xf32>
    %115 = tpu.matmul %113, %114, %cst_91 {dimension_numbers = #tpu.dot_dimension_numbers<[1], [0], [0], [1], [0, 0, 1, 1], [], []>} : vector<616x128xbf16>, vector<128x128xbf16>, vector<616x128xf32> -> vector<616x128xf32>
    %116 = arith.addf %112, %115 : vector<616x128xf32>
    %117 = vector.broadcast %0 : vector<616x1xf32> to vector<616x128xf32>
    %118 = arith.mulf %116, %117 : vector<616x128xf32>
    %cst_92 = arith.constant dense<0.000000e+00> : vector<128xf32>
    %119 = vector.multi_reduction <add>, %118, %cst_92 [0] : vector<616x128xf32> to vector<128xf32>
    %120 = vector.shape_cast %119 : vector<128xf32> to vector<1x128xf32>
    %121 = arith.mulf %118, %116 : vector<616x128xf32>
    %cst_93 = arith.constant dense<0.000000e+00> : vector<128xf32>
    %122 = vector.multi_reduction <add>, %121, %cst_93 [0] : vector<616x128xf32> to vector<128xf32>
    %123 = vector.shape_cast %122 : vector<128xf32> to vector<1x128xf32>
    %cst_94 = arith.constant 0.001953125 : f32
    %124 = vector.broadcast %cst_94 : f32 to vector<1x128xf32>
    %125 = arith.mulf %120, %124 : vector<1x128xf32>
    %cst_95 = arith.constant 0.001953125 : f32
    %126 = vector.broadcast %cst_95 : f32 to vector<1x128xf32>
    %127 = arith.mulf %123, %126 : vector<1x128xf32>
    %128 = arith.mulf %125, %125 : vector<1x128xf32>
    %129 = arith.subf %127, %128 : vector<1x128xf32>
    %cst_96 = arith.constant 0.000000e+00 : f32
    %130 = vector.broadcast %cst_96 : f32 to vector<1x128xf32>
    %131 = arith.maximumf %129, %130 : vector<1x128xf32>
    %c0_97 = arith.constant 0 : index
    %c0_98 = arith.constant 0 : index
    %132 = vector.load %arg5[%c0_97, %c0_98] : memref<1x128xf32, #tpu.memory_space<vmem>>, vector<1x128xf32>
    %cst_99 = arith.constant 9.99999974E-6 : f32
    %133 = vector.broadcast %cst_99 : f32 to vector<1x128xf32>
    %134 = arith.addf %131, %133 : vector<1x128xf32>
    %135 = math.rsqrt %134 : vector<1x128xf32>
    %136 = arith.mulf %132, %135 : vector<1x128xf32>
    %c0_100 = arith.constant 0 : index
    %c0_101 = arith.constant 0 : index
    %137 = vector.load %arg6[%c0_100, %c0_101] : memref<1x128xf32, #tpu.memory_space<vmem>>, vector<1x128xf32>
    %138 = arith.mulf %125, %136 : vector<1x128xf32>
    %139 = arith.subf %137, %138 : vector<1x128xf32>
    %140 = vector.broadcast %136 : vector<1x128xf32> to vector<616x128xf32>
    %141 = arith.mulf %116, %140 : vector<616x128xf32>
    %142 = vector.broadcast %139 : vector<1x128xf32> to vector<616x128xf32>
    %143 = arith.addf %141, %142 : vector<616x128xf32>
    %144 = arith.addf %1, %143 : vector<616x128xf32>
    %cst_102 = arith.constant 0.000000e+00 : f32
    %145 = vector.broadcast %cst_102 : f32 to vector<616x128xf32>
    %146 = arith.maximumf %144, %145 : vector<616x128xf32>
    %c0_103 = arith.constant 0 : index
    %c0_104 = arith.constant 0 : index
    %147 = vector.load %arg8[%c0_103, %c0_104] : memref<616x128xf32, #tpu.memory_space<vmem>>, vector<616x128xf32>
    tpu.vector_store %arg8[%c0_103, %c0_104], %146 {strides = array<i32>} : memref<616x128xf32, #tpu.memory_space<vmem>>, vector<616x128xf32>,
    return
  }
}

</mosaic_0001>

<llo_original>
// kernel: resnet_basicblock.1
$region0: #{resnet_basicblock.1}
  #allocation0 [shape = 'u32[]', space=smem, size = 0x4, offset = 0x4, fixed_abs, tag = 'smem constant byte address 0x4 - core index']
  #allocation1 [shape = 'u32[72,128]{1,0:T(1,128)}', space=vmem, size = 0x9000, scoped, tag = 'internal scratch']
  #allocation2 [shape = 'bf16[656,128]{1,0:T(8,128)(2,1)}', space=vmem, size = 0x29000, scoped, tag = 'scratch operand']
  %s0 = inlined_call_operand.vmem [shape: f32[656,128], index: 0, kind: input, shape index: {}]
  %s1 = inlined_call_operand.vmem [shape: bf16[1152,128], index: 1, kind: input, shape index: {}]
  %s2 = inlined_call_operand.vmem [shape: bf16[1152,128], index: 2, kind: input, shape index: {}]
  %s3 = inlined_call_operand.vmem [shape: f32[1,128], index: 3, kind: input, shape index: {}]
  %s4 = inlined_call_operand.vmem [shape: f32[1,128], index: 4, kind: input, shape index: {}]
  %s5 = inlined_call_operand.vmem [shape: f32[1,128], index: 5, kind: input, shape index: {}]
  %s6 = inlined_call_operand.vmem [shape: f32[1,128], index: 6, kind: input, shape index: {}]
  %s7 = inlined_call_operand.vmem [shape: f32[616,1], index: 7, kind: input, shape index: {}]
  %s8 = inlined_call_operand.vmem [shape: f32[616,128], index: 8, kind: output, shape index: {}]
  %s9 = sld [smem:[#allocation0]]
  $region42: #{resnet_basicblock.1} parent=0
    _
  %s11 = ssub.s32 1, %s9
  %s12 = scalar_select 0, %s11, %s9
  // Predicated region
  $region2: #{resnet_basicblock.1} parent=0 // pred_check
    _
  $region3: #{resnet_basicblock.1} parent=0 // pred_check_branch
    %14 = sbr.rel (0) target = $region5
  $region4: #{resnet_basicblock.1} parent=0 // pred_region
    _
  $region5: #{resnet_basicblock.1} parent=0 // pred_fallthru
    _
  // Predicated region
  $region6: #{resnet_basicblock.1} parent=0 // pred_check
    _
  $region7: #{resnet_basicblock.1} parent=0 // pred_check_branch
    %16 = sbr.rel (0) target = $region9
  $region8: #{resnet_basicblock.1} parent=0 // pred_region
    _
  $region9: #{resnet_basicblock.1} parent=0 // pred_fallthru
    _
  // Predicated region
  $region10: #{resnet_basicblock.1} parent=0 // pred_check
    _
  $region11: #{resnet_basicblock.1} parent=0 // pred_check_branch
    %18 = sbr.rel (0) target = $region13
  $region12: #{resnet_basicblock.1} parent=0 // pred_region
    _
  $region13: #{resnet_basicblock.1} parent=0 // pred_fallthru
    _
  // Predicated region
  $region14: #{resnet_basicblock.1} parent=0 // pred_check
    _
  $region15: #{resnet_basicblock.1} parent=0 // pred_check_branch
    %20 = sbr.rel (0) target = $region17
  $region16: #{resnet_basicblock.1} parent=0 // pred_region
    _
  $region17: #{resnet_basicblock.1} parent=0 // pred_fallthru
    _
  // Predicated region
  $region18: #{resnet_basicblock.1} parent=0 // pred_check
    _
  $region19: #{resnet_basicblock.1} parent=0 // pred_check_branch
    %22 = sbr.rel (0) target = $region21
  $region20: #{resnet_basicblock.1} parent=0 // pred_region
    _
  $region21: #{resnet_basicblock.1} parent=0 // pred_fallthru
    _
  // Predicated region
  $region22: #{resnet_basicblock.1} parent=0 // pred_check
    _
  $region23: #{resnet_basicblock.1} parent=0 // pred_check_branch
    %24 = sbr.rel (0) target = $region25
  $region24: #{resnet_basicblock.1} parent=0 // pred_region
    _
  $region25: #{resnet_basicblock.1} parent=0 // pred_fallthru
    _
  // Predicated region
  $region26: #{resnet_basicblock.1} parent=0 // pred_check
    _
  $region27: #{resnet_basicblock.1} parent=0 // pred_check_branch
    %26 = sbr.rel (0) target = $region29
  $region28: #{resnet_basicblock.1} parent=0 // pred_region
    _
  $region29: #{resnet_basicblock.1} parent=0 // pred_fallthru
    _
  // Predicated region
  $region30: #{resnet_basicblock.1} parent=0 // pred_check
    _
  $region31: #{resnet_basicblock.1} parent=0 // pred_check_branch
    %28 = sbr.rel (0) target = $region33
  $region32: #{resnet_basicblock.1} parent=0 // pred_region
    _
  $region33: #{resnet_basicblock.1} parent=0 // pred_fallthru
    _
  %v30 = vld [vmem:[%s7] sm:$0xff]
  %v31 = vld [vmem:[%s7 + $0x8] sm:$0xff]
  %v32 = vld [vmem:[%s7 + $0x10] sm:$0xff]
  %v33 = vld [vmem:[%s7 + $0x18] sm:$0xff]
  %v34 = vld [vmem:[%s7 + $0x20] sm:$0xff]
  %v35 = vld [vmem:[%s7 + $0x28] sm:$0xff]
  %v36 = vld [vmem:[%s7 + $0x30] sm:$0xff]
  %v37 = vld [vmem:[%s7 + $0x38] sm:$0xff]
  %v38 = vld [vmem:[%s7 + $0x40] sm:$0xff]
  %v39 = vld [vmem:[%s7 + $0x48] sm:$0xff]
  %v40 = vld [vmem:[%s7 + $0x50] sm:$0xff]
  %v41 = vld [vmem:[%s7 + $0x58] sm:$0xff]
  %v42 = vld [vmem:[%s7 + $0x60] sm:$0xff]
  %v43 = vld [vmem:[%s7 + $0x68] sm:$0xff]
  %v44 = vld [vmem:[%s7 + $0x70] sm:$0xff]
  %v45 = vld [vmem:[%s7 + $0x78] sm:$0xff]
  %v46 = vld [vmem:[%s7 + $0x80] sm:$0xff]
  %v47 = vld [vmem:[%s7 + $0x88] sm:$0xff]
  %v48 = vld [vmem:[%s7 + $0x90] sm:$0xff]
  %v49 = vld [vmem:[%s7 + $0x98] sm:$0xff]
  %v50 = vld [vmem:[%s7 + $0xa0] sm:$0xff]
  %v51 = vld [vmem:[%s7 + $0xa8] sm:$0xff]
  %v52 = vld [vmem:[%s7 + $0xb0] sm:$0xff]
  %v53 = vld [vmem:[%s7 + $0xb8] sm:$0xff]
  %v54 = vld [vmem:[%s7 + $0xc0] sm:$0xff]
  %v55 = vld [vmem:[%s7 + $0xc8] sm:$0xff]
  %v56 = vld [vmem:[%s7 + $0xd0] sm:$0xff]
  %v57 = vld [vmem:[%s7 + $0xd8] sm:$0xff]
  %v58 = vld [vmem:[%s7 + $0xe0] sm:$0xff]
  %v59 = vld [vmem:[%s7 + $0xe8] sm:$0xff]
  %v60 = vld [vmem:[%s7 + $0xf0] sm:$0xff]
  %v61 = vld [vmem:[%s7 + $0xf8] sm:$0xff]
  %v62 = vld [vmem:[%s7 + $0x100] sm:$0xff]
  %v63 = vld [vmem:[%s7 + $0x108] sm:$0xff]
  %v64 = vld [vmem:[%s7 + $0x110] sm:$0xff]
  %v65 = vld [vmem:[%s7 + $0x118] sm:$0xff]
  %v66 = vld [vmem:[%s7 + $0x120] sm:$0xff]
  %v67 = vld [vmem:[%s7 + $0x128] sm:$0xff]
  %v68 = vld [vmem:[%s7 + $0x130] sm:$0xff]
  %v69 = vld [vmem:[%s7 + $0x138] sm:$0xff]
  %v70 = vld [vmem:[%s7 + $0x140] sm:$0xff]
  %v71 = vld [vmem:[%s7 + $0x148] sm:$0xff]
  %v72 = vld [vmem:[%s7 + $0x150] sm:$0xff]
  %v73 = vld [vmem:[%s7 + $0x158] sm:$0xff]
  %v74 = vld [vmem:[%s7 + $0x160] sm:$0xff]
  %v75 = vld [vmem:[%s7 + $0x168] sm:$0xff]
  %v76 = vld [vmem:[%s7 + $0x170] sm:$0xff]
  %v77 = vld [vmem:[%s7 + $0x178] sm:$0xff]
  %v78 = vld [vmem:[%s7 + $0x180] sm:$0xff]
  %v79 = vld [vmem:[%s7 + $0x188] sm:$0xff]
  %v80 = vld [vmem:[%s7 + $0x190] sm:$0xff]
  %v81 = vld [vmem:[%s7 + $0x198] sm:$0xff]
  %v82 = vld [vmem:[%s7 + $0x1a0] sm:$0xff]
  %v83 = vld [vmem:[%s7 + $0x1a8] sm:$0xff]
  %v84 = vld [vmem:[%s7 + $0x1b0] sm:$0xff]
  %v85 = vld [vmem:[%s7 + $0x1b8] sm:$0xff]
  %v86 = vld [vmem:[%s7 + $0x1c0] sm:$0xff]
  %v87 = vld [vmem:[%s7 + $0x1c8] sm:$0xff]
  %v88 = vld [vmem:[%s7 + $0x1d0] sm:$0xff]
  %v89 = vld [vmem:[%s7 + $0x1d8] sm:$0xff]
  %v90 = vld [vmem:[%s7 + $0x1e0] sm:$0xff]
  %v91 = vld [vmem:[%s7 + $0x1e8] sm:$0xff]
  %v92 = vld [vmem:[%s7 + $0x1f0] sm:$0xff]
  %v93 = vld [vmem:[%s7 + $0x1f8] sm:$0xff]
  %v94 = vld [vmem:[%s7 + $0x200] sm:$0xff]
  %v95 = vld [vmem:[%s7 + $0x208] sm:$0xff]
  %v96 = vld [vmem:[%s7 + $0x210] sm:$0xff]
  %v97 = vld [vmem:[%s7 + $0x218] sm:$0xff]
  %v98 = vld [vmem:[%s7 + $0x220] sm:$0xff]
  %v99 = vld [vmem:[%s7 + $0x228] sm:$0xff]
  %v100 = vld [vmem:[%s7 + $0x230] sm:$0xff]
  %v101 = vld [vmem:[%s7 + $0x238] sm:$0xff]
  %v102 = vld [vmem:[%s7 + $0x240] sm:$0xff]
  %v103 = vld [vmem:[%s7 + $0x248] sm:$0xff]
  %v104 = vld [vmem:[%s7 + $0x250] sm:$0xff]
  %v105 = vld [vmem:[%s7 + $0x258] sm:$0xff]
  %v106 = vld [vmem:[%s7 + $0x260] sm:$0xff]
  %v107 = vld [vmem:[%s0 + $0x13] sm:$0xff]
  %v108 = vld [vmem:[%s0 + $0x1b] sm:$0xff]
  %v109 = vld [vmem:[%s0 + $0x23] sm:$0xff]
  %v110 = vld [vmem:[%s0 + $0x2b] sm:$0xff]
  %v111 = vld [vmem:[%s0 + $0x33] sm:$0xff]
  %v112 = vld [vmem:[%s0 + $0x3b] sm:$0xff]
  %v113 = vld [vmem:[%s0 + $0x43] sm:$0xff]
  %v114 = vld [vmem:[%s0 + $0x4b] sm:$0xff]
  %v115 = vld [vmem:[%s0 + $0x53] sm:$0xff]
  %v116 = vld [vmem:[%s0 + $0x5b] sm:$0xff]
  %v117 = vld [vmem:[%s0 + $0x63] sm:$0xff]
  %v118 = vld [vmem:[%s0 + $0x6b] sm:$0xff]
  %v119 = vld [vmem:[%s0 + $0x73] sm:$0xff]
  %v120 = vld [vmem:[%s0 + $0x7b] sm:$0xff]
  %v121 = vld [vmem:[%s0 + $0x83] sm:$0xff]
  %v122 = vld [vmem:[%s0 + $0x8b] sm:$0xff]
  %v123 = vld [vmem:[%s0 + $0x93] sm:$0xff]
  %v124 = vld [vmem:[%s0 + $0x9b] sm:$0xff]
  %v125 = vld [vmem:[%s0 + $0xa3] sm:$0xff]
  %v126 = vld [vmem:[%s0 + $0xab] sm:$0xff]
  %v127 = vld [vmem:[%s0 + $0xb3] sm:$0xff]
  %v128 = vld [vmem:[%s0 + $0xbb] sm:$0xff]
  %v129 = vld [vmem:[%s0 + $0xc3] sm:$0xff]
  %v130 = vld [vmem:[%s0 + $0xcb] sm:$0xff]
  %v131 = vld [vmem:[%s0 + $0xd3] sm:$0xff]
  %v132 = vld [vmem:[%s0 + $0xdb] sm:$0xff]
  %v133 = vld [vmem:[%s0 + $0xe3] sm:$0xff]
  %v134 = vld [vmem:[%s0 + $0xeb] sm:$0xff]
  %v135 = vld [vmem:[%s0 + $0xf3] sm:$0xff]
  %v136 = vld [vmem:[%s0 + $0xfb] sm:$0xff]
  %v137 = vld [vmem:[%s0 + $0x103] sm:$0xff]
  %v138 = vld [vmem:[%s0 + $0x10b] sm:$0xff]
  %v139 = vld [vmem:[%s0 + $0x113] sm:$0xff]
  %v140 = vld [vmem:[%s0 + $0x11b] sm:$0xff]
  %v141 = vld [vmem:[%s0 + $0x123] sm:$0xff]
  %v142 = vld [vmem:[%s0 + $0x12b] sm:$0xff]
  %v143 = vld [vmem:[%s0 + $0x133] sm:$0xff]
  %v144 = vld [vmem:[%s0 + $0x13b] sm:$0xff]
  %v145 = vld [vmem:[%s0 + $0x143] sm:$0xff]
  %v146 = vld [vmem:[%s0 + $0x14b] sm:$0xff]
  %v147 = vld [vmem:[%s0 + $0x153] sm:$0xff]
  %v148 = vld [vmem:[%s0 + $0x15b] sm:$0xff]
  %v149 = vld [vmem:[%s0 + $0x163] sm:$0xff]
  %v150 = vld [vmem:[%s0 + $0x16b] sm:$0xff]
  %v151 = vld [vmem:[%s0 + $0x173] sm:$0xff]
  %v152 = vld [vmem:[%s0 + $0x17b] sm:$0xff]
  %v153 = vld [vmem:[%s0 + $0x183] sm:$0xff]
  %v154 = vld [vmem:[%s0 + $0x18b] sm:$0xff]
  %v155 = vld [vmem:[%s0 + $0x193] sm:$0xff]
  %v156 = vld [vmem:[%s0 + $0x19b] sm:$0xff]
  %v157 = vld [vmem:[%s0 + $0x1a3] sm:$0xff]
  %v158 = vld [vmem:[%s0 + $0x1ab] sm:$0xff]
  %v159 = vld [vmem:[%s0 + $0x1b3] sm:$0xff]
  %v160 = vld [vmem:[%s0 + $0x1bb] sm:$0xff]
  %v161 = vld [vmem:[%s0 + $0x1c3] sm:$0xff]
  %v162 = vld [vmem:[%s0 + $0x1cb] sm:$0xff]
  %v163 = vld [vmem:[%s0 + $0x1d3] sm:$0xff]
  %v164 = vld [vmem:[%s0 + $0x1db] sm:$0xff]
  %v165 = vld [vmem:[%s0 + $0x1e3] sm:$0xff]
  %v166 = vld [vmem:[%s0 + $0x1eb] sm:$0xff]
  %v167 = vld [vmem:[%s0 + $0x1f3] sm:$0xff]
  %v168 = vld [vmem:[%s0 + $0x1fb] sm:$0xff]
  %v169 = vld [vmem:[%s0 + $0x203] sm:$0xff]
  %v170 = vld [vmem:[%s0 + $0x20b] sm:$0xff]
  %v171 = vld [vmem:[%s0 + $0x213] sm:$0xff]
  %v172 = vld [vmem:[%s0 + $0x21b] sm:$0xff]
  %v173 = vld [vmem:[%s0 + $0x223] sm:$0xff]
  %v174 = vld [vmem:[%s0 + $0x22b] sm:$0xff]
  %v175 = vld [vmem:[%s0 + $0x233] sm:$0xff]
  %v176 = vld [vmem:[%s0 + $0x23b] sm:$0xff]
  %v177 = vld [vmem:[%s0 + $0x243] sm:$0xff]
  %v178 = vld [vmem:[%s0 + $0x24b] sm:$0xff]
  %v179 = vld [vmem:[%s0 + $0x253] sm:$0xff]
  %v180 = vld [vmem:[%s0 + $0x25b] sm:$0xff]
  %v181 = vld [vmem:[%s0 + $0x263] sm:$0xff]
  %v182 = vld [vmem:[%s0 + $0x26b] sm:$0xff]
  %v183 = vld [vmem:[%s0 + $0x273] sm:$0xff]
  %v184 = vpack.c.bf16 %v108, %v107
  %v185 = vpack.c.bf16 %v110, %v109
  %v186 = vpack.c.bf16 %v112, %v111
  %v187 = vpack.c.bf16 %v114, %v113
  %v188 = vpack.c.bf16 %v116, %v115
  %v189 = vpack.c.bf16 %v118, %v117
  %v190 = vpack.c.bf16 %v120, %v119
  %v191 = vpack.c.bf16 %v122, %v121
  %v192 = vpack.c.bf16 %v124, %v123
  %v193 = vpack.c.bf16 %v126, %v125
  %v194 = vpack.c.bf16 %v128, %v127
  %v195 = vpack.c.bf16 %v130, %v129
  %v196 = vpack.c.bf16 %v132, %v131
  %v197 = vpack.c.bf16 %v134, %v133
  %v198 = vpack.c.bf16 %v136, %v135
  %v199 = vpack.c.bf16 %v138, %v137
  %v200 = vpack.c.bf16 %v140, %v139
  %v201 = vpack.c.bf16 %v142, %v141
  %v202 = vpack.c.bf16 %v144, %v143
  %v203 = vpack.c.bf16 %v146, %v145
  %v204 = vpack.c.bf16 %v148, %v147
  %v205 = vpack.c.bf16 %v150, %v149
  %v206 = vpack.c.bf16 %v152, %v151
  %v207 = vpack.c.bf16 %v154, %v153
  %v208 = vpack.c.bf16 %v156, %v155
  %v209 = vpack.c.bf16 %v158, %v157
  %v210 = vpack.c.bf16 %v160, %v159
  %v211 = vpack.c.bf16 %v162, %v161
  %v212 = vpack.c.bf16 %v164, %v163
  %v213 = vpack.c.bf16 %v166, %v165
  %v214 = vpack.c.bf16 %v168, %v167
  %v215 = vpack.c.bf16 %v170, %v169
  %v216 = vpack.c.bf16 %v172, %v171
  %v217 = vpack.c.bf16 %v174, %v173
  %v218 = vpack.c.bf16 %v176, %v175
  %v219 = vpack.c.bf16 %v178, %v177
  %v220 = vpack.c.bf16 %v180, %v179
  %v221 = vpack.c.bf16 %v182, %v181
  %v222 = vpack.c.bf16 %v183, %v183
  %v223 = vld [vmem:[%s0] sm:$0xff]
  %v224 = vld [vmem:[%s0 + $0x8] sm:$0xff]
  %v225 = vld [vmem:[%s0 + $0x10] sm:$0xff]
  %v226 = vld [vmem:[%s0 + $0x18] sm:$0xff]
  %v227 = vld [vmem:[%s0 + $0x20] sm:$0xff]
  %v228 = vld [vmem:[%s0 + $0x28] sm:$0xff]
  %v229 = vld [vmem:[%s0 + $0x30] sm:$0xff]
  %v230 = vld [vmem:[%s0 + $0x38] sm:$0xff]
  %v231 = vld [vmem:[%s0 + $0x40] sm:$0xff]
  %v232 = vld [vmem:[%s0 + $0x48] sm:$0xff]
  %v233 = vld [vmem:[%s0 + $0x50] sm:$0xff]
  %v234 = vld [vmem:[%s0 + $0x58] sm:$0xff]
  %v235 = vld [vmem:[%s0 + $0x60] sm:$0xff]
  %v236 = vld [vmem:[%s0 + $0x68] sm:$0xff]
  %v237 = vld [vmem:[%s0 + $0x70] sm:$0xff]
  %v238 = vld [vmem:[%s0 + $0x78] sm:$0xff]
  %v239 = vld [vmem:[%s0 + $0x80] sm:$0xff]
  %v240 = vld [vmem:[%s0 + $0x88] sm:$0xff]
  %v241 = vld [vmem:[%s0 + $0x90] sm:$0xff]
  %v242 = vld [vmem:[%s0 + $0x98] sm:$0xff]
  %v243 = vld [vmem:[%s0 + $0xa0] sm:$0xff]
  %v244 = vld [vmem:[%s0 + $0xa8] sm:$0xff]
  %v245 = vld [vmem:[%s0 + $0xb0] sm:$0xff]
  %v246 = vld [vmem:[%s0 + $0xb8] sm:$0xff]
  %v247 = vld [vmem:[%s0 + $0xc0] sm:$0xff]
  %v248 = vld [vmem:[%s0 + $0xc8] sm:$0xff]
  %v249 = vld [vmem:[%s0 + $0xd0] sm:$0xff]
  %v250 = vld [vmem:[%s0 + $0xd8] sm:$0xff]
  %v251 = vld [vmem:[%s0 + $0xe0] sm:$0xff]
  %v252 = vld [vmem:[%s0 + $0xe8] sm:$0xff]
  %v253 = vld [vmem:[%s0 + $0xf0] sm:$0xff]
  %v254 = vld [vmem:[%s0 + $0xf8] sm:$0xff]
  %v255 = vld [vmem:[%s0 + $0x100] sm:$0xff]
  %v256 = vld [vmem:[%s0 + $0x108] sm:$0xff]
  %v257 = vld [vmem:[%s0 + $0x110] sm:$0xff]
  %v258 = vld [vmem:[%s0 + $0x118] sm:$0xff]
  %v259 = vld [vmem:[%s0 + $0x120] sm:$0xff]
  %v260 = vld [vmem:[%s0 + $0x128] sm:$0xff]
  %v261 = vld [vmem:[%s0 + $0x130] sm:$0xff]
  %v262 = vld [vmem:[%s0 + $0x138] sm:$0xff]
  %v263 = vld [vmem:[%s0 + $0x140] sm:$0xff]
  %v264 = vld [vmem:[%s0 + $0x148] sm:$0xff]
  %v265 = vld [vmem:[%s0 + $0x150] sm:$0xff]
  %v266 = vld [vmem:[%s0 + $0x158] sm:$0xff]
  %v267 = vld [vmem:[%s0 + $0x160] sm:$0xff]
  %v268 = vld [vmem:[%s0 + $0x168] sm:$0xff]
  %v269 = vld [vmem:[%s0 + $0x170] sm:$0xff]
  %v270 = vld [vmem:[%s0 + $0x178] sm:$0xff]
  %v271 = vld [vmem:[%s0 + $0x180] sm:$0xff]
  %v272 = vld [vmem:[%s0 + $0x188] sm:$0xff]
  %v273 = vld [vmem:[%s0 + $0x190] sm:$0xff]
  %v274 = vld [vmem:[%s0 + $0x198] sm:$0xff]
  %v275 = vld [vmem:[%s0 + $0x1a0] sm:$0xff]
  %v276 = vld [vmem:[%s0 + $0x1a8] sm:$0xff]
  %v277 = vld [vmem:[%s0 + $0x1b0] sm:$0xff]
  %v278 = vld [vmem:[%s0 + $0x1b8] sm:$0xff]
  %v279 = vld [vmem:[%s0 + $0x1c0] sm:$0xff]
  %v280 = vld [vmem:[%s0 + $0x1c8] sm:$0xff]
  %v281 = vld [vmem:[%s0 + $0x1d0] sm:$0xff]
  %v282 = vld [vmem:[%s0 + $0x1d8] sm:$0xff]
  %v283 = vld [vmem:[%s0 + $0x1e0] sm:$0xff]
  %v284 = vld [vmem:[%s0 + $0x1e8] sm:$0xff]
  %v285 = vld [vmem:[%s0 + $0x1f0] sm:$0xff]
  %v286 = vld [vmem:[%s0 + $0x1f8] sm:$0xff]
  %v287 = vld [vmem:[%s0 + $0x200] sm:$0xff]
  %v288 = vld [vmem:[%s0 + $0x208] sm:$0xff]
  %v289 = vld [vmem:[%s0 + $0x210] sm:$0xff]
  %v290 = vld [vmem:[%s0 + $0x218] sm:$0xff]
  %v291 = vld [vmem:[%s0 + $0x220] sm:$0xff]
  %v292 = vld [vmem:[%s0 + $0x228] sm:$0xff]
  %v293 = vld [vmem:[%s0 + $0x230] sm:$0xff]
  %v294 = vld [vmem:[%s0 + $0x238] sm:$0xff]
  %v295 = vld [vmem:[%s0 + $0x240] sm:$0xff]
  %v296 = vld [vmem:[%s0 + $0x248] sm:$0xff]
  %v297 = vld [vmem:[%s0 + $0x250] sm:$0xff]
  %v298 = vld [vmem:[%s0 + $0x258] sm:$0xff]
  %v299 = vld [vmem:[%s0 + $0x260] sm:$0xff]
  %v300 = vpack.c.bf16 %v224, %v223
  %v301 = vpack.c.bf16 %v226, %v225
  %v302 = vpack.c.bf16 %v228, %v227
  %v303 = vpack.c.bf16 %v230, %v229
  %v304 = vpack.c.bf16 %v232, %v231
  %v305 = vpack.c.bf16 %v234, %v233
  %v306 = vpack.c.bf16 %v236, %v235
  %v307 = vpack.c.bf16 %v238, %v237
  %v308 = vpack.c.bf16 %v240, %v239
  %v309 = vpack.c.bf16 %v242, %v241
  %v310 = vpack.c.bf16 %v244, %v243
  %v311 = vpack.c.bf16 %v246, %v245
  %v312 = vpack.c.bf16 %v248, %v247
  %v313 = vpack.c.bf16 %v250, %v249
  %v314 = vpack.c.bf16 %v252, %v251
  %v315 = vpack.c.bf16 %v254, %v253
  %v316 = vpack.c.bf16 %v256, %v255
  %v317 = vpack.c.bf16 %v258, %v257
  %v318 = vpack.c.bf16 %v260, %v259
  %v319 = vpack.c.bf16 %v262, %v261
  %v320 = vpack.c.bf16 %v264, %v263
  %v321 = vpack.c.bf16 %v266, %v265
  %v322 = vpack.c.bf16 %v268, %v267
  %v323 = vpack.c.bf16 %v270, %v269
  %v324 = vpack.c.bf16 %v272, %v271
  %v325 = vpack.c.bf16 %v274, %v273
  %v326 = vpack.c.bf16 %v276, %v275
  %v327 = vpack.c.bf16 %v278, %v277
  %v328 = vpack.c.bf16 %v280, %v279
  %v329 = vpack.c.bf16 %v282, %v281
  %v330 = vpack.c.bf16 %v284, %v283
  %v331 = vpack.c.bf16 %v286, %v285
  %v332 = vpack.c.bf16 %v288, %v287
  %v333 = vpack.c.bf16 %v290, %v289
  %v334 = vpack.c.bf16 %v292, %v291
  %v335 = vpack.c.bf16 %v294, %v293
  %v336 = vpack.c.bf16 %v296, %v295
  %v337 = vpack.c.bf16 %v298, %v297
  %v338 = vpack.c.bf16 %v299, %v299
  %v339 = vld [vmem:[%s1] sm:$0xf]
  %v340 = vld [vmem:[%s1 + $0x4] sm:$0xf]
  %v341 = vld [vmem:[%s1 + $0x8] sm:$0xf]
  %v342 = vld [vmem:[%s1 + $0xc] sm:$0xf]
  %v343 = vld [vmem:[%s1 + $0x10] sm:$0xf]
  %v344 = vld [vmem:[%s1 + $0x14] sm:$0xf]
  %v345 = vld [vmem:[%s1 + $0x18] sm:$0xf]
  %v346 = vld [vmem:[%s1 + $0x1c] sm:$0xf]
  %v347 = vld [vmem:[%s1 + $0x20] sm:$0xf]
  %v348 = vld [vmem:[%s1 + $0x24] sm:$0xf]
  %v349 = vld [vmem:[%s1 + $0x28] sm:$0xf]
  %v350 = vld [vmem:[%s1 + $0x2c] sm:$0xf]
  %v351 = vld [vmem:[%s1 + $0x30] sm:$0xf]
  %v352 = vld [vmem:[%s1 + $0x34] sm:$0xf]
  %v353 = vld [vmem:[%s1 + $0x38] sm:$0xf]
  %v354 = vld [vmem:[%s1 + $0x3c] sm:$0xf]
  %v355 = vld [vmem:[%s0 + $0x1] sm:$0xff]
  %v356 = vld [vmem:[%s0 + $0x9] sm:$0xff]
  %v357 = vld [vmem:[%s0 + $0x11] sm:$0xff]
  %v358 = vld [vmem:[%s0 + $0x19] sm:$0xff]
  %v359 = vld [vmem:[%s0 + $0x21] sm:$0xff]
  %v360 = vld [vmem:[%s0 + $0x29] sm:$0xff]
  %v361 = vld [vmem:[%s0 + $0x31] sm:$0xff]
  %v362 = vld [vmem:[%s0 + $0x39] sm:$0xff]
  %v363 = vld [vmem:[%s0 + $0x41] sm:$0xff]
  %v364 = vld [vmem:[%s0 + $0x49] sm:$0xff]
  %v365 = vld [vmem:[%s0 + $0x51] sm:$0xff]
  %v366 = vld [vmem:[%s0 + $0x59] sm:$0xff]
  %v367 = vld [vmem:[%s0 + $0x61] sm:$0xff]
  %v368 = vld [vmem:[%s0 + $0x69] sm:$0xff]
  %v369 = vld [vmem:[%s0 + $0x71] sm:$0xff]
  %v370 = vld [vmem:[%s0 + $0x79] sm:$0xff]
  %v371 = vld [vmem:[%s0 + $0x81] sm:$0xff]
  %v372 = vld [vmem:[%s0 + $0x89] sm:$0xff]
  %v373 = vld [vmem:[%s0 + $0x91] sm:$0xff]
  %v374 = vld [vmem:[%s0 + $0x99] sm:$0xff]
  %v375 = vld [vmem:[%s0 + $0xa1] sm:$0xff]
  %v376 = vld [vmem:[%s0 + $0xa9] sm:$0xff]
  %v377 = vld [vmem:[%s0 + $0xb1] sm:$0xff]
  %v378 = vld [vmem:[%s0 + $0xb9] sm:$0xff]
  %v379 = vld [vmem:[%s0 + $0xc1] sm:$0xff]
  %v380 = vld [vmem:[%s0 + $0xc9] sm:$0xff]
  %v381 = vld [vmem:[%s0 + $0xd1] sm:$0xff]
  %v382 = vld [vmem:[%s0 + $0xd9] sm:$0xff]
  %v383 = vld [vmem:[%s0 + $0xe1] sm:$0xff]
  %v384 = vld [vmem:[%s0 + $0xe9] sm:$0xff]
  %v385 = vld [vmem:[%s0 + $0xf1] sm:$0xff]
  %v386 = vld [vmem:[%s0 + $0xf9] sm:$0xff]
  %v387 = vld [vmem:[%s0 + $0x101] sm:$0xff]
  %v388 = vld [vmem:[%s0 + $0x109] sm:$0xff]
  %v389 = vld [vmem:[%s0 + $0x111] sm:$0xff]
  %v390 = vld [vmem:[%s0 + $0x119] sm:$0xff]
  %v391 = vld [vmem:[%s0 + $0x121] sm:$0xff]
  %v392 = vld [vmem:[%s0 + $0x129] sm:$0xff]
  %v393 = vld [vmem:[%s0 + $0x131] sm:$0xff]
  %v394 = vld [vmem:[%s0 + $0x139] sm:$0xff]
  %v395 = vld [vmem:[%s0 + $0x141] sm:$0xff]
  %v396 = vld [vmem:[%s0 + $0x149] sm:$0xff]
  %v397 = vld [vmem:[%s0 + $0x151] sm:$0xff]
  %v398 = vld [vmem:[%s0 + $0x159] sm:$0xff]
  %v399 = vld [vmem:[%s0 + $0x161] sm:$0xff]
  %v400 = vld [vmem:[%s0 + $0x169] sm:$0xff]
  %v401 = vld [vmem:[%s0 + $0x171] sm:$0xff]
  %v402 = vld [vmem:[%s0 + $0x179] sm:$0xff]
  %v403 = vld [vmem:[%s0 + $0x181] sm:$0xff]
  %v404 = vld [vmem:[%s0 + $0x189] sm:$0xff]
  %v405 = vld [vmem:[%s0 + $0x191] sm:$0xff]
  %v406 = vld [vmem:[%s0 + $0x199] sm:$0xff]
  %v407 = vld [vmem:[%s0 + $0x1a1] sm:$0xff]
  %v408 = vld [vmem:[%s0 + $0x1a9] sm:$0xff]
  %v409 = vld [vmem:[%s0 + $0x1b1] sm:$0xff]
  %v410 = vld [vmem:[%s0 + $0x1b9] sm:$0xff]
  %v411 = vld [vmem:[%s0 + $0x1c1] sm:$0xff]
  %v412 = vld [vmem:[%s0 + $0x1c9] sm:$0xff]
  %v413 = vld [vmem:[%s0 + $0x1d1] sm:$0xff]
  %v414 = vld [vmem:[%s0 + $0x1d9] sm:$0xff]
  %v415 = vld [vmem:[%s0 + $0x1e1] sm:$0xff]
  %v416 = vld [vmem:[%s0 + $0x1e9] sm:$0xff]
  %v417 = vld [vmem:[%s0 + $0x1f1] sm:$0xff]
  %v418 = vld [vmem:[%s0 + $0x1f9] sm:$0xff]
  %v419 = vld [vmem:[%s0 + $0x201] sm:$0xff]
  %v420 = vld [vmem:[%s0 + $0x209] sm:$0xff]
  %v421 = vld [vmem:[%s0 + $0x211] sm:$0xff]
  %v422 = vld [vmem:[%s0 + $0x219] sm:$0xff]
  %v423 = vld [vmem:[%s0 + $0x221] sm:$0xff]
  %v424 = vld [vmem:[%s0 + $0x229] sm:$0xff]
  %v425 = vld [vmem:[%s0 + $0x231] sm:$0xff]
  %v426 = vld [vmem:[%s0 + $0x239] sm:$0xff]
  %v427 = vld [vmem:[%s0 + $0x241] sm:$0xff]
  %v428 = vld [vmem:[%s0 + $0x249] sm:$0xff]
  %v429 = vld [vmem:[%s0 + $0x251] sm:$0xff]
  %v430 = vld [vmem:[%s0 + $0x259] sm:$0xff]
  %v431 = vld [vmem:[%s0 + $0x261] sm:$0xff]
  %v432 = vpack.c.bf16 %v356, %v355
  %v433 = vpack.c.bf16 %v358, %v357
  %v434 = vpack.c.bf16 %v360, %v359
  %v435 = vpack.c.bf16 %v362, %v361
  %v436 = vpack.c.bf16 %v364, %v363
  %v437 = vpack.c.bf16 %v366, %v365
  %v438 = vpack.c.bf16 %v368, %v367
  %v439 = vpack.c.bf16 %v370, %v369
  %v440 = vpack.c.bf16 %v372, %v371
  %v441 = vpack.c.bf16 %v374, %v373
  %v442 = vpack.c.bf16 %v376, %v375
  %v443 = vpack.c.bf16 %v378, %v377
  %v444 = vpack.c.bf16 %v380, %v379
  %v445 = vpack.c.bf16 %v382, %v381
  %v446 = vpack.c.bf16 %v384, %v383
  %v447 = vpack.c.bf16 %v386, %v385
  %v448 = vpack.c.bf16 %v388, %v387
  %v449 = vpack.c.bf16 %v390, %v389
  %v450 = vpack.c.bf16 %v392, %v391
  %v451 = vpack.c.bf16 %v394, %v393
  %v452 = vpack.c.bf16 %v396, %v395
  %v453 = vpack.c.bf16 %v398, %v397
  %v454 = vpack.c.bf16 %v400, %v399
  %v455 = vpack.c.bf16 %v402, %v401
  %v456 = vpack.c.bf16 %v404, %v403
  %v457 = vpack.c.bf16 %v406, %v405
  %v458 = vpack.c.bf16 %v408, %v407
  %v459 = vpack.c.bf16 %v410, %v409
  %v460 = vpack.c.bf16 %v412, %v411
  %v461 = vpack.c.bf16 %v414, %v413
  %v462 = vpack.c.bf16 %v416, %v415
  %v463 = vpack.c.bf16 %v418, %v417
  %v464 = vpack.c.bf16 %v420, %v419
  %v465 = vpack.c.bf16 %v422, %v421
  %v466 = vpack.c.bf16 %v424, %v423
  %v467 = vpack.c.bf16 %v426, %v425
  %v468 = vpack.c.bf16 %v428, %v427
  %v469 = vpack.c.bf16 %v430, %v429
  %v470 = vpack.c.bf16 %v431, %v431
  %v471 = vld [vmem:[%s1 + $0x40] sm:$0xf]
  %v472 = vld [vmem:[%s1 + $0x44] sm:$0xf]
  %v473 = vld [vmem:[%s1 + $0x48] sm:$0xf]
  %v474 = vld [vmem:[%s1 + $0x4c] sm:$0xf]
  %v475 = vld [vmem:[%s1 + $0x50] sm:$0xf]
  %v476 = vld [vmem:[%s1 + $0x54] sm:$0xf]
  %v477 = vld [vmem:[%s1 + $0x58] sm:$0xf]
  %v478 = vld [vmem:[%s1 + $0x5c] sm:$0xf]
  %v479 = vld [vmem:[%s1 + $0x60] sm:$0xf]
  %v480 = vld [vmem:[%s1 + $0x64] sm:$0xf]
  %v481 = vld [vmem:[%s1 + $0x68] sm:$0xf]
  %v482 = vld [vmem:[%s1 + $0x6c] sm:$0xf]
  %v483 = vld [vmem:[%s1 + $0x70] sm:$0xf]
  %v484 = vld [vmem:[%s1 + $0x74] sm:$0xf]
  %v485 = vld [vmem:[%s1 + $0x78] sm:$0xf]
  %v486 = vld [vmem:[%s1 + $0x7c] sm:$0xf]
  %v503 = vunpack.c.l.b16 %v471
  %v504 = vunpack.c.l.b16 %v472
  %v505 = vunpack.c.l.b16 %v473
  %v506 = vunpack.c.l.b16 %v474
  %v507 = vunpack.c.l.b16 %v475
  %v508 = vunpack.c.l.b16 %v476
  %v509 = vunpack.c.l.b16 %v477
  %v510 = vunpack.c.l.b16 %v478
  %v511 = vunpack.c.l.b16 %v479
  %v512 = vunpack.c.l.b16 %v480
  %v513 = vunpack.c.l.b16 %v481
  %v514 = vunpack.c.l.b16 %v482
  %v515 = vunpack.c.l.b16 %v483
  %v516 = vunpack.c.l.b16 %v484
  %v517 = vunpack.c.l.b16 %v485
  %v518 = vunpack.c.l.b16 %v486
  %v519 = vpack.c.b16 %v504, %v503
  %v520 = vpack.c.b16 %v506, %v505
  %v521 = vpack.c.b16 %v508, %v507
  %v522 = vpack.c.b16 %v510, %v509
  %v523 = vpack.c.b16 %v512, %v511
  %v524 = vpack.c.b16 %v514, %v513
  %v525 = vpack.c.b16 %v516, %v515
  %v526 = vpack.c.b16 %v518, %v517
  %535 = vmatpush.bf16.msra.mxu0 %v526
  %536 = vmatpush.bf16.msra.mxu0 %v525
  %537 = vmatpush.bf16.msra.mxu0 %v524
  %538 = vmatpush.bf16.msra.mxu0 %v523
  %539 = vmatpush.bf16.msra.mxu0 %v522
  %540 = vmatpush.bf16.msra.mxu0 %v521
  %541 = vmatpush.bf16.msra.mxu0 %v520
  %542 = vmatpush.bf16.msra.mxu0 %v519
  %543 = vmatmul.bf16.gmra.mxu0 %v432
  %v544 = vpop.f32.mrf.mxu0
  %v545 = vadd.f32 0.0, %v544
  %v546 = vpop.f32.mrf.mxu0
  %v547 = vadd.f32 0.0, %v546
  %548 = vmatmul.bf16.gmra.mxu0 %v433
  %v549 = vpop.f32.mrf.mxu0
  %v550 = vadd.f32 0.0, %v549
  %v551 = vpop.f32.mrf.mxu0
  %v552 = vadd.f32 0.0, %v551
  %553 = vmatmul.bf16.gmra.mxu0 %v434
  %v554 = vpop.f32.mrf.mxu0
  %v555 = vadd.f32 0.0, %v554
  %v556 = vpop.f32.mrf.mxu0
  %v557 = vadd.f32 0.0, %v556
  %558 = vmatmul.bf16.gmra.mxu0 %v435
  %v559 = vpop.f32.mrf.mxu0
  %v560 = vadd.f32 0.0, %v559
  %v561 = vpop.f32.mrf.mxu0
  %v562 = vadd.f32 0.0, %v561
  %563 = vmatmul.bf16.gmra.mxu0 %v436
  %v564 = vpop.f32.mrf.mxu0
  %v565 = vadd.f32 0.0, %v564
  %v566 = vpop.f32.mrf.mxu0
  %v567 = vadd.f32 0.0, %v566
  %568 = vmatmul.bf16.gmra.mxu0 %v437
  %v569 = vpop.f32.mrf.mxu0
  %v570 = vadd.f32 0.0, %v569
  %v571 = vpop.f32.mrf.mxu0
  %v572 = vadd.f32 0.0, %v571
  %573 = vmatmul.bf16.gmra.mxu0 %v438
  %v574 = vpop.f32.mrf.mxu0
  %v575 = vadd.f32 0.0, %v574
  %v576 = vpop.f32.mrf.mxu0
  %v577 = vadd.f32 0.0, %v576
  %578 = vmatmul.bf16.gmra.mxu0 %v439
  %v579 = vpop.f32.mrf.mxu0
  %v580 = vadd.f32 0.0, %v579
  %v581 = vpop.f32.mrf.mxu0
  %v582 = vadd.f32 0.0, %v581
  %583 = vmatmul.bf16.gmra.mxu0 %v440
  %v584 = vpop.f32.mrf.mxu0
  %v585 = vadd.f32 0.0, %v584
  %v586 = vpop.f32.mrf.mxu0
  %v587 = vadd.f32 0.0, %v586
  %588 = vmatmul.bf16.gmra.mxu0 %v441
  %v589 = vpop.f32.mrf.mxu0
  %v590 = vadd.f32 0.0, %v589
  %v591 = vpop.f32.mrf.mxu0
  %v592 = vadd.f32 0.0, %v591
  %593 = vmatmul.bf16.gmra.mxu0 %v442
  %v594 = vpop.f32.mrf.mxu0
  %v595 = vadd.f32 0.0, %v594
  %v596 = vpop.f32.mrf.mxu0
  %v597 = vadd.f32 0.0, %v596
  %598 = vmatmul.bf16.gmra.mxu0 %v443
  %v599 = vpop.f32.mrf.mxu0
  %v600 = vadd.f32 0.0, %v599
  %v601 = vpop.f32.mrf.mxu0
  %v602 = vadd.f32 0.0, %v601
  %603 = vmatmul.bf16.gmra.mxu0 %v444
  %v604 = vpop.f32.mrf.mxu0
  %v605 = vadd.f32 0.0, %v604
  %v606 = vpop.f32.mrf.mxu0
  %v607 = vadd.f32 0.0, %v606
  %608 = vmatmul.bf16.gmra.mxu0 %v445
  %v609 = vpop.f32.mrf.mxu0
  %v610 = vadd.f32 0.0, %v609
  %v611 = vpop.f32.mrf.mxu0
  %v612 = vadd.f32 0.0, %v611
  %613 = vmatmul.bf16.gmra.mxu0 %v446
  %v614 = vpop.f32.mrf.mxu0
  %v615 = vadd.f32 0.0, %v614
  %v616 = vpop.f32.mrf.mxu0
  %v617 = vadd.f32 0.0, %v616
  %618 = vmatmul.bf16.gmra.mxu0 %v447
  %v619 = vpop.f32.mrf.mxu0
  %v620 = vadd.f32 0.0, %v619
  %v621 = vpop.f32.mrf.mxu0
  %v622 = vadd.f32 0.0, %v621
  %623 = vmatmul.bf16.gmra.mxu0 %v448
  %v624 = vpop.f32.mrf.mxu0
  %v625 = vadd.f32 0.0, %v624
  %v626 = vpop.f32.mrf.mxu0
  %v627 = vadd.f32 0.0, %v626
  %628 = vmatmul.bf16.gmra.mxu0 %v449
  %v629 = vpop.f32.mrf.mxu0
  %v630 = vadd.f32 0.0, %v629
  %v631 = vpop.f32.mrf.mxu0
  %v632 = vadd.f32 0.0, %v631
  %633 = vmatmul.bf16.gmra.mxu0 %v450
  %v634 = vpop.f32.mrf.mxu0
  %v635 = vadd.f32 0.0, %v634
  %v636 = vpop.f32.mrf.mxu0
  %v637 = vadd.f32 0.0, %v636
  %638 = vmatmul.bf16.gmra.mxu0 %v451
  %v639 = vpop.f32.mrf.mxu0
  %v640 = vadd.f32 0.0, %v639
  %v641 = vpop.f32.mrf.mxu0
  %v642 = vadd.f32 0.0, %v641
  %643 = vmatmul.bf16.gmra.mxu0 %v452
  %v644 = vpop.f32.mrf.mxu0
  %v645 = vadd.f32 0.0, %v644
  %v646 = vpop.f32.mrf.mxu0
  %v647 = vadd.f32 0.0, %v646
  %648 = vmatmul.bf16.gmra.mxu0 %v453
  %v649 = vpop.f32.mrf.mxu0
  %v650 = vadd.f32 0.0, %v649
  %v651 = vpop.f32.mrf.mxu0
  %v652 = vadd.f32 0.0, %v651
  %653 = vmatmul.bf16.gmra.mxu0 %v454
  %v654 = vpop.f32.mrf.mxu0
  %v655 = vadd.f32 0.0, %v654
  %v656 = vpop.f32.mrf.mxu0
  %v657 = vadd.f32 0.0, %v656
  %658 = vmatmul.bf16.gmra.mxu0 %v455
  %v659 = vpop.f32.mrf.mxu0
  %v660 = vadd.f32 0.0, %v659
  %v661 = vpop.f32.mrf.mxu0
  %v662 = vadd.f32 0.0, %v661
  %663 = vmatmul.bf16.gmra.mxu0 %v456
  %v664 = vpop.f32.mrf.mxu0
  %v665 = vadd.f32 0.0, %v664
  %v666 = vpop.f32.mrf.mxu0
  %v667 = vadd.f32 0.0, %v666
  %668 = vmatmul.bf16.gmra.mxu0 %v457
  %v669 = vpop.f32.mrf.mxu0
  %v670 = vadd.f32 0.0, %v669
  %v671 = vpop.f32.mrf.mxu0
  %v672 = vadd.f32 0.0, %v671
  %673 = vmatmul.bf16.gmra.mxu0 %v458
  %v674 = vpop.f32.mrf.mxu0
  %v675 = vadd.f32 0.0, %v674
  %v676 = vpop.f32.mrf.mxu0
  %v677 = vadd.f32 0.0, %v676
  %678 = vmatmul.bf16.gmra.mxu0 %v459
  %v679 = vpop.f32.mrf.mxu0
  %v680 = vadd.f32 0.0, %v679
  %v681 = vpop.f32.mrf.mxu0
  %v682 = vadd.f32 0.0, %v681
  %683 = vmatmul.bf16.gmra.mxu0 %v460
  %v684 = vpop.f32.mrf.mxu0
  %v685 = vadd.f32 0.0, %v684
  %v686 = vpop.f32.mrf.mxu0
  %v687 = vadd.f32 0.0, %v686
  %688 = vmatmul.bf16.gmra.mxu0 %v461
  %v689 = vpop.f32.mrf.mxu0
  %v690 = vadd.f32 0.0, %v689
  %v691 = vpop.f32.mrf.mxu0
  %v692 = vadd.f32 0.0, %v691
  %693 = vmatmul.bf16.gmra.mxu0 %v462
  %v694 = vpop.f32.mrf.mxu0
  %v695 = vadd.f32 0.0, %v694
  %v696 = vpop.f32.mrf.mxu0
  %v697 = vadd.f32 0.0, %v696
  %698 = vmatmul.bf16.gmra.mxu0 %v463
  %v699 = vpop.f32.mrf.mxu0
  %v700 = vadd.f32 0.0, %v699
  %v701 = vpop.f32.mrf.mxu0
  %v702 = vadd.f32 0.0, %v701
  %703 = vmatmul.bf16.gmra.mxu0 %v464
  %v704 = vpop.f32.mrf.mxu0
  %v705 = vadd.f32 0.0, %v704
  %v706 = vpop.f32.mrf.mxu0
  %v707 = vadd.f32 0.0, %v706
  %708 = vmatmul.bf16.gmra.mxu0 %v465
  %v709 = vpop.f32.mrf.mxu0
  %v710 = vadd.f32 0.0, %v709
  %v711 = vpop.f32.mrf.mxu0
  %v712 = vadd.f32 0.0, %v711
  %713 = vmatmul.bf16.gmra.mxu0 %v466
  %v714 = vpop.f32.mrf.mxu0
  %v715 = vadd.f32 0.0, %v714
  %v716 = vpop.f32.mrf.mxu0
  %v717 = vadd.f32 0.0, %v716
  %718 = vmatmul.bf16.gmra.mxu0 %v467
  %v719 = vpop.f32.mrf.mxu0
  %v720 = vadd.f32 0.0, %v719
  %v721 = vpop.f32.mrf.mxu0
  %v722 = vadd.f32 0.0, %v721
  %723 = vmatmul.bf16.gmra.mxu0 %v468
  %v724 = vpop.f32.mrf.mxu0
  %v725 = vadd.f32 0.0, %v724
  %v726 = vpop.f32.mrf.mxu0
  %v727 = vadd.f32 0.0, %v726
  %728 = vmatmul.bf16.gmra.mxu0 %v469
  %v729 = vpop.f32.mrf.mxu0
  %v730 = vadd.f32 0.0, %v729
  %v731 = vpop.f32.mrf.mxu0
  %v732 = vadd.f32 0.0, %v731
  %733 = vmatmul.bf16.gmra.mxu0 %v470
  %v734 = vpop.f32.mrf.mxu0
  %v735 = vadd.f32 0.0, %v734
  %v736 = vpop.f32.mrf.mxu0
  %737 = vdwg.mxu0
  %v754 = vunpack.c.l.b16 %v339
  %v755 = vunpack.c.l.b16 %v340
  %v756 = vunpack.c.l.b16 %v341
  %v757 = vunpack.c.l.b16 %v342
  %v758 = vunpack.c.l.b16 %v343
  %v759 = vunpack.c.l.b16 %v344
  %v760 = vunpack.c.l.b16 %v345
  %v761 = vunpack.c.l.b16 %v346
  %v762 = vunpack.c.l.b16 %v347
  %v763 = vunpack.c.l.b16 %v348
  %v764 = vunpack.c.l.b16 %v349
  %v765 = vunpack.c.l.b16 %v350
  %v766 = vunpack.c.l.b16 %v351
  %v767 = vunpack.c.l.b16 %v352
  %v768 = vunpack.c.l.b16 %v353
  %v769 = vunpack.c.l.b16 %v354
  %v770 = vpack.c.b16 %v755, %v754
  %v771 = vpack.c.b16 %v757, %v756
  %v772 = vpack.c.b16 %v759, %v758
  %v773 = vpack.c.b16 %v761, %v760
  %v774 = vpack.c.b16 %v763, %v762
  %v775 = vpack.c.b16 %v765, %v764
  %v776 = vpack.c.b16 %v767, %v766
  %v777 = vpack.c.b16 %v769, %v768
  %786 = vmatpush.bf16.msra.mxu0 %v777
  %787 = vmatpush.bf16.msra.mxu0 %v776
  %788 = vmatpush.bf16.msra.mxu0 %v775
  %789 = vmatpush.bf16.msra.mxu0 %v774
  %790 = vmatpush.bf16.msra.mxu0 %v773
  %791 = vmatpush.bf16.msra.mxu0 %v772
  %792 = vmatpush.bf16.msra.mxu0 %v771
  %793 = vmatpush.bf16.msra.mxu0 %v770
  %794 = vmatmul.bf16.gmra.mxu0 %v300
  %v795 = vpop.f32.mrf.mxu0
  %v796 = vadd.f32 %v545, %v795
  %v797 = vpop.f32.mrf.mxu0
  %v798 = vadd.f32 %v547, %v797
  %799 = vmatmul.bf16.gmra.mxu0 %v301
  %v800 = vpop.f32.mrf.mxu0
  %v801 = vadd.f32 %v550, %v800
  %v802 = vpop.f32.mrf.mxu0
  %v803 = vadd.f32 %v552, %v802
  %804 = vmatmul.bf16.gmra.mxu0 %v302
  %v805 = vpop.f32.mrf.mxu0
  %v806 = vadd.f32 %v555, %v805
  %v807 = vpop.f32.mrf.mxu0
  %v808 = vadd.f32 %v557, %v807
  %809 = vmatmul.bf16.gmra.mxu0 %v303
  %v810 = vpop.f32.mrf.mxu0
  %v811 = vadd.f32 %v560, %v810
  %v812 = vpop.f32.mrf.mxu0
  %v813 = vadd.f32 %v562, %v812
  %814 = vmatmul.bf16.gmra.mxu0 %v304
  %v815 = vpop.f32.mrf.mxu0
  %v816 = vadd.f32 %v565, %v815
  %v817 = vpop.f32.mrf.mxu0
  %v818 = vadd.f32 %v567, %v817
  %819 = vmatmul.bf16.gmra.mxu0 %v305
  %v820 = vpop.f32.mrf.mxu0
  %v821 = vadd.f32 %v570, %v820
  %v822 = vpop.f32.mrf.mxu0
  %v823 = vadd.f32 %v572, %v822
  %824 = vmatmul.bf16.gmra.mxu0 %v306
  %v825 = vpop.f32.mrf.mxu0
  %v826 = vadd.f32 %v575, %v825
  %v827 = vpop.f32.mrf.mxu0
  %v828 = vadd.f32 %v577, %v827
  %829 = vmatmul.bf16.gmra.mxu0 %v307
  %v830 = vpop.f32.mrf.mxu0
  %v831 = vadd.f32 %v580, %v830
  %v832 = vpop.f32.mrf.mxu0
  %v833 = vadd.f32 %v582, %v832
  %834 = vmatmul.bf16.gmra.mxu0 %v308
  %v835 = vpop.f32.mrf.mxu0
  %v836 = vadd.f32 %v585, %v835
  %v837 = vpop.f32.mrf.mxu0
  %v838 = vadd.f32 %v587, %v837
  %839 = vmatmul.bf16.gmra.mxu0 %v309
  %v840 = vpop.f32.mrf.mxu0
  %v841 = vadd.f32 %v590, %v840
  %v842 = vpop.f32.mrf.mxu0
  %v843 = vadd.f32 %v592, %v842
  %844 = vmatmul.bf16.gmra.mxu0 %v310
  %v845 = vpop.f32.mrf.mxu0
  %v846 = vadd.f32 %v595, %v845
  %v847 = vpop.f32.mrf.mxu0
  %v848 = vadd.f32 %v597, %v847
  %849 = vmatmul.bf16.gmra.mxu0 %v311
  %v850 = vpop.f32.mrf.mxu0
  %v851 = vadd.f32 %v600, %v850
  %v852 = vpop.f32.mrf.mxu0
  %v853 = vadd.f32 %v602, %v852
  %854 = vmatmul.bf16.gmra.mxu0 %v312
  %v855 = vpop.f32.mrf.mxu0
  %v856 = vadd.f32 %v605, %v855
  %v857 = vpop.f32.mrf.mxu0
  %v858 = vadd.f32 %v607, %v857
  %859 = vmatmul.bf16.gmra.mxu0 %v313
  %v860 = vpop.f32.mrf.mxu0
  %v861 = vadd.f32 %v610, %v860
  %v862 = vpop.f32.mrf.mxu0
  %v863 = vadd.f32 %v612, %v862
  %864 = vmatmul.bf16.gmra.mxu0 %v314
  %v865 = vpop.f32.mrf.mxu0
  %v866 = vadd.f32 %v615, %v865
  %v867 = vpop.f32.mrf.mxu0
  %v868 = vadd.f32 %v617, %v867
  %869 = vmatmul.bf16.gmra.mxu0 %v315
  %v870 = vpop.f32.mrf.mxu0
  %v871 = vadd.f32 %v620, %v870
  %v872 = vpop.f32.mrf.mxu0
  %v873 = vadd.f32 %v622, %v872
  %874 = vmatmul.bf16.gmra.mxu0 %v316
  %v875 = vpop.f32.mrf.mxu0
  %v876 = vadd.f32 %v625, %v875
  %v877 = vpop.f32.mrf.mxu0
  %v878 = vadd.f32 %v627, %v877
  %879 = vmatmul.bf16.gmra.mxu0 %v317
  %v880 = vpop.f32.mrf.mxu0
  %v881 = vadd.f32 %v630, %v880
  %v882 = vpop.f32.mrf.mxu0
  %v883 = vadd.f32 %v632, %v882
  %884 = vmatmul.bf16.gmra.mxu0 %v318
  %v885 = vpop.f32.mrf.mxu0
  %v886 = vadd.f32 %v635, %v885
  %v887 = vpop.f32.mrf.mxu0
  %v888 = vadd.f32 %v637, %v887
  %889 = vmatmul.bf16.gmra.mxu0 %v319
  %v890 = vpop.f32.mrf.mxu0
  %v891 = vadd.f32 %v640, %v890
  %v892 = vpop.f32.mrf.mxu0
  %v893 = vadd.f32 %v642, %v892
  %894 = vmatmul.bf16.gmra.mxu0 %v320
  %v895 = vpop.f32.mrf.mxu0
  %v896 = vadd.f32 %v645, %v895
  %v897 = vpop.f32.mrf.mxu0
  %v898 = vadd.f32 %v647, %v897
  %899 = vmatmul.bf16.gmra.mxu0 %v321
  %v900 = vpop.f32.mrf.mxu0
  %v901 = vadd.f32 %v650, %v900
  %v902 = vpop.f32.mrf.mxu0
  %v903 = vadd.f32 %v652, %v902
  %904 = vmatmul.bf16.gmra.mxu0 %v322
  %v905 = vpop.f32.mrf.mxu0
  %v906 = vadd.f32 %v655, %v905
  %v907 = vpop.f32.mrf.mxu0
  %v908 = vadd.f32 %v657, %v907
  %909 = vmatmul.bf16.gmra.mxu0 %v323
  %v910 = vpop.f32.mrf.mxu0
  %v911 = vadd.f32 %v660, %v910
  %v912 = vpop.f32.mrf.mxu0
  %v913 = vadd.f32 %v662, %v912
  %914 = vmatmul.bf16.gmra.mxu0 %v324
  %v915 = vpop.f32.mrf.mxu0
  %v916 = vadd.f32 %v665, %v915
  %v917 = vpop.f32.mrf.mxu0
  %v918 = vadd.f32 %v667, %v917
  %919 = vmatmul.bf16.gmra.mxu0 %v325
  %v920 = vpop.f32.mrf.mxu0
  %v921 = vadd.f32 %v670, %v920
  %v922 = vpop.f32.mrf.mxu0
  %v923 = vadd.f32 %v672, %v922
  %924 = vmatmul.bf16.gmra.mxu0 %v326
  %v925 = vpop.f32.mrf.mxu0
  %v926 = vadd.f32 %v675, %v925
  %v927 = vpop.f32.mrf.mxu0
  %v928 = vadd.f32 %v677, %v927
  %929 = vmatmul.bf16.gmra.mxu0 %v327
  %v930 = vpop.f32.mrf.mxu0
  %v931 = vadd.f32 %v680, %v930
  %v932 = vpop.f32.mrf.mxu0
  %v933 = vadd.f32 %v682, %v932
  %934 = vmatmul.bf16.gmra.mxu0 %v328
  %v935 = vpop.f32.mrf.mxu0
  %v936 = vadd.f32 %v685, %v935
  %v937 = vpop.f32.mrf.mxu0
  %v938 = vadd.f32 %v687, %v937
  %939 = vmatmul.bf16.gmra.mxu0 %v329
  %v940 = vpop.f32.mrf.mxu0
  %v941 = vadd.f32 %v690, %v940
  %v942 = vpop.f32.mrf.mxu0
  %v943 = vadd.f32 %v692, %v942
  %944 = vmatmul.bf16.gmra.mxu0 %v330
  %v945 = vpop.f32.mrf.mxu0
  %v946 = vadd.f32 %v695, %v945
  %v947 = vpop.f32.mrf.mxu0
  %v948 = vadd.f32 %v697, %v947
  %949 = vmatmul.bf16.gmra.mxu0 %v331
  %v950 = vpop.f32.mrf.mxu0
  %v951 = vadd.f32 %v700, %v950
  %v952 = vpop.f32.mrf.mxu0
  %v953 = vadd.f32 %v702, %v952
  %954 = vmatmul.bf16.gmra.mxu0 %v332
  %v955 = vpop.f32.mrf.mxu0
  %v956 = vadd.f32 %v705, %v955
  %v957 = vpop.f32.mrf.mxu0
  %v958 = vadd.f32 %v707, %v957
  %959 = vmatmul.bf16.gmra.mxu0 %v333
  %v960 = vpop.f32.mrf.mxu0
  %v961 = vadd.f32 %v710, %v960
  %v962 = vpop.f32.mrf.mxu0
  %v963 = vadd.f32 %v712, %v962
  %964 = vmatmul.bf16.gmra.mxu0 %v334
  %v965 = vpop.f32.mrf.mxu0
  %v966 = vadd.f32 %v715, %v965
  %v967 = vpop.f32.mrf.mxu0
  %v968 = vadd.f32 %v717, %v967
  %969 = vmatmul.bf16.gmra.mxu0 %v335
  %v970 = vpop.f32.mrf.mxu0
  %v971 = vadd.f32 %v720, %v970
  %v972 = vpop.f32.mrf.mxu0
  %v973 = vadd.f32 %v722, %v972
  %974 = vmatmul.bf16.gmra.mxu0 %v336
  %v975 = vpop.f32.mrf.mxu0
  %v976 = vadd.f32 %v725, %v975
  %v977 = vpop.f32.mrf.mxu0
  %v978 = vadd.f32 %v727, %v977
  %979 = vmatmul.bf16.gmra.mxu0 %v337
  %v980 = vpop.f32.mrf.mxu0
  %v981 = vadd.f32 %v730, %v980
  %v982 = vpop.f32.mrf.mxu0
  %v983 = vadd.f32 %v732, %v982
  %984 = vmatmul.bf16.gmra.mxu0 %v338
  %v985 = vpop.f32.mrf.mxu0
  %v986 = vadd.f32 %v735, %v985
  %v987 = vpop.f32.mrf.mxu0
  %988 = vdwg.mxu0
  %v989 = vld [vmem:[%s0 + $0x2] sm:$0xff]
  %v990 = vld [vmem:[%s0 + $0xa] sm:$0xff]
  %v991 = vld [vmem:[%s0 + $0x12] sm:$0xff]
  %v992 = vld [vmem:[%s0 + $0x1a] sm:$0xff]
  %v993 = vld [vmem:[%s0 + $0x22] sm:$0xff]
  %v994 = vld [vmem:[%s0 + $0x2a] sm:$0xff]
  %v995 = vld [vmem:[%s0 + $0x32] sm:$0xff]
  %v996 = vld [vmem:[%s0 + $0x3a] sm:$0xff]
  %v997 = vld [vmem:[%s0 + $0x42] sm:$0xff]
  %v998 = vld [vmem:[%s0 + $0x4a] sm:$0xff]
  %v999 = vld [vmem:[%s0 + $0x52] sm:$0xff]
  %v1000 = vld [vmem:[%s0 + $0x5a] sm:$0xff]
  %v1001 = vld [vmem:[%s0 + $0x62] sm:$0xff]
  %v1002 = vld [vmem:[%s0 + $0x6a] sm:$0xff]
  %v1003 = vld [vmem:[%s0 + $0x72] sm:$0xff]
  %v1004 = vld [vmem:[%s0 + $0x7a] sm:$0xff]
  %v1005 = vld [vmem:[%s0 + $0x82] sm:$0xff]
  %v1006 = vld [vmem:[%s0 + $0x8a] sm:$0xff]
  %v1007 = vld [vmem:[%s0 + $0x92] sm:$0xff]
  %v1008 = vld [vmem:[%s0 + $0x9a] sm:$0xff]
  %v1009 = vld [vmem:[%s0 + $0xa2] sm:$0xff]
  %v1010 = vld [vmem:[%s0 + $0xaa] sm:$0xff]
  %v1011 = vld [vmem:[%s0 + $0xb2] sm:$0xff]
  %v1012 = vld [vmem:[%s0 + $0xba] sm:$0xff]
  %v1013 = vld [vmem:[%s0 + $0xc2] sm:$0xff]
  %v1014 = vld [vmem:[%s0 + $0xca] sm:$0xff]
  %v1015 = vld [vmem:[%s0 + $0xd2] sm:$0xff]
  %v1016 = vld [vmem:[%s0 + $0xda] sm:$0xff]
  %v1017 = vld [vmem:[%s0 + $0xe2] sm:$0xff]
  %v1018 = vld [vmem:[%s0 + $0xea] sm:$0xff]
  %v1019 = vld [vmem:[%s0 + $0xf2] sm:$0xff]
  %v1020 = vld [vmem:[%s0 + $0xfa] sm:$0xff]
  %v1021 = vld [vmem:[%s0 + $0x102] sm:$0xff]
  %v1022 = vld [vmem:[%s0 + $0x10a] sm:$0xff]
  %v1023 = vld [vmem:[%s0 + $0x112] sm:$0xff]
  %v1024 = vld [vmem:[%s0 + $0x11a] sm:$0xff]
  %v1025 = vld [vmem:[%s0 + $0x122] sm:$0xff]
  %v1026 = vld [vmem:[%s0 + $0x12a] sm:$0xff]
  %v1027 = vld [vmem:[%s0 + $0x132] sm:$0xff]
  %v1028 = vld [vmem:[%s0 + $0x13a] sm:$0xff]
  %v1029 = vld [vmem:[%s0 + $0x142] sm:$0xff]
  %v1030 = vld [vmem:[%s0 + $0x14a] sm:$0xff]
  %v1031 = vld [vmem:[%s0 + $0x152] sm:$0xff]
  %v1032 = vld [vmem:[%s0 + $0x15a] sm:$0xff]
  %v1033 = vld [vmem:[%s0 + $0x162] sm:$0xff]
  %v1034 = vld [vmem:[%s0 + $0x16a] sm:$0xff]
  %v1035 = vld [vmem:[%s0 + $0x172] sm:$0xff]
  %v1036 = vld [vmem:[%s0 + $0x17a] sm:$0xff]
  %v1037 = vld [vmem:[%s0 + $0x182] sm:$0xff]
  %v1038 = vld [vmem:[%s0 + $0x18a] sm:$0xff]
  %v1039 = vld [vmem:[%s0 + $0x192] sm:$0xff]
  %v1040 = vld [vmem:[%s0 + $0x19a] sm:$0xff]
  %v1041 = vld [vmem:[%s0 + $0x1a2] sm:$0xff]
  %v1042 = vld [vmem:[%s0 + $0x1aa] sm:$0xff]
  %v1043 = vld [vmem:[%s0 + $0x1b2] sm:$0xff]
  %v1044 = vld [vmem:[%s0 + $0x1ba] sm:$0xff]
  %v1045 = vld [vmem:[%s0 + $0x1c2] sm:$0xff]
  %v1046 = vld [vmem:[%s0 + $0x1ca] sm:$0xff]
  %v1047 = vld [vmem:[%s0 + $0x1d2] sm:$0xff]
  %v1048 = vld [vmem:[%s0 + $0x1da] sm:$0xff]
  %v1049 = vld [vmem:[%s0 + $0x1e2] sm:$0xff]
  %v1050 = vld [vmem:[%s0 + $0x1ea] sm:$0xff]
  %v1051 = vld [vmem:[%s0 + $0x1f2] sm:$0xff]
  %v1052 = vld [vmem:[%s0 + $0x1fa] sm:$0xff]
  %v1053 = vld [vmem:[%s0 + $0x202] sm:$0xff]
  %v1054 = vld [vmem:[%s0 + $0x20a] sm:$0xff]
  %v1055 = vld [vmem:[%s0 + $0x212] sm:$0xff]
  %v1056 = vld [vmem:[%s0 + $0x21a] sm:$0xff]
  %v1057 = vld [vmem:[%s0 + $0x222] sm:$0xff]
  %v1058 = vld [vmem:[%s0 + $0x22a] sm:$0xff]
  %v1059 = vld [vmem:[%s0 + $0x232] sm:$0xff]
  %v1060 = vld [vmem:[%s0 + $0x23a] sm:$0xff]
  %v1061 = vld [vmem:[%s0 + $0x242] sm:$0xff]
  %v1062 = vld [vmem:[%s0 + $0x24a] sm:$0xff]
  %v1063 = vld [vmem:[%s0 + $0x252] sm:$0xff]
  %v1064 = vld [vmem:[%s0 + $0x25a] sm:$0xff]
  %v1065 = vld [vmem:[%s0 + $0x262] sm:$0xff]
  %v1066 = vpack.c.bf16 %v990, %v989
  %v1067 = vpack.c.bf16 %v992, %v991
  %v1068 = vpack.c.bf16 %v994, %v993
  %v1069 = vpack.c.bf16 %v996, %v995
  %v1070 = vpack.c.bf16 %v998, %v997
  %v1071 = vpack.c.bf16 %v1000, %v999
  %v1072 = vpack.c.bf16 %v1002, %v1001
  %v1073 = vpack.c.bf16 %v1004, %v1003
  %v1074 = vpack.c.bf16 %v1006, %v1005
  %v1075 = vpack.c.bf16 %v1008, %v1007
  %v1076 = vpack.c.bf16 %v1010, %v1009
  %v1077 = vpack.c.bf16 %v1012, %v1011
  %v1078 = vpack.c.bf16 %v1014, %v1013
  %v1079 = vpack.c.bf16 %v1016, %v1015
  %v1080 = vpack.c.bf16 %v1018, %v1017
  %v1081 = vpack.c.bf16 %v1020, %v1019
  %v1082 = vpack.c.bf16 %v1022, %v1021
  %v1083 = vpack.c.bf16 %v1024, %v1023
  %v1084 = vpack.c.bf16 %v1026, %v1025
  %v1085 = vpack.c.bf16 %v1028, %v1027
  %v1086 = vpack.c.bf16 %v1030, %v1029
  %v1087 = vpack.c.bf16 %v1032, %v1031
  %v1088 = vpack.c.bf16 %v1034, %v1033
  %v1089 = vpack.c.bf16 %v1036, %v1035
  %v1090 = vpack.c.bf16 %v1038, %v1037
  %v1091 = vpack.c.bf16 %v1040, %v1039
  %v1092 = vpack.c.bf16 %v1042, %v1041
  %v1093 = vpack.c.bf16 %v1044, %v1043
  %v1094 = vpack.c.bf16 %v1046, %v1045
  %v1095 = vpack.c.bf16 %v1048, %v1047
  %v1096 = vpack.c.bf16 %v1050, %v1049
  %v1097 = vpack.c.bf16 %v1052, %v1051
  %v1098 = vpack.c.bf16 %v1054, %v1053
  %v1099 = vpack.c.bf16 %v1056, %v1055
  %v1100 = vpack.c.bf16 %v1058, %v1057
  %v1101 = vpack.c.bf16 %v1060, %v1059
  %v1102 = vpack.c.bf16 %v1062, %v1061
  %v1103 = vpack.c.bf16 %v1064, %v1063
  %v1104 = vpack.c.bf16 %v1065, %v1065
  %v1105 = vld [vmem:[%s1 + $0x80] sm:$0xf]
  %v1106 = vld [vmem:[%s1 + $0x84] sm:$0xf]
  %v1107 = vld [vmem:[%s1 + $0x88] sm:$0xf]
  %v1108 = vld [vmem:[%s1 + $0x8c] sm:$0xf]
  %v1109 = vld [vmem:[%s1 + $0x90] sm:$0xf]
  %v1110 = vld [vmem:[%s1 + $0x94] sm:$0xf]
  %v1111 = vld [vmem:[%s1 + $0x98] sm:$0xf]
  %v1112 = vld [vmem:[%s1 + $0x9c] sm:$0xf]
  %v1113 = vld [vmem:[%s1 + $0xa0] sm:$0xf]
  %v1114 = vld [vmem:[%s1 + $0xa4] sm:$0xf]
  %v1115 = vld [vmem:[%s1 + $0xa8] sm:$0xf]
  %v1116 = vld [vmem:[%s1 + $0xac] sm:$0xf]
  %v1117 = vld [vmem:[%s1 + $0xb0] sm:$0xf]
  %v1118 = vld [vmem:[%s1 + $0xb4] sm:$0xf]
  %v1119 = vld [vmem:[%s1 + $0xb8] sm:$0xf]
  %v1120 = vld [vmem:[%s1 + $0xbc] sm:$0xf]
  %v1137 = vunpack.c.l.b16 %v1105
  %v1138 = vunpack.c.l.b16 %v1106
  %v1139 = vunpack.c.l.b16 %v1107
  %v1140 = vunpack.c.l.b16 %v1108
  %v1141 = vunpack.c.l.b16 %v1109
  %v1142 = vunpack.c.l.b16 %v1110
  %v1143 = vunpack.c.l.b16 %v1111
  %v1144 = vunpack.c.l.b16 %v1112
  %v1145 = vunpack.c.l.b16 %v1113
  %v1146 = vunpack.c.l.b16 %v1114
  %v1147 = vunpack.c.l.b16 %v1115
  %v1148 = vunpack.c.l.b16 %v1116
  %v1149 = vunpack.c.l.b16 %v1117
  %v1150 = vunpack.c.l.b16 %v1118
  %v1151 = vunpack.c.l.b16 %v1119
  %v1152 = vunpack.c.l.b16 %v1120
  %v1153 = vpack.c.b16 %v1138, %v1137
  %v1154 = vpack.c.b16 %v1140, %v1139
  %v1155 = vpack.c.b16 %v1142, %v1141
  %v1156 = vpack.c.b16 %v1144, %v1143
  %v1157 = vpack.c.b16 %v1146, %v1145
  %v1158 = vpack.c.b16 %v1148, %v1147
  %v1159 = vpack.c.b16 %v1150, %v1149
  %v1160 = vpack.c.b16 %v1152, %v1151
  %1169 = vmatpush.bf16.msra.mxu0 %v1160
  %1170 = vmatpush.bf16.msra.mxu0 %v1159
  %1171 = vmatpush.bf16.msra.mxu0 %v1158
  %1172 = vmatpush.bf16.msra.mxu0 %v1157
  %1173 = vmatpush.bf16.msra.mxu0 %v1156
  %1174 = vmatpush.bf16.msra.mxu0 %v1155
  %1175 = vmatpush.bf16.msra.mxu0 %v1154
  %1176 = vmatpush.bf16.msra.mxu0 %v1153
  %1177 = vmatmul.bf16.gmra.mxu0 %v1066
  %v1178 = vpop.f32.mrf.mxu0
  %v1179 = vadd.f32 0.0, %v1178
  %v1180 = vpop.f32.mrf.mxu0
  %v1181 = vadd.f32 0.0, %v1180
  %1182 = vmatmul.bf16.gmra.mxu0 %v1067
  %v1183 = vpop.f32.mrf.mxu0
  %v1184 = vadd.f32 0.0, %v1183
  %v1185 = vpop.f32.mrf.mxu0
  %v1186 = vadd.f32 0.0, %v1185
  %1187 = vmatmul.bf16.gmra.mxu0 %v1068
  %v1188 = vpop.f32.mrf.mxu0
  %v1189 = vadd.f32 0.0, %v1188
  %v1190 = vpop.f32.mrf.mxu0
  %v1191 = vadd.f32 0.0, %v1190
  %1192 = vmatmul.bf16.gmra.mxu0 %v1069
  %v1193 = vpop.f32.mrf.mxu0
  %v1194 = vadd.f32 0.0, %v1193
  %v1195 = vpop.f32.mrf.mxu0
  %v1196 = vadd.f32 0.0, %v1195
  %1197 = vmatmul.bf16.gmra.mxu0 %v1070
  %v1198 = vpop.f32.mrf.mxu0
  %v1199 = vadd.f32 0.0, %v1198
  %v1200 = vpop.f32.mrf.mxu0
  %v1201 = vadd.f32 0.0, %v1200
  %1202 = vmatmul.bf16.gmra.mxu0 %v1071
  %v1203 = vpop.f32.mrf.mxu0
  %v1204 = vadd.f32 0.0, %v1203
  %v1205 = vpop.f32.mrf.mxu0
  %v1206 = vadd.f32 0.0, %v1205
  %1207 = vmatmul.bf16.gmra.mxu0 %v1072
  %v1208 = vpop.f32.mrf.mxu0
  %v1209 = vadd.f32 0.0, %v1208
  %v1210 = vpop.f32.mrf.mxu0
  %v1211 = vadd.f32 0.0, %v1210
  %1212 = vmatmul.bf16.gmra.mxu0 %v1073
  %v1213 = vpop.f32.mrf.mxu0
  %v1214 = vadd.f32 0.0, %v1213
  %v1215 = vpop.f32.mrf.mxu0
  %v1216 = vadd.f32 0.0, %v1215
  %1217 = vmatmul.bf16.gmra.mxu0 %v1074
  %v1218 = vpop.f32.mrf.mxu0
  %v1219 = vadd.f32 0.0, %v1218
  %v1220 = vpop.f32.mrf.mxu0
  %v1221 = vadd.f32 0.0, %v1220
  %1222 = vmatmul.bf16.gmra.mxu0 %v1075
  %v1223 = vpop.f32.mrf.mxu0
  %v1224 = vadd.f32 0.0, %v1223
  %v1225 = vpop.f32.mrf.mxu0
  %v1226 = vadd.f32 0.0, %v1225
  %1227 = vmatmul.bf16.gmra.mxu0 %v1076
  %v1228 = vpop.f32.mrf.mxu0
  %v1229 = vadd.f32 0.0, %v1228
  %v1230 = vpop.f32.mrf.mxu0
  %v1231 = vadd.f32 0.0, %v1230
  %1232 = vmatmul.bf16.gmra.mxu0 %v1077
  %v1233 = vpop.f32.mrf.mxu0
  %v1234 = vadd.f32 0.0, %v1233
  %v1235 = vpop.f32.mrf.mxu0
  %v1236 = vadd.f32 0.0, %v1235
  %1237 = vmatmul.bf16.gmra.mxu0 %v1078
  %v1238 = vpop.f32.mrf.mxu0
  %v1239 = vadd.f32 0.0, %v1238
  %v1240 = vpop.f32.mrf.mxu0
  %v1241 = vadd.f32 0.0, %v1240
  %1242 = vmatmul.bf16.gmra.mxu0 %v1079
  %v1243 = vpop.f32.mrf.mxu0
  %v1244 = vadd.f32 0.0, %v1243
  %v1245 = vpop.f32.mrf.mxu0
  %v1246 = vadd.f32 0.0, %v1245
  %1247 = vmatmul.bf16.gmra.mxu0 %v1080
  %v1248 = vpop.f32.mrf.mxu0
  %v1249 = vadd.f32 0.0, %v1248
  %v1250 = vpop.f32.mrf.mxu0
  %v1251 = vadd.f32 0.0, %v1250
  %1252 = vmatmul.bf16.gmra.mxu0 %v1081
  %v1253 = vpop.f32.mrf.mxu0
  %v1254 = vadd.f32 0.0, %v1253
  %v1255 = vpop.f32.mrf.mxu0
  %v1256 = vadd.f32 0.0, %v1255
  %1257 = vmatmul.bf16.gmra.mxu0 %v1082
  %v1258 = vpop.f32.mrf.mxu0
  %v1259 = vadd.f32 0.0, %v1258
  %v1260 = vpop.f32.mrf.mxu0
  %v1261 = vadd.f32 0.0, %v1260
  %1262 = vmatmul.bf16.gmra.mxu0 %v1083
  %v1263 = vpop.f32.mrf.mxu0
  %v1264 = vadd.f32 0.0, %v1263
  %v1265 = vpop.f32.mrf.mxu0
  %v1266 = vadd.f32 0.0, %v1265
  %1267 = vmatmul.bf16.gmra.mxu0 %v1084
  %v1268 = vpop.f32.mrf.mxu0
  %v1269 = vadd.f32 0.0, %v1268
  %v1270 = vpop.f32.mrf.mxu0
  %v1271 = vadd.f32 0.0, %v1270
  %1272 = vmatmul.bf16.gmra.mxu0 %v1085
  %v1273 = vpop.f32.mrf.mxu0
  %v1274 = vadd.f32 0.0, %v1273
  %v1275 = vpop.f32.mrf.mxu0
  %v1276 = vadd.f32 0.0, %v1275
  %1277 = vmatmul.bf16.gmra.mxu0 %v1086
  %v1278 = vpop.f32.mrf.mxu0
  %v1279 = vadd.f32 0.0, %v1278
  %v1280 = vpop.f32.mrf.mxu0
  %v1281 = vadd.f32 0.0, %v1280
  %1282 = vmatmul.bf16.gmra.mxu0 %v1087
  %v1283 = vpop.f32.mrf.mxu0
  %v1284 = vadd.f32 0.0, %v1283
  %v1285 = vpop.f32.mrf.mxu0
  %v1286 = vadd.f32 0.0, %v1285
  %1287 = vmatmul.bf16.gmra.mxu0 %v1088
  %v1288 = vpop.f32.mrf.mxu0
  %v1289 = vadd.f32 0.0, %v1288
  %v1290 = vpop.f32.mrf.mxu0
  %v1291 = vadd.f32 0.0, %v1290
  %1292 = vmatmul.bf16.gmra.mxu0 %v1089
  %v1293 = vpop.f32.mrf.mxu0
  %v1294 = vadd.f32 0.0, %v1293
  %v1295 = vpop.f32.mrf.mxu0
  %v1296 = vadd.f32 0.0, %v1295
  %1297 = vmatmul.bf16.gmra.mxu0 %v1090
  %v1298 = vpop.f32.mrf.mxu0
  %v1299 = vadd.f32 0.0, %v1298
  %v1300 = vpop.f32.mrf.mxu0
  %v1301 = vadd.f32 0.0, %v1300
  %1302 = vmatmul.bf16.gmra.mxu0 %v1091
  %v1303 = vpop.f32.mrf.mxu0
  %v1304 = vadd.f32 0.0, %v1303
  %v1305 = vpop.f32.mrf.mxu0
  %v1306 = vadd.f32 0.0, %v1305
  %1307 = vmatmul.bf16.gmra.mxu0 %v1092
  %v1308 = vpop.f32.mrf.mxu0
  %v1309 = vadd.f32 0.0, %v1308
  %v1310 = vpop.f32.mrf.mxu0
  %v1311 = vadd.f32 0.0, %v1310
  %1312 = vmatmul.bf16.gmra.mxu0 %v1093
  %v1313 = vpop.f32.mrf.mxu0
  %v1314 = vadd.f32 0.0, %v1313
  %v1315 = vpop.f32.mrf.mxu0
  %v1316 = vadd.f32 0.0, %v1315
  %1317 = vmatmul.bf16.gmra.mxu0 %v1094
  %v1318 = vpop.f32.mrf.mxu0
  %v1319 = vadd.f32 0.0, %v1318
  %v1320 = vpop.f32.mrf.mxu0
  %v1321 = vadd.f32 0.0, %v1320
  %1322 = vmatmul.bf16.gmra.mxu0 %v1095
  %v1323 = vpop.f32.mrf.mxu0
  %v1324 = vadd.f32 0.0, %v1323
  %v1325 = vpop.f32.mrf.mxu0
  %v1326 = vadd.f32 0.0, %v1325
  %1327 = vmatmul.bf16.gmra.mxu0 %v1096
  %v1328 = vpop.f32.mrf.mxu0
  %v1329 = vadd.f32 0.0, %v1328
  %v1330 = vpop.f32.mrf.mxu0
  %v1331 = vadd.f32 0.0, %v1330
  %1332 = vmatmul.bf16.gmra.mxu0 %v1097
  %v1333 = vpop.f32.mrf.mxu0
  %v1334 = vadd.f32 0.0, %v1333
  %v1335 = vpop.f32.mrf.mxu0
  %v1336 = vadd.f32 0.0, %v1335
  %1337 = vmatmul.bf16.gmra.mxu0 %v1098
  %v1338 = vpop.f32.mrf.mxu0
  %v1339 = vadd.f32 0.0, %v1338
  %v1340 = vpop.f32.mrf.mxu0
  %v1341 = vadd.f32 0.0, %v1340
  %1342 = vmatmul.bf16.gmra.mxu0 %v1099
  %v1343 = vpop.f32.mrf.mxu0
  %v1344 = vadd.f32 0.0, %v1343
  %v1345 = vpop.f32.mrf.mxu0
  %v1346 = vadd.f32 0.0, %v1345
  %1347 = vmatmul.bf16.gmra.mxu0 %v1100
  %v1348 = vpop.f32.mrf.mxu0
  %v1349 = vadd.f32 0.0, %v1348
  %v1350 = vpop.f32.mrf.mxu0
  %v1351 = vadd.f32 0.0, %v1350
  %1352 = vmatmul.bf16.gmra.mxu0 %v1101
  %v1353 = vpop.f32.mrf.mxu0
  %v1354 = vadd.f32 0.0, %v1353
  %v1355 = vpop.f32.mrf.mxu0
  %v1356 = vadd.f32 0.0, %v1355
  %1357 = vmatmul.bf16.gmra.mxu0 %v1102
  %v1358 = vpop.f32.mrf.mxu0
  %v1359 = vadd.f32 0.0, %v1358
  %v1360 = vpop.f32.mrf.mxu0
  %v1361 = vadd.f32 0.0, %v1360
  %1362 = vmatmul.bf16.gmra.mxu0 %v1103
  %v1363 = vpop.f32.mrf.mxu0
  %v1364 = vadd.f32 0.0, %v1363
  %v1365 = vpop.f32.mrf.mxu0
  %v1366 = vadd.f32 0.0, %v1365
  %1367 = vmatmul.bf16.gmra.mxu0 %v1104
  %v1368 = vpop.f32.mrf.mxu0
  %v1369 = vadd.f32 0.0, %v1368
  %v1370 = vpop.f32.mrf.mxu0
  %1371 = vdwg.mxu0
  %v1372 = vadd.f32 %v796, %v1179
  %v1373 = vadd.f32 %v798, %v1181
  %v1374 = vadd.f32 %v801, %v1184
  %v1375 = vadd.f32 %v803, %v1186
  %v1376 = vadd.f32 %v806, %v1189
  %v1377 = vadd.f32 %v808, %v1191
  %v1378 = vadd.f32 %v811, %v1194
  %v1379 = vadd.f32 %v813, %v1196
  %v1380 = vadd.f32 %v816, %v1199
  %v1381 = vadd.f32 %v818, %v1201
  %v1382 = vadd.f32 %v821, %v1204
  %v1383 = vadd.f32 %v823, %v1206
  %v1384 = vadd.f32 %v826, %v1209
  %v1385 = vadd.f32 %v828, %v1211
  %v1386 = vadd.f32 %v831, %v1214
  %v1387 = vadd.f32 %v833, %v1216
  %v1388 = vadd.f32 %v836, %v1219
  %v1389 = vadd.f32 %v838, %v1221
  %v1390 = vadd.f32 %v841, %v1224
  %v1391 = vadd.f32 %v843, %v1226
  %v1392 = vadd.f32 %v846, %v1229
  %v1393 = vadd.f32 %v848, %v1231
  %v1394 = vadd.f32 %v851, %v1234
  %v1395 = vadd.f32 %v853, %v1236
  %v1396 = vadd.f32 %v856, %v1239
  %v1397 = vadd.f32 %v858, %v1241
  %v1398 = vadd.f32 %v861, %v1244
  %v1399 = vadd.f32 %v863, %v1246
  %v1400 = vadd.f32 %v866, %v1249
  %v1401 = vadd.f32 %v868, %v1251
  %v1402 = vadd.f32 %v871, %v1254
  %v1403 = vadd.f32 %v873, %v1256
  %v1404 = vadd.f32 %v876, %v1259
  %v1405 = vadd.f32 %v878, %v1261
  %v1406 = vadd.f32 %v881, %v1264
  %v1407 = vadd.f32 %v883, %v1266
  %v1408 = vadd.f32 %v886, %v1269
  %v1409 = vadd.f32 %v888, %v1271
  %v1410 = vadd.f32 %v891, %v1274
  %v1411 = vadd.f32 %v893, %v1276
  %v1412 = vadd.f32 %v896, %v1279
  %v1413 = vadd.f32 %v898, %v1281
  %v1414 = vadd.f32 %v901, %v1284
  %v1415 = vadd.f32 %v903, %v1286
  %v1416 = vadd.f32 %v906, %v1289
  %v1417 = vadd.f32 %v908, %v1291
  %v1418 = vadd.f32 %v911, %v1294
  %v1419 = vadd.f32 %v913, %v1296
  %v1420 = vadd.f32 %v916, %v1299
  %v1421 = vadd.f32 %v918, %v1301
  %v1422 = vadd.f32 %v921, %v1304
  %v1423 = vadd.f32 %v923, %v1306
  %v1424 = vadd.f32 %v926, %v1309
  %v1425 = vadd.f32 %v928, %v1311
  %v1426 = vadd.f32 %v931, %v1314
  %v1427 = vadd.f32 %v933, %v1316
  %v1428 = vadd.f32 %v936, %v1319
  %v1429 = vadd.f32 %v938, %v1321
  %v1430 = vadd.f32 %v941, %v1324
  %v1431 = vadd.f32 %v943, %v1326
  %v1432 = vadd.f32 %v946, %v1329
  %v1433 = vadd.f32 %v948, %v1331
  %v1434 = vadd.f32 %v951, %v1334
  %v1435 = vadd.f32 %v953, %v1336
  %v1436 = vadd.f32 %v956, %v1339
  %v1437 = vadd.f32 %v958, %v1341
  %v1438 = vadd.f32 %v961, %v1344
  %v1439 = vadd.f32 %v963, %v1346
  %v1440 = vadd.f32 %v966, %v1349
  %v1441 = vadd.f32 %v968, %v1351
  %v1442 = vadd.f32 %v971, %v1354
  %v1443 = vadd.f32 %v973, %v1356
  %v1444 = vadd.f32 %v976, %v1359
  %v1445 = vadd.f32 %v978, %v1361
  %v1446 = vadd.f32 %v981, %v1364
  %v1447 = vadd.f32 %v983, %v1366
  %v1448 = vadd.f32 %v986, %v1369
  %v1449 = vld [vmem:[%s0 + $0x12] sm:$0xff]
  %v1450 = vld [vmem:[%s0 + $0x1a] sm:$0xff]
  %v1451 = vld [vmem:[%s0 + $0x22] sm:$0xff]
  %v1452 = vld [vmem:[%s0 + $0x2a] sm:$0xff]
  %v1453 = vld [vmem:[%s0 + $0x32] sm:$0xff]
  %v1454 = vld [vmem:[%s0 + $0x3a] sm:$0xff]
  %v1455 = vld [vmem:[%s0 + $0x42] sm:$0xff]
  %v1456 = vld [vmem:[%s0 + $0x4a] sm:$0xff]
  %v1457 = vld [vmem:[%s0 + $0x52] sm:$0xff]
  %v1458 = vld [vmem:[%s0 + $0x5a] sm:$0xff]
  %v1459 = vld [vmem:[%s0 + $0x62] sm:$0xff]
  %v1460 = vld [vmem:[%s0 + $0x6a] sm:$0xff]
  %v1461 = vld [vmem:[%s0 + $0x72] sm:$0xff]
  %v1462 = vld [vmem:[%s0 + $0x7a] sm:$0xff]
  %v1463 = vld [vmem:[%s0 + $0x82] sm:$0xff]
  %v1464 = vld [vmem:[%s0 + $0x8a] sm:$0xff]
  %v1465 = vld [vmem:[%s0 + $0x92] sm:$0xff]
  %v1466 = vld [vmem:[%s0 + $0x9a] sm:$0xff]
  %v1467 = vld [vmem:[%s0 + $0xa2] sm:$0xff]
  %v1468 = vld [vmem:[%s0 + $0xaa] sm:$0xff]
  %v1469 = vld [vmem:[%s0 + $0xb2] sm:$0xff]
  %v1470 = vld [vmem:[%s0 + $0xba] sm:$0xff]
  %v1471 = vld [vmem:[%s0 + $0xc2] sm:$0xff]
  %v1472 = vld [vmem:[%s0 + $0xca] sm:$0xff]
  %v1473 = vld [vmem:[%s0 + $0xd2] sm:$0xff]
  %v1474 = vld [vmem:[%s0 + $0xda] sm:$0xff]
  %v1475 = vld [vmem:[%s0 + $0xe2] sm:$0xff]
  %v1476 = vld [vmem:[%s0 + $0xea] sm:$0xff]
  %v1477 = vld [vmem:[%s0 + $0xf2] sm:$0xff]
  %v1478 = vld [vmem:[%s0 + $0xfa] sm:$0xff]
  %v1479 = vld [vmem:[%s0 + $0x102] sm:$0xff]
  %v1480 = vld [vmem:[%s0 + $0x10a] sm:$0xff]
  %v1481 = vld [vmem:[%s0 + $0x112] sm:$0xff]
  %v1482 = vld [vmem:[%s0 + $0x11a] sm:$0xff]
  %v1483 = vld [vmem:[%s0 + $0x122] sm:$0xff]
  %v1484 = vld [vmem:[%s0 + $0x12a] sm:$0xff]
  %v1485 = vld [vmem:[%s0 + $0x132] sm:$0xff]
  %v1486 = vld [vmem:[%s0 + $0x13a] sm:$0xff]
  %v1487 = vld [vmem:[%s0 + $0x142] sm:$0xff]
  %v1488 = vld [vmem:[%s0 + $0x14a] sm:$0xff]
  %v1489 = vld [vmem:[%s0 + $0x152] sm:$0xff]
  %v1490 = vld [vmem:[%s0 + $0x15a] sm:$0xff]
  %v1491 = vld [vmem:[%s0 + $0x162] sm:$0xff]
  %v1492 = vld [vmem:[%s0 + $0x16a] sm:$0xff]
  %v1493 = vld [vmem:[%s0 + $0x172] sm:$0xff]
  %v1494 = vld [vmem:[%s0 + $0x17a] sm:$0xff]
  %v1495 = vld [vmem:[%s0 + $0x182] sm:$0xff]
  %v1496 = vld [vmem:[%s0 + $0x18a] sm:$0xff]
  %v1497 = vld [vmem:[%s0 + $0x192] sm:$0xff]
  %v1498 = vld [vmem:[%s0 + $0x19a] sm:$0xff]
  %v1499 = vld [vmem:[%s0 + $0x1a2] sm:$0xff]
  %v1500 = vld [vmem:[%s0 + $0x1aa] sm:$0xff]
  %v1501 = vld [vmem:[%s0 + $0x1b2] sm:$0xff]
  %v1502 = vld [vmem:[%s0 + $0x1ba] sm:$0xff]
  %v1503 = vld [vmem:[%s0 + $0x1c2] sm:$0xff]
  %v1504 = vld [vmem:[%s0 + $0x1ca] sm:$0xff]
  %v1505 = vld [vmem:[%s0 + $0x1d2] sm:$0xff]
  %v1506 = vld [vmem:[%s0 + $0x1da] sm:$0xff]
  %v1507 = vld [vmem:[%s0 + $0x1e2] sm:$0xff]
  %v1508 = vld [vmem:[%s0 + $0x1ea] sm:$0xff]
  %v1509 = vld [vmem:[%s0 + $0x1f2] sm:$0xff]
  %v1510 = vld [vmem:[%s0 + $0x1fa] sm:$0xff]
  %v1511 = vld [vmem:[%s0 + $0x202] sm:$0xff]
  %v1512 = vld [vmem:[%s0 + $0x20a] sm:$0xff]
  %v1513 = vld [vmem:[%s0 + $0x212] sm:$0xff]
  %v1514 = vld [vmem:[%s0 + $0x21a] sm:$0xff]
  %v1515 = vld [vmem:[%s0 + $0x222] sm:$0xff]
  %v1516 = vld [vmem:[%s0 + $0x22a] sm:$0xff]
  %v1517 = vld [vmem:[%s0 + $0x232] sm:$0xff]
  %v1518 = vld [vmem:[%s0 + $0x23a] sm:$0xff]
  %v1519 = vld [vmem:[%s0 + $0x242] sm:$0xff]
  %v1520 = vld [vmem:[%s0 + $0x24a] sm:$0xff]
  %v1521 = vld [vmem:[%s0 + $0x252] sm:$0xff]
  %v1522 = vld [vmem:[%s0 + $0x25a] sm:$0xff]
  %v1523 = vld [vmem:[%s0 + $0x262] sm:$0xff]
  %v1524 = vld [vmem:[%s0 + $0x26a] sm:$0xff]
  %v1525 = vld [vmem:[%s0 + $0x272] sm:$0xff]
  %v1526 = vpack.c.bf16 %v1450, %v1449
  %v1527 = vpack.c.bf16 %v1452, %v1451
  %v1528 = vpack.c.bf16 %v1454, %v1453
  %v1529 = vpack.c.bf16 %v1456, %v1455
  %v1530 = vpack.c.bf16 %v1458, %v1457
  %v1531 = vpack.c.bf16 %v1460, %v1459
  %v1532 = vpack.c.bf16 %v1462, %v1461
  %v1533 = vpack.c.bf16 %v1464, %v1463
  %v1534 = vpack.c.bf16 %v1466, %v1465
  %v1535 = vpack.c.bf16 %v1468, %v1467
  %v1536 = vpack.c.bf16 %v1470, %v1469
  %v1537 = vpack.c.bf16 %v1472, %v1471
  %v1538 = vpack.c.bf16 %v1474, %v1473
  %v1539 = vpack.c.bf16 %v1476, %v1475
  %v1540 = vpack.c.bf16 %v1478, %v1477
  %v1541 = vpack.c.bf16 %v1480, %v1479
  %v1542 = vpack.c.bf16 %v1482, %v1481
  %v1543 = vpack.c.bf16 %v1484, %v1483
  %v1544 = vpack.c.bf16 %v1486, %v1485
  %v1545 = vpack.c.bf16 %v1488, %v1487
  %v1546 = vpack.c.bf16 %v1490, %v1489
  %v1547 = vpack.c.bf16 %v1492, %v1491
  %v1548 = vpack.c.bf16 %v1494, %v1493
  %v1549 = vpack.c.bf16 %v1496, %v1495
  %v1550 = vpack.c.bf16 %v1498, %v1497
  %v1551 = vpack.c.bf16 %v1500, %v1499
  %v1552 = vpack.c.bf16 %v1502, %v1501
  %v1553 = vpack.c.bf16 %v1504, %v1503
  %v1554 = vpack.c.bf16 %v1506, %v1505
  %v1555 = vpack.c.bf16 %v1508, %v1507
  %v1556 = vpack.c.bf16 %v1510, %v1509
  %v1557 = vpack.c.bf16 %v1512, %v1511
  %v1558 = vpack.c.bf16 %v1514, %v1513
  %v1559 = vpack.c.bf16 %v1516, %v1515
  %v1560 = vpack.c.bf16 %v1518, %v1517
  %v1561 = vpack.c.bf16 %v1520, %v1519
  %v1562 = vpack.c.bf16 %v1522, %v1521
  %v1563 = vpack.c.bf16 %v1524, %v1523
  %v1564 = vpack.c.bf16 %v1525, %v1525
  %v1565 = vld [vmem:[%s1 + $0xc0] sm:$0xf]
  %v1566 = vld [vmem:[%s1 + $0xc4] sm:$0xf]
  %v1567 = vld [vmem:[%s1 + $0xc8] sm:$0xf]
  %v1568 = vld [vmem:[%s1 + $0xcc] sm:$0xf]
  %v1569 = vld [vmem:[%s1 + $0xd0] sm:$0xf]
  %v1570 = vld [vmem:[%s1 + $0xd4] sm:$0xf]
  %v1571 = vld [vmem:[%s1 + $0xd8] sm:$0xf]
  %v1572 = vld [vmem:[%s1 + $0xdc] sm:$0xf]
  %v1573 = vld [vmem:[%s1 + $0xe0] sm:$0xf]
  %v1574 = vld [vmem:[%s1 + $0xe4] sm:$0xf]
  %v1575 = vld [vmem:[%s1 + $0xe8] sm:$0xf]
  %v1576 = vld [vmem:[%s1 + $0xec] sm:$0xf]
  %v1577 = vld [vmem:[%s1 + $0xf0] sm:$0xf]
  %v1578 = vld [vmem:[%s1 + $0xf4] sm:$0xf]
  %v1579 = vld [vmem:[%s1 + $0xf8] sm:$0xf]
  %v1580 = vld [vmem:[%s1 + $0xfc] sm:$0xf]
  %v1597 = vunpack.c.l.b16 %v1565
  %v1598 = vunpack.c.l.b16 %v1566
  %v1599 = vunpack.c.l.b16 %v1567
  %v1600 = vunpack.c.l.b16 %v1568
  %v1601 = vunpack.c.l.b16 %v1569
  %v1602 = vunpack.c.l.b16 %v1570
  %v1603 = vunpack.c.l.b16 %v1571
  %v1604 = vunpack.c.l.b16 %v1572
  %v1605 = vunpack.c.l.b16 %v1573
  %v1606 = vunpack.c.l.b16 %v1574
  %v1607 = vunpack.c.l.b16 %v1575
  %v1608 = vunpack.c.l.b16 %v1576
  %v1609 = vunpack.c.l.b16 %v1577
  %v1610 = vunpack.c.l.b16 %v1578
  %v1611 = vunpack.c.l.b16 %v1579
  %v1612 = vunpack.c.l.b16 %v1580
  %v1613 = vpack.c.b16 %v1598, %v1597
  %v1614 = vpack.c.b16 %v1600, %v1599
  %v1615 = vpack.c.b16 %v1602, %v1601
  %v1616 = vpack.c.b16 %v1604, %v1603
  %v1617 = vpack.c.b16 %v1606, %v1605
  %v1618 = vpack.c.b16 %v1608, %v1607
  %v1619 = vpack.c.b16 %v1610, %v1609
  %v1620 = vpack.c.b16 %v1612, %v1611
  %1629 = vmatpush.bf16.msra.mxu0 %v1620
  %1630 = vmatpush.bf16.msra.mxu0 %v1619
  %1631 = vmatpush.bf16.msra.mxu0 %v1618
  %1632 = vmatpush.bf16.msra.mxu0 %v1617
  %1633 = vmatpush.bf16.msra.mxu0 %v1616
  %1634 = vmatpush.bf16.msra.mxu0 %v1615
  %1635 = vmatpush.bf16.msra.mxu0 %v1614
  %1636 = vmatpush.bf16.msra.mxu0 %v1613
  %1637 = vmatmul.bf16.gmra.mxu0 %v1526
  %v1638 = vpop.f32.mrf.mxu0
  %v1639 = vadd.f32 0.0, %v1638
  %v1640 = vpop.f32.mrf.mxu0
  %v1641 = vadd.f32 0.0, %v1640
  %1642 = vmatmul.bf16.gmra.mxu0 %v1527
  %v1643 = vpop.f32.mrf.mxu0
  %v1644 = vadd.f32 0.0, %v1643
  %v1645 = vpop.f32.mrf.mxu0
  %v1646 = vadd.f32 0.0, %v1645
  %1647 = vmatmul.bf16.gmra.mxu0 %v1528
  %v1648 = vpop.f32.mrf.mxu0
  %v1649 = vadd.f32 0.0, %v1648
  %v1650 = vpop.f32.mrf.mxu0
  %v1651 = vadd.f32 0.0, %v1650
  %1652 = vmatmul.bf16.gmra.mxu0 %v1529
  %v1653 = vpop.f32.mrf.mxu0
  %v1654 = vadd.f32 0.0, %v1653
  %v1655 = vpop.f32.mrf.mxu0
  %v1656 = vadd.f32 0.0, %v1655
  %1657 = vmatmul.bf16.gmra.mxu0 %v1530
  %v1658 = vpop.f32.mrf.mxu0
  %v1659 = vadd.f32 0.0, %v1658
  %v1660 = vpop.f32.mrf.mxu0
  %v1661 = vadd.f32 0.0, %v1660
  %1662 = vmatmul.bf16.gmra.mxu0 %v1531
  %v1663 = vpop.f32.mrf.mxu0
  %v1664 = vadd.f32 0.0, %v1663
  %v1665 = vpop.f32.mrf.mxu0
  %v1666 = vadd.f32 0.0, %v1665
  %1667 = vmatmul.bf16.gmra.mxu0 %v1532
  %v1668 = vpop.f32.mrf.mxu0
  %v1669 = vadd.f32 0.0, %v1668
  %v1670 = vpop.f32.mrf.mxu0
  %v1671 = vadd.f32 0.0, %v1670
  %1672 = vmatmul.bf16.gmra.mxu0 %v1533
  %v1673 = vpop.f32.mrf.mxu0
  %v1674 = vadd.f32 0.0, %v1673
  %v1675 = vpop.f32.mrf.mxu0
  %v1676 = vadd.f32 0.0, %v1675
  %1677 = vmatmul.bf16.gmra.mxu0 %v1534
  %v1678 = vpop.f32.mrf.mxu0
  %v1679 = vadd.f32 0.0, %v1678
  %v1680 = vpop.f32.mrf.mxu0
  %v1681 = vadd.f32 0.0, %v1680
  %1682 = vmatmul.bf16.gmra.mxu0 %v1535
  %v1683 = vpop.f32.mrf.mxu0
  %v1684 = vadd.f32 0.0, %v1683
  %v1685 = vpop.f32.mrf.mxu0
  %v1686 = vadd.f32 0.0, %v1685
  %1687 = vmatmul.bf16.gmra.mxu0 %v1536
  %v1688 = vpop.f32.mrf.mxu0
  %v1689 = vadd.f32 0.0, %v1688
  %v1690 = vpop.f32.mrf.mxu0
  %v1691 = vadd.f32 0.0, %v1690
  %1692 = vmatmul.bf16.gmra.mxu0 %v1537
  %v1693 = vpop.f32.mrf.mxu0
  %v1694 = vadd.f32 0.0, %v1693
  %v1695 = vpop.f32.mrf.mxu0
  %v1696 = vadd.f32 0.0, %v1695
  %1697 = vmatmul.bf16.gmra.mxu0 %v1538
  %v1698 = vpop.f32.mrf.mxu0
  %v1699 = vadd.f32 0.0, %v1698
  %v1700 = vpop.f32.mrf.mxu0
  %v1701 = vadd.f32 0.0, %v1700
  %1702 = vmatmul.bf16.gmra.mxu0 %v1539
  %v1703 = vpop.f32.mrf.mxu0
  %v1704 = vadd.f32 0.0, %v1703
  %v1705 = vpop.f32.mrf.mxu0
  %v1706 = vadd.f32 0.0, %v1705
  %1707 = vmatmul.bf16.gmra.mxu0 %v1540
  %v1708 = vpop.f32.mrf.mxu0
  %v1709 = vadd.f32 0.0, %v1708
  %v1710 = vpop.f32.mrf.mxu0
  %v1711 = vadd.f32 0.0, %v1710
  %1712 = vmatmul.bf16.gmra.mxu0 %v1541
  %v1713 = vpop.f32.mrf.mxu0
  %v1714 = vadd.f32 0.0, %v1713
  %v1715 = vpop.f32.mrf.mxu0
  %v1716 = vadd.f32 0.0, %v1715
  %1717 = vmatmul.bf16.gmra.mxu0 %v1542
  %v1718 = vpop.f32.mrf.mxu0
  %v1719 = vadd.f32 0.0, %v1718
  %v1720 = vpop.f32.mrf.mxu0
  %v1721 = vadd.f32 0.0, %v1720
  %1722 = vmatmul.bf16.gmra.mxu0 %v1543
  %v1723 = vpop.f32.mrf.mxu0
  %v1724 = vadd.f32 0.0, %v1723
  %v1725 = vpop.f32.mrf.mxu0
  %v1726 = vadd.f32 0.0, %v1725
  %1727 = vmatmul.bf16.gmra.mxu0 %v1544
  %v1728 = vpop.f32.mrf.mxu0
  %v1729 = vadd.f32 0.0, %v1728
  %v1730 = vpop.f32.mrf.mxu0
  %v1731 = vadd.f32 0.0, %v1730
  %1732 = vmatmul.bf16.gmra.mxu0 %v1545
  %v1733 = vpop.f32.mrf.mxu0
  %v1734 = vadd.f32 0.0, %v1733
  %v1735 = vpop.f32.mrf.mxu0
  %v1736 = vadd.f32 0.0, %v1735
  %1737 = vmatmul.bf16.gmra.mxu0 %v1546
  %v1738 = vpop.f32.mrf.mxu0
  %v1739 = vadd.f32 0.0, %v1738
  %v1740 = vpop.f32.mrf.mxu0
  %v1741 = vadd.f32 0.0, %v1740
  %1742 = vmatmul.bf16.gmra.mxu0 %v1547
  %v1743 = vpop.f32.mrf.mxu0
  %v1744 = vadd.f32 0.0, %v1743
  %v1745 = vpop.f32.mrf.mxu0
  %v1746 = vadd.f32 0.0, %v1745
  %1747 = vmatmul.bf16.gmra.mxu0 %v1548
  %v1748 = vpop.f32.mrf.mxu0
  %v1749 = vadd.f32 0.0, %v1748
  %v1750 = vpop.f32.mrf.mxu0
  %v1751 = vadd.f32 0.0, %v1750
  %1752 = vmatmul.bf16.gmra.mxu0 %v1549
  %v1753 = vpop.f32.mrf.mxu0
  %v1754 = vadd.f32 0.0, %v1753
  %v1755 = vpop.f32.mrf.mxu0
  %v1756 = vadd.f32 0.0, %v1755
  %1757 = vmatmul.bf16.gmra.mxu0 %v1550
  %v1758 = vpop.f32.mrf.mxu0
  %v1759 = vadd.f32 0.0, %v1758
  %v1760 = vpop.f32.mrf.mxu0
  %v1761 = vadd.f32 0.0, %v1760
  %1762 = vmatmul.bf16.gmra.mxu0 %v1551
  %v1763 = vpop.f32.mrf.mxu0
  %v1764 = vadd.f32 0.0, %v1763
  %v1765 = vpop.f32.mrf.mxu0
  %v1766 = vadd.f32 0.0, %v1765
  %1767 = vmatmul.bf16.gmra.mxu0 %v1552
  %v1768 = vpop.f32.mrf.mxu0
  %v1769 = vadd.f32 0.0, %v1768
  %v1770 = vpop.f32.mrf.mxu0
  %v1771 = vadd.f32 0.0, %v1770
  %1772 = vmatmul.bf16.gmra.mxu0 %v1553
  %v1773 = vpop.f32.mrf.mxu0
  %v1774 = vadd.f32 0.0, %v1773
  %v1775 = vpop.f32.mrf.mxu0
  %v1776 = vadd.f32 0.0, %v1775
  %1777 = vmatmul.bf16.gmra.mxu0 %v1554
  %v1778 = vpop.f32.mrf.mxu0
  %v1779 = vadd.f32 0.0, %v1778
  %v1780 = vpop.f32.mrf.mxu0
  %v1781 = vadd.f32 0.0, %v1780
  %1782 = vmatmul.bf16.gmra.mxu0 %v1555
  %v1783 = vpop.f32.mrf.mxu0
  %v1784 = vadd.f32 0.0, %v1783
  %v1785 = vpop.f32.mrf.mxu0
  %v1786 = vadd.f32 0.0, %v1785
  %1787 = vmatmul.bf16.gmra.mxu0 %v1556
  %v1788 = vpop.f32.mrf.mxu0
  %v1789 = vadd.f32 0.0, %v1788
  %v1790 = vpop.f32.mrf.mxu0
  %v1791 = vadd.f32 0.0, %v1790
  %1792 = vmatmul.bf16.gmra.mxu0 %v1557
  %v1793 = vpop.f32.mrf.mxu0
  %v1794 = vadd.f32 0.0, %v1793
  %v1795 = vpop.f32.mrf.mxu0
  %v1796 = vadd.f32 0.0, %v1795
  %1797 = vmatmul.bf16.gmra.mxu0 %v1558
  %v1798 = vpop.f32.mrf.mxu0
  %v1799 = vadd.f32 0.0, %v1798
  %v1800 = vpop.f32.mrf.mxu0
  %v1801 = vadd.f32 0.0, %v1800
  %1802 = vmatmul.bf16.gmra.mxu0 %v1559
  %v1803 = vpop.f32.mrf.mxu0
  %v1804 = vadd.f32 0.0, %v1803
  %v1805 = vpop.f32.mrf.mxu0
  %v1806 = vadd.f32 0.0, %v1805
  %1807 = vmatmul.bf16.gmra.mxu0 %v1560
  %v1808 = vpop.f32.mrf.mxu0
  %v1809 = vadd.f32 0.0, %v1808
  %v1810 = vpop.f32.mrf.mxu0
  %v1811 = vadd.f32 0.0, %v1810
  %1812 = vmatmul.bf16.gmra.mxu0 %v1561
  %v1813 = vpop.f32.mrf.mxu0
  %v1814 = vadd.f32 0.0, %v1813
  %v1815 = vpop.f32.mrf.mxu0
  %v1816 = vadd.f32 0.0, %v1815
  %1817 = vmatmul.bf16.gmra.mxu0 %v1562
  %v1818 = vpop.f32.mrf.mxu0
  %v1819 = vadd.f32 0.0, %v1818
  %v1820 = vpop.f32.mrf.mxu0
  %v1821 = vadd.f32 0.0, %v1820
  %1822 = vmatmul.bf16.gmra.mxu0 %v1563
  %v1823 = vpop.f32.mrf.mxu0
  %v1824 = vadd.f32 0.0, %v1823
  %v1825 = vpop.f32.mrf.mxu0
  %v1826 = vadd.f32 0.0, %v1825
  %1827 = vmatmul.bf16.gmra.mxu0 %v1564
  %v1828 = vpop.f32.mrf.mxu0
  %v1829 = vadd.f32 0.0, %v1828
  %v1830 = vpop.f32.mrf.mxu0
  %1831 = vdwg.mxu0
  %v1832 = vadd.f32 %v1372, %v1639
  %v1833 = vadd.f32 %v1373, %v1641
  %v1834 = vadd.f32 %v1374, %v1644
  %v1835 = vadd.f32 %v1375, %v1646
  %v1836 = vadd.f32 %v1376, %v1649
  %v1837 = vadd.f32 %v1377, %v1651
  %v1838 = vadd.f32 %v1378, %v1654
  %v1839 = vadd.f32 %v1379, %v1656
  %v1840 = vadd.f32 %v1380, %v1659
  %v1841 = vadd.f32 %v1381, %v1661
  %v1842 = vadd.f32 %v1382, %v1664
  %v1843 = vadd.f32 %v1383, %v1666
  %v1844 = vadd.f32 %v1384, %v1669
  %v1845 = vadd.f32 %v1385, %v1671
  %v1846 = vadd.f32 %v1386, %v1674
  %v1847 = vadd.f32 %v1387, %v1676
  %v1848 = vadd.f32 %v1388, %v1679
  %v1849 = vadd.f32 %v1389, %v1681
  %v1850 = vadd.f32 %v1390, %v1684
  %v1851 = vadd.f32 %v1391, %v1686
  %v1852 = vadd.f32 %v1392, %v1689
  %v1853 = vadd.f32 %v1393, %v1691
  %v1854 = vadd.f32 %v1394, %v1694
  %v1855 = vadd.f32 %v1395, %v1696
  %v1856 = vadd.f32 %v1396, %v1699
  %v1857 = vadd.f32 %v1397, %v1701
  %v1858 = vadd.f32 %v1398, %v1704
  %v1859 = vadd.f32 %v1399, %v1706
  %v1860 = vadd.f32 %v1400, %v1709
  %v1861 = vadd.f32 %v1401, %v1711
  %v1862 = vadd.f32 %v1402, %v1714
  %v1863 = vadd.f32 %v1403, %v1716
  %v1864 = vadd.f32 %v1404, %v1719
  %v1865 = vadd.f32 %v1405, %v1721
  %v1866 = vadd.f32 %v1406, %v1724
  %v1867 = vadd.f32 %v1407, %v1726
  %v1868 = vadd.f32 %v1408, %v1729
  %v1869 = vadd.f32 %v1409, %v1731
  %v1870 = vadd.f32 %v1410, %v1734
  %v1871 = vadd.f32 %v1411, %v1736
  %v1872 = vadd.f32 %v1412, %v1739
  %v1873 = vadd.f32 %v1413, %v1741
  %v1874 = vadd.f32 %v1414, %v1744
  %v1875 = vadd.f32 %v1415, %v1746
  %v1876 = vadd.f32 %v1416, %v1749
  %v1877 = vadd.f32 %v1417, %v1751
  %v1878 = vadd.f32 %v1418, %v1754
  %v1879 = vadd.f32 %v1419, %v1756
  %v1880 = vadd.f32 %v1420, %v1759
  %v1881 = vadd.f32 %v1421, %v1761
  %v1882 = vadd.f32 %v1422, %v1764
  %v1883 = vadd.f32 %v1423, %v1766
  %v1884 = vadd.f32 %v1424, %v1769
  %v1885 = vadd.f32 %v1425, %v1771
  %v1886 = vadd.f32 %v1426, %v1774
  %v1887 = vadd.f32 %v1427, %v1776
  %v1888 = vadd.f32 %v1428, %v1779
  %v1889 = vadd.f32 %v1429, %v1781
  %v1890 = vadd.f32 %v1430, %v1784
  %v1891 = vadd.f32 %v1431, %v1786
  %v1892 = vadd.f32 %v1432, %v1789
  %v1893 = vadd.f32 %v1433, %v1791
  %v1894 = vadd.f32 %v1434, %v1794
  %v1895 = vadd.f32 %v1435, %v1796
  %v1896 = vadd.f32 %v1436, %v1799
  %v1897 = vadd.f32 %v1437, %v1801
  %v1898 = vadd.f32 %v1438, %v1804
  %v1899 = vadd.f32 %v1439, %v1806
  %v1900 = vadd.f32 %v1440, %v1809
  %v1901 = vadd.f32 %v1441, %v1811
  %v1902 = vadd.f32 %v1442, %v1814
  %v1903 = vadd.f32 %v1443, %v1816
  %v1904 = vadd.f32 %v1444, %v1819
  %v1905 = vadd.f32 %v1445, %v1821
  %v1906 = vadd.f32 %v1446, %v1824
  %v1907 = vadd.f32 %v1447, %v1826
  %v1908 = vadd.f32 %v1448, %v1829
  %v1909 = vld [vmem:[%s1 + $0x100] sm:$0xf]
  %v1910 = vld [vmem:[%s1 + $0x104] sm:$0xf]
  %v1911 = vld [vmem:[%s1 + $0x108] sm:$0xf]
  %v1912 = vld [vmem:[%s1 + $0x10c] sm:$0xf]
  %v1913 = vld [vmem:[%s1 + $0x110] sm:$0xf]
  %v1914 = vld [vmem:[%s1 + $0x114] sm:$0xf]
  %v1915 = vld [vmem:[%s1 + $0x118] sm:$0xf]
  %v1916 = vld [vmem:[%s1 + $0x11c] sm:$0xf]
  %v1917 = vld [vmem:[%s1 + $0x120] sm:$0xf]
  %v1918 = vld [vmem:[%s1 + $0x124] sm:$0xf]
  %v1919 = vld [vmem:[%s1 + $0x128] sm:$0xf]
  %v1920 = vld [vmem:[%s1 + $0x12c] sm:$0xf]
  %v1921 = vld [vmem:[%s1 + $0x130] sm:$0xf]
  %v1922 = vld [vmem:[%s1 + $0x134] sm:$0xf]
  %v1923 = vld [vmem:[%s1 + $0x138] sm:$0xf]
  %v1924 = vld [vmem:[%s1 + $0x13c] sm:$0xf]
  %v1941 = vunpack.c.l.b16 %v1909
  %v1942 = vunpack.c.l.b16 %v1910
  %v1943 = vunpack.c.l.b16 %v1911
  %v1944 = vunpack.c.l.b16 %v1912
  %v1945 = vunpack.c.l.b16 %v1913
  %v1946 = vunpack.c.l.b16 %v1914
  %v1947 = vunpack.c.l.b16 %v1915
  %v1948 = vunpack.c.l.b16 %v1916
  %v1949 = vunpack.c.l.b16 %v1917
  %v1950 = vunpack.c.l.b16 %v1918
  %v1951 = vunpack.c.l.b16 %v1919
  %v1952 = vunpack.c.l.b16 %v1920
  %v1953 = vunpack.c.l.b16 %v1921
  %v1954 = vunpack.c.l.b16 %v1922
  %v1955 = vunpack.c.l.b16 %v1923
  %v1956 = vunpack.c.l.b16 %v1924
  %v1957 = vpack.c.b16 %v1942, %v1941
  %v1958 = vpack.c.b16 %v1944, %v1943
  %v1959 = vpack.c.b16 %v1946, %v1945
  %v1960 = vpack.c.b16 %v1948, %v1947
  %v1961 = vpack.c.b16 %v1950, %v1949
  %v1962 = vpack.c.b16 %v1952, %v1951
  %v1963 = vpack.c.b16 %v1954, %v1953
  %v1964 = vpack.c.b16 %v1956, %v1955
  %1973 = vmatpush.bf16.msra.mxu0 %v1964
  %1974 = vmatpush.bf16.msra.mxu0 %v1963
  %1975 = vmatpush.bf16.msra.mxu0 %v1962
  %1976 = vmatpush.bf16.msra.mxu0 %v1961
  %1977 = vmatpush.bf16.msra.mxu0 %v1960
  %1978 = vmatpush.bf16.msra.mxu0 %v1959
  %1979 = vmatpush.bf16.msra.mxu0 %v1958
  %1980 = vmatpush.bf16.msra.mxu0 %v1957
  %1981 = vmatmul.bf16.gmra.mxu0 %v184
  %v1982 = vpop.f32.mrf.mxu0
  %v1983 = vadd.f32 0.0, %v1982
  %v1984 = vpop.f32.mrf.mxu0
  %v1985 = vadd.f32 0.0, %v1984
  %1986 = vmatmul.bf16.gmra.mxu0 %v185
  %v1987 = vpop.f32.mrf.mxu0
  %v1988 = vadd.f32 0.0, %v1987
  %v1989 = vpop.f32.mrf.mxu0
  %v1990 = vadd.f32 0.0, %v1989
  %1991 = vmatmul.bf16.gmra.mxu0 %v186
  %v1992 = vpop.f32.mrf.mxu0
  %v1993 = vadd.f32 0.0, %v1992
  %v1994 = vpop.f32.mrf.mxu0
  %v1995 = vadd.f32 0.0, %v1994
  %1996 = vmatmul.bf16.gmra.mxu0 %v187
  %v1997 = vpop.f32.mrf.mxu0
  %v1998 = vadd.f32 0.0, %v1997
  %v1999 = vpop.f32.mrf.mxu0
  %v2000 = vadd.f32 0.0, %v1999
  %2001 = vmatmul.bf16.gmra.mxu0 %v188
  %v2002 = vpop.f32.mrf.mxu0
  %v2003 = vadd.f32 0.0, %v2002
  %v2004 = vpop.f32.mrf.mxu0
  %v2005 = vadd.f32 0.0, %v2004
  %2006 = vmatmul.bf16.gmra.mxu0 %v189
  %v2007 = vpop.f32.mrf.mxu0
  %v2008 = vadd.f32 0.0, %v2007
  %v2009 = vpop.f32.mrf.mxu0
  %v2010 = vadd.f32 0.0, %v2009
  %2011 = vmatmul.bf16.gmra.mxu0 %v190
  %v2012 = vpop.f32.mrf.mxu0
  %v2013 = vadd.f32 0.0, %v2012
  %v2014 = vpop.f32.mrf.mxu0
  %v2015 = vadd.f32 0.0, %v2014
  %2016 = vmatmul.bf16.gmra.mxu0 %v191
  %v2017 = vpop.f32.mrf.mxu0
  %v2018 = vadd.f32 0.0, %v2017
  %v2019 = vpop.f32.mrf.mxu0
  %v2020 = vadd.f32 0.0, %v2019
  %2021 = vmatmul.bf16.gmra.mxu0 %v192
  %v2022 = vpop.f32.mrf.mxu0
  %v2023 = vadd.f32 0.0, %v2022
  %v2024 = vpop.f32.mrf.mxu0
  %v2025 = vadd.f32 0.0, %v2024
  %2026 = vmatmul.bf16.gmra.mxu0 %v193
  %v2027 = vpop.f32.mrf.mxu0
  %v2028 = vadd.f32 0.0, %v2027
  %v2029 = vpop.f32.mrf.mxu0
  %v2030 = vadd.f32 0.0, %v2029
  %2031 = vmatmul.bf16.gmra.mxu0 %v194
  %v2032 = vpop.f32.mrf.mxu0
  %v2033 = vadd.f32 0.0, %v2032
  %v2034 = vpop.f32.mrf.mxu0
  %v2035 = vadd.f32 0.0, %v2034
  %2036 = vmatmul.bf16.gmra.mxu0 %v195
  %v2037 = vpop.f32.mrf.mxu0
  %v2038 = vadd.f32 0.0, %v2037
  %v2039 = vpop.f32.mrf.mxu0
  %v2040 = vadd.f32 0.0, %v2039
  %2041 = vmatmul.bf16.gmra.mxu0 %v196
  %v2042 = vpop.f32.mrf.mxu0
  %v2043 = vadd.f32 0.0, %v2042
  %v2044 = vpop.f32.mrf.mxu0
  %v2045 = vadd.f32 0.0, %v2044
  %2046 = vmatmul.bf16.gmra.mxu0 %v197
  %v2047 = vpop.f32.mrf.mxu0
  %v2048 = vadd.f32 0.0, %v2047
  %v2049 = vpop.f32.mrf.mxu0
  %v2050 = vadd.f32 0.0, %v2049
  %2051 = vmatmul.bf16.gmra.mxu0 %v198
  %v2052 = vpop.f32.mrf.mxu0
  %v2053 = vadd.f32 0.0, %v2052
  %v2054 = vpop.f32.mrf.mxu0
  %v2055 = vadd.f32 0.0, %v2054
  %2056 = vmatmul.bf16.gmra.mxu0 %v199
  %v2057 = vpop.f32.mrf.mxu0
  %v2058 = vadd.f32 0.0, %v2057
  %v2059 = vpop.f32.mrf.mxu0
  %v2060 = vadd.f32 0.0, %v2059
  %2061 = vmatmul.bf16.gmra.mxu0 %v200
  %v2062 = vpop.f32.mrf.mxu0
  %v2063 = vadd.f32 0.0, %v2062
  %v2064 = vpop.f32.mrf.mxu0
  %v2065 = vadd.f32 0.0, %v2064
  %2066 = vmatmul.bf16.gmra.mxu0 %v201
  %v2067 = vpop.f32.mrf.mxu0
  %v2068 = vadd.f32 0.0, %v2067
  %v2069 = vpop.f32.mrf.mxu0
  %v2070 = vadd.f32 0.0, %v2069
  %2071 = vmatmul.bf16.gmra.mxu0 %v202
  %v2072 = vpop.f32.mrf.mxu0
  %v2073 = vadd.f32 0.0, %v2072
  %v2074 = vpop.f32.mrf.mxu0
  %v2075 = vadd.f32 0.0, %v2074
  %2076 = vmatmul.bf16.gmra.mxu0 %v203
  %v2077 = vpop.f32.mrf.mxu0
  %v2078 = vadd.f32 0.0, %v2077
  %v2079 = vpop.f32.mrf.mxu0
  %v2080 = vadd.f32 0.0, %v2079
  %2081 = vmatmul.bf16.gmra.mxu0 %v204
  %v2082 = vpop.f32.mrf.mxu0
  %v2083 = vadd.f32 0.0, %v2082
  %v2084 = vpop.f32.mrf.mxu0
  %v2085 = vadd.f32 0.0, %v2084
  %2086 = vmatmul.bf16.gmra.mxu0 %v205
  %v2087 = vpop.f32.mrf.mxu0
  %v2088 = vadd.f32 0.0, %v2087
  %v2089 = vpop.f32.mrf.mxu0
  %v2090 = vadd.f32 0.0, %v2089
  %2091 = vmatmul.bf16.gmra.mxu0 %v206
  %v2092 = vpop.f32.mrf.mxu0
  %v2093 = vadd.f32 0.0, %v2092
  %v2094 = vpop.f32.mrf.mxu0
  %v2095 = vadd.f32 0.0, %v2094
  %2096 = vmatmul.bf16.gmra.mxu0 %v207
  %v2097 = vpop.f32.mrf.mxu0
  %v2098 = vadd.f32 0.0, %v2097
  %v2099 = vpop.f32.mrf.mxu0
  %v2100 = vadd.f32 0.0, %v2099
  %2101 = vmatmul.bf16.gmra.mxu0 %v208
  %v2102 = vpop.f32.mrf.mxu0
  %v2103 = vadd.f32 0.0, %v2102
  %v2104 = vpop.f32.mrf.mxu0
  %v2105 = vadd.f32 0.0, %v2104
  %2106 = vmatmul.bf16.gmra.mxu0 %v209
  %v2107 = vpop.f32.mrf.mxu0
  %v2108 = vadd.f32 0.0, %v2107
  %v2109 = vpop.f32.mrf.mxu0
  %v2110 = vadd.f32 0.0, %v2109
  %2111 = vmatmul.bf16.gmra.mxu0 %v210
  %v2112 = vpop.f32.mrf.mxu0
  %v2113 = vadd.f32 0.0, %v2112
  %v2114 = vpop.f32.mrf.mxu0
  %v2115 = vadd.f32 0.0, %v2114
  %2116 = vmatmul.bf16.gmra.mxu0 %v211
  %v2117 = vpop.f32.mrf.mxu0
  %v2118 = vadd.f32 0.0, %v2117
  %v2119 = vpop.f32.mrf.mxu0
  %v2120 = vadd.f32 0.0, %v2119
  %2121 = vmatmul.bf16.gmra.mxu0 %v212
  %v2122 = vpop.f32.mrf.mxu0
  %v2123 = vadd.f32 0.0, %v2122
  %v2124 = vpop.f32.mrf.mxu0
  %v2125 = vadd.f32 0.0, %v2124
  %2126 = vmatmul.bf16.gmra.mxu0 %v213
  %v2127 = vpop.f32.mrf.mxu0
  %v2128 = vadd.f32 0.0, %v2127
  %v2129 = vpop.f32.mrf.mxu0
  %v2130 = vadd.f32 0.0, %v2129
  %2131 = vmatmul.bf16.gmra.mxu0 %v214
  %v2132 = vpop.f32.mrf.mxu0
  %v2133 = vadd.f32 0.0, %v2132
  %v2134 = vpop.f32.mrf.mxu0
  %v2135 = vadd.f32 0.0, %v2134
  %2136 = vmatmul.bf16.gmra.mxu0 %v215
  %v2137 = vpop.f32.mrf.mxu0
  %v2138 = vadd.f32 0.0, %v2137
  %v2139 = vpop.f32.mrf.mxu0
  %v2140 = vadd.f32 0.0, %v2139
  %2141 = vmatmul.bf16.gmra.mxu0 %v216
  %v2142 = vpop.f32.mrf.mxu0
  %v2143 = vadd.f32 0.0, %v2142
  %v2144 = vpop.f32.mrf.mxu0
  %v2145 = vadd.f32 0.0, %v2144
  %2146 = vmatmul.bf16.gmra.mxu0 %v217
  %v2147 = vpop.f32.mrf.mxu0
  %v2148 = vadd.f32 0.0, %v2147
  %v2149 = vpop.f32.mrf.mxu0
  %v2150 = vadd.f32 0.0, %v2149
  %2151 = vmatmul.bf16.gmra.mxu0 %v218
  %v2152 = vpop.f32.mrf.mxu0
  %v2153 = vadd.f32 0.0, %v2152
  %v2154 = vpop.f32.mrf.mxu0
  %v2155 = vadd.f32 0.0, %v2154
  %2156 = vmatmul.bf16.gmra.mxu0 %v219
  %v2157 = vpop.f32.mrf.mxu0
  %v2158 = vadd.f32 0.0, %v2157
  %v2159 = vpop.f32.mrf.mxu0
  %v2160 = vadd.f32 0.0, %v2159
  %2161 = vmatmul.bf16.gmra.mxu0 %v220
  %v2162 = vpop.f32.mrf.mxu0
  %v2163 = vadd.f32 0.0, %v2162
  %v2164 = vpop.f32.mrf.mxu0
  %v2165 = vadd.f32 0.0, %v2164
  %2166 = vmatmul.bf16.gmra.mxu0 %v221
  %v2167 = vpop.f32.mrf.mxu0
  %v2168 = vadd.f32 0.0, %v2167
  %v2169 = vpop.f32.mrf.mxu0
  %v2170 = vadd.f32 0.0, %v2169
  %2171 = vmatmul.bf16.gmra.mxu0 %v222
  %v2172 = vpop.f32.mrf.mxu0
  %v2173 = vadd.f32 0.0, %v2172
  %v2174 = vpop.f32.mrf.mxu0
  %2175 = vdwg.mxu0
  %v2176 = vadd.f32 %v1832, %v1983
  %v2177 = vadd.f32 %v1833, %v1985
  %v2178 = vadd.f32 %v1834, %v1988
  %v2179 = vadd.f32 %v1835, %v1990
  %v2180 = vadd.f32 %v1836, %v1993
  %v2181 = vadd.f32 %v1837, %v1995
  %v2182 = vadd.f32 %v1838, %v1998
  %v2183 = vadd.f32 %v1839, %v2000
  %v2184 = vadd.f32 %v1840, %v2003
  %v2185 = vadd.f32 %v1841, %v2005
  %v2186 = vadd.f32 %v1842, %v2008
  %v2187 = vadd.f32 %v1843, %v2010
  %v2188 = vadd.f32 %v1844, %v2013
  %v2189 = vadd.f32 %v1845, %v2015
  %v2190 = vadd.f32 %v1846, %v2018
  %v2191 = vadd.f32 %v1847, %v2020
  %v2192 = vadd.f32 %v1848, %v2023
  %v2193 = vadd.f32 %v1849, %v2025
  %v2194 = vadd.f32 %v1850, %v2028
  %v2195 = vadd.f32 %v1851, %v2030
  %v2196 = vadd.f32 %v1852, %v2033
  %v2197 = vadd.f32 %v1853, %v2035
  %v2198 = vadd.f32 %v1854, %v2038
  %v2199 = vadd.f32 %v1855, %v2040
  %v2200 = vadd.f32 %v1856, %v2043
  %v2201 = vadd.f32 %v1857, %v2045
  %v2202 = vadd.f32 %v1858, %v2048
  %v2203 = vadd.f32 %v1859, %v2050
  %v2204 = vadd.f32 %v1860, %v2053
  %v2205 = vadd.f32 %v1861, %v2055
  %v2206 = vadd.f32 %v1862, %v2058
  %v2207 = vadd.f32 %v1863, %v2060
  %v2208 = vadd.f32 %v1864, %v2063
  %v2209 = vadd.f32 %v1865, %v2065
  %v2210 = vadd.f32 %v1866, %v2068
  %v2211 = vadd.f32 %v1867, %v2070
  %v2212 = vadd.f32 %v1868, %v2073
  %v2213 = vadd.f32 %v1869, %v2075
  %v2214 = vadd.f32 %v1870, %v2078
  %v2215 = vadd.f32 %v1871, %v2080
  %v2216 = vadd.f32 %v1872, %v2083
  %v2217 = vadd.f32 %v1873, %v2085
  %v2218 = vadd.f32 %v1874, %v2088
  %v2219 = vadd.f32 %v1875, %v2090
  %v2220 = vadd.f32 %v1876, %v2093
  %v2221 = vadd.f32 %v1877, %v2095
  %v2222 = vadd.f32 %v1878, %v2098
  %v2223 = vadd.f32 %v1879, %v2100
  %v2224 = vadd.f32 %v1880, %v2103
  %v2225 = vadd.f32 %v1881, %v2105
  %v2226 = vadd.f32 %v1882, %v2108
  %v2227 = vadd.f32 %v1883, %v2110
  %v2228 = vadd.f32 %v1884, %v2113
  %v2229 = vadd.f32 %v1885, %v2115
  %v2230 = vadd.f32 %v1886, %v2118
  %v2231 = vadd.f32 %v1887, %v2120
  %v2232 = vadd.f32 %v1888, %v2123
  %v2233 = vadd.f32 %v1889, %v2125
  %v2234 = vadd.f32 %v1890, %v2128
  %v2235 = vadd.f32 %v1891, %v2130
  %v2236 = vadd.f32 %v1892, %v2133
  %v2237 = vadd.f32 %v1893, %v2135
  %v2238 = vadd.f32 %v1894, %v2138
  %v2239 = vadd.f32 %v1895, %v2140
  %v2240 = vadd.f32 %v1896, %v2143
  %v2241 = vadd.f32 %v1897, %v2145
  %v2242 = vadd.f32 %v1898, %v2148
  %v2243 = vadd.f32 %v1899, %v2150
  %v2244 = vadd.f32 %v1900, %v2153
  %v2245 = vadd.f32 %v1901, %v2155
  %v2246 = vadd.f32 %v1902, %v2158
  %v2247 = vadd.f32 %v1903, %v2160
  %v2248 = vadd.f32 %v1904, %v2163
  %v2249 = vadd.f32 %v1905, %v2165
  %v2250 = vadd.f32 %v1906, %v2168
  %v2251 = vadd.f32 %v1907, %v2170
  %v2252 = vadd.f32 %v1908, %v2173
  %v2253 = vld [vmem:[%s0 + $0x14] sm:$0xff]
  %v2254 = vld [vmem:[%s0 + $0x1c] sm:$0xff]
  %v2255 = vld [vmem:[%s0 + $0x24] sm:$0xff]
  %v2256 = vld [vmem:[%s0 + $0x2c] sm:$0xff]
  %v2257 = vld [vmem:[%s0 + $0x34] sm:$0xff]
  %v2258 = vld [vmem:[%s0 + $0x3c] sm:$0xff]
  %v2259 = vld [vmem:[%s0 + $0x44] sm:$0xff]
  %v2260 = vld [vmem:[%s0 + $0x4c] sm:$0xff]
  %v2261 = vld [vmem:[%s0 + $0x54] sm:$0xff]
  %v2262 = vld [vmem:[%s0 + $0x5c] sm:$0xff]
  %v2263 = vld [vmem:[%s0 + $0x64] sm:$0xff]
  %v2264 = vld [vmem:[%s0 + $0x6c] sm:$0xff]
  %v2265 = vld [vmem:[%s0 + $0x74] sm:$0xff]
  %v2266 = vld [vmem:[%s0 + $0x7c] sm:$0xff]
  %v2267 = vld [vmem:[%s0 + $0x84] sm:$0xff]
  %v2268 = vld [vmem:[%s0 + $0x8c] sm:$0xff]
  %v2269 = vld [vmem:[%s0 + $0x94] sm:$0xff]
  %v2270 = vld [vmem:[%s0 + $0x9c] sm:$0xff]
  %v2271 = vld [vmem:[%s0 + $0xa4] sm:$0xff]
  %v2272 = vld [vmem:[%s0 + $0xac] sm:$0xff]
  %v2273 = vld [vmem:[%s0 + $0xb4] sm:$0xff]
  %v2274 = vld [vmem:[%s0 + $0xbc] sm:$0xff]
  %v2275 = vld [vmem:[%s0 + $0xc4] sm:$0xff]
  %v2276 = vld [vmem:[%s0 + $0xcc] sm:$0xff]
  %v2277 = vld [vmem:[%s0 + $0xd4] sm:$0xff]
  %v2278 = vld [vmem:[%s0 + $0xdc] sm:$0xff]
  %v2279 = vld [vmem:[%s0 + $0xe4] sm:$0xff]
  %v2280 = vld [vmem:[%s0 + $0xec] sm:$0xff]
  %v2281 = vld [vmem:[%s0 + $0xf4] sm:$0xff]
  %v2282 = vld [vmem:[%s0 + $0xfc] sm:$0xff]
  %v2283 = vld [vmem:[%s0 + $0x104] sm:$0xff]
  %v2284 = vld [vmem:[%s0 + $0x10c] sm:$0xff]
  %v2285 = vld [vmem:[%s0 + $0x114] sm:$0xff]
  %v2286 = vld [vmem:[%s0 + $0x11c] sm:$0xff]
  %v2287 = vld [vmem:[%s0 + $0x124] sm:$0xff]
  %v2288 = vld [vmem:[%s0 + $0x12c] sm:$0xff]
  %v2289 = vld [vmem:[%s0 + $0x134] sm:$0xff]
  %v2290 = vld [vmem:[%s0 + $0x13c] sm:$0xff]
  %v2291 = vld [vmem:[%s0 + $0x144] sm:$0xff]
  %v2292 = vld [vmem:[%s0 + $0x14c] sm:$0xff]
  %v2293 = vld [vmem:[%s0 + $0x154] sm:$0xff]
  %v2294 = vld [vmem:[%s0 + $0x15c] sm:$0xff]
  %v2295 = vld [vmem:[%s0 + $0x164] sm:$0xff]
  %v2296 = vld [vmem:[%s0 + $0x16c] sm:$0xff]
  %v2297 = vld [vmem:[%s0 + $0x174] sm:$0xff]
  %v2298 = vld [vmem:[%s0 + $0x17c] sm:$0xff]
  %v2299 = vld [vmem:[%s0 + $0x184] sm:$0xff]
  %v2300 = vld [vmem:[%s0 + $0x18c] sm:$0xff]
  %v2301 = vld [vmem:[%s0 + $0x194] sm:$0xff]
  %v2302 = vld [vmem:[%s0 + $0x19c] sm:$0xff]
  %v2303 = vld [vmem:[%s0 + $0x1a4] sm:$0xff]
  %v2304 = vld [vmem:[%s0 + $0x1ac] sm:$0xff]
  %v2305 = vld [vmem:[%s0 + $0x1b4] sm:$0xff]
  %v2306 = vld [vmem:[%s0 + $0x1bc] sm:$0xff]
  %v2307 = vld [vmem:[%s0 + $0x1c4] sm:$0xff]
  %v2308 = vld [vmem:[%s0 + $0x1cc] sm:$0xff]
  %v2309 = vld [vmem:[%s0 + $0x1d4] sm:$0xff]
  %v2310 = vld [vmem:[%s0 + $0x1dc] sm:$0xff]
  %v2311 = vld [vmem:[%s0 + $0x1e4] sm:$0xff]
  %v2312 = vld [vmem:[%s0 + $0x1ec] sm:$0xff]
  %v2313 = vld [vmem:[%s0 + $0x1f4] sm:$0xff]
  %v2314 = vld [vmem:[%s0 + $0x1fc] sm:$0xff]
  %v2315 = vld [vmem:[%s0 + $0x204] sm:$0xff]
  %v2316 = vld [vmem:[%s0 + $0x20c] sm:$0xff]
  %v2317 = vld [vmem:[%s0 + $0x214] sm:$0xff]
  %v2318 = vld [vmem:[%s0 + $0x21c] sm:$0xff]
  %v2319 = vld [vmem:[%s0 + $0x224] sm:$0xff]
  %v2320 = vld [vmem:[%s0 + $0x22c] sm:$0xff]
  %v2321 = vld [vmem:[%s0 + $0x234] sm:$0xff]
  %v2322 = vld [vmem:[%s0 + $0x23c] sm:$0xff]
  %v2323 = vld [vmem:[%s0 + $0x244] sm:$0xff]
  %v2324 = vld [vmem:[%s0 + $0x24c] sm:$0xff]
  %v2325 = vld [vmem:[%s0 + $0x254] sm:$0xff]
  %v2326 = vld [vmem:[%s0 + $0x25c] sm:$0xff]
  %v2327 = vld [vmem:[%s0 + $0x264] sm:$0xff]
  %v2328 = vld [vmem:[%s0 + $0x26c] sm:$0xff]
  %v2329 = vld [vmem:[%s0 + $0x274] sm:$0xff]
  %v2330 = vpack.c.bf16 %v2254, %v2253
  %v2331 = vpack.c.bf16 %v2256, %v2255
  %v2332 = vpack.c.bf16 %v2258, %v2257
  %v2333 = vpack.c.bf16 %v2260, %v2259
  %v2334 = vpack.c.bf16 %v2262, %v2261
  %v2335 = vpack.c.bf16 %v2264, %v2263
  %v2336 = vpack.c.bf16 %v2266, %v2265
  %v2337 = vpack.c.bf16 %v2268, %v2267
  %v2338 = vpack.c.bf16 %v2270, %v2269
  %v2339 = vpack.c.bf16 %v2272, %v2271
  %v2340 = vpack.c.bf16 %v2274, %v2273
  %v2341 = vpack.c.bf16 %v2276, %v2275
  %v2342 = vpack.c.bf16 %v2278, %v2277
  %v2343 = vpack.c.bf16 %v2280, %v2279
  %v2344 = vpack.c.bf16 %v2282, %v2281
  %v2345 = vpack.c.bf16 %v2284, %v2283
  %v2346 = vpack.c.bf16 %v2286, %v2285
  %v2347 = vpack.c.bf16 %v2288, %v2287
  %v2348 = vpack.c.bf16 %v2290, %v2289
  %v2349 = vpack.c.bf16 %v2292, %v2291
  %v2350 = vpack.c.bf16 %v2294, %v2293
  %v2351 = vpack.c.bf16 %v2296, %v2295
  %v2352 = vpack.c.bf16 %v2298, %v2297
  %v2353 = vpack.c.bf16 %v2300, %v2299
  %v2354 = vpack.c.bf16 %v2302, %v2301
  %v2355 = vpack.c.bf16 %v2304, %v2303
  %v2356 = vpack.c.bf16 %v2306, %v2305
  %v2357 = vpack.c.bf16 %v2308, %v2307
  %v2358 = vpack.c.bf16 %v2310, %v2309
  %v2359 = vpack.c.bf16 %v2312, %v2311
  %v2360 = vpack.c.bf16 %v2314, %v2313
  %v2361 = vpack.c.bf16 %v2316, %v2315
  %v2362 = vpack.c.bf16 %v2318, %v2317
  %v2363 = vpack.c.bf16 %v2320, %v2319
  %v2364 = vpack.c.bf16 %v2322, %v2321
  %v2365 = vpack.c.bf16 %v2324, %v2323
  %v2366 = vpack.c.bf16 %v2326, %v2325
  %v2367 = vpack.c.bf16 %v2328, %v2327
  %v2368 = vpack.c.bf16 %v2329, %v2329
  %v2369 = vld [vmem:[%s1 + $0x140] sm:$0xf]
  %v2370 = vld [vmem:[%s1 + $0x144] sm:$0xf]
  %v2371 = vld [vmem:[%s1 + $0x148] sm:$0xf]
  %v2372 = vld [vmem:[%s1 + $0x14c] sm:$0xf]
  %v2373 = vld [vmem:[%s1 + $0x150] sm:$0xf]
  %v2374 = vld [vmem:[%s1 + $0x154] sm:$0xf]
  %v2375 = vld [vmem:[%s1 + $0x158] sm:$0xf]
  %v2376 = vld [vmem:[%s1 + $0x15c] sm:$0xf]
  %v2377 = vld [vmem:[%s1 + $0x160] sm:$0xf]
  %v2378 = vld [vmem:[%s1 + $0x164] sm:$0xf]
  %v2379 = vld [vmem:[%s1 + $0x168] sm:$0xf]
  %v2380 = vld [vmem:[%s1 + $0x16c] sm:$0xf]
  %v2381 = vld [vmem:[%s1 + $0x170] sm:$0xf]
  %v2382 = vld [vmem:[%s1 + $0x174] sm:$0xf]
  %v2383 = vld [vmem:[%s1 + $0x178] sm:$0xf]
  %v2384 = vld [vmem:[%s1 + $0x17c] sm:$0xf]
  %v2401 = vunpack.c.l.b16 %v2369
  %v2402 = vunpack.c.l.b16 %v2370
  %v2403 = vunpack.c.l.b16 %v2371
  %v2404 = vunpack.c.l.b16 %v2372
  %v2405 = vunpack.c.l.b16 %v2373
  %v2406 = vunpack.c.l.b16 %v2374
  %v2407 = vunpack.c.l.b16 %v2375
  %v2408 = vunpack.c.l.b16 %v2376
  %v2409 = vunpack.c.l.b16 %v2377
  %v2410 = vunpack.c.l.b16 %v2378
  %v2411 = vunpack.c.l.b16 %v2379
  %v2412 = vunpack.c.l.b16 %v2380
  %v2413 = vunpack.c.l.b16 %v2381
  %v2414 = vunpack.c.l.b16 %v2382
  %v2415 = vunpack.c.l.b16 %v2383
  %v2416 = vunpack.c.l.b16 %v2384
  %v2417 = vpack.c.b16 %v2402, %v2401
  %v2418 = vpack.c.b16 %v2404, %v2403
  %v2419 = vpack.c.b16 %v2406, %v2405
  %v2420 = vpack.c.b16 %v2408, %v2407
  %v2421 = vpack.c.b16 %v2410, %v2409
  %v2422 = vpack.c.b16 %v2412, %v2411
  %v2423 = vpack.c.b16 %v2414, %v2413
  %v2424 = vpack.c.b16 %v2416, %v2415
  %2433 = vmatpush.bf16.msra.mxu0 %v2424
  %2434 = vmatpush.bf16.msra.mxu0 %v2423
  %2435 = vmatpush.bf16.msra.mxu0 %v2422
  %2436 = vmatpush.bf16.msra.mxu0 %v2421
  %2437 = vmatpush.bf16.msra.mxu0 %v2420
  %2438 = vmatpush.bf16.msra.mxu0 %v2419
  %2439 = vmatpush.bf16.msra.mxu0 %v2418
  %2440 = vmatpush.bf16.msra.mxu0 %v2417
  %2441 = vmatmul.bf16.gmra.mxu0 %v2330
  %v2442 = vpop.f32.mrf.mxu0
  %v2443 = vadd.f32 0.0, %v2442
  %v2444 = vpop.f32.mrf.mxu0
  %v2445 = vadd.f32 0.0, %v2444
  %2446 = vmatmul.bf16.gmra.mxu0 %v2331
  %v2447 = vpop.f32.mrf.mxu0
  %v2448 = vadd.f32 0.0, %v2447
  %v2449 = vpop.f32.mrf.mxu0
  %v2450 = vadd.f32 0.0, %v2449
  %2451 = vmatmul.bf16.gmra.mxu0 %v2332
  %v2452 = vpop.f32.mrf.mxu0
  %v2453 = vadd.f32 0.0, %v2452
  %v2454 = vpop.f32.mrf.mxu0
  %v2455 = vadd.f32 0.0, %v2454
  %2456 = vmatmul.bf16.gmra.mxu0 %v2333
  %v2457 = vpop.f32.mrf.mxu0
  %v2458 = vadd.f32 0.0, %v2457
  %v2459 = vpop.f32.mrf.mxu0
  %v2460 = vadd.f32 0.0, %v2459
  %2461 = vmatmul.bf16.gmra.mxu0 %v2334
  %v2462 = vpop.f32.mrf.mxu0
  %v2463 = vadd.f32 0.0, %v2462
  %v2464 = vpop.f32.mrf.mxu0
  %v2465 = vadd.f32 0.0, %v2464
  %2466 = vmatmul.bf16.gmra.mxu0 %v2335
  %v2467 = vpop.f32.mrf.mxu0
  %v2468 = vadd.f32 0.0, %v2467
  %v2469 = vpop.f32.mrf.mxu0
  %v2470 = vadd.f32 0.0, %v2469
  %2471 = vmatmul.bf16.gmra.mxu0 %v2336
  %v2472 = vpop.f32.mrf.mxu0
  %v2473 = vadd.f32 0.0, %v2472
  %v2474 = vpop.f32.mrf.mxu0
  %v2475 = vadd.f32 0.0, %v2474
  %2476 = vmatmul.bf16.gmra.mxu0 %v2337
  %v2477 = vpop.f32.mrf.mxu0
  %v2478 = vadd.f32 0.0, %v2477
  %v2479 = vpop.f32.mrf.mxu0
  %v2480 = vadd.f32 0.0, %v2479
  %2481 = vmatmul.bf16.gmra.mxu0 %v2338
  %v2482 = vpop.f32.mrf.mxu0
  %v2483 = vadd.f32 0.0, %v2482
  %v2484 = vpop.f32.mrf.mxu0
  %v2485 = vadd.f32 0.0, %v2484
  %2486 = vmatmul.bf16.gmra.mxu0 %v2339
  %v2487 = vpop.f32.mrf.mxu0
  %v2488 = vadd.f32 0.0, %v2487
  %v2489 = vpop.f32.mrf.mxu0
  %v2490 = vadd.f32 0.0, %v2489
  %2491 = vmatmul.bf16.gmra.mxu0 %v2340
  %v2492 = vpop.f32.mrf.mxu0
  %v2493 = vadd.f32 0.0, %v2492
  %v2494 = vpop.f32.mrf.mxu0
  %v2495 = vadd.f32 0.0, %v2494
  %2496 = vmatmul.bf16.gmra.mxu0 %v2341
  %v2497 = vpop.f32.mrf.mxu0
  %v2498 = vadd.f32 0.0, %v2497
  %v2499 = vpop.f32.mrf.mxu0
  %v2500 = vadd.f32 0.0, %v2499
  %2501 = vmatmul.bf16.gmra.mxu0 %v2342
  %v2502 = vpop.f32.mrf.mxu0
  %v2503 = vadd.f32 0.0, %v2502
  %v2504 = vpop.f32.mrf.mxu0
  %v2505 = vadd.f32 0.0, %v2504
  %2506 = vmatmul.bf16.gmra.mxu0 %v2343
  %v2507 = vpop.f32.mrf.mxu0
  %v2508 = vadd.f32 0.0, %v2507
  %v2509 = vpop.f32.mrf.mxu0
  %v2510 = vadd.f32 0.0, %v2509
  %2511 = vmatmul.bf16.gmra.mxu0 %v2344
  %v2512 = vpop.f32.mrf.mxu0
  %v2513 = vadd.f32 0.0, %v2512
  %v2514 = vpop.f32.mrf.mxu0
  %v2515 = vadd.f32 0.0, %v2514
  %2516 = vmatmul.bf16.gmra.mxu0 %v2345
  %v2517 = vpop.f32.mrf.mxu0
  %v2518 = vadd.f32 0.0, %v2517
  %v2519 = vpop.f32.mrf.mxu0
  %v2520 = vadd.f32 0.0, %v2519
  %2521 = vmatmul.bf16.gmra.mxu0 %v2346
  %v2522 = vpop.f32.mrf.mxu0
  %v2523 = vadd.f32 0.0, %v2522
  %v2524 = vpop.f32.mrf.mxu0
  %v2525 = vadd.f32 0.0, %v2524
  %2526 = vmatmul.bf16.gmra.mxu0 %v2347
  %v2527 = vpop.f32.mrf.mxu0
  %v2528 = vadd.f32 0.0, %v2527
  %v2529 = vpop.f32.mrf.mxu0
  %v2530 = vadd.f32 0.0, %v2529
  %2531 = vmatmul.bf16.gmra.mxu0 %v2348
  %v2532 = vpop.f32.mrf.mxu0
  %v2533 = vadd.f32 0.0, %v2532
  %v2534 = vpop.f32.mrf.mxu0
  %v2535 = vadd.f32 0.0, %v2534
  %2536 = vmatmul.bf16.gmra.mxu0 %v2349
  %v2537 = vpop.f32.mrf.mxu0
  %v2538 = vadd.f32 0.0, %v2537
  %v2539 = vpop.f32.mrf.mxu0
  %v2540 = vadd.f32 0.0, %v2539
  %2541 = vmatmul.bf16.gmra.mxu0 %v2350
  %v2542 = vpop.f32.mrf.mxu0
  %v2543 = vadd.f32 0.0, %v2542
  %v2544 = vpop.f32.mrf.mxu0
  %v2545 = vadd.f32 0.0, %v2544
  %2546 = vmatmul.bf16.gmra.mxu0 %v2351
  %v2547 = vpop.f32.mrf.mxu0
  %v2548 = vadd.f32 0.0, %v2547
  %v2549 = vpop.f32.mrf.mxu0
  %v2550 = vadd.f32 0.0, %v2549
  %2551 = vmatmul.bf16.gmra.mxu0 %v2352
  %v2552 = vpop.f32.mrf.mxu0
  %v2553 = vadd.f32 0.0, %v2552
  %v2554 = vpop.f32.mrf.mxu0
  %v2555 = vadd.f32 0.0, %v2554
  %2556 = vmatmul.bf16.gmra.mxu0 %v2353
  %v2557 = vpop.f32.mrf.mxu0
  %v2558 = vadd.f32 0.0, %v2557
  %v2559 = vpop.f32.mrf.mxu0
  %v2560 = vadd.f32 0.0, %v2559
  %2561 = vmatmul.bf16.gmra.mxu0 %v2354
  %v2562 = vpop.f32.mrf.mxu0
  %v2563 = vadd.f32 0.0, %v2562
  %v2564 = vpop.f32.mrf.mxu0
  %v2565 = vadd.f32 0.0, %v2564
  %2566 = vmatmul.bf16.gmra.mxu0 %v2355
  %v2567 = vpop.f32.mrf.mxu0
  %v2568 = vadd.f32 0.0, %v2567
  %v2569 = vpop.f32.mrf.mxu0
  %v2570 = vadd.f32 0.0, %v2569
  %2571 = vmatmul.bf16.gmra.mxu0 %v2356
  %v2572 = vpop.f32.mrf.mxu0
  %v2573 = vadd.f32 0.0, %v2572
  %v2574 = vpop.f32.mrf.mxu0
  %v2575 = vadd.f32 0.0, %v2574
  %2576 = vmatmul.bf16.gmra.mxu0 %v2357
  %v2577 = vpop.f32.mrf.mxu0
  %v2578 = vadd.f32 0.0, %v2577
  %v2579 = vpop.f32.mrf.mxu0
  %v2580 = vadd.f32 0.0, %v2579
  %2581 = vmatmul.bf16.gmra.mxu0 %v2358
  %v2582 = vpop.f32.mrf.mxu0
  %v2583 = vadd.f32 0.0, %v2582
  %v2584 = vpop.f32.mrf.mxu0
  %v2585 = vadd.f32 0.0, %v2584
  %2586 = vmatmul.bf16.gmra.mxu0 %v2359
  %v2587 = vpop.f32.mrf.mxu0
  %v2588 = vadd.f32 0.0, %v2587
  %v2589 = vpop.f32.mrf.mxu0
  %v2590 = vadd.f32 0.0, %v2589
  %2591 = vmatmul.bf16.gmra.mxu0 %v2360
  %v2592 = vpop.f32.mrf.mxu0
  %v2593 = vadd.f32 0.0, %v2592
  %v2594 = vpop.f32.mrf.mxu0
  %v2595 = vadd.f32 0.0, %v2594
  %2596 = vmatmul.bf16.gmra.mxu0 %v2361
  %v2597 = vpop.f32.mrf.mxu0
  %v2598 = vadd.f32 0.0, %v2597
  %v2599 = vpop.f32.mrf.mxu0
  %v2600 = vadd.f32 0.0, %v2599
  %2601 = vmatmul.bf16.gmra.mxu0 %v2362
  %v2602 = vpop.f32.mrf.mxu0
  %v2603 = vadd.f32 0.0, %v2602
  %v2604 = vpop.f32.mrf.mxu0
  %v2605 = vadd.f32 0.0, %v2604
  %2606 = vmatmul.bf16.gmra.mxu0 %v2363
  %v2607 = vpop.f32.mrf.mxu0
  %v2608 = vadd.f32 0.0, %v2607
  %v2609 = vpop.f32.mrf.mxu0
  %v2610 = vadd.f32 0.0, %v2609
  %2611 = vmatmul.bf16.gmra.mxu0 %v2364
  %v2612 = vpop.f32.mrf.mxu0
  %v2613 = vadd.f32 0.0, %v2612
  %v2614 = vpop.f32.mrf.mxu0
  %v2615 = vadd.f32 0.0, %v2614
  %2616 = vmatmul.bf16.gmra.mxu0 %v2365
  %v2617 = vpop.f32.mrf.mxu0
  %v2618 = vadd.f32 0.0, %v2617
  %v2619 = vpop.f32.mrf.mxu0
  %v2620 = vadd.f32 0.0, %v2619
  %2621 = vmatmul.bf16.gmra.mxu0 %v2366
  %v2622 = vpop.f32.mrf.mxu0
  %v2623 = vadd.f32 0.0, %v2622
  %v2624 = vpop.f32.mrf.mxu0
  %v2625 = vadd.f32 0.0, %v2624
  %2626 = vmatmul.bf16.gmra.mxu0 %v2367
  %v2627 = vpop.f32.mrf.mxu0
  %v2628 = vadd.f32 0.0, %v2627
  %v2629 = vpop.f32.mrf.mxu0
  %v2630 = vadd.f32 0.0, %v2629
  %2631 = vmatmul.bf16.gmra.mxu0 %v2368
  %v2632 = vpop.f32.mrf.mxu0
  %v2633 = vadd.f32 0.0, %v2632
  %v2634 = vpop.f32.mrf.mxu0
  %2635 = vdwg.mxu0
  %v2636 = vadd.f32 %v2176, %v2443
  %v2637 = vadd.f32 %v2177, %v2445
  %v2638 = vadd.f32 %v2178, %v2448
  %v2639 = vadd.f32 %v2179, %v2450
  %v2640 = vadd.f32 %v2180, %v2453
  %v2641 = vadd.f32 %v2181, %v2455
  %v2642 = vadd.f32 %v2182, %v2458
  %v2643 = vadd.f32 %v2183, %v2460
  %v2644 = vadd.f32 %v2184, %v2463
  %v2645 = vadd.f32 %v2185, %v2465
  %v2646 = vadd.f32 %v2186, %v2468
  %v2647 = vadd.f32 %v2187, %v2470
  %v2648 = vadd.f32 %v2188, %v2473
  %v2649 = vadd.f32 %v2189, %v2475
  %v2650 = vadd.f32 %v2190, %v2478
  %v2651 = vadd.f32 %v2191, %v2480
  %v2652 = vadd.f32 %v2192, %v2483
  %v2653 = vadd.f32 %v2193, %v2485
  %v2654 = vadd.f32 %v2194, %v2488
  %v2655 = vadd.f32 %v2195, %v2490
  %v2656 = vadd.f32 %v2196, %v2493
  %v2657 = vadd.f32 %v2197, %v2495
  %v2658 = vadd.f32 %v2198, %v2498
  %v2659 = vadd.f32 %v2199, %v2500
  %v2660 = vadd.f32 %v2200, %v2503
  %v2661 = vadd.f32 %v2201, %v2505
  %v2662 = vadd.f32 %v2202, %v2508
  %v2663 = vadd.f32 %v2203, %v2510
  %v2664 = vadd.f32 %v2204, %v2513
  %v2665 = vadd.f32 %v2205, %v2515
  %v2666 = vadd.f32 %v2206, %v2518
  %v2667 = vadd.f32 %v2207, %v2520
  %v2668 = vadd.f32 %v2208, %v2523
  %v2669 = vadd.f32 %v2209, %v2525
  %v2670 = vadd.f32 %v2210, %v2528
  %v2671 = vadd.f32 %v2211, %v2530
  %v2672 = vadd.f32 %v2212, %v2533
  %v2673 = vadd.f32 %v2213, %v2535
  %v2674 = vadd.f32 %v2214, %v2538
  %v2675 = vadd.f32 %v2215, %v2540
  %v2676 = vadd.f32 %v2216, %v2543
  %v2677 = vadd.f32 %v2217, %v2545
  %v2678 = vadd.f32 %v2218, %v2548
  %v2679 = vadd.f32 %v2219, %v2550
  %v2680 = vadd.f32 %v2220, %v2553
  %v2681 = vadd.f32 %v2221, %v2555
  %v2682 = vadd.f32 %v2222, %v2558
  %v2683 = vadd.f32 %v2223, %v2560
  %v2684 = vadd.f32 %v2224, %v2563
  %v2685 = vadd.f32 %v2225, %v2565
  %v2686 = vadd.f32 %v2226, %v2568
  %v2687 = vadd.f32 %v2227, %v2570
  %v2688 = vadd.f32 %v2228, %v2573
  %v2689 = vadd.f32 %v2229, %v2575
  %v2690 = vadd.f32 %v2230, %v2578
  %v2691 = vadd.f32 %v2231, %v2580
  %v2692 = vadd.f32 %v2232, %v2583
  %v2693 = vadd.f32 %v2233, %v2585
  %v2694 = vadd.f32 %v2234, %v2588
  %v2695 = vadd.f32 %v2235, %v2590
  %v2696 = vadd.f32 %v2236, %v2593
  %v2697 = vadd.f32 %v2237, %v2595
  %v2698 = vadd.f32 %v2238, %v2598
  %v2699 = vadd.f32 %v2239, %v2600
  %v2700 = vadd.f32 %v2240, %v2603
  %v2701 = vadd.f32 %v2241, %v2605
  %v2702 = vadd.f32 %v2242, %v2608
  %v2703 = vadd.f32 %v2243, %v2610
  %v2704 = vadd.f32 %v2244, %v2613
  %v2705 = vadd.f32 %v2245, %v2615
  %v2706 = vadd.f32 %v2246, %v2618
  %v2707 = vadd.f32 %v2247, %v2620
  %v2708 = vadd.f32 %v2248, %v2623
  %v2709 = vadd.f32 %v2249, %v2625
  %v2710 = vadd.f32 %v2250, %v2628
  %v2711 = vadd.f32 %v2251, %v2630
  %v2712 = vadd.f32 %v2252, %v2633
  %v2713 = vld [vmem:[%s0 + $0x24] sm:$0xff]
  %v2714 = vld [vmem:[%s0 + $0x2c] sm:$0xff]
  %v2715 = vld [vmem:[%s0 + $0x34] sm:$0xff]
  %v2716 = vld [vmem:[%s0 + $0x3c] sm:$0xff]
  %v2717 = vld [vmem:[%s0 + $0x44] sm:$0xff]
  %v2718 = vld [vmem:[%s0 + $0x4c] sm:$0xff]
  %v2719 = vld [vmem:[%s0 + $0x54] sm:$0xff]
  %v2720 = vld [vmem:[%s0 + $0x5c] sm:$0xff]
  %v2721 = vld [vmem:[%s0 + $0x64] sm:$0xff]
  %v2722 = vld [vmem:[%s0 + $0x6c] sm:$0xff]
  %v2723 = vld [vmem:[%s0 + $0x74] sm:$0xff]
  %v2724 = vld [vmem:[%s0 + $0x7c] sm:$0xff]
  %v2725 = vld [vmem:[%s0 + $0x84] sm:$0xff]
  %v2726 = vld [vmem:[%s0 + $0x8c] sm:$0xff]
  %v2727 = vld [vmem:[%s0 + $0x94] sm:$0xff]
  %v2728 = vld [vmem:[%s0 + $0x9c] sm:$0xff]
  %v2729 = vld [vmem:[%s0 + $0xa4] sm:$0xff]
  %v2730 = vld [vmem:[%s0 + $0xac] sm:$0xff]
  %v2731 = vld [vmem:[%s0 + $0xb4] sm:$0xff]
  %v2732 = vld [vmem:[%s0 + $0xbc] sm:$0xff]
  %v2733 = vld [vmem:[%s0 + $0xc4] sm:$0xff]
  %v2734 = vld [vmem:[%s0 + $0xcc] sm:$0xff]
  %v2735 = vld [vmem:[%s0 + $0xd4] sm:$0xff]
  %v2736 = vld [vmem:[%s0 + $0xdc] sm:$0xff]
  %v2737 = vld [vmem:[%s0 + $0xe4] sm:$0xff]
  %v2738 = vld [vmem:[%s0 + $0xec] sm:$0xff]
  %v2739 = vld [vmem:[%s0 + $0xf4] sm:$0xff]
  %v2740 = vld [vmem:[%s0 + $0xfc] sm:$0xff]
  %v2741 = vld [vmem:[%s0 + $0x104] sm:$0xff]
  %v2742 = vld [vmem:[%s0 + $0x10c] sm:$0xff]
  %v2743 = vld [vmem:[%s0 + $0x114] sm:$0xff]
  %v2744 = vld [vmem:[%s0 + $0x11c] sm:$0xff]
  %v2745 = vld [vmem:[%s0 + $0x124] sm:$0xff]
  %v2746 = vld [vmem:[%s0 + $0x12c] sm:$0xff]
  %v2747 = vld [vmem:[%s0 + $0x134] sm:$0xff]
  %v2748 = vld [vmem:[%s0 + $0x13c] sm:$0xff]
  %v2749 = vld [vmem:[%s0 + $0x144] sm:$0xff]
  %v2750 = vld [vmem:[%s0 + $0x14c] sm:$0xff]
  %v2751 = vld [vmem:[%s0 + $0x154] sm:$0xff]
  %v2752 = vld [vmem:[%s0 + $0x15c] sm:$0xff]
  %v2753 = vld [vmem:[%s0 + $0x164] sm:$0xff]
  %v2754 = vld [vmem:[%s0 + $0x16c] sm:$0xff]
  %v2755 = vld [vmem:[%s0 + $0x174] sm:$0xff]
  %v2756 = vld [vmem:[%s0 + $0x17c] sm:$0xff]
  %v2757 = vld [vmem:[%s0 + $0x184] sm:$0xff]
  %v2758 = vld [vmem:[%s0 + $0x18c] sm:$0xff]
  %v2759 = vld [vmem:[%s0 + $0x194] sm:$0xff]
  %v2760 = vld [vmem:[%s0 + $0x19c] sm:$0xff]
  %v2761 = vld [vmem:[%s0 + $0x1a4] sm:$0xff]
  %v2762 = vld [vmem:[%s0 + $0x1ac] sm:$0xff]
  %v2763 = vld [vmem:[%s0 + $0x1b4] sm:$0xff]
  %v2764 = vld [vmem:[%s0 + $0x1bc] sm:$0xff]
  %v2765 = vld [vmem:[%s0 + $0x1c4] sm:$0xff]
  %v2766 = vld [vmem:[%s0 + $0x1cc] sm:$0xff]
  %v2767 = vld [vmem:[%s0 + $0x1d4] sm:$0xff]
  %v2768 = vld [vmem:[%s0 + $0x1dc] sm:$0xff]
  %v2769 = vld [vmem:[%s0 + $0x1e4] sm:$0xff]
  %v2770 = vld [vmem:[%s0 + $0x1ec] sm:$0xff]
  %v2771 = vld [vmem:[%s0 + $0x1f4] sm:$0xff]
  %v2772 = vld [vmem:[%s0 + $0x1fc] sm:$0xff]
  %v2773 = vld [vmem:[%s0 + $0x204] sm:$0xff]
  %v2774 = vld [vmem:[%s0 + $0x20c] sm:$0xff]
  %v2775 = vld [vmem:[%s0 + $0x214] sm:$0xff]
  %v2776 = vld [vmem:[%s0 + $0x21c] sm:$0xff]
  %v2777 = vld [vmem:[%s0 + $0x224] sm:$0xff]
  %v2778 = vld [vmem:[%s0 + $0x22c] sm:$0xff]
  %v2779 = vld [vmem:[%s0 + $0x234] sm:$0xff]
  %v2780 = vld [vmem:[%s0 + $0x23c] sm:$0xff]
  %v2781 = vld [vmem:[%s0 + $0x244] sm:$0xff]
  %v2782 = vld [vmem:[%s0 + $0x24c] sm:$0xff]
  %v2783 = vld [vmem:[%s0 + $0x254] sm:$0xff]
  %v2784 = vld [vmem:[%s0 + $0x25c] sm:$0xff]
  %v2785 = vld [vmem:[%s0 + $0x264] sm:$0xff]
  %v2786 = vld [vmem:[%s0 + $0x26c] sm:$0xff]
  %v2787 = vld [vmem:[%s0 + $0x274] sm:$0xff]
  %v2788 = vld [vmem:[%s0 + $0x27c] sm:$0xff]
  %v2789 = vld [vmem:[%s0 + $0x284] sm:$0xff]
  %v2790 = vpack.c.bf16 %v2714, %v2713
  %v2791 = vpack.c.bf16 %v2716, %v2715
  %v2792 = vpack.c.bf16 %v2718, %v2717
  %v2793 = vpack.c.bf16 %v2720, %v2719
  %v2794 = vpack.c.bf16 %v2722, %v2721
  %v2795 = vpack.c.bf16 %v2724, %v2723
  %v2796 = vpack.c.bf16 %v2726, %v2725
  %v2797 = vpack.c.bf16 %v2728, %v2727
  %v2798 = vpack.c.bf16 %v2730, %v2729
  %v2799 = vpack.c.bf16 %v2732, %v2731
  %v2800 = vpack.c.bf16 %v2734, %v2733
  %v2801 = vpack.c.bf16 %v2736, %v2735
  %v2802 = vpack.c.bf16 %v2738, %v2737
  %v2803 = vpack.c.bf16 %v2740, %v2739
  %v2804 = vpack.c.bf16 %v2742, %v2741
  %v2805 = vpack.c.bf16 %v2744, %v2743
  %v2806 = vpack.c.bf16 %v2746, %v2745
  %v2807 = vpack.c.bf16 %v2748, %v2747
  %v2808 = vpack.c.bf16 %v2750, %v2749
  %v2809 = vpack.c.bf16 %v2752, %v2751
  %v2810 = vpack.c.bf16 %v2754, %v2753
  %v2811 = vpack.c.bf16 %v2756, %v2755
  %v2812 = vpack.c.bf16 %v2758, %v2757
  %v2813 = vpack.c.bf16 %v2760, %v2759
  %v2814 = vpack.c.bf16 %v2762, %v2761
  %v2815 = vpack.c.bf16 %v2764, %v2763
  %v2816 = vpack.c.bf16 %v2766, %v2765
  %v2817 = vpack.c.bf16 %v2768, %v2767
  %v2818 = vpack.c.bf16 %v2770, %v2769
  %v2819 = vpack.c.bf16 %v2772, %v2771
  %v2820 = vpack.c.bf16 %v2774, %v2773
  %v2821 = vpack.c.bf16 %v2776, %v2775
  %v2822 = vpack.c.bf16 %v2778, %v2777
  %v2823 = vpack.c.bf16 %v2780, %v2779
  %v2824 = vpack.c.bf16 %v2782, %v2781
  %v2825 = vpack.c.bf16 %v2784, %v2783
  %v2826 = vpack.c.bf16 %v2786, %v2785
  %v2827 = vpack.c.bf16 %v2788, %v2787
  %v2828 = vpack.c.bf16 %v2789, %v2789
  %v2829 = vld [vmem:[%s1 + $0x180] sm:$0xf]
  %v2830 = vld [vmem:[%s1 + $0x184] sm:$0xf]
  %v2831 = vld [vmem:[%s1 + $0x188] sm:$0xf]
  %v2832 = vld [vmem:[%s1 + $0x18c] sm:$0xf]
  %v2833 = vld [vmem:[%s1 + $0x190] sm:$0xf]
  %v2834 = vld [vmem:[%s1 + $0x194] sm:$0xf]
  %v2835 = vld [vmem:[%s1 + $0x198] sm:$0xf]
  %v2836 = vld [vmem:[%s1 + $0x19c] sm:$0xf]
  %v2837 = vld [vmem:[%s1 + $0x1a0] sm:$0xf]
  %v2838 = vld [vmem:[%s1 + $0x1a4] sm:$0xf]
  %v2839 = vld [vmem:[%s1 + $0x1a8] sm:$0xf]
  %v2840 = vld [vmem:[%s1 + $0x1ac] sm:$0xf]
  %v2841 = vld [vmem:[%s1 + $0x1b0] sm:$0xf]
  %v2842 = vld [vmem:[%s1 + $0x1b4] sm:$0xf]
  %v2843 = vld [vmem:[%s1 + $0x1b8] sm:$0xf]
  %v2844 = vld [vmem:[%s1 + $0x1bc] sm:$0xf]
  %v2861 = vunpack.c.l.b16 %v2829
  %v2862 = vunpack.c.l.b16 %v2830
  %v2863 = vunpack.c.l.b16 %v2831
  %v2864 = vunpack.c.l.b16 %v2832
  %v2865 = vunpack.c.l.b16 %v2833
  %v2866 = vunpack.c.l.b16 %v2834
  %v2867 = vunpack.c.l.b16 %v2835
  %v2868 = vunpack.c.l.b16 %v2836
  %v2869 = vunpack.c.l.b16 %v2837
  %v2870 = vunpack.c.l.b16 %v2838
  %v2871 = vunpack.c.l.b16 %v2839
  %v2872 = vunpack.c.l.b16 %v2840
  %v2873 = vunpack.c.l.b16 %v2841
  %v2874 = vunpack.c.l.b16 %v2842
  %v2875 = vunpack.c.l.b16 %v2843
  %v2876 = vunpack.c.l.b16 %v2844
  %v2877 = vpack.c.b16 %v2862, %v2861
  %v2878 = vpack.c.b16 %v2864, %v2863
  %v2879 = vpack.c.b16 %v2866, %v2865
  %v2880 = vpack.c.b16 %v2868, %v2867
  %v2881 = vpack.c.b16 %v2870, %v2869
  %v2882 = vpack.c.b16 %v2872, %v2871
  %v2883 = vpack.c.b16 %v2874, %v2873
  %v2884 = vpack.c.b16 %v2876, %v2875
  %2893 = vmatpush.bf16.msra.mxu0 %v2884
  %2894 = vmatpush.bf16.msra.mxu0 %v2883
  %2895 = vmatpush.bf16.msra.mxu0 %v2882
  %2896 = vmatpush.bf16.msra.mxu0 %v2881
  %2897 = vmatpush.bf16.msra.mxu0 %v2880
  %2898 = vmatpush.bf16.msra.mxu0 %v2879
  %2899 = vmatpush.bf16.msra.mxu0 %v2878
  %2900 = vmatpush.bf16.msra.mxu0 %v2877
  %2901 = vmatmul.bf16.gmra.mxu0 %v2790
  %v2902 = vpop.f32.mrf.mxu0
  %v2903 = vadd.f32 0.0, %v2902
  %v2904 = vpop.f32.mrf.mxu0
  %v2905 = vadd.f32 0.0, %v2904
  %2906 = vmatmul.bf16.gmra.mxu0 %v2791
  %v2907 = vpop.f32.mrf.mxu0
  %v2908 = vadd.f32 0.0, %v2907
  %v2909 = vpop.f32.mrf.mxu0
  %v2910 = vadd.f32 0.0, %v2909
  %2911 = vmatmul.bf16.gmra.mxu0 %v2792
  %v2912 = vpop.f32.mrf.mxu0
  %v2913 = vadd.f32 0.0, %v2912
  %v2914 = vpop.f32.mrf.mxu0
  %v2915 = vadd.f32 0.0, %v2914
  %2916 = vmatmul.bf16.gmra.mxu0 %v2793
  %v2917 = vpop.f32.mrf.mxu0
  %v2918 = vadd.f32 0.0, %v2917
  %v2919 = vpop.f32.mrf.mxu0
  %v2920 = vadd.f32 0.0, %v2919
  %2921 = vmatmul.bf16.gmra.mxu0 %v2794
  %v2922 = vpop.f32.mrf.mxu0
  %v2923 = vadd.f32 0.0, %v2922
  %v2924 = vpop.f32.mrf.mxu0
  %v2925 = vadd.f32 0.0, %v2924
  %2926 = vmatmul.bf16.gmra.mxu0 %v2795
  %v2927 = vpop.f32.mrf.mxu0
  %v2928 = vadd.f32 0.0, %v2927
  %v2929 = vpop.f32.mrf.mxu0
  %v2930 = vadd.f32 0.0, %v2929
  %2931 = vmatmul.bf16.gmra.mxu0 %v2796
  %v2932 = vpop.f32.mrf.mxu0
  %v2933 = vadd.f32 0.0, %v2932
  %v2934 = vpop.f32.mrf.mxu0
  %v2935 = vadd.f32 0.0, %v2934
  %2936 = vmatmul.bf16.gmra.mxu0 %v2797
  %v2937 = vpop.f32.mrf.mxu0
  %v2938 = vadd.f32 0.0, %v2937
  %v2939 = vpop.f32.mrf.mxu0
  %v2940 = vadd.f32 0.0, %v2939
  %2941 = vmatmul.bf16.gmra.mxu0 %v2798
  %v2942 = vpop.f32.mrf.mxu0
  %v2943 = vadd.f32 0.0, %v2942
  %v2944 = vpop.f32.mrf.mxu0
  %v2945 = vadd.f32 0.0, %v2944
  %2946 = vmatmul.bf16.gmra.mxu0 %v2799
  %v2947 = vpop.f32.mrf.mxu0
  %v2948 = vadd.f32 0.0, %v2947
  %v2949 = vpop.f32.mrf.mxu0
  %v2950 = vadd.f32 0.0, %v2949
  %2951 = vmatmul.bf16.gmra.mxu0 %v2800
  %v2952 = vpop.f32.mrf.mxu0
  %v2953 = vadd.f32 0.0, %v2952
  %v2954 = vpop.f32.mrf.mxu0
  %v2955 = vadd.f32 0.0, %v2954
  %2956 = vmatmul.bf16.gmra.mxu0 %v2801
  %v2957 = vpop.f32.mrf.mxu0
  %v2958 = vadd.f32 0.0, %v2957
  %v2959 = vpop.f32.mrf.mxu0
  %v2960 = vadd.f32 0.0, %v2959
  %2961 = vmatmul.bf16.gmra.mxu0 %v2802
  %v2962 = vpop.f32.mrf.mxu0
  %v2963 = vadd.f32 0.0, %v2962
  %v2964 = vpop.f32.mrf.mxu0
  %v2965 = vadd.f32 0.0, %v2964
  %2966 = vmatmul.bf16.gmra.mxu0 %v2803
  %v2967 = vpop.f32.mrf.mxu0
  %v2968 = vadd.f32 0.0, %v2967
  %v2969 = vpop.f32.mrf.mxu0
  %v2970 = vadd.f32 0.0, %v2969
  %2971 = vmatmul.bf16.gmra.mxu0 %v2804
  %v2972 = vpop.f32.mrf.mxu0
  %v2973 = vadd.f32 0.0, %v2972
  %v2974 = vpop.f32.mrf.mxu0
  %v2975 = vadd.f32 0.0, %v2974
  %2976 = vmatmul.bf16.gmra.mxu0 %v2805
  %v2977 = vpop.f32.mrf.mxu0
  %v2978 = vadd.f32 0.0, %v2977
  %v2979 = vpop.f32.mrf.mxu0
  %v2980 = vadd.f32 0.0, %v2979
  %2981 = vmatmul.bf16.gmra.mxu0 %v2806
  %v2982 = vpop.f32.mrf.mxu0
  %v2983 = vadd.f32 0.0, %v2982
  %v2984 = vpop.f32.mrf.mxu0
  %v2985 = vadd.f32 0.0, %v2984
  %2986 = vmatmul.bf16.gmra.mxu0 %v2807
  %v2987 = vpop.f32.mrf.mxu0
  %v2988 = vadd.f32 0.0, %v2987
  %v2989 = vpop.f32.mrf.mxu0
  %v2990 = vadd.f32 0.0, %v2989
  %2991 = vmatmul.bf16.gmra.mxu0 %v2808
  %v2992 = vpop.f32.mrf.mxu0
  %v2993 = vadd.f32 0.0, %v2992
  %v2994 = vpop.f32.mrf.mxu0
  %v2995 = vadd.f32 0.0, %v2994
  %2996 = vmatmul.bf16.gmra.mxu0 %v2809
  %v2997 = vpop.f32.mrf.mxu0
  %v2998 = vadd.f32 0.0, %v2997
  %v2999 = vpop.f32.mrf.mxu0
  %v3000 = vadd.f32 0.0, %v2999
  %3001 = vmatmul.bf16.gmra.mxu0 %v2810
  %v3002 = vpop.f32.mrf.mxu0
  %v3003 = vadd.f32 0.0, %v3002
  %v3004 = vpop.f32.mrf.mxu0
  %v3005 = vadd.f32 0.0, %v3004
  %3006 = vmatmul.bf16.gmra.mxu0 %v2811
  %v3007 = vpop.f32.mrf.mxu0
  %v3008 = vadd.f32 0.0, %v3007
  %v3009 = vpop.f32.mrf.mxu0
  %v3010 = vadd.f32 0.0, %v3009
  %3011 = vmatmul.bf16.gmra.mxu0 %v2812
  %v3012 = vpop.f32.mrf.mxu0
  %v3013 = vadd.f32 0.0, %v3012
  %v3014 = vpop.f32.mrf.mxu0
  %v3015 = vadd.f32 0.0, %v3014
  %3016 = vmatmul.bf16.gmra.mxu0 %v2813
  %v3017 = vpop.f32.mrf.mxu0
  %v3018 = vadd.f32 0.0, %v3017
  %v3019 = vpop.f32.mrf.mxu0
  %v3020 = vadd.f32 0.0, %v3019
  %3021 = vmatmul.bf16.gmra.mxu0 %v2814
  %v3022 = vpop.f32.mrf.mxu0
  %v3023 = vadd.f32 0.0, %v3022
  %v3024 = vpop.f32.mrf.mxu0
  %v3025 = vadd.f32 0.0, %v3024
  %3026 = vmatmul.bf16.gmra.mxu0 %v2815
  %v3027 = vpop.f32.mrf.mxu0
  %v3028 = vadd.f32 0.0, %v3027
  %v3029 = vpop.f32.mrf.mxu0
  %v3030 = vadd.f32 0.0, %v3029
  %3031 = vmatmul.bf16.gmra.mxu0 %v2816
  %v3032 = vpop.f32.mrf.mxu0
  %v3033 = vadd.f32 0.0, %v3032
  %v3034 = vpop.f32.mrf.mxu0
  %v3035 = vadd.f32 0.0, %v3034
  %3036 = vmatmul.bf16.gmra.mxu0 %v2817
  %v3037 = vpop.f32.mrf.mxu0
  %v3038 = vadd.f32 0.0, %v3037
  %v3039 = vpop.f32.mrf.mxu0
  %v3040 = vadd.f32 0.0, %v3039
  %3041 = vmatmul.bf16.gmra.mxu0 %v2818
  %v3042 = vpop.f32.mrf.mxu0
  %v3043 = vadd.f32 0.0, %v3042
  %v3044 = vpop.f32.mrf.mxu0
  %v3045 = vadd.f32 0.0, %v3044
  %3046 = vmatmul.bf16.gmra.mxu0 %v2819
  %v3047 = vpop.f32.mrf.mxu0
  %v3048 = vadd.f32 0.0, %v3047
  %v3049 = vpop.f32.mrf.mxu0
  %v3050 = vadd.f32 0.0, %v3049
  %3051 = vmatmul.bf16.gmra.mxu0 %v2820
  %v3052 = vpop.f32.mrf.mxu0
  %v3053 = vadd.f32 0.0, %v3052
  %v3054 = vpop.f32.mrf.mxu0
  %v3055 = vadd.f32 0.0, %v3054
  %3056 = vmatmul.bf16.gmra.mxu0 %v2821
  %v3057 = vpop.f32.mrf.mxu0
  %v3058 = vadd.f32 0.0, %v3057
  %v3059 = vpop.f32.mrf.mxu0
  %v3060 = vadd.f32 0.0, %v3059
  %3061 = vmatmul.bf16.gmra.mxu0 %v2822
  %v3062 = vpop.f32.mrf.mxu0
  %v3063 = vadd.f32 0.0, %v3062
  %v3064 = vpop.f32.mrf.mxu0
  %v3065 = vadd.f32 0.0, %v3064
  %3066 = vmatmul.bf16.gmra.mxu0 %v2823
  %v3067 = vpop.f32.mrf.mxu0
  %v3068 = vadd.f32 0.0, %v3067
  %v3069 = vpop.f32.mrf.mxu0
  %v3070 = vadd.f32 0.0, %v3069
  %3071 = vmatmul.bf16.gmra.mxu0 %v2824
  %v3072 = vpop.f32.mrf.mxu0
  %v3073 = vadd.f32 0.0, %v3072
  %v3074 = vpop.f32.mrf.mxu0
  %v3075 = vadd.f32 0.0, %v3074
  %3076 = vmatmul.bf16.gmra.mxu0 %v2825
  %v3077 = vpop.f32.mrf.mxu0
  %v3078 = vadd.f32 0.0, %v3077
  %v3079 = vpop.f32.mrf.mxu0
  %v3080 = vadd.f32 0.0, %v3079
  %3081 = vmatmul.bf16.gmra.mxu0 %v2826
  %v3082 = vpop.f32.mrf.mxu0
  %v3083 = vadd.f32 0.0, %v3082
  %v3084 = vpop.f32.mrf.mxu0
  %v3085 = vadd.f32 0.0, %v3084
  %3086 = vmatmul.bf16.gmra.mxu0 %v2827
  %v3087 = vpop.f32.mrf.mxu0
  %v3088 = vadd.f32 0.0, %v3087
  %v3089 = vpop.f32.mrf.mxu0
  %v3090 = vadd.f32 0.0, %v3089
  %3091 = vmatmul.bf16.gmra.mxu0 %v2828
  %v3092 = vpop.f32.mrf.mxu0
  %v3093 = vadd.f32 0.0, %v3092
  %v3094 = vpop.f32.mrf.mxu0
  %3095 = vdwg.mxu0
  %v3096 = vadd.f32 %v2636, %v2903
  %v3097 = vadd.f32 %v2637, %v2905
  %v3098 = vadd.f32 %v2638, %v2908
  %v3099 = vadd.f32 %v2639, %v2910
  %v3100 = vadd.f32 %v2640, %v2913
  %v3101 = vadd.f32 %v2641, %v2915
  %v3102 = vadd.f32 %v2642, %v2918
  %v3103 = vadd.f32 %v2643, %v2920
  %v3104 = vadd.f32 %v2644, %v2923
  %v3105 = vadd.f32 %v2645, %v2925
  %v3106 = vadd.f32 %v2646, %v2928
  %v3107 = vadd.f32 %v2647, %v2930
  %v3108 = vadd.f32 %v2648, %v2933
  %v3109 = vadd.f32 %v2649, %v2935
  %v3110 = vadd.f32 %v2650, %v2938
  %v3111 = vadd.f32 %v2651, %v2940
  %v3112 = vadd.f32 %v2652, %v2943
  %v3113 = vadd.f32 %v2653, %v2945
  %v3114 = vadd.f32 %v2654, %v2948
  %v3115 = vadd.f32 %v2655, %v2950
  %v3116 = vadd.f32 %v2656, %v2953
  %v3117 = vadd.f32 %v2657, %v2955
  %v3118 = vadd.f32 %v2658, %v2958
  %v3119 = vadd.f32 %v2659, %v2960
  %v3120 = vadd.f32 %v2660, %v2963
  %v3121 = vadd.f32 %v2661, %v2965
  %v3122 = vadd.f32 %v2662, %v2968
  %v3123 = vadd.f32 %v2663, %v2970
  %v3124 = vadd.f32 %v2664, %v2973
  %v3125 = vadd.f32 %v2665, %v2975
  %v3126 = vadd.f32 %v2666, %v2978
  %v3127 = vadd.f32 %v2667, %v2980
  %v3128 = vadd.f32 %v2668, %v2983
  %v3129 = vadd.f32 %v2669, %v2985
  %v3130 = vadd.f32 %v2670, %v2988
  %v3131 = vadd.f32 %v2671, %v2990
  %v3132 = vadd.f32 %v2672, %v2993
  %v3133 = vadd.f32 %v2673, %v2995
  %v3134 = vadd.f32 %v2674, %v2998
  %v3135 = vadd.f32 %v2675, %v3000
  %v3136 = vadd.f32 %v2676, %v3003
  %v3137 = vadd.f32 %v2677, %v3005
  %v3138 = vadd.f32 %v2678, %v3008
  %v3139 = vadd.f32 %v2679, %v3010
  %v3140 = vadd.f32 %v2680, %v3013
  %v3141 = vadd.f32 %v2681, %v3015
  %v3142 = vadd.f32 %v2682, %v3018
  %v3143 = vadd.f32 %v2683, %v3020
  %v3144 = vadd.f32 %v2684, %v3023
  %v3145 = vadd.f32 %v2685, %v3025
  %v3146 = vadd.f32 %v2686, %v3028
  %v3147 = vadd.f32 %v2687, %v3030
  %v3148 = vadd.f32 %v2688, %v3033
  %v3149 = vadd.f32 %v2689, %v3035
  %v3150 = vadd.f32 %v2690, %v3038
  %v3151 = vadd.f32 %v2691, %v3040
  %v3152 = vadd.f32 %v2692, %v3043
  %v3153 = vadd.f32 %v2693, %v3045
  %v3154 = vadd.f32 %v2694, %v3048
  %v3155 = vadd.f32 %v2695, %v3050
  %v3156 = vadd.f32 %v2696, %v3053
  %v3157 = vadd.f32 %v2697, %v3055
  %v3158 = vadd.f32 %v2698, %v3058
  %v3159 = vadd.f32 %v2699, %v3060
  %v3160 = vadd.f32 %v2700, %v3063
  %v3161 = vadd.f32 %v2701, %v3065
  %v3162 = vadd.f32 %v2702, %v3068
  %v3163 = vadd.f32 %v2703, %v3070
  %v3164 = vadd.f32 %v2704, %v3073
  %v3165 = vadd.f32 %v2705, %v3075
  %v3166 = vadd.f32 %v2706, %v3078
  %v3167 = vadd.f32 %v2707, %v3080
  %v3168 = vadd.f32 %v2708, %v3083
  %v3169 = vadd.f32 %v2709, %v3085
  %v3170 = vadd.f32 %v2710, %v3088
  %v3171 = vadd.f32 %v2711, %v3090
  %v3172 = vadd.f32 %v2712, %v3093
  %v3173 = vld [vmem:[%s0 + $0x25] sm:$0xff]
  %v3174 = vld [vmem:[%s0 + $0x2d] sm:$0xff]
  %v3175 = vld [vmem:[%s0 + $0x35] sm:$0xff]
  %v3176 = vld [vmem:[%s0 + $0x3d] sm:$0xff]
  %v3177 = vld [vmem:[%s0 + $0x45] sm:$0xff]
  %v3178 = vld [vmem:[%s0 + $0x4d] sm:$0xff]
  %v3179 = vld [vmem:[%s0 + $0x55] sm:$0xff]
  %v3180 = vld [vmem:[%s0 + $0x5d] sm:$0xff]
  %v3181 = vld [vmem:[%s0 + $0x65] sm:$0xff]
  %v3182 = vld [vmem:[%s0 + $0x6d] sm:$0xff]
  %v3183 = vld [vmem:[%s0 + $0x75] sm:$0xff]
  %v3184 = vld [vmem:[%s0 + $0x7d] sm:$0xff]
  %v3185 = vld [vmem:[%s0 + $0x85] sm:$0xff]
  %v3186 = vld [vmem:[%s0 + $0x8d] sm:$0xff]
  %v3187 = vld [vmem:[%s0 + $0x95] sm:$0xff]
  %v3188 = vld [vmem:[%s0 + $0x9d] sm:$0xff]
  %v3189 = vld [vmem:[%s0 + $0xa5] sm:$0xff]
  %v3190 = vld [vmem:[%s0 + $0xad] sm:$0xff]
  %v3191 = vld [vmem:[%s0 + $0xb5] sm:$0xff]
  %v3192 = vld [vmem:[%s0 + $0xbd] sm:$0xff]
  %v3193 = vld [vmem:[%s0 + $0xc5] sm:$0xff]
  %v3194 = vld [vmem:[%s0 + $0xcd] sm:$0xff]
  %v3195 = vld [vmem:[%s0 + $0xd5] sm:$0xff]
  %v3196 = vld [vmem:[%s0 + $0xdd] sm:$0xff]
  %v3197 = vld [vmem:[%s0 + $0xe5] sm:$0xff]
  %v3198 = vld [vmem:[%s0 + $0xed] sm:$0xff]
  %v3199 = vld [vmem:[%s0 + $0xf5] sm:$0xff]
  %v3200 = vld [vmem:[%s0 + $0xfd] sm:$0xff]
  %v3201 = vld [vmem:[%s0 + $0x105] sm:$0xff]
  %v3202 = vld [vmem:[%s0 + $0x10d] sm:$0xff]
  %v3203 = vld [vmem:[%s0 + $0x115] sm:$0xff]
  %v3204 = vld [vmem:[%s0 + $0x11d] sm:$0xff]
  %v3205 = vld [vmem:[%s0 + $0x125] sm:$0xff]
  %v3206 = vld [vmem:[%s0 + $0x12d] sm:$0xff]
  %v3207 = vld [vmem:[%s0 + $0x135] sm:$0xff]
  %v3208 = vld [vmem:[%s0 + $0x13d] sm:$0xff]
  %v3209 = vld [vmem:[%s0 + $0x145] sm:$0xff]
  %v3210 = vld [vmem:[%s0 + $0x14d] sm:$0xff]
  %v3211 = vld [vmem:[%s0 + $0x155] sm:$0xff]
  %v3212 = vld [vmem:[%s0 + $0x15d] sm:$0xff]
  %v3213 = vld [vmem:[%s0 + $0x165] sm:$0xff]
  %v3214 = vld [vmem:[%s0 + $0x16d] sm:$0xff]
  %v3215 = vld [vmem:[%s0 + $0x175] sm:$0xff]
  %v3216 = vld [vmem:[%s0 + $0x17d] sm:$0xff]
  %v3217 = vld [vmem:[%s0 + $0x185] sm:$0xff]
  %v3218 = vld [vmem:[%s0 + $0x18d] sm:$0xff]
  %v3219 = vld [vmem:[%s0 + $0x195] sm:$0xff]
  %v3220 = vld [vmem:[%s0 + $0x19d] sm:$0xff]
  %v3221 = vld [vmem:[%s0 + $0x1a5] sm:$0xff]
  %v3222 = vld [vmem:[%s0 + $0x1ad] sm:$0xff]
  %v3223 = vld [vmem:[%s0 + $0x1b5] sm:$0xff]
  %v3224 = vld [vmem:[%s0 + $0x1bd] sm:$0xff]
  %v3225 = vld [vmem:[%s0 + $0x1c5] sm:$0xff]
  %v3226 = vld [vmem:[%s0 + $0x1cd] sm:$0xff]
  %v3227 = vld [vmem:[%s0 + $0x1d5] sm:$0xff]
  %v3228 = vld [vmem:[%s0 + $0x1dd] sm:$0xff]
  %v3229 = vld [vmem:[%s0 + $0x1e5] sm:$0xff]
  %v3230 = vld [vmem:[%s0 + $0x1ed] sm:$0xff]
  %v3231 = vld [vmem:[%s0 + $0x1f5] sm:$0xff]
  %v3232 = vld [vmem:[%s0 + $0x1fd] sm:$0xff]
  %v3233 = vld [vmem:[%s0 + $0x205] sm:$0xff]
  %v3234 = vld [vmem:[%s0 + $0x20d] sm:$0xff]
  %v3235 = vld [vmem:[%s0 + $0x215] sm:$0xff]
  %v3236 = vld [vmem:[%s0 + $0x21d] sm:$0xff]
  %v3237 = vld [vmem:[%s0 + $0x225] sm:$0xff]
  %v3238 = vld [vmem:[%s0 + $0x22d] sm:$0xff]
  %v3239 = vld [vmem:[%s0 + $0x235] sm:$0xff]
  %v3240 = vld [vmem:[%s0 + $0x23d] sm:$0xff]
  %v3241 = vld [vmem:[%s0 + $0x245] sm:$0xff]
  %v3242 = vld [vmem:[%s0 + $0x24d] sm:$0xff]
  %v3243 = vld [vmem:[%s0 + $0x255] sm:$0xff]
  %v3244 = vld [vmem:[%s0 + $0x25d] sm:$0xff]
  %v3245 = vld [vmem:[%s0 + $0x265] sm:$0xff]
  %v3246 = vld [vmem:[%s0 + $0x26d] sm:$0xff]
  %v3247 = vld [vmem:[%s0 + $0x275] sm:$0xff]
  %v3248 = vld [vmem:[%s0 + $0x27d] sm:$0xff]
  %v3249 = vld [vmem:[%s0 + $0x285] sm:$0xff]
  %v3250 = vpack.c.bf16 %v3174, %v3173
  %v3251 = vpack.c.bf16 %v3176, %v3175
  %v3252 = vpack.c.bf16 %v3178, %v3177
  %v3253 = vpack.c.bf16 %v3180, %v3179
  %v3254 = vpack.c.bf16 %v3182, %v3181
  %v3255 = vpack.c.bf16 %v3184, %v3183
  %v3256 = vpack.c.bf16 %v3186, %v3185
  %v3257 = vpack.c.bf16 %v3188, %v3187
  %v3258 = vpack.c.bf16 %v3190, %v3189
  %v3259 = vpack.c.bf16 %v3192, %v3191
  %v3260 = vpack.c.bf16 %v3194, %v3193
  %v3261 = vpack.c.bf16 %v3196, %v3195
  %v3262 = vpack.c.bf16 %v3198, %v3197
  %v3263 = vpack.c.bf16 %v3200, %v3199
  %v3264 = vpack.c.bf16 %v3202, %v3201
  %v3265 = vpack.c.bf16 %v3204, %v3203
  %v3266 = vpack.c.bf16 %v3206, %v3205
  %v3267 = vpack.c.bf16 %v3208, %v3207
  %v3268 = vpack.c.bf16 %v3210, %v3209
  %v3269 = vpack.c.bf16 %v3212, %v3211
  %v3270 = vpack.c.bf16 %v3214, %v3213
  %v3271 = vpack.c.bf16 %v3216, %v3215
  %v3272 = vpack.c.bf16 %v3218, %v3217
  %v3273 = vpack.c.bf16 %v3220, %v3219
  %v3274 = vpack.c.bf16 %v3222, %v3221
  %v3275 = vpack.c.bf16 %v3224, %v3223
  %v3276 = vpack.c.bf16 %v3226, %v3225
  %v3277 = vpack.c.bf16 %v3228, %v3227
  %v3278 = vpack.c.bf16 %v3230, %v3229
  %v3279 = vpack.c.bf16 %v3232, %v3231
  %v3280 = vpack.c.bf16 %v3234, %v3233
  %v3281 = vpack.c.bf16 %v3236, %v3235
  %v3282 = vpack.c.bf16 %v3238, %v3237
  %v3283 = vpack.c.bf16 %v3240, %v3239
  %v3284 = vpack.c.bf16 %v3242, %v3241
  %v3285 = vpack.c.bf16 %v3244, %v3243
  %v3286 = vpack.c.bf16 %v3246, %v3245
  %v3287 = vpack.c.bf16 %v3248, %v3247
  %v3288 = vpack.c.bf16 %v3249, %v3249
  %v3289 = vld [vmem:[%s1 + $0x1c0] sm:$0xf]
  %v3290 = vld [vmem:[%s1 + $0x1c4] sm:$0xf]
  %v3291 = vld [vmem:[%s1 + $0x1c8] sm:$0xf]
  %v3292 = vld [vmem:[%s1 + $0x1cc] sm:$0xf]
  %v3293 = vld [vmem:[%s1 + $0x1d0] sm:$0xf]
  %v3294 = vld [vmem:[%s1 + $0x1d4] sm:$0xf]
  %v3295 = vld [vmem:[%s1 + $0x1d8] sm:$0xf]
  %v3296 = vld [vmem:[%s1 + $0x1dc] sm:$0xf]
  %v3297 = vld [vmem:[%s1 + $0x1e0] sm:$0xf]
  %v3298 = vld [vmem:[%s1 + $0x1e4] sm:$0xf]
  %v3299 = vld [vmem:[%s1 + $0x1e8] sm:$0xf]
  %v3300 = vld [vmem:[%s1 + $0x1ec] sm:$0xf]
  %v3301 = vld [vmem:[%s1 + $0x1f0] sm:$0xf]
  %v3302 = vld [vmem:[%s1 + $0x1f4] sm:$0xf]
  %v3303 = vld [vmem:[%s1 + $0x1f8] sm:$0xf]
  %v3304 = vld [vmem:[%s1 + $0x1fc] sm:$0xf]
  %v3321 = vunpack.c.l.b16 %v3289
  %v3322 = vunpack.c.l.b16 %v3290
  %v3323 = vunpack.c.l.b16 %v3291
  %v3324 = vunpack.c.l.b16 %v3292
  %v3325 = vunpack.c.l.b16 %v3293
  %v3326 = vunpack.c.l.b16 %v3294
  %v3327 = vunpack.c.l.b16 %v3295
  %v3328 = vunpack.c.l.b16 %v3296
  %v3329 = vunpack.c.l.b16 %v3297
  %v3330 = vunpack.c.l.b16 %v3298
  %v3331 = vunpack.c.l.b16 %v3299
  %v3332 = vunpack.c.l.b16 %v3300
  %v3333 = vunpack.c.l.b16 %v3301
  %v3334 = vunpack.c.l.b16 %v3302
  %v3335 = vunpack.c.l.b16 %v3303
  %v3336 = vunpack.c.l.b16 %v3304
  %v3337 = vpack.c.b16 %v3322, %v3321
  %v3338 = vpack.c.b16 %v3324, %v3323
  %v3339 = vpack.c.b16 %v3326, %v3325
  %v3340 = vpack.c.b16 %v3328, %v3327
  %v3341 = vpack.c.b16 %v3330, %v3329
  %v3342 = vpack.c.b16 %v3332, %v3331
  %v3343 = vpack.c.b16 %v3334, %v3333
  %v3344 = vpack.c.b16 %v3336, %v3335
  %3353 = vmatpush.bf16.msra.mxu0 %v3344
  %3354 = vmatpush.bf16.msra.mxu0 %v3343
  %3355 = vmatpush.bf16.msra.mxu0 %v3342
  %3356 = vmatpush.bf16.msra.mxu0 %v3341
  %3357 = vmatpush.bf16.msra.mxu0 %v3340
  %3358 = vmatpush.bf16.msra.mxu0 %v3339
  %3359 = vmatpush.bf16.msra.mxu0 %v3338
  %3360 = vmatpush.bf16.msra.mxu0 %v3337
  %3361 = vmatmul.bf16.gmra.mxu0 %v3250
  %v3362 = vpop.f32.mrf.mxu0
  %v3363 = vadd.f32 0.0, %v3362
  %v3364 = vpop.f32.mrf.mxu0
  %v3365 = vadd.f32 0.0, %v3364
  %3366 = vmatmul.bf16.gmra.mxu0 %v3251
  %v3367 = vpop.f32.mrf.mxu0
  %v3368 = vadd.f32 0.0, %v3367
  %v3369 = vpop.f32.mrf.mxu0
  %v3370 = vadd.f32 0.0, %v3369
  %3371 = vmatmul.bf16.gmra.mxu0 %v3252
  %v3372 = vpop.f32.mrf.mxu0
  %v3373 = vadd.f32 0.0, %v3372
  %v3374 = vpop.f32.mrf.mxu0
  %v3375 = vadd.f32 0.0, %v3374
  %3376 = vmatmul.bf16.gmra.mxu0 %v3253
  %v3377 = vpop.f32.mrf.mxu0
  %v3378 = vadd.f32 0.0, %v3377
  %v3379 = vpop.f32.mrf.mxu0
  %v3380 = vadd.f32 0.0, %v3379
  %3381 = vmatmul.bf16.gmra.mxu0 %v3254
  %v3382 = vpop.f32.mrf.mxu0
  %v3383 = vadd.f32 0.0, %v3382
  %v3384 = vpop.f32.mrf.mxu0
  %v3385 = vadd.f32 0.0, %v3384
  %3386 = vmatmul.bf16.gmra.mxu0 %v3255
  %v3387 = vpop.f32.mrf.mxu0
  %v3388 = vadd.f32 0.0, %v3387
  %v3389 = vpop.f32.mrf.mxu0
  %v3390 = vadd.f32 0.0, %v3389
  %3391 = vmatmul.bf16.gmra.mxu0 %v3256
  %v3392 = vpop.f32.mrf.mxu0
  %v3393 = vadd.f32 0.0, %v3392
  %v3394 = vpop.f32.mrf.mxu0
  %v3395 = vadd.f32 0.0, %v3394
  %3396 = vmatmul.bf16.gmra.mxu0 %v3257
  %v3397 = vpop.f32.mrf.mxu0
  %v3398 = vadd.f32 0.0, %v3397
  %v3399 = vpop.f32.mrf.mxu0
  %v3400 = vadd.f32 0.0, %v3399
  %3401 = vmatmul.bf16.gmra.mxu0 %v3258
  %v3402 = vpop.f32.mrf.mxu0
  %v3403 = vadd.f32 0.0, %v3402
  %v3404 = vpop.f32.mrf.mxu0
  %v3405 = vadd.f32 0.0, %v3404
  %3406 = vmatmul.bf16.gmra.mxu0 %v3259
  %v3407 = vpop.f32.mrf.mxu0
  %v3408 = vadd.f32 0.0, %v3407
  %v3409 = vpop.f32.mrf.mxu0
  %v3410 = vadd.f32 0.0, %v3409
  %3411 = vmatmul.bf16.gmra.mxu0 %v3260
  %v3412 = vpop.f32.mrf.mxu0
  %v3413 = vadd.f32 0.0, %v3412
  %v3414 = vpop.f32.mrf.mxu0
  %v3415 = vadd.f32 0.0, %v3414
  %3416 = vmatmul.bf16.gmra.mxu0 %v3261
  %v3417 = vpop.f32.mrf.mxu0
  %v3418 = vadd.f32 0.0, %v3417
  %v3419 = vpop.f32.mrf.mxu0
  %v3420 = vadd.f32 0.0, %v3419
  %3421 = vmatmul.bf16.gmra.mxu0 %v3262
  %v3422 = vpop.f32.mrf.mxu0
  %v3423 = vadd.f32 0.0, %v3422
  %v3424 = vpop.f32.mrf.mxu0
  %v3425 = vadd.f32 0.0, %v3424
  %3426 = vmatmul.bf16.gmra.mxu0 %v3263
  %v3427 = vpop.f32.mrf.mxu0
  %v3428 = vadd.f32 0.0, %v3427
  %v3429 = vpop.f32.mrf.mxu0
  %v3430 = vadd.f32 0.0, %v3429
  %3431 = vmatmul.bf16.gmra.mxu0 %v3264
  %v3432 = vpop.f32.mrf.mxu0
  %v3433 = vadd.f32 0.0, %v3432
  %v3434 = vpop.f32.mrf.mxu0
  %v3435 = vadd.f32 0.0, %v3434
  %3436 = vmatmul.bf16.gmra.mxu0 %v3265
  %v3437 = vpop.f32.mrf.mxu0
  %v3438 = vadd.f32 0.0, %v3437
  %v3439 = vpop.f32.mrf.mxu0
  %v3440 = vadd.f32 0.0, %v3439
  %3441 = vmatmul.bf16.gmra.mxu0 %v3266
  %v3442 = vpop.f32.mrf.mxu0
  %v3443 = vadd.f32 0.0, %v3442
  %v3444 = vpop.f32.mrf.mxu0
  %v3445 = vadd.f32 0.0, %v3444
  %3446 = vmatmul.bf16.gmra.mxu0 %v3267
  %v3447 = vpop.f32.mrf.mxu0
  %v3448 = vadd.f32 0.0, %v3447
  %v3449 = vpop.f32.mrf.mxu0
  %v3450 = vadd.f32 0.0, %v3449
  %3451 = vmatmul.bf16.gmra.mxu0 %v3268
  %v3452 = vpop.f32.mrf.mxu0
  %v3453 = vadd.f32 0.0, %v3452
  %v3454 = vpop.f32.mrf.mxu0
  %v3455 = vadd.f32 0.0, %v3454
  %3456 = vmatmul.bf16.gmra.mxu0 %v3269
  %v3457 = vpop.f32.mrf.mxu0
  %v3458 = vadd.f32 0.0, %v3457
  %v3459 = vpop.f32.mrf.mxu0
  %v3460 = vadd.f32 0.0, %v3459
  %3461 = vmatmul.bf16.gmra.mxu0 %v3270
  %v3462 = vpop.f32.mrf.mxu0
  %v3463 = vadd.f32 0.0, %v3462
  %v3464 = vpop.f32.mrf.mxu0
  %v3465 = vadd.f32 0.0, %v3464
  %3466 = vmatmul.bf16.gmra.mxu0 %v3271
  %v3467 = vpop.f32.mrf.mxu0
  %v3468 = vadd.f32 0.0, %v3467
  %v3469 = vpop.f32.mrf.mxu0
  %v3470 = vadd.f32 0.0, %v3469
  %3471 = vmatmul.bf16.gmra.mxu0 %v3272
  %v3472 = vpop.f32.mrf.mxu0
  %v3473 = vadd.f32 0.0, %v3472
  %v3474 = vpop.f32.mrf.mxu0
  %v3475 = vadd.f32 0.0, %v3474
  %3476 = vmatmul.bf16.gmra.mxu0 %v3273
  %v3477 = vpop.f32.mrf.mxu0
  %v3478 = vadd.f32 0.0, %v3477
  %v3479 = vpop.f32.mrf.mxu0
  %v3480 = vadd.f32 0.0, %v3479
  %3481 = vmatmul.bf16.gmra.mxu0 %v3274
  %v3482 = vpop.f32.mrf.mxu0
  %v3483 = vadd.f32 0.0, %v3482
  %v3484 = vpop.f32.mrf.mxu0
  %v3485 = vadd.f32 0.0, %v3484
  %3486 = vmatmul.bf16.gmra.mxu0 %v3275
  %v3487 = vpop.f32.mrf.mxu0
  %v3488 = vadd.f32 0.0, %v3487
  %v3489 = vpop.f32.mrf.mxu0
  %v3490 = vadd.f32 0.0, %v3489
  %3491 = vmatmul.bf16.gmra.mxu0 %v3276
  %v3492 = vpop.f32.mrf.mxu0
  %v3493 = vadd.f32 0.0, %v3492
  %v3494 = vpop.f32.mrf.mxu0
  %v3495 = vadd.f32 0.0, %v3494
  %3496 = vmatmul.bf16.gmra.mxu0 %v3277
  %v3497 = vpop.f32.mrf.mxu0
  %v3498 = vadd.f32 0.0, %v3497
  %v3499 = vpop.f32.mrf.mxu0
  %v3500 = vadd.f32 0.0, %v3499
  %3501 = vmatmul.bf16.gmra.mxu0 %v3278
  %v3502 = vpop.f32.mrf.mxu0
  %v3503 = vadd.f32 0.0, %v3502
  %v3504 = vpop.f32.mrf.mxu0
  %v3505 = vadd.f32 0.0, %v3504
  %3506 = vmatmul.bf16.gmra.mxu0 %v3279
  %v3507 = vpop.f32.mrf.mxu0
  %v3508 = vadd.f32 0.0, %v3507
  %v3509 = vpop.f32.mrf.mxu0
  %v3510 = vadd.f32 0.0, %v3509
  %3511 = vmatmul.bf16.gmra.mxu0 %v3280
  %v3512 = vpop.f32.mrf.mxu0
  %v3513 = vadd.f32 0.0, %v3512
  %v3514 = vpop.f32.mrf.mxu0
  %v3515 = vadd.f32 0.0, %v3514
  %3516 = vmatmul.bf16.gmra.mxu0 %v3281
  %v3517 = vpop.f32.mrf.mxu0
  %v3518 = vadd.f32 0.0, %v3517
  %v3519 = vpop.f32.mrf.mxu0
  %v3520 = vadd.f32 0.0, %v3519
  %3521 = vmatmul.bf16.gmra.mxu0 %v3282
  %v3522 = vpop.f32.mrf.mxu0
  %v3523 = vadd.f32 0.0, %v3522
  %v3524 = vpop.f32.mrf.mxu0
  %v3525 = vadd.f32 0.0, %v3524
  %3526 = vmatmul.bf16.gmra.mxu0 %v3283
  %v3527 = vpop.f32.mrf.mxu0
  %v3528 = vadd.f32 0.0, %v3527
  %v3529 = vpop.f32.mrf.mxu0
  %v3530 = vadd.f32 0.0, %v3529
  %3531 = vmatmul.bf16.gmra.mxu0 %v3284
  %v3532 = vpop.f32.mrf.mxu0
  %v3533 = vadd.f32 0.0, %v3532
  %v3534 = vpop.f32.mrf.mxu0
  %v3535 = vadd.f32 0.0, %v3534
  %3536 = vmatmul.bf16.gmra.mxu0 %v3285
  %v3537 = vpop.f32.mrf.mxu0
  %v3538 = vadd.f32 0.0, %v3537
  %v3539 = vpop.f32.mrf.mxu0
  %v3540 = vadd.f32 0.0, %v3539
  %3541 = vmatmul.bf16.gmra.mxu0 %v3286
  %v3542 = vpop.f32.mrf.mxu0
  %v3543 = vadd.f32 0.0, %v3542
  %v3544 = vpop.f32.mrf.mxu0
  %v3545 = vadd.f32 0.0, %v3544
  %3546 = vmatmul.bf16.gmra.mxu0 %v3287
  %v3547 = vpop.f32.mrf.mxu0
  %v3548 = vadd.f32 0.0, %v3547
  %v3549 = vpop.f32.mrf.mxu0
  %v3550 = vadd.f32 0.0, %v3549
  %3551 = vmatmul.bf16.gmra.mxu0 %v3288
  %v3552 = vpop.f32.mrf.mxu0
  %v3553 = vadd.f32 0.0, %v3552
  %v3554 = vpop.f32.mrf.mxu0
  %3555 = vdwg.mxu0
  %v3556 = vadd.f32 %v3096, %v3363
  %v3557 = vadd.f32 %v3097, %v3365
  %v3558 = vadd.f32 %v3098, %v3368
  %v3559 = vadd.f32 %v3099, %v3370
  %v3560 = vadd.f32 %v3100, %v3373
  %v3561 = vadd.f32 %v3101, %v3375
  %v3562 = vadd.f32 %v3102, %v3378
  %v3563 = vadd.f32 %v3103, %v3380
  %v3564 = vadd.f32 %v3104, %v3383
  %v3565 = vadd.f32 %v3105, %v3385
  %v3566 = vadd.f32 %v3106, %v3388
  %v3567 = vadd.f32 %v3107, %v3390
  %v3568 = vadd.f32 %v3108, %v3393
  %v3569 = vadd.f32 %v3109, %v3395
  %v3570 = vadd.f32 %v3110, %v3398
  %v3571 = vadd.f32 %v3111, %v3400
  %v3572 = vadd.f32 %v3112, %v3403
  %v3573 = vadd.f32 %v3113, %v3405
  %v3574 = vadd.f32 %v3114, %v3408
  %v3575 = vadd.f32 %v3115, %v3410
  %v3576 = vadd.f32 %v3116, %v3413
  %v3577 = vadd.f32 %v3117, %v3415
  %v3578 = vadd.f32 %v3118, %v3418
  %v3579 = vadd.f32 %v3119, %v3420
  %v3580 = vadd.f32 %v3120, %v3423
  %v3581 = vadd.f32 %v3121, %v3425
  %v3582 = vadd.f32 %v3122, %v3428
  %v3583 = vadd.f32 %v3123, %v3430
  %v3584 = vadd.f32 %v3124, %v3433
  %v3585 = vadd.f32 %v3125, %v3435
  %v3586 = vadd.f32 %v3126, %v3438
  %v3587 = vadd.f32 %v3127, %v3440
  %v3588 = vadd.f32 %v3128, %v3443
  %v3589 = vadd.f32 %v3129, %v3445
  %v3590 = vadd.f32 %v3130, %v3448
  %v3591 = vadd.f32 %v3131, %v3450
  %v3592 = vadd.f32 %v3132, %v3453
  %v3593 = vadd.f32 %v3133, %v3455
  %v3594 = vadd.f32 %v3134, %v3458
  %v3595 = vadd.f32 %v3135, %v3460
  %v3596 = vadd.f32 %v3136, %v3463
  %v3597 = vadd.f32 %v3137, %v3465
  %v3598 = vadd.f32 %v3138, %v3468
  %v3599 = vadd.f32 %v3139, %v3470
  %v3600 = vadd.f32 %v3140, %v3473
  %v3601 = vadd.f32 %v3141, %v3475
  %v3602 = vadd.f32 %v3142, %v3478
  %v3603 = vadd.f32 %v3143, %v3480
  %v3604 = vadd.f32 %v3144, %v3483
  %v3605 = vadd.f32 %v3145, %v3485
  %v3606 = vadd.f32 %v3146, %v3488
  %v3607 = vadd.f32 %v3147, %v3490
  %v3608 = vadd.f32 %v3148, %v3493
  %v3609 = vadd.f32 %v3149, %v3495
  %v3610 = vadd.f32 %v3150, %v3498
  %v3611 = vadd.f32 %v3151, %v3500
  %v3612 = vadd.f32 %v3152, %v3503
  %v3613 = vadd.f32 %v3153, %v3505
  %v3614 = vadd.f32 %v3154, %v3508
  %v3615 = vadd.f32 %v3155, %v3510
  %v3616 = vadd.f32 %v3156, %v3513
  %v3617 = vadd.f32 %v3157, %v3515
  %v3618 = vadd.f32 %v3158, %v3518
  %v3619 = vadd.f32 %v3159, %v3520
  %v3620 = vadd.f32 %v3160, %v3523
  %v3621 = vadd.f32 %v3161, %v3525
  %v3622 = vadd.f32 %v3162, %v3528
  %v3623 = vadd.f32 %v3163, %v3530
  %v3624 = vadd.f32 %v3164, %v3533
  %v3625 = vadd.f32 %v3165, %v3535
  %v3626 = vadd.f32 %v3166, %v3538
  %v3627 = vadd.f32 %v3167, %v3540
  %v3628 = vadd.f32 %v3168, %v3543
  %v3629 = vadd.f32 %v3169, %v3545
  %v3630 = vadd.f32 %v3170, %v3548
  %v3631 = vadd.f32 %v3171, %v3550
  %v3632 = vadd.f32 %v3172, %v3553
  %v3633 = vld [vmem:[%s0 + $0x26] sm:$0xff]
  %v3634 = vld [vmem:[%s0 + $0x2e] sm:$0xff]
  %v3635 = vld [vmem:[%s0 + $0x36] sm:$0xff]
  %v3636 = vld [vmem:[%s0 + $0x3e] sm:$0xff]
  %v3637 = vld [vmem:[%s0 + $0x46] sm:$0xff]
  %v3638 = vld [vmem:[%s0 + $0x4e] sm:$0xff]
  %v3639 = vld [vmem:[%s0 + $0x56] sm:$0xff]
  %v3640 = vld [vmem:[%s0 + $0x5e] sm:$0xff]
  %v3641 = vld [vmem:[%s0 + $0x66] sm:$0xff]
  %v3642 = vld [vmem:[%s0 + $0x6e] sm:$0xff]
  %v3643 = vld [vmem:[%s0 + $0x76] sm:$0xff]
  %v3644 = vld [vmem:[%s0 + $0x7e] sm:$0xff]
  %v3645 = vld [vmem:[%s0 + $0x86] sm:$0xff]
  %v3646 = vld [vmem:[%s0 + $0x8e] sm:$0xff]
  %v3647 = vld [vmem:[%s0 + $0x96] sm:$0xff]
  %v3648 = vld [vmem:[%s0 + $0x9e] sm:$0xff]
  %v3649 = vld [vmem:[%s0 + $0xa6] sm:$0xff]
  %v3650 = vld [vmem:[%s0 + $0xae] sm:$0xff]
  %v3651 = vld [vmem:[%s0 + $0xb6] sm:$0xff]
  %v3652 = vld [vmem:[%s0 + $0xbe] sm:$0xff]
  %v3653 = vld [vmem:[%s0 + $0xc6] sm:$0xff]
  %v3654 = vld [vmem:[%s0 + $0xce] sm:$0xff]
  %v3655 = vld [vmem:[%s0 + $0xd6] sm:$0xff]
  %v3656 = vld [vmem:[%s0 + $0xde] sm:$0xff]
  %v3657 = vld [vmem:[%s0 + $0xe6] sm:$0xff]
  %v3658 = vld [vmem:[%s0 + $0xee] sm:$0xff]
  %v3659 = vld [vmem:[%s0 + $0xf6] sm:$0xff]
  %v3660 = vld [vmem:[%s0 + $0xfe] sm:$0xff]
  %v3661 = vld [vmem:[%s0 + $0x106] sm:$0xff]
  %v3662 = vld [vmem:[%s0 + $0x10e] sm:$0xff]
  %v3663 = vld [vmem:[%s0 + $0x116] sm:$0xff]
  %v3664 = vld [vmem:[%s0 + $0x11e] sm:$0xff]
  %v3665 = vld [vmem:[%s0 + $0x126] sm:$0xff]
  %v3666 = vld [vmem:[%s0 + $0x12e] sm:$0xff]
  %v3667 = vld [vmem:[%s0 + $0x136] sm:$0xff]
  %v3668 = vld [vmem:[%s0 + $0x13e] sm:$0xff]
  %v3669 = vld [vmem:[%s0 + $0x146] sm:$0xff]
  %v3670 = vld [vmem:[%s0 + $0x14e] sm:$0xff]
  %v3671 = vld [vmem:[%s0 + $0x156] sm:$0xff]
  %v3672 = vld [vmem:[%s0 + $0x15e] sm:$0xff]
  %v3673 = vld [vmem:[%s0 + $0x166] sm:$0xff]
  %v3674 = vld [vmem:[%s0 + $0x16e] sm:$0xff]
  %v3675 = vld [vmem:[%s0 + $0x176] sm:$0xff]
  %v3676 = vld [vmem:[%s0 + $0x17e] sm:$0xff]
  %v3677 = vld [vmem:[%s0 + $0x186] sm:$0xff]
  %v3678 = vld [vmem:[%s0 + $0x18e] sm:$0xff]
  %v3679 = vld [vmem:[%s0 + $0x196] sm:$0xff]
  %v3680 = vld [vmem:[%s0 + $0x19e] sm:$0xff]
  %v3681 = vld [vmem:[%s0 + $0x1a6] sm:$0xff]
  %v3682 = vld [vmem:[%s0 + $0x1ae] sm:$0xff]
  %v3683 = vld [vmem:[%s0 + $0x1b6] sm:$0xff]
  %v3684 = vld [vmem:[%s0 + $0x1be] sm:$0xff]
  %v3685 = vld [vmem:[%s0 + $0x1c6] sm:$0xff]
  %v3686 = vld [vmem:[%s0 + $0x1ce] sm:$0xff]
  %v3687 = vld [vmem:[%s0 + $0x1d6] sm:$0xff]
  %v3688 = vld [vmem:[%s0 + $0x1de] sm:$0xff]
  %v3689 = vld [vmem:[%s0 + $0x1e6] sm:$0xff]
  %v3690 = vld [vmem:[%s0 + $0x1ee] sm:$0xff]
  %v3691 = vld [vmem:[%s0 + $0x1f6] sm:$0xff]
  %v3692 = vld [vmem:[%s0 + $0x1fe] sm:$0xff]
  %v3693 = vld [vmem:[%s0 + $0x206] sm:$0xff]
  %v3694 = vld [vmem:[%s0 + $0x20e] sm:$0xff]
  %v3695 = vld [vmem:[%s0 + $0x216] sm:$0xff]
  %v3696 = vld [vmem:[%s0 + $0x21e] sm:$0xff]
  %v3697 = vld [vmem:[%s0 + $0x226] sm:$0xff]
  %v3698 = vld [vmem:[%s0 + $0x22e] sm:$0xff]
  %v3699 = vld [vmem:[%s0 + $0x236] sm:$0xff]
  %v3700 = vld [vmem:[%s0 + $0x23e] sm:$0xff]
  %v3701 = vld [vmem:[%s0 + $0x246] sm:$0xff]
  %v3702 = vld [vmem:[%s0 + $0x24e] sm:$0xff]
  %v3703 = vld [vmem:[%s0 + $0x256] sm:$0xff]
  %v3704 = vld [vmem:[%s0 + $0x25e] sm:$0xff]
  %v3705 = vld [vmem:[%s0 + $0x266] sm:$0xff]
  %v3706 = vld [vmem:[%s0 + $0x26e] sm:$0xff]
  %v3707 = vld [vmem:[%s0 + $0x276] sm:$0xff]
  %v3708 = vld [vmem:[%s0 + $0x27e] sm:$0xff]
  %v3709 = vld [vmem:[%s0 + $0x286] sm:$0xff]
  %v3710 = vpack.c.bf16 %v3634, %v3633
  %v3711 = vpack.c.bf16 %v3636, %v3635
  %v3712 = vpack.c.bf16 %v3638, %v3637
  %v3713 = vpack.c.bf16 %v3640, %v3639
  %v3714 = vpack.c.bf16 %v3642, %v3641
  %v3715 = vpack.c.bf16 %v3644, %v3643
  %v3716 = vpack.c.bf16 %v3646, %v3645
  %v3717 = vpack.c.bf16 %v3648, %v3647
  %v3718 = vpack.c.bf16 %v3650, %v3649
  %v3719 = vpack.c.bf16 %v3652, %v3651
  %v3720 = vpack.c.bf16 %v3654, %v3653
  %v3721 = vpack.c.bf16 %v3656, %v3655
  %v3722 = vpack.c.bf16 %v3658, %v3657
  %v3723 = vpack.c.bf16 %v3660, %v3659
  %v3724 = vpack.c.bf16 %v3662, %v3661
  %v3725 = vpack.c.bf16 %v3664, %v3663
  %v3726 = vpack.c.bf16 %v3666, %v3665
  %v3727 = vpack.c.bf16 %v3668, %v3667
  %v3728 = vpack.c.bf16 %v3670, %v3669
  %v3729 = vpack.c.bf16 %v3672, %v3671
  %v3730 = vpack.c.bf16 %v3674, %v3673
  %v3731 = vpack.c.bf16 %v3676, %v3675
  %v3732 = vpack.c.bf16 %v3678, %v3677
  %v3733 = vpack.c.bf16 %v3680, %v3679
  %v3734 = vpack.c.bf16 %v3682, %v3681
  %v3735 = vpack.c.bf16 %v3684, %v3683
  %v3736 = vpack.c.bf16 %v3686, %v3685
  %v3737 = vpack.c.bf16 %v3688, %v3687
  %v3738 = vpack.c.bf16 %v3690, %v3689
  %v3739 = vpack.c.bf16 %v3692, %v3691
  %v3740 = vpack.c.bf16 %v3694, %v3693
  %v3741 = vpack.c.bf16 %v3696, %v3695
  %v3742 = vpack.c.bf16 %v3698, %v3697
  %v3743 = vpack.c.bf16 %v3700, %v3699
  %v3744 = vpack.c.bf16 %v3702, %v3701
  %v3745 = vpack.c.bf16 %v3704, %v3703
  %v3746 = vpack.c.bf16 %v3706, %v3705
  %v3747 = vpack.c.bf16 %v3708, %v3707
  %v3748 = vpack.c.bf16 %v3709, %v3709
  %v3749 = vld [vmem:[%s1 + $0x200] sm:$0xf]
  %v3750 = vld [vmem:[%s1 + $0x204] sm:$0xf]
  %v3751 = vld [vmem:[%s1 + $0x208] sm:$0xf]
  %v3752 = vld [vmem:[%s1 + $0x20c] sm:$0xf]
  %v3753 = vld [vmem:[%s1 + $0x210] sm:$0xf]
  %v3754 = vld [vmem:[%s1 + $0x214] sm:$0xf]
  %v3755 = vld [vmem:[%s1 + $0x218] sm:$0xf]
  %v3756 = vld [vmem:[%s1 + $0x21c] sm:$0xf]
  %v3757 = vld [vmem:[%s1 + $0x220] sm:$0xf]
  %v3758 = vld [vmem:[%s1 + $0x224] sm:$0xf]
  %v3759 = vld [vmem:[%s1 + $0x228] sm:$0xf]
  %v3760 = vld [vmem:[%s1 + $0x22c] sm:$0xf]
  %v3761 = vld [vmem:[%s1 + $0x230] sm:$0xf]
  %v3762 = vld [vmem:[%s1 + $0x234] sm:$0xf]
  %v3763 = vld [vmem:[%s1 + $0x238] sm:$0xf]
  %v3764 = vld [vmem:[%s1 + $0x23c] sm:$0xf]
  %v3781 = vunpack.c.l.b16 %v3749
  %v3782 = vunpack.c.l.b16 %v3750
  %v3783 = vunpack.c.l.b16 %v3751
  %v3784 = vunpack.c.l.b16 %v3752
  %v3785 = vunpack.c.l.b16 %v3753
  %v3786 = vunpack.c.l.b16 %v3754
  %v3787 = vunpack.c.l.b16 %v3755
  %v3788 = vunpack.c.l.b16 %v3756
  %v3789 = vunpack.c.l.b16 %v3757
  %v3790 = vunpack.c.l.b16 %v3758
  %v3791 = vunpack.c.l.b16 %v3759
  %v3792 = vunpack.c.l.b16 %v3760
  %v3793 = vunpack.c.l.b16 %v3761
  %v3794 = vunpack.c.l.b16 %v3762
  %v3795 = vunpack.c.l.b16 %v3763
  %v3796 = vunpack.c.l.b16 %v3764
  %v3797 = vpack.c.b16 %v3782, %v3781
  %v3798 = vpack.c.b16 %v3784, %v3783
  %v3799 = vpack.c.b16 %v3786, %v3785
  %v3800 = vpack.c.b16 %v3788, %v3787
  %v3801 = vpack.c.b16 %v3790, %v3789
  %v3802 = vpack.c.b16 %v3792, %v3791
  %v3803 = vpack.c.b16 %v3794, %v3793
  %v3804 = vpack.c.b16 %v3796, %v3795
  %3813 = vmatpush.bf16.msra.mxu0 %v3804
  %3814 = vmatpush.bf16.msra.mxu0 %v3803
  %3815 = vmatpush.bf16.msra.mxu0 %v3802
  %3816 = vmatpush.bf16.msra.mxu0 %v3801
  %3817 = vmatpush.bf16.msra.mxu0 %v3800
  %3818 = vmatpush.bf16.msra.mxu0 %v3799
  %3819 = vmatpush.bf16.msra.mxu0 %v3798
  %3820 = vmatpush.bf16.msra.mxu0 %v3797
  %3821 = vmatmul.bf16.gmra.mxu0 %v3710
  %v3822 = vpop.f32.mrf.mxu0
  %v3823 = vadd.f32 0.0, %v3822
  %v3824 = vpop.f32.mrf.mxu0
  %v3825 = vadd.f32 0.0, %v3824
  %3826 = vmatmul.bf16.gmra.mxu0 %v3711
  %v3827 = vpop.f32.mrf.mxu0
  %v3828 = vadd.f32 0.0, %v3827
  %v3829 = vpop.f32.mrf.mxu0
  %v3830 = vadd.f32 0.0, %v3829
  %3831 = vmatmul.bf16.gmra.mxu0 %v3712
  %v3832 = vpop.f32.mrf.mxu0
  %v3833 = vadd.f32 0.0, %v3832
  %v3834 = vpop.f32.mrf.mxu0
  %v3835 = vadd.f32 0.0, %v3834
  %3836 = vmatmul.bf16.gmra.mxu0 %v3713
  %v3837 = vpop.f32.mrf.mxu0
  %v3838 = vadd.f32 0.0, %v3837
  %v3839 = vpop.f32.mrf.mxu0
  %v3840 = vadd.f32 0.0, %v3839
  %3841 = vmatmul.bf16.gmra.mxu0 %v3714
  %v3842 = vpop.f32.mrf.mxu0
  %v3843 = vadd.f32 0.0, %v3842
  %v3844 = vpop.f32.mrf.mxu0
  %v3845 = vadd.f32 0.0, %v3844
  %3846 = vmatmul.bf16.gmra.mxu0 %v3715
  %v3847 = vpop.f32.mrf.mxu0
  %v3848 = vadd.f32 0.0, %v3847
  %v3849 = vpop.f32.mrf.mxu0
  %v3850 = vadd.f32 0.0, %v3849
  %3851 = vmatmul.bf16.gmra.mxu0 %v3716
  %v3852 = vpop.f32.mrf.mxu0
  %v3853 = vadd.f32 0.0, %v3852
  %v3854 = vpop.f32.mrf.mxu0
  %v3855 = vadd.f32 0.0, %v3854
  %3856 = vmatmul.bf16.gmra.mxu0 %v3717
  %v3857 = vpop.f32.mrf.mxu0
  %v3858 = vadd.f32 0.0, %v3857
  %v3859 = vpop.f32.mrf.mxu0
  %v3860 = vadd.f32 0.0, %v3859
  %3861 = vmatmul.bf16.gmra.mxu0 %v3718
  %v3862 = vpop.f32.mrf.mxu0
  %v3863 = vadd.f32 0.0, %v3862
  %v3864 = vpop.f32.mrf.mxu0
  %v3865 = vadd.f32 0.0, %v3864
  %3866 = vmatmul.bf16.gmra.mxu0 %v3719
  %v3867 = vpop.f32.mrf.mxu0
  %v3868 = vadd.f32 0.0, %v3867
  %v3869 = vpop.f32.mrf.mxu0
  %v3870 = vadd.f32 0.0, %v3869
  %3871 = vmatmul.bf16.gmra.mxu0 %v3720
  %v3872 = vpop.f32.mrf.mxu0
  %v3873 = vadd.f32 0.0, %v3872
  %v3874 = vpop.f32.mrf.mxu0
  %v3875 = vadd.f32 0.0, %v3874
  %3876 = vmatmul.bf16.gmra.mxu0 %v3721
  %v3877 = vpop.f32.mrf.mxu0
  %v3878 = vadd.f32 0.0, %v3877
  %v3879 = vpop.f32.mrf.mxu0
  %v3880 = vadd.f32 0.0, %v3879
  %3881 = vmatmul.bf16.gmra.mxu0 %v3722
  %v3882 = vpop.f32.mrf.mxu0
  %v3883 = vadd.f32 0.0, %v3882
  %v3884 = vpop.f32.mrf.mxu0
  %v3885 = vadd.f32 0.0, %v3884
  %3886 = vmatmul.bf16.gmra.mxu0 %v3723
  %v3887 = vpop.f32.mrf.mxu0
  %v3888 = vadd.f32 0.0, %v3887
  %v3889 = vpop.f32.mrf.mxu0
  %v3890 = vadd.f32 0.0, %v3889
  %3891 = vmatmul.bf16.gmra.mxu0 %v3724
  %v3892 = vpop.f32.mrf.mxu0
  %v3893 = vadd.f32 0.0, %v3892
  %v3894 = vpop.f32.mrf.mxu0
  %v3895 = vadd.f32 0.0, %v3894
  %3896 = vmatmul.bf16.gmra.mxu0 %v3725
  %v3897 = vpop.f32.mrf.mxu0
  %v3898 = vadd.f32 0.0, %v3897
  %v3899 = vpop.f32.mrf.mxu0
  %v3900 = vadd.f32 0.0, %v3899
  %3901 = vmatmul.bf16.gmra.mxu0 %v3726
  %v3902 = vpop.f32.mrf.mxu0
  %v3903 = vadd.f32 0.0, %v3902
  %v3904 = vpop.f32.mrf.mxu0
  %v3905 = vadd.f32 0.0, %v3904
  %3906 = vmatmul.bf16.gmra.mxu0 %v3727
  %v3907 = vpop.f32.mrf.mxu0
  %v3908 = vadd.f32 0.0, %v3907
  %v3909 = vpop.f32.mrf.mxu0
  %v3910 = vadd.f32 0.0, %v3909
  %3911 = vmatmul.bf16.gmra.mxu0 %v3728
  %v3912 = vpop.f32.mrf.mxu0
  %v3913 = vadd.f32 0.0, %v3912
  %v3914 = vpop.f32.mrf.mxu0
  %v3915 = vadd.f32 0.0, %v3914
  %3916 = vmatmul.bf16.gmra.mxu0 %v3729
  %v3917 = vpop.f32.mrf.mxu0
  %v3918 = vadd.f32 0.0, %v3917
  %v3919 = vpop.f32.mrf.mxu0
  %v3920 = vadd.f32 0.0, %v3919
  %3921 = vmatmul.bf16.gmra.mxu0 %v3730
  %v3922 = vpop.f32.mrf.mxu0
  %v3923 = vadd.f32 0.0, %v3922
  %v3924 = vpop.f32.mrf.mxu0
  %v3925 = vadd.f32 0.0, %v3924
  %3926 = vmatmul.bf16.gmra.mxu0 %v3731
  %v3927 = vpop.f32.mrf.mxu0
  %v3928 = vadd.f32 0.0, %v3927
  %v3929 = vpop.f32.mrf.mxu0
  %v3930 = vadd.f32 0.0, %v3929
  %3931 = vmatmul.bf16.gmra.mxu0 %v3732
  %v3932 = vpop.f32.mrf.mxu0
  %v3933 = vadd.f32 0.0, %v3932
  %v3934 = vpop.f32.mrf.mxu0
  %v3935 = vadd.f32 0.0, %v3934
  %3936 = vmatmul.bf16.gmra.mxu0 %v3733
  %v3937 = vpop.f32.mrf.mxu0
  %v3938 = vadd.f32 0.0, %v3937
  %v3939 = vpop.f32.mrf.mxu0
  %v3940 = vadd.f32 0.0, %v3939
  %3941 = vmatmul.bf16.gmra.mxu0 %v3734
  %v3942 = vpop.f32.mrf.mxu0
  %v3943 = vadd.f32 0.0, %v3942
  %v3944 = vpop.f32.mrf.mxu0
  %v3945 = vadd.f32 0.0, %v3944
  %3946 = vmatmul.bf16.gmra.mxu0 %v3735
  %v3947 = vpop.f32.mrf.mxu0
  %v3948 = vadd.f32 0.0, %v3947
  %v3949 = vpop.f32.mrf.mxu0
  %v3950 = vadd.f32 0.0, %v3949
  %3951 = vmatmul.bf16.gmra.mxu0 %v3736
  %v3952 = vpop.f32.mrf.mxu0
  %v3953 = vadd.f32 0.0, %v3952
  %v3954 = vpop.f32.mrf.mxu0
  %v3955 = vadd.f32 0.0, %v3954
  %3956 = vmatmul.bf16.gmra.mxu0 %v3737
  %v3957 = vpop.f32.mrf.mxu0
  %v3958 = vadd.f32 0.0, %v3957
  %v3959 = vpop.f32.mrf.mxu0
  %v3960 = vadd.f32 0.0, %v3959
  %3961 = vmatmul.bf16.gmra.mxu0 %v3738
  %v3962 = vpop.f32.mrf.mxu0
  %v3963 = vadd.f32 0.0, %v3962
  %v3964 = vpop.f32.mrf.mxu0
  %v3965 = vadd.f32 0.0, %v3964
  %3966 = vmatmul.bf16.gmra.mxu0 %v3739
  %v3967 = vpop.f32.mrf.mxu0
  %v3968 = vadd.f32 0.0, %v3967
  %v3969 = vpop.f32.mrf.mxu0
  %v3970 = vadd.f32 0.0, %v3969
  %3971 = vmatmul.bf16.gmra.mxu0 %v3740
  %v3972 = vpop.f32.mrf.mxu0
  %v3973 = vadd.f32 0.0, %v3972
  %v3974 = vpop.f32.mrf.mxu0
  %v3975 = vadd.f32 0.0, %v3974
  %3976 = vmatmul.bf16.gmra.mxu0 %v3741
  %v3977 = vpop.f32.mrf.mxu0
  %v3978 = vadd.f32 0.0, %v3977
  %v3979 = vpop.f32.mrf.mxu0
  %v3980 = vadd.f32 0.0, %v3979
  %3981 = vmatmul.bf16.gmra.mxu0 %v3742
  %v3982 = vpop.f32.mrf.mxu0
  %v3983 = vadd.f32 0.0, %v3982
  %v3984 = vpop.f32.mrf.mxu0
  %v3985 = vadd.f32 0.0, %v3984
  %3986 = vmatmul.bf16.gmra.mxu0 %v3743
  %v3987 = vpop.f32.mrf.mxu0
  %v3988 = vadd.f32 0.0, %v3987
  %v3989 = vpop.f32.mrf.mxu0
  %v3990 = vadd.f32 0.0, %v3989
  %3991 = vmatmul.bf16.gmra.mxu0 %v3744
  %v3992 = vpop.f32.mrf.mxu0
  %v3993 = vadd.f32 0.0, %v3992
  %v3994 = vpop.f32.mrf.mxu0
  %v3995 = vadd.f32 0.0, %v3994
  %3996 = vmatmul.bf16.gmra.mxu0 %v3745
  %v3997 = vpop.f32.mrf.mxu0
  %v3998 = vadd.f32 0.0, %v3997
  %v3999 = vpop.f32.mrf.mxu0
  %v4000 = vadd.f32 0.0, %v3999
  %4001 = vmatmul.bf16.gmra.mxu0 %v3746
  %v4002 = vpop.f32.mrf.mxu0
  %v4003 = vadd.f32 0.0, %v4002
  %v4004 = vpop.f32.mrf.mxu0
  %v4005 = vadd.f32 0.0, %v4004
  %4006 = vmatmul.bf16.gmra.mxu0 %v3747
  %v4007 = vpop.f32.mrf.mxu0
  %v4008 = vadd.f32 0.0, %v4007
  %v4009 = vpop.f32.mrf.mxu0
  %v4010 = vadd.f32 0.0, %v4009
  %4011 = vmatmul.bf16.gmra.mxu0 %v3748
  %v4012 = vpop.f32.mrf.mxu0
  %v4013 = vadd.f32 0.0, %v4012
  %v4014 = vpop.f32.mrf.mxu0
  %4015 = vdwg.mxu0
  %v4016 = vadd.f32 %v3556, %v3823
  %v4017 = vadd.f32 %v3557, %v3825
  %v4018 = vadd.f32 %v3558, %v3828
  %v4019 = vadd.f32 %v3559, %v3830
  %v4020 = vadd.f32 %v3560, %v3833
  %v4021 = vadd.f32 %v3561, %v3835
  %v4022 = vadd.f32 %v3562, %v3838
  %v4023 = vadd.f32 %v3563, %v3840
  %v4024 = vadd.f32 %v3564, %v3843
  %v4025 = vadd.f32 %v3565, %v3845
  %v4026 = vadd.f32 %v3566, %v3848
  %v4027 = vadd.f32 %v3567, %v3850
  %v4028 = vadd.f32 %v3568, %v3853
  %v4029 = vadd.f32 %v3569, %v3855
  %v4030 = vadd.f32 %v3570, %v3858
  %v4031 = vadd.f32 %v3571, %v3860
  %v4032 = vadd.f32 %v3572, %v3863
  %v4033 = vadd.f32 %v3573, %v3865
  %v4034 = vadd.f32 %v3574, %v3868
  %v4035 = vadd.f32 %v3575, %v3870
  %v4036 = vadd.f32 %v3576, %v3873
  %v4037 = vadd.f32 %v3577, %v3875
  %v4038 = vadd.f32 %v3578, %v3878
  %v4039 = vadd.f32 %v3579, %v3880
  %v4040 = vadd.f32 %v3580, %v3883
  %v4041 = vadd.f32 %v3581, %v3885
  %v4042 = vadd.f32 %v3582, %v3888
  %v4043 = vadd.f32 %v3583, %v3890
  %v4044 = vadd.f32 %v3584, %v3893
  %v4045 = vadd.f32 %v3585, %v3895
  %v4046 = vadd.f32 %v3586, %v3898
  %v4047 = vadd.f32 %v3587, %v3900
  %v4048 = vadd.f32 %v3588, %v3903
  %v4049 = vadd.f32 %v3589, %v3905
  %v4050 = vadd.f32 %v3590, %v3908
  %v4051 = vadd.f32 %v3591, %v3910
  %v4052 = vadd.f32 %v3592, %v3913
  %v4053 = vadd.f32 %v3593, %v3915
  %v4054 = vadd.f32 %v3594, %v3918
  %v4055 = vadd.f32 %v3595, %v3920
  %v4056 = vadd.f32 %v3596, %v3923
  %v4057 = vadd.f32 %v3597, %v3925
  %v4058 = vadd.f32 %v3598, %v3928
  %v4059 = vadd.f32 %v3599, %v3930
  %v4060 = vadd.f32 %v3600, %v3933
  %v4061 = vadd.f32 %v3601, %v3935
  %v4062 = vadd.f32 %v3602, %v3938
  %v4063 = vadd.f32 %v3603, %v3940
  %v4064 = vadd.f32 %v3604, %v3943
  %v4065 = vadd.f32 %v3605, %v3945
  %v4066 = vadd.f32 %v3606, %v3948
  %v4067 = vadd.f32 %v3607, %v3950
  %v4068 = vadd.f32 %v3608, %v3953
  %v4069 = vadd.f32 %v3609, %v3955
  %v4070 = vadd.f32 %v3610, %v3958
  %v4071 = vadd.f32 %v3611, %v3960
  %v4072 = vadd.f32 %v3612, %v3963
  %v4073 = vadd.f32 %v3613, %v3965
  %v4074 = vadd.f32 %v3614, %v3968
  %v4075 = vadd.f32 %v3615, %v3970
  %v4076 = vadd.f32 %v3616, %v3973
  %v4077 = vadd.f32 %v3617, %v3975
  %v4078 = vadd.f32 %v3618, %v3978
  %v4079 = vadd.f32 %v3619, %v3980
  %v4080 = vadd.f32 %v3620, %v3983
  %v4081 = vadd.f32 %v3621, %v3985
  %v4082 = vadd.f32 %v3622, %v3988
  %v4083 = vadd.f32 %v3623, %v3990
  %v4084 = vadd.f32 %v3624, %v3993
  %v4085 = vadd.f32 %v3625, %v3995
  %v4086 = vadd.f32 %v3626, %v3998
  %v4087 = vadd.f32 %v3627, %v4000
  %v4088 = vadd.f32 %v3628, %v4003
  %v4089 = vadd.f32 %v3629, %v4005
  %v4090 = vadd.f32 %v3630, %v4008
  %v4091 = vadd.f32 %v3631, %v4010
  %v4092 = vadd.f32 %v3632, %v4013
  %4094 = vset.pattern.permute.xlu0 0
  %4095 = vperm.xlu0 %4094, %v30
  %v4096 = vpop.permute.xlu0 %4095
  %4099 = vset.pattern.permute.xlu0 0
  %4100 = vperm.xlu0 %4099, %v31
  %v4101 = vpop.permute.xlu0 %4100
  %4104 = vset.pattern.permute.xlu0 0
  %4105 = vperm.xlu0 %4104, %v32
  %v4106 = vpop.permute.xlu0 %4105
  %4109 = vset.pattern.permute.xlu0 0
  %4110 = vperm.xlu0 %4109, %v33
  %v4111 = vpop.permute.xlu0 %4110
  %4114 = vset.pattern.permute.xlu0 0
  %4115 = vperm.xlu0 %4114, %v34
  %v4116 = vpop.permute.xlu0 %4115
  %4119 = vset.pattern.permute.xlu0 0
  %4120 = vperm.xlu0 %4119, %v35
  %v4121 = vpop.permute.xlu0 %4120
  %4124 = vset.pattern.permute.xlu0 0
  %4125 = vperm.xlu0 %4124, %v36
  %v4126 = vpop.permute.xlu0 %4125
  %4129 = vset.pattern.permute.xlu0 0
  %4130 = vperm.xlu0 %4129, %v37
  %v4131 = vpop.permute.xlu0 %4130
  %4134 = vset.pattern.permute.xlu0 0
  %4135 = vperm.xlu0 %4134, %v38
  %v4136 = vpop.permute.xlu0 %4135
  %4139 = vset.pattern.permute.xlu0 0
  %4140 = vperm.xlu0 %4139, %v39
  %v4141 = vpop.permute.xlu0 %4140
  %4144 = vset.pattern.permute.xlu0 0
  %4145 = vperm.xlu0 %4144, %v40
  %v4146 = vpop.permute.xlu0 %4145
  %4149 = vset.pattern.permute.xlu0 0
  %4150 = vperm.xlu0 %4149, %v41
  %v4151 = vpop.permute.xlu0 %4150
  %4154 = vset.pattern.permute.xlu0 0
  %4155 = vperm.xlu0 %4154, %v42
  %v4156 = vpop.permute.xlu0 %4155
  %4159 = vset.pattern.permute.xlu0 0
  %4160 = vperm.xlu0 %4159, %v43
  %v4161 = vpop.permute.xlu0 %4160
  %4164 = vset.pattern.permute.xlu0 0
  %4165 = vperm.xlu0 %4164, %v44
  %v4166 = vpop.permute.xlu0 %4165
  %4169 = vset.pattern.permute.xlu0 0
  %4170 = vperm.xlu0 %4169, %v45
  %v4171 = vpop.permute.xlu0 %4170
  %4174 = vset.pattern.permute.xlu0 0
  %4175 = vperm.xlu0 %4174, %v46
  %v4176 = vpop.permute.xlu0 %4175
  %4179 = vset.pattern.permute.xlu0 0
  %4180 = vperm.xlu0 %4179, %v47
  %v4181 = vpop.permute.xlu0 %4180
  %4184 = vset.pattern.permute.xlu0 0
  %4185 = vperm.xlu0 %4184, %v48
  %v4186 = vpop.permute.xlu0 %4185
  %4189 = vset.pattern.permute.xlu0 0
  %4190 = vperm.xlu0 %4189, %v49
  %v4191 = vpop.permute.xlu0 %4190
  %4194 = vset.pattern.permute.xlu0 0
  %4195 = vperm.xlu0 %4194, %v50
  %v4196 = vpop.permute.xlu0 %4195
  %4199 = vset.pattern.permute.xlu0 0
  %4200 = vperm.xlu0 %4199, %v51
  %v4201 = vpop.permute.xlu0 %4200
  %4204 = vset.pattern.permute.xlu0 0
  %4205 = vperm.xlu0 %4204, %v52
  %v4206 = vpop.permute.xlu0 %4205
  %4209 = vset.pattern.permute.xlu0 0
  %4210 = vperm.xlu0 %4209, %v53
  %v4211 = vpop.permute.xlu0 %4210
  %4214 = vset.pattern.permute.xlu0 0
  %4215 = vperm.xlu0 %4214, %v54
  %v4216 = vpop.permute.xlu0 %4215
  %4219 = vset.pattern.permute.xlu0 0
  %4220 = vperm.xlu0 %4219, %v55
  %v4221 = vpop.permute.xlu0 %4220
  %4224 = vset.pattern.permute.xlu0 0
  %4225 = vperm.xlu0 %4224, %v56
  %v4226 = vpop.permute.xlu0 %4225
  %4229 = vset.pattern.permute.xlu0 0
  %4230 = vperm.xlu0 %4229, %v57
  %v4231 = vpop.permute.xlu0 %4230
  %4234 = vset.pattern.permute.xlu0 0
  %4235 = vperm.xlu0 %4234, %v58
  %v4236 = vpop.permute.xlu0 %4235
  %4239 = vset.pattern.permute.xlu0 0
  %4240 = vperm.xlu0 %4239, %v59
  %v4241 = vpop.permute.xlu0 %4240
  %4244 = vset.pattern.permute.xlu0 0
  %4245 = vperm.xlu0 %4244, %v60
  %v4246 = vpop.permute.xlu0 %4245
  %4249 = vset.pattern.permute.xlu0 0
  %4250 = vperm.xlu0 %4249, %v61
  %v4251 = vpop.permute.xlu0 %4250
  %4254 = vset.pattern.permute.xlu0 0
  %4255 = vperm.xlu0 %4254, %v62
  %v4256 = vpop.permute.xlu0 %4255
  %4259 = vset.pattern.permute.xlu0 0
  %4260 = vperm.xlu0 %4259, %v63
  %v4261 = vpop.permute.xlu0 %4260
  %4264 = vset.pattern.permute.xlu0 0
  %4265 = vperm.xlu0 %4264, %v64
  %v4266 = vpop.permute.xlu0 %4265
  %4269 = vset.pattern.permute.xlu0 0
  %4270 = vperm.xlu0 %4269, %v65
  %v4271 = vpop.permute.xlu0 %4270
  %4274 = vset.pattern.permute.xlu0 0
  %4275 = vperm.xlu0 %4274, %v66
  %v4276 = vpop.permute.xlu0 %4275
  %4279 = vset.pattern.permute.xlu0 0
  %4280 = vperm.xlu0 %4279, %v67
  %v4281 = vpop.permute.xlu0 %4280
  %4284 = vset.pattern.permute.xlu0 0
  %4285 = vperm.xlu0 %4284, %v68
  %v4286 = vpop.permute.xlu0 %4285
  %4289 = vset.pattern.permute.xlu0 0
  %4290 = vperm.xlu0 %4289, %v69
  %v4291 = vpop.permute.xlu0 %4290
  %4294 = vset.pattern.permute.xlu0 0
  %4295 = vperm.xlu0 %4294, %v70
  %v4296 = vpop.permute.xlu0 %4295
  %4299 = vset.pattern.permute.xlu0 0
  %4300 = vperm.xlu0 %4299, %v71
  %v4301 = vpop.permute.xlu0 %4300
  %4304 = vset.pattern.permute.xlu0 0
  %4305 = vperm.xlu0 %4304, %v72
  %v4306 = vpop.permute.xlu0 %4305
  %4309 = vset.pattern.permute.xlu0 0
  %4310 = vperm.xlu0 %4309, %v73
  %v4311 = vpop.permute.xlu0 %4310
  %4314 = vset.pattern.permute.xlu0 0
  %4315 = vperm.xlu0 %4314, %v74
  %v4316 = vpop.permute.xlu0 %4315
  %4319 = vset.pattern.permute.xlu0 0
  %4320 = vperm.xlu0 %4319, %v75
  %v4321 = vpop.permute.xlu0 %4320
  %4324 = vset.pattern.permute.xlu0 0
  %4325 = vperm.xlu0 %4324, %v76
  %v4326 = vpop.permute.xlu0 %4325
  %4329 = vset.pattern.permute.xlu0 0
  %4330 = vperm.xlu0 %4329, %v77
  %v4331 = vpop.permute.xlu0 %4330
  %4334 = vset.pattern.permute.xlu0 0
  %4335 = vperm.xlu0 %4334, %v78
  %v4336 = vpop.permute.xlu0 %4335
  %4339 = vset.pattern.permute.xlu0 0
  %4340 = vperm.xlu0 %4339, %v79
  %v4341 = vpop.permute.xlu0 %4340
  %4344 = vset.pattern.permute.xlu0 0
  %4345 = vperm.xlu0 %4344, %v80
  %v4346 = vpop.permute.xlu0 %4345
  %4349 = vset.pattern.permute.xlu0 0
  %4350 = vperm.xlu0 %4349, %v81
  %v4351 = vpop.permute.xlu0 %4350
  %4354 = vset.pattern.permute.xlu0 0
  %4355 = vperm.xlu0 %4354, %v82
  %v4356 = vpop.permute.xlu0 %4355
  %4359 = vset.pattern.permute.xlu0 0
  %4360 = vperm.xlu0 %4359, %v83
  %v4361 = vpop.permute.xlu0 %4360
  %4364 = vset.pattern.permute.xlu0 0
  %4365 = vperm.xlu0 %4364, %v84
  %v4366 = vpop.permute.xlu0 %4365
  %4369 = vset.pattern.permute.xlu0 0
  %4370 = vperm.xlu0 %4369, %v85
  %v4371 = vpop.permute.xlu0 %4370
  %4374 = vset.pattern.permute.xlu0 0
  %4375 = vperm.xlu0 %4374, %v86
  %v4376 = vpop.permute.xlu0 %4375
  %4379 = vset.pattern.permute.xlu0 0
  %4380 = vperm.xlu0 %4379, %v87
  %v4381 = vpop.permute.xlu0 %4380
  %4384 = vset.pattern.permute.xlu0 0
  %4385 = vperm.xlu0 %4384, %v88
  %v4386 = vpop.permute.xlu0 %4385
  %4389 = vset.pattern.permute.xlu0 0
  %4390 = vperm.xlu0 %4389, %v89
  %v4391 = vpop.permute.xlu0 %4390
  %4394 = vset.pattern.permute.xlu0 0
  %4395 = vperm.xlu0 %4394, %v90
  %v4396 = vpop.permute.xlu0 %4395
  %4399 = vset.pattern.permute.xlu0 0
  %4400 = vperm.xlu0 %4399, %v91
  %v4401 = vpop.permute.xlu0 %4400
  %4404 = vset.pattern.permute.xlu0 0
  %4405 = vperm.xlu0 %4404, %v92
  %v4406 = vpop.permute.xlu0 %4405
  %4409 = vset.pattern.permute.xlu0 0
  %4410 = vperm.xlu0 %4409, %v93
  %v4411 = vpop.permute.xlu0 %4410
  %4414 = vset.pattern.permute.xlu0 0
  %4415 = vperm.xlu0 %4414, %v94
  %v4416 = vpop.permute.xlu0 %4415
  %4419 = vset.pattern.permute.xlu0 0
  %4420 = vperm.xlu0 %4419, %v95
  %v4421 = vpop.permute.xlu0 %4420
  %4424 = vset.pattern.permute.xlu0 0
  %4425 = vperm.xlu0 %4424, %v96
  %v4426 = vpop.permute.xlu0 %4425
  %4429 = vset.pattern.permute.xlu0 0
  %4430 = vperm.xlu0 %4429, %v97
  %v4431 = vpop.permute.xlu0 %4430
  %4434 = vset.pattern.permute.xlu0 0
  %4435 = vperm.xlu0 %4434, %v98
  %v4436 = vpop.permute.xlu0 %4435
  %4439 = vset.pattern.permute.xlu0 0
  %4440 = vperm.xlu0 %4439, %v99
  %v4441 = vpop.permute.xlu0 %4440
  %4444 = vset.pattern.permute.xlu0 0
  %4445 = vperm.xlu0 %4444, %v100
  %v4446 = vpop.permute.xlu0 %4445
  %4449 = vset.pattern.permute.xlu0 0
  %4450 = vperm.xlu0 %4449, %v101
  %v4451 = vpop.permute.xlu0 %4450
  %4454 = vset.pattern.permute.xlu0 0
  %4455 = vperm.xlu0 %4454, %v102
  %v4456 = vpop.permute.xlu0 %4455
  %4459 = vset.pattern.permute.xlu0 0
  %4460 = vperm.xlu0 %4459, %v103
  %v4461 = vpop.permute.xlu0 %4460
  %4464 = vset.pattern.permute.xlu0 0
  %4465 = vperm.xlu0 %4464, %v104
  %v4466 = vpop.permute.xlu0 %4465
  %4469 = vset.pattern.permute.xlu0 0
  %4470 = vperm.xlu0 %4469, %v105
  %v4471 = vpop.permute.xlu0 %4470
  %4474 = vset.pattern.permute.xlu0 0
  %4475 = vperm.xlu0 %4474, %v106
  %v4476 = vpop.permute.xlu0 %4475
  %v4478 = vmul.f32 %v4016, %v4096
  %v4479 = vmul.f32 %v4017, %v4101
  %v4480 = vmul.f32 %v4018, %v4106
  %v4481 = vmul.f32 %v4019, %v4111
  %v4482 = vmul.f32 %v4020, %v4116
  %v4483 = vmul.f32 %v4021, %v4121
  %v4484 = vmul.f32 %v4022, %v4126
  %v4485 = vmul.f32 %v4023, %v4131
  %v4486 = vmul.f32 %v4024, %v4136
  %v4487 = vmul.f32 %v4025, %v4141
  %v4488 = vmul.f32 %v4026, %v4146
  %v4489 = vmul.f32 %v4027, %v4151
  %v4490 = vmul.f32 %v4028, %v4156
  %v4491 = vmul.f32 %v4029, %v4161
  %v4492 = vmul.f32 %v4030, %v4166
  %v4493 = vmul.f32 %v4031, %v4171
  %v4494 = vmul.f32 %v4032, %v4176
  %v4495 = vmul.f32 %v4033, %v4181
  %v4496 = vmul.f32 %v4034, %v4186
  %v4497 = vmul.f32 %v4035, %v4191
  %v4498 = vmul.f32 %v4036, %v4196
  %v4499 = vmul.f32 %v4037, %v4201
  %v4500 = vmul.f32 %v4038, %v4206
  %v4501 = vmul.f32 %v4039, %v4211
  %v4502 = vmul.f32 %v4040, %v4216
  %v4503 = vmul.f32 %v4041, %v4221
  %v4504 = vmul.f32 %v4042, %v4226
  %v4505 = vmul.f32 %v4043, %v4231
  %v4506 = vmul.f32 %v4044, %v4236
  %v4507 = vmul.f32 %v4045, %v4241
  %v4508 = vmul.f32 %v4046, %v4246
  %v4509 = vmul.f32 %v4047, %v4251
  %v4510 = vmul.f32 %v4048, %v4256
  %v4511 = vmul.f32 %v4049, %v4261
  %v4512 = vmul.f32 %v4050, %v4266
  %v4513 = vmul.f32 %v4051, %v4271
  %v4514 = vmul.f32 %v4052, %v4276
  %v4515 = vmul.f32 %v4053, %v4281
  %v4516 = vmul.f32 %v4054, %v4286
  %v4517 = vmul.f32 %v4055, %v4291
  %v4518 = vmul.f32 %v4056, %v4296
  %v4519 = vmul.f32 %v4057, %v4301
  %v4520 = vmul.f32 %v4058, %v4306
  %v4521 = vmul.f32 %v4059, %v4311
  %v4522 = vmul.f32 %v4060, %v4316
  %v4523 = vmul.f32 %v4061, %v4321
  %v4524 = vmul.f32 %v4062, %v4326
  %v4525 = vmul.f32 %v4063, %v4331
  %v4526 = vmul.f32 %v4064, %v4336
  %v4527 = vmul.f32 %v4065, %v4341
  %v4528 = vmul.f32 %v4066, %v4346
  %v4529 = vmul.f32 %v4067, %v4351
  %v4530 = vmul.f32 %v4068, %v4356
  %v4531 = vmul.f32 %v4069, %v4361
  %v4532 = vmul.f32 %v4070, %v4366
  %v4533 = vmul.f32 %v4071, %v4371
  %v4534 = vmul.f32 %v4072, %v4376
  %v4535 = vmul.f32 %v4073, %v4381
  %v4536 = vmul.f32 %v4074, %v4386
  %v4537 = vmul.f32 %v4075, %v4391
  %v4538 = vmul.f32 %v4076, %v4396
  %v4539 = vmul.f32 %v4077, %v4401
  %v4540 = vmul.f32 %v4078, %v4406
  %v4541 = vmul.f32 %v4079, %v4411
  %v4542 = vmul.f32 %v4080, %v4416
  %v4543 = vmul.f32 %v4081, %v4421
  %v4544 = vmul.f32 %v4082, %v4426
  %v4545 = vmul.f32 %v4083, %v4431
  %v4546 = vmul.f32 %v4084, %v4436
  %v4547 = vmul.f32 %v4085, %v4441
  %v4548 = vmul.f32 %v4086, %v4446
  %v4549 = vmul.f32 %v4087, %v4451
  %v4550 = vmul.f32 %v4088, %v4456
  %v4551 = vmul.f32 %v4089, %v4461
  %v4552 = vmul.f32 %v4090, %v4466
  %v4553 = vmul.f32 %v4091, %v4471
  %v4554 = vmul.f32 %v4092, %v4476
  %v4555 = vadd.f32 %v4478, %v4479
  %v4556 = vadd.f32 %v4555, %v4480
  %v4557 = vadd.f32 %v4556, %v4481
  %v4558 = vadd.f32 %v4557, %v4482
  %v4559 = vadd.f32 %v4558, %v4483
  %v4560 = vadd.f32 %v4559, %v4484
  %v4561 = vadd.f32 %v4560, %v4485
  %v4562 = vadd.f32 %v4561, %v4486
  %v4563 = vadd.f32 %v4562, %v4487
  %v4564 = vadd.f32 %v4563, %v4488
  %v4565 = vadd.f32 %v4564, %v4489
  %v4566 = vadd.f32 %v4565, %v4490
  %v4567 = vadd.f32 %v4566, %v4491
  %v4568 = vadd.f32 %v4567, %v4492
  %v4569 = vadd.f32 %v4568, %v4493
  %v4570 = vadd.f32 %v4569, %v4494
  %v4571 = vadd.f32 %v4570, %v4495
  %v4572 = vadd.f32 %v4571, %v4496
  %v4573 = vadd.f32 %v4572, %v4497
  %v4574 = vadd.f32 %v4573, %v4498
  %v4575 = vadd.f32 %v4574, %v4499
  %v4576 = vadd.f32 %v4575, %v4500
  %v4577 = vadd.f32 %v4576, %v4501
  %v4578 = vadd.f32 %v4577, %v4502
  %v4579 = vadd.f32 %v4578, %v4503
  %v4580 = vadd.f32 %v4579, %v4504
  %v4581 = vadd.f32 %v4580, %v4505
  %v4582 = vadd.f32 %v4581, %v4506
  %v4583 = vadd.f32 %v4582, %v4507
  %v4584 = vadd.f32 %v4583, %v4508
  %v4585 = vadd.f32 %v4584, %v4509
  %v4586 = vadd.f32 %v4585, %v4510
  %v4587 = vadd.f32 %v4586, %v4511
  %v4588 = vadd.f32 %v4587, %v4512
  %v4589 = vadd.f32 %v4588, %v4513
  %v4590 = vadd.f32 %v4589, %v4514
  %v4591 = vadd.f32 %v4590, %v4515
  %v4592 = vadd.f32 %v4591, %v4516
  %v4593 = vadd.f32 %v4592, %v4517
  %v4594 = vadd.f32 %v4593, %v4518
  %v4595 = vadd.f32 %v4594, %v4519
  %v4596 = vadd.f32 %v4595, %v4520
  %v4597 = vadd.f32 %v4596, %v4521
  %v4598 = vadd.f32 %v4597, %v4522
  %v4599 = vadd.f32 %v4598, %v4523
  %v4600 = vadd.f32 %v4599, %v4524
  %v4601 = vadd.f32 %v4600, %v4525
  %v4602 = vadd.f32 %v4601, %v4526
  %v4603 = vadd.f32 %v4602, %v4527
  %v4604 = vadd.f32 %v4603, %v4528
  %v4605 = vadd.f32 %v4604, %v4529
  %v4606 = vadd.f32 %v4605, %v4530
  %v4607 = vadd.f32 %v4606, %v4531
  %v4608 = vadd.f32 %v4607, %v4532
  %v4609 = vadd.f32 %v4608, %v4533
  %v4610 = vadd.f32 %v4609, %v4534
  %v4611 = vadd.f32 %v4610, %v4535
  %v4612 = vadd.f32 %v4611, %v4536
  %v4613 = vadd.f32 %v4612, %v4537
  %v4614 = vadd.f32 %v4613, %v4538
  %v4615 = vadd.f32 %v4614, %v4539
  %v4616 = vadd.f32 %v4615, %v4540
  %v4617 = vadd.f32 %v4616, %v4541
  %v4618 = vadd.f32 %v4617, %v4542
  %v4619 = vadd.f32 %v4618, %v4543
  %v4620 = vadd.f32 %v4619, %v4544
  %v4621 = vadd.f32 %v4620, %v4545
  %v4622 = vadd.f32 %v4621, %v4546
  %v4623 = vadd.f32 %v4622, %v4547
  %v4624 = vadd.f32 %v4623, %v4548
  %v4625 = vadd.f32 %v4624, %v4549
  %v4626 = vadd.f32 %v4625, %v4550
  %v4627 = vadd.f32 %v4626, %v4551
  %v4628 = vadd.f32 %v4627, %v4552
  %v4629 = vadd.f32 %v4628, %v4553
  %v4630 = vadd.f32 %v4629, %v4554
  %v4631 = vrot.slane %v4630, 4
  %v4632 = vadd.f32 %v4630, %v4631
  %v4633 = vrot.slane %v4632, 2
  %v4634 = vadd.f32 %v4632, %v4633
  %v4635 = vrot.slane %v4634, 1
  %v4636 = vadd.f32 %v4634, %v4635
  %v4637 = vmul.f32 %v4478, %v4016
  %v4638 = vmul.f32 %v4479, %v4017
  %v4639 = vmul.f32 %v4480, %v4018
  %v4640 = vmul.f32 %v4481, %v4019
  %v4641 = vmul.f32 %v4482, %v4020
  %v4642 = vmul.f32 %v4483, %v4021
  %v4643 = vmul.f32 %v4484, %v4022
  %v4644 = vmul.f32 %v4485, %v4023
  %v4645 = vmul.f32 %v4486, %v4024
  %v4646 = vmul.f32 %v4487, %v4025
  %v4647 = vmul.f32 %v4488, %v4026
  %v4648 = vmul.f32 %v4489, %v4027
  %v4649 = vmul.f32 %v4490, %v4028
  %v4650 = vmul.f32 %v4491, %v4029
  %v4651 = vmul.f32 %v4492, %v4030
  %v4652 = vmul.f32 %v4493, %v4031
  %v4653 = vmul.f32 %v4494, %v4032
  %v4654 = vmul.f32 %v4495, %v4033
  %v4655 = vmul.f32 %v4496, %v4034
  %v4656 = vmul.f32 %v4497, %v4035
  %v4657 = vmul.f32 %v4498, %v4036
  %v4658 = vmul.f32 %v4499, %v4037
  %v4659 = vmul.f32 %v4500, %v4038
  %v4660 = vmul.f32 %v4501, %v4039
  %v4661 = vmul.f32 %v4502, %v4040
  %v4662 = vmul.f32 %v4503, %v4041
  %v4663 = vmul.f32 %v4504, %v4042
  %v4664 = vmul.f32 %v4505, %v4043
  %v4665 = vmul.f32 %v4506, %v4044
  %v4666 = vmul.f32 %v4507, %v4045
  %v4667 = vmul.f32 %v4508, %v4046
  %v4668 = vmul.f32 %v4509, %v4047
  %v4669 = vmul.f32 %v4510, %v4048
  %v4670 = vmul.f32 %v4511, %v4049
  %v4671 = vmul.f32 %v4512, %v4050
  %v4672 = vmul.f32 %v4513, %v4051
  %v4673 = vmul.f32 %v4514, %v4052
  %v4674 = vmul.f32 %v4515, %v4053
  %v4675 = vmul.f32 %v4516, %v4054
  %v4676 = vmul.f32 %v4517, %v4055
  %v4677 = vmul.f32 %v4518, %v4056
  %v4678 = vmul.f32 %v4519, %v4057
  %v4679 = vmul.f32 %v4520, %v4058
  %v4680 = vmul.f32 %v4521, %v4059
  %v4681 = vmul.f32 %v4522, %v4060
  %v4682 = vmul.f32 %v4523, %v4061
  %v4683 = vmul.f32 %v4524, %v4062
  %v4684 = vmul.f32 %v4525, %v4063
  %v4685 = vmul.f32 %v4526, %v4064
  %v4686 = vmul.f32 %v4527, %v4065
  %v4687 = vmul.f32 %v4528, %v4066
  %v4688 = vmul.f32 %v4529, %v4067
  %v4689 = vmul.f32 %v4530, %v4068
  %v4690 = vmul.f32 %v4531, %v4069
  %v4691 = vmul.f32 %v4532, %v4070
  %v4692 = vmul.f32 %v4533, %v4071
  %v4693 = vmul.f32 %v4534, %v4072
  %v4694 = vmul.f32 %v4535, %v4073
  %v4695 = vmul.f32 %v4536, %v4074
  %v4696 = vmul.f32 %v4537, %v4075
  %v4697 = vmul.f32 %v4538, %v4076
  %v4698 = vmul.f32 %v4539, %v4077
  %v4699 = vmul.f32 %v4540, %v4078
  %v4700 = vmul.f32 %v4541, %v4079
  %v4701 = vmul.f32 %v4542, %v4080
  %v4702 = vmul.f32 %v4543, %v4081
  %v4703 = vmul.f32 %v4544, %v4082
  %v4704 = vmul.f32 %v4545, %v4083
  %v4705 = vmul.f32 %v4546, %v4084
  %v4706 = vmul.f32 %v4547, %v4085
  %v4707 = vmul.f32 %v4548, %v4086
  %v4708 = vmul.f32 %v4549, %v4087
  %v4709 = vmul.f32 %v4550, %v4088
  %v4710 = vmul.f32 %v4551, %v4089
  %v4711 = vmul.f32 %v4552, %v4090
  %v4712 = vmul.f32 %v4553, %v4091
  %v4713 = vmul.f32 %v4554, %v4092
  %v4714 = vadd.f32 %v4637, %v4638
  %v4715 = vadd.f32 %v4714, %v4639
  %v4716 = vadd.f32 %v4715, %v4640
  %v4717 = vadd.f32 %v4716, %v4641
  %v4718 = vadd.f32 %v4717, %v4642
  %v4719 = vadd.f32 %v4718, %v4643
  %v4720 = vadd.f32 %v4719, %v4644
  %v4721 = vadd.f32 %v4720, %v4645
  %v4722 = vadd.f32 %v4721, %v4646
  %v4723 = vadd.f32 %v4722, %v4647
  %v4724 = vadd.f32 %v4723, %v4648
  %v4725 = vadd.f32 %v4724, %v4649
  %v4726 = vadd.f32 %v4725, %v4650
  %v4727 = vadd.f32 %v4726, %v4651
  %v4728 = vadd.f32 %v4727, %v4652
  %v4729 = vadd.f32 %v4728, %v4653
  %v4730 = vadd.f32 %v4729, %v4654
  %v4731 = vadd.f32 %v4730, %v4655
  %v4732 = vadd.f32 %v4731, %v4656
  %v4733 = vadd.f32 %v4732, %v4657
  %v4734 = vadd.f32 %v4733, %v4658
  %v4735 = vadd.f32 %v4734, %v4659
  %v4736 = vadd.f32 %v4735, %v4660
  %v4737 = vadd.f32 %v4736, %v4661
  %v4738 = vadd.f32 %v4737, %v4662
  %v4739 = vadd.f32 %v4738, %v4663
  %v4740 = vadd.f32 %v4739, %v4664
  %v4741 = vadd.f32 %v4740, %v4665
  %v4742 = vadd.f32 %v4741, %v4666
  %v4743 = vadd.f32 %v4742, %v4667
  %v4744 = vadd.f32 %v4743, %v4668
  %v4745 = vadd.f32 %v4744, %v4669
  %v4746 = vadd.f32 %v4745, %v4670
  %v4747 = vadd.f32 %v4746, %v4671
  %v4748 = vadd.f32 %v4747, %v4672
  %v4749 = vadd.f32 %v4748, %v4673
  %v4750 = vadd.f32 %v4749, %v4674
  %v4751 = vadd.f32 %v4750, %v4675
  %v4752 = vadd.f32 %v4751, %v4676
  %v4753 = vadd.f32 %v4752, %v4677
  %v4754 = vadd.f32 %v4753, %v4678
  %v4755 = vadd.f32 %v4754, %v4679
  %v4756 = vadd.f32 %v4755, %v4680
  %v4757 = vadd.f32 %v4756, %v4681
  %v4758 = vadd.f32 %v4757, %v4682
  %v4759 = vadd.f32 %v4758, %v4683
  %v4760 = vadd.f32 %v4759, %v4684
  %v4761 = vadd.f32 %v4760, %v4685
  %v4762 = vadd.f32 %v4761, %v4686
  %v4763 = vadd.f32 %v4762, %v4687
  %v4764 = vadd.f32 %v4763, %v4688
  %v4765 = vadd.f32 %v4764, %v4689
  %v4766 = vadd.f32 %v4765, %v4690
  %v4767 = vadd.f32 %v4766, %v4691
  %v4768 = vadd.f32 %v4767, %v4692
  %v4769 = vadd.f32 %v4768, %v4693
  %v4770 = vadd.f32 %v4769, %v4694
  %v4771 = vadd.f32 %v4770, %v4695
  %v4772 = vadd.f32 %v4771, %v4696
  %v4773 = vadd.f32 %v4772, %v4697
  %v4774 = vadd.f32 %v4773, %v4698
  %v4775 = vadd.f32 %v4774, %v4699
  %v4776 = vadd.f32 %v4775, %v4700
  %v4777 = vadd.f32 %v4776, %v4701
  %v4778 = vadd.f32 %v4777, %v4702
  %v4779 = vadd.f32 %v4778, %v4703
  %v4780 = vadd.f32 %v4779, %v4704
  %v4781 = vadd.f32 %v4780, %v4705
  %v4782 = vadd.f32 %v4781, %v4706
  %v4783 = vadd.f32 %v4782, %v4707
  %v4784 = vadd.f32 %v4783, %v4708
  %v4785 = vadd.f32 %v4784, %v4709
  %v4786 = vadd.f32 %v4785, %v4710
  %v4787 = vadd.f32 %v4786, %v4711
  %v4788 = vadd.f32 %v4787, %v4712
  %v4789 = vadd.f32 %v4788, %v4713
  %v4790 = vrot.slane %v4789, 4
  %v4791 = vadd.f32 %v4789, %v4790
  %v4792 = vrot.slane %v4791, 2
  %v4793 = vadd.f32 %v4791, %v4792
  %v4794 = vrot.slane %v4793, 1
  %v4795 = vadd.f32 %v4793, %v4794
  %v4796 = vmul.f32 %v4636, 0.001953125
  %v4797 = vmul.f32 %v4795, 0.001953125
  %v4798 = vmul.f32 %v4796, %v4796
  %v4799 = vsub.f32 %v4797, %v4798
  %v4800 = vmax.f32 %v4799, 0.0
  %v4801 = vld [vmem:[%s3] sm:$0x1]
  %v4802 = vadd.f32 %v4800, 1e-05
  %v4803 = vrsqrt.pop %v4802
  %v4804 = vmul.f32 %v4803, %v4802
  %v4805 = vmul.f32 %v4804, %v4803
  %v4806 = vmul.f32 0.5, %v4805
  %v4807 = vsub.f32 1.5, %v4806
  %v4808 = vmul.f32 %v4803, %v4807
  %vm4809 = vweird.f32 %v4802
  %vm4810 = vweird.f32 %v4803
  %vm4811 = vmor %vm4809, %vm4810
  %v4812 = vsel %vm4811, %v4803, %v4808
  %v4813 = vmul.f32 %v4801, %v4812
  %v4814 = vld [vmem:[%s4] sm:$0x1]
  %v4815 = vmul.f32 %v4796, %v4813
  %v4816 = vsub.f32 %v4814, %v4815
  %v4818 = vperm.slane %v4813, 0
  %v4820 = vmul.f32 %v4016, %v4818
  %v4821 = vmul.f32 %v4017, %v4818
  %v4822 = vmul.f32 %v4018, %v4818
  %v4823 = vmul.f32 %v4019, %v4818
  %v4824 = vmul.f32 %v4020, %v4818
  %v4825 = vmul.f32 %v4021, %v4818
  %v4826 = vmul.f32 %v4022, %v4818
  %v4827 = vmul.f32 %v4023, %v4818
  %v4828 = vmul.f32 %v4024, %v4818
  %v4829 = vmul.f32 %v4025, %v4818
  %v4830 = vmul.f32 %v4026, %v4818
  %v4831 = vmul.f32 %v4027, %v4818
  %v4832 = vmul.f32 %v4028, %v4818
  %v4833 = vmul.f32 %v4029, %v4818
  %v4834 = vmul.f32 %v4030, %v4818
  %v4835 = vmul.f32 %v4031, %v4818
  %v4836 = vmul.f32 %v4032, %v4818
  %v4837 = vmul.f32 %v4033, %v4818
  %v4838 = vmul.f32 %v4034, %v4818
  %v4839 = vmul.f32 %v4035, %v4818
  %v4840 = vmul.f32 %v4036, %v4818
  %v4841 = vmul.f32 %v4037, %v4818
  %v4842 = vmul.f32 %v4038, %v4818
  %v4843 = vmul.f32 %v4039, %v4818
  %v4844 = vmul.f32 %v4040, %v4818
  %v4845 = vmul.f32 %v4041, %v4818
  %v4846 = vmul.f32 %v4042, %v4818
  %v4847 = vmul.f32 %v4043, %v4818
  %v4848 = vmul.f32 %v4044, %v4818
  %v4849 = vmul.f32 %v4045, %v4818
  %v4850 = vmul.f32 %v4046, %v4818
  %v4851 = vmul.f32 %v4047, %v4818
  %v4852 = vmul.f32 %v4048, %v4818
  %v4853 = vmul.f32 %v4049, %v4818
  %v4854 = vmul.f32 %v4050, %v4818
  %v4855 = vmul.f32 %v4051, %v4818
  %v4856 = vmul.f32 %v4052, %v4818
  %v4857 = vmul.f32 %v4053, %v4818
  %v4858 = vmul.f32 %v4054, %v4818
  %v4859 = vmul.f32 %v4055, %v4818
  %v4860 = vmul.f32 %v4056, %v4818
  %v4861 = vmul.f32 %v4057, %v4818
  %v4862 = vmul.f32 %v4058, %v4818
  %v4863 = vmul.f32 %v4059, %v4818
  %v4864 = vmul.f32 %v4060, %v4818
  %v4865 = vmul.f32 %v4061, %v4818
  %v4866 = vmul.f32 %v4062, %v4818
  %v4867 = vmul.f32 %v4063, %v4818
  %v4868 = vmul.f32 %v4064, %v4818
  %v4869 = vmul.f32 %v4065, %v4818
  %v4870 = vmul.f32 %v4066, %v4818
  %v4871 = vmul.f32 %v4067, %v4818
  %v4872 = vmul.f32 %v4068, %v4818
  %v4873 = vmul.f32 %v4069, %v4818
  %v4874 = vmul.f32 %v4070, %v4818
  %v4875 = vmul.f32 %v4071, %v4818
  %v4876 = vmul.f32 %v4072, %v4818
  %v4877 = vmul.f32 %v4073, %v4818
  %v4878 = vmul.f32 %v4074, %v4818
  %v4879 = vmul.f32 %v4075, %v4818
  %v4880 = vmul.f32 %v4076, %v4818
  %v4881 = vmul.f32 %v4077, %v4818
  %v4882 = vmul.f32 %v4078, %v4818
  %v4883 = vmul.f32 %v4079, %v4818
  %v4884 = vmul.f32 %v4080, %v4818
  %v4885 = vmul.f32 %v4081, %v4818
  %v4886 = vmul.f32 %v4082, %v4818
  %v4887 = vmul.f32 %v4083, %v4818
  %v4888 = vmul.f32 %v4084, %v4818
  %v4889 = vmul.f32 %v4085, %v4818
  %v4890 = vmul.f32 %v4086, %v4818
  %v4891 = vmul.f32 %v4087, %v4818
  %v4892 = vmul.f32 %v4088, %v4818
  %v4893 = vmul.f32 %v4089, %v4818
  %v4894 = vmul.f32 %v4090, %v4818
  %v4895 = vmul.f32 %v4091, %v4818
  %v4896 = vmul.f32 %v4092, %v4818
  %v4898 = vperm.slane %v4816, 0
  %v4900 = vadd.f32 %v4820, %v4898
  %v4901 = vadd.f32 %v4821, %v4898
  %v4902 = vadd.f32 %v4822, %v4898
  %v4903 = vadd.f32 %v4823, %v4898
  %v4904 = vadd.f32 %v4824, %v4898
  %v4905 = vadd.f32 %v4825, %v4898
  %v4906 = vadd.f32 %v4826, %v4898
  %v4907 = vadd.f32 %v4827, %v4898
  %v4908 = vadd.f32 %v4828, %v4898
  %v4909 = vadd.f32 %v4829, %v4898
  %v4910 = vadd.f32 %v4830, %v4898
  %v4911 = vadd.f32 %v4831, %v4898
  %v4912 = vadd.f32 %v4832, %v4898
  %v4913 = vadd.f32 %v4833, %v4898
  %v4914 = vadd.f32 %v4834, %v4898
  %v4915 = vadd.f32 %v4835, %v4898
  %v4916 = vadd.f32 %v4836, %v4898
  %v4917 = vadd.f32 %v4837, %v4898
  %v4918 = vadd.f32 %v4838, %v4898
  %v4919 = vadd.f32 %v4839, %v4898
  %v4920 = vadd.f32 %v4840, %v4898
  %v4921 = vadd.f32 %v4841, %v4898
  %v4922 = vadd.f32 %v4842, %v4898
  %v4923 = vadd.f32 %v4843, %v4898
  %v4924 = vadd.f32 %v4844, %v4898
  %v4925 = vadd.f32 %v4845, %v4898
  %v4926 = vadd.f32 %v4846, %v4898
  %v4927 = vadd.f32 %v4847, %v4898
  %v4928 = vadd.f32 %v4848, %v4898
  %v4929 = vadd.f32 %v4849, %v4898
  %v4930 = vadd.f32 %v4850, %v4898
  %v4931 = vadd.f32 %v4851, %v4898
  %v4932 = vadd.f32 %v4852, %v4898
  %v4933 = vadd.f32 %v4853, %v4898
  %v4934 = vadd.f32 %v4854, %v4898
  %v4935 = vadd.f32 %v4855, %v4898
  %v4936 = vadd.f32 %v4856, %v4898
  %v4937 = vadd.f32 %v4857, %v4898
  %v4938 = vadd.f32 %v4858, %v4898
  %v4939 = vadd.f32 %v4859, %v4898
  %v4940 = vadd.f32 %v4860, %v4898
  %v4941 = vadd.f32 %v4861, %v4898
  %v4942 = vadd.f32 %v4862, %v4898
  %v4943 = vadd.f32 %v4863, %v4898
  %v4944 = vadd.f32 %v4864, %v4898
  %v4945 = vadd.f32 %v4865, %v4898
  %v4946 = vadd.f32 %v4866, %v4898
  %v4947 = vadd.f32 %v4867, %v4898
  %v4948 = vadd.f32 %v4868, %v4898
  %v4949 = vadd.f32 %v4869, %v4898
  %v4950 = vadd.f32 %v4870, %v4898
  %v4951 = vadd.f32 %v4871, %v4898
  %v4952 = vadd.f32 %v4872, %v4898
  %v4953 = vadd.f32 %v4873, %v4898
  %v4954 = vadd.f32 %v4874, %v4898
  %v4955 = vadd.f32 %v4875, %v4898
  %v4956 = vadd.f32 %v4876, %v4898
  %v4957 = vadd.f32 %v4877, %v4898
  %v4958 = vadd.f32 %v4878, %v4898
  %v4959 = vadd.f32 %v4879, %v4898
  %v4960 = vadd.f32 %v4880, %v4898
  %v4961 = vadd.f32 %v4881, %v4898
  %v4962 = vadd.f32 %v4882, %v4898
  %v4963 = vadd.f32 %v4883, %v4898
  %v4964 = vadd.f32 %v4884, %v4898
  %v4965 = vadd.f32 %v4885, %v4898
  %v4966 = vadd.f32 %v4886, %v4898
  %v4967 = vadd.f32 %v4887, %v4898
  %v4968 = vadd.f32 %v4888, %v4898
  %v4969 = vadd.f32 %v4889, %v4898
  %v4970 = vadd.f32 %v4890, %v4898
  %v4971 = vadd.f32 %v4891, %v4898
  %v4972 = vadd.f32 %v4892, %v4898
  %v4973 = vadd.f32 %v4893, %v4898
  %v4974 = vadd.f32 %v4894, %v4898
  %v4975 = vadd.f32 %v4895, %v4898
  %v4976 = vadd.f32 %v4896, %v4898
  %v4977 = vmax.f32 %v4900, 0.0
  %v4978 = vmax.f32 %v4901, 0.0
  %v4979 = vmax.f32 %v4902, 0.0
  %v4980 = vmax.f32 %v4903, 0.0
  %v4981 = vmax.f32 %v4904, 0.0
  %v4982 = vmax.f32 %v4905, 0.0
  %v4983 = vmax.f32 %v4906, 0.0
  %v4984 = vmax.f32 %v4907, 0.0
  %v4985 = vmax.f32 %v4908, 0.0
  %v4986 = vmax.f32 %v4909, 0.0
  %v4987 = vmax.f32 %v4910, 0.0
  %v4988 = vmax.f32 %v4911, 0.0
  %v4989 = vmax.f32 %v4912, 0.0
  %v4990 = vmax.f32 %v4913, 0.0
  %v4991 = vmax.f32 %v4914, 0.0
  %v4992 = vmax.f32 %v4915, 0.0
  %v4993 = vmax.f32 %v4916, 0.0
  %v4994 = vmax.f32 %v4917, 0.0
  %v4995 = vmax.f32 %v4918, 0.0
  %v4996 = vmax.f32 %v4919, 0.0
  %v4997 = vmax.f32 %v4920, 0.0
  %v4998 = vmax.f32 %v4921, 0.0
  %v4999 = vmax.f32 %v4922, 0.0
  %v5000 = vmax.f32 %v4923, 0.0
  %v5001 = vmax.f32 %v4924, 0.0
  %v5002 = vmax.f32 %v4925, 0.0
  %v5003 = vmax.f32 %v4926, 0.0
  %v5004 = vmax.f32 %v4927, 0.0
  %v5005 = vmax.f32 %v4928, 0.0
  %v5006 = vmax.f32 %v4929, 0.0
  %v5007 = vmax.f32 %v4930, 0.0
  %v5008 = vmax.f32 %v4931, 0.0
  %v5009 = vmax.f32 %v4932, 0.0
  %v5010 = vmax.f32 %v4933, 0.0
  %v5011 = vmax.f32 %v4934, 0.0
  %v5012 = vmax.f32 %v4935, 0.0
  %v5013 = vmax.f32 %v4936, 0.0
  %v5014 = vmax.f32 %v4937, 0.0
  %v5015 = vmax.f32 %v4938, 0.0
  %v5016 = vmax.f32 %v4939, 0.0
  %v5017 = vmax.f32 %v4940, 0.0
  %v5018 = vmax.f32 %v4941, 0.0
  %v5019 = vmax.f32 %v4942, 0.0
  %v5020 = vmax.f32 %v4943, 0.0
  %v5021 = vmax.f32 %v4944, 0.0
  %v5022 = vmax.f32 %v4945, 0.0
  %v5023 = vmax.f32 %v4946, 0.0
  %v5024 = vmax.f32 %v4947, 0.0
  %v5025 = vmax.f32 %v4948, 0.0
  %v5026 = vmax.f32 %v4949, 0.0
  %v5027 = vmax.f32 %v4950, 0.0
  %v5028 = vmax.f32 %v4951, 0.0
  %v5029 = vmax.f32 %v4952, 0.0
  %v5030 = vmax.f32 %v4953, 0.0
  %v5031 = vmax.f32 %v4954, 0.0
  %v5032 = vmax.f32 %v4955, 0.0
  %v5033 = vmax.f32 %v4956, 0.0
  %v5034 = vmax.f32 %v4957, 0.0
  %v5035 = vmax.f32 %v4958, 0.0
  %v5036 = vmax.f32 %v4959, 0.0
  %v5037 = vmax.f32 %v4960, 0.0
  %v5038 = vmax.f32 %v4961, 0.0
  %v5039 = vmax.f32 %v4962, 0.0
  %v5040 = vmax.f32 %v4963, 0.0
  %v5041 = vmax.f32 %v4964, 0.0
  %v5042 = vmax.f32 %v4965, 0.0
  %v5043 = vmax.f32 %v4966, 0.0
  %v5044 = vmax.f32 %v4967, 0.0
  %v5045 = vmax.f32 %v4968, 0.0
  %v5046 = vmax.f32 %v4969, 0.0
  %v5047 = vmax.f32 %v4970, 0.0
  %v5048 = vmax.f32 %v4971, 0.0
  %v5049 = vmax.f32 %v4972, 0.0
  %v5050 = vmax.f32 %v4973, 0.0
  %v5051 = vmax.f32 %v4974, 0.0
  %v5052 = vmax.f32 %v4975, 0.0
  %v5053 = vmax.f32 %v4976, 0.0
  %v5054 = vmul.f32 %v4977, %v4096
  %v5055 = vmul.f32 %v4978, %v4101
  %v5056 = vmul.f32 %v4979, %v4106
  %v5057 = vmul.f32 %v4980, %v4111
  %v5058 = vmul.f32 %v4981, %v4116
  %v5059 = vmul.f32 %v4982, %v4121
  %v5060 = vmul.f32 %v4983, %v4126
  %v5061 = vmul.f32 %v4984, %v4131
  %v5062 = vmul.f32 %v4985, %v4136
  %v5063 = vmul.f32 %v4986, %v4141
  %v5064 = vmul.f32 %v4987, %v4146
  %v5065 = vmul.f32 %v4988, %v4151
  %v5066 = vmul.f32 %v4989, %v4156
  %v5067 = vmul.f32 %v4990, %v4161
  %v5068 = vmul.f32 %v4991, %v4166
  %v5069 = vmul.f32 %v4992, %v4171
  %v5070 = vmul.f32 %v4993, %v4176
  %v5071 = vmul.f32 %v4994, %v4181
  %v5072 = vmul.f32 %v4995, %v4186
  %v5073 = vmul.f32 %v4996, %v4191
  %v5074 = vmul.f32 %v4997, %v4196
  %v5075 = vmul.f32 %v4998, %v4201
  %v5076 = vmul.f32 %v4999, %v4206
  %v5077 = vmul.f32 %v5000, %v4211
  %v5078 = vmul.f32 %v5001, %v4216
  %v5079 = vmul.f32 %v5002, %v4221
  %v5080 = vmul.f32 %v5003, %v4226
  %v5081 = vmul.f32 %v5004, %v4231
  %v5082 = vmul.f32 %v5005, %v4236
  %v5083 = vmul.f32 %v5006, %v4241
  %v5084 = vmul.f32 %v5007, %v4246
  %v5085 = vmul.f32 %v5008, %v4251
  %v5086 = vmul.f32 %v5009, %v4256
  %v5087 = vmul.f32 %v5010, %v4261
  %v5088 = vmul.f32 %v5011, %v4266
  %v5089 = vmul.f32 %v5012, %v4271
  %v5090 = vmul.f32 %v5013, %v4276
  %v5091 = vmul.f32 %v5014, %v4281
  %v5092 = vmul.f32 %v5015, %v4286
  %v5093 = vmul.f32 %v5016, %v4291
  %v5094 = vmul.f32 %v5017, %v4296
  %v5095 = vmul.f32 %v5018, %v4301
  %v5096 = vmul.f32 %v5019, %v4306
  %v5097 = vmul.f32 %v5020, %v4311
  %v5098 = vmul.f32 %v5021, %v4316
  %v5099 = vmul.f32 %v5022, %v4321
  %v5100 = vmul.f32 %v5023, %v4326
  %v5101 = vmul.f32 %v5024, %v4331
  %v5102 = vmul.f32 %v5025, %v4336
  %v5103 = vmul.f32 %v5026, %v4341
  %v5104 = vmul.f32 %v5027, %v4346
  %v5105 = vmul.f32 %v5028, %v4351
  %v5106 = vmul.f32 %v5029, %v4356
  %v5107 = vmul.f32 %v5030, %v4361
  %v5108 = vmul.f32 %v5031, %v4366
  %v5109 = vmul.f32 %v5032, %v4371
  %v5110 = vmul.f32 %v5033, %v4376
  %v5111 = vmul.f32 %v5034, %v4381
  %v5112 = vmul.f32 %v5035, %v4386
  %v5113 = vmul.f32 %v5036, %v4391
  %v5114 = vmul.f32 %v5037, %v4396
  %v5115 = vmul.f32 %v5038, %v4401
  %v5116 = vmul.f32 %v5039, %v4406
  %v5117 = vmul.f32 %v5040, %v4411
  %v5118 = vmul.f32 %v5041, %v4416
  %v5119 = vmul.f32 %v5042, %v4421
  %v5120 = vmul.f32 %v5043, %v4426
  %v5121 = vmul.f32 %v5044, %v4431
  %v5122 = vmul.f32 %v5045, %v4436
  %v5123 = vmul.f32 %v5046, %v4441
  %v5124 = vmul.f32 %v5047, %v4446
  %v5125 = vmul.f32 %v5048, %v4451
  %v5126 = vmul.f32 %v5049, %v4456
  %v5127 = vmul.f32 %v5050, %v4461
  %v5128 = vmul.f32 %v5051, %v4466
  %v5129 = vmul.f32 %v5052, %v4471
  %v5130 = vmul.f32 %v5053, %v4476
  %5131 = vst [vmem:[#allocation2] sm:$0xf] 0
  %5132 = vst [vmem:[#allocation2 + $0x4] sm:$0xf] 0
  %vm5133 = vcmask 1041408
  %vm5134 = vsmask.f32 1280
  %vm5135 = vmand %vm5133, %vm5134
  %v5136 = vld [vmem:[#allocation2 + $0x8] sm:$0x3]
  %v5137 = vsel %vm5135, 0, %v5136
  %5138 = vst [vmem:[#allocation2 + $0x8] sm:$0x3] %v5137
  %vm5139 = vcmask 1043457
  %vm5140 = vsmask.f32 7942
  %vm5141 = vmand %vm5139, %vm5140
  %v5142 = vld [vmem:[#allocation2 + $0x13c] sm:$0xe]
  %v5143 = vsel %vm5141, 0, %v5142
  %5144 = vst [vmem:[#allocation2 + $0x13c] sm:$0xe] %v5143
  %5145 = vst [vmem:[#allocation2 + $0x140] sm:$0xf] 0
  %5146 = vst [vmem:[#allocation2 + $0x144] sm:$0xf] 0
  %v5147 = vpack.c.bf16 %v5054, %v5054
  %v5148 = vpack.c.bf16 %v5055, %v5055
  %v5149 = vpack.c.bf16 %v5056, %v5056
  %v5150 = vpack.c.bf16 %v5057, %v5057
  %v5151 = vpack.c.bf16 %v5058, %v5058
  %v5152 = vpack.c.bf16 %v5059, %v5059
  %v5153 = vpack.c.bf16 %v5060, %v5060
  %v5154 = vpack.c.bf16 %v5061, %v5061
  %v5155 = vpack.c.bf16 %v5062, %v5062
  %v5156 = vpack.c.bf16 %v5063, %v5063
  %v5157 = vpack.c.bf16 %v5064, %v5064
  %v5158 = vpack.c.bf16 %v5065, %v5065
  %v5159 = vpack.c.bf16 %v5066, %v5066
  %v5160 = vpack.c.bf16 %v5067, %v5067
  %v5161 = vpack.c.bf16 %v5068, %v5068
  %v5162 = vpack.c.bf16 %v5069, %v5069
  %v5163 = vpack.c.bf16 %v5070, %v5070
  %v5164 = vpack.c.bf16 %v5071, %v5071
  %v5165 = vpack.c.bf16 %v5072, %v5072
  %v5166 = vpack.c.bf16 %v5073, %v5073
  %v5167 = vpack.c.bf16 %v5074, %v5074
  %v5168 = vpack.c.bf16 %v5075, %v5075
  %v5169 = vpack.c.bf16 %v5076, %v5076
  %v5170 = vpack.c.bf16 %v5077, %v5077
  %v5171 = vpack.c.bf16 %v5078, %v5078
  %v5172 = vpack.c.bf16 %v5079, %v5079
  %v5173 = vpack.c.bf16 %v5080, %v5080
  %v5174 = vpack.c.bf16 %v5081, %v5081
  %v5175 = vpack.c.bf16 %v5082, %v5082
  %v5176 = vpack.c.bf16 %v5083, %v5083
  %v5177 = vpack.c.bf16 %v5084, %v5084
  %v5178 = vpack.c.bf16 %v5085, %v5085
  %v5179 = vpack.c.bf16 %v5086, %v5086
  %v5180 = vpack.c.bf16 %v5087, %v5087
  %v5181 = vpack.c.bf16 %v5088, %v5088
  %v5182 = vpack.c.bf16 %v5089, %v5089
  %v5183 = vpack.c.bf16 %v5090, %v5090
  %v5184 = vpack.c.bf16 %v5091, %v5091
  %v5185 = vpack.c.bf16 %v5092, %v5092
  %v5186 = vpack.c.bf16 %v5093, %v5093
  %v5187 = vpack.c.bf16 %v5094, %v5094
  %v5188 = vpack.c.bf16 %v5095, %v5095
  %v5189 = vpack.c.bf16 %v5096, %v5096
  %v5190 = vpack.c.bf16 %v5097, %v5097
  %v5191 = vpack.c.bf16 %v5098, %v5098
  %v5192 = vpack.c.bf16 %v5099, %v5099
  %v5193 = vpack.c.bf16 %v5100, %v5100
  %v5194 = vpack.c.bf16 %v5101, %v5101
  %v5195 = vpack.c.bf16 %v5102, %v5102
  %v5196 = vpack.c.bf16 %v5103, %v5103
  %v5197 = vpack.c.bf16 %v5104, %v5104
  %v5198 = vpack.c.bf16 %v5105, %v5105
  %v5199 = vpack.c.bf16 %v5106, %v5106
  %v5200 = vpack.c.bf16 %v5107, %v5107
  %v5201 = vpack.c.bf16 %v5108, %v5108
  %v5202 = vpack.c.bf16 %v5109, %v5109
  %v5203 = vpack.c.bf16 %v5110, %v5110
  %v5204 = vpack.c.bf16 %v5111, %v5111
  %v5205 = vpack.c.bf16 %v5112, %v5112
  %v5206 = vpack.c.bf16 %v5113, %v5113
  %v5207 = vpack.c.bf16 %v5114, %v5114
  %v5208 = vpack.c.bf16 %v5115, %v5115
  %v5209 = vpack.c.bf16 %v5116, %v5116
  %v5210 = vpack.c.bf16 %v5117, %v5117
  %v5211 = vpack.c.bf16 %v5118, %v5118
  %v5212 = vpack.c.bf16 %v5119, %v5119
  %v5213 = vpack.c.bf16 %v5120, %v5120
  %v5214 = vpack.c.bf16 %v5121, %v5121
  %v5215 = vpack.c.bf16 %v5122, %v5122
  %v5216 = vpack.c.bf16 %v5123, %v5123
  %v5217 = vpack.c.bf16 %v5124, %v5124
  %v5218 = vpack.c.bf16 %v5125, %v5125
  %v5219 = vpack.c.bf16 %v5126, %v5126
  %v5220 = vpack.c.bf16 %v5127, %v5127
  %v5221 = vpack.c.bf16 %v5128, %v5128
  %v5222 = vpack.c.bf16 %v5129, %v5129
  %v5223 = vpack.c.bf16 %v5130, %v5130
  %vm5224 = vsmask.f32 5392
  %vm5225 = vmor %vm5134, %vm5224
  %v5227 = vshrl.u32 %v5147, 16
  %v5229 = vrot.slane %v5227, 6
  %v5230 = vshll.u32 %v5147, 16
  %v5232 = vrot.slane %v5230, 7
  %v5233 = vor.u32 %v5229, %v5232
  %v5234 = vrot.slane %v5233, 4
  %v5236 = vshrl.u32 %v5148, 16
  %v5238 = vrot.slane %v5236, 6
  %v5239 = vshll.u32 %v5148, 16
  %v5241 = vrot.slane %v5239, 7
  %v5242 = vor.u32 %v5238, %v5241
  %v5243 = vsel %vm5225, %v5234, %v5242
  %v5244 = vrot.slane %v5242, 4
  %v5246 = vshrl.u32 %v5149, 16
  %v5248 = vrot.slane %v5246, 6
  %v5249 = vshll.u32 %v5149, 16
  %v5251 = vrot.slane %v5249, 7
  %v5252 = vor.u32 %v5248, %v5251
  %v5253 = vsel %vm5225, %v5244, %v5252
  %v5254 = vrot.slane %v5252, 4
  %v5256 = vshrl.u32 %v5150, 16
  %v5258 = vrot.slane %v5256, 6
  %v5259 = vshll.u32 %v5150, 16
  %v5261 = vrot.slane %v5259, 7
  %v5262 = vor.u32 %v5258, %v5261
  %v5263 = vsel %vm5225, %v5254, %v5262
  %v5264 = vrot.slane %v5262, 4
  %v5266 = vshrl.u32 %v5151, 16
  %v5268 = vrot.slane %v5266, 6
  %v5269 = vshll.u32 %v5151, 16
  %v5271 = vrot.slane %v5269, 7
  %v5272 = vor.u32 %v5268, %v5271
  %v5273 = vsel %vm5225, %v5264, %v5272
  %v5274 = vrot.slane %v5272, 4
  %v5276 = vshrl.u32 %v5152, 16
  %v5278 = vrot.slane %v5276, 6
  %v5279 = vshll.u32 %v5152, 16
  %v5281 = vrot.slane %v5279, 7
  %v5282 = vor.u32 %v5278, %v5281
  %v5283 = vsel %vm5225, %v5274, %v5282
  %v5284 = vrot.slane %v5282, 4
  %v5286 = vshrl.u32 %v5153, 16
  %v5288 = vrot.slane %v5286, 6
  %v5289 = vshll.u32 %v5153, 16
  %v5291 = vrot.slane %v5289, 7
  %v5292 = vor.u32 %v5288, %v5291
  %v5293 = vsel %vm5225, %v5284, %v5292
  %v5294 = vrot.slane %v5292, 4
  %v5296 = vshrl.u32 %v5154, 16
  %v5298 = vrot.slane %v5296, 6
  %v5299 = vshll.u32 %v5154, 16
  %v5301 = vrot.slane %v5299, 7
  %v5302 = vor.u32 %v5298, %v5301
  %v5303 = vsel %vm5225, %v5294, %v5302
  %v5304 = vrot.slane %v5302, 4
  %v5306 = vshrl.u32 %v5155, 16
  %v5308 = vrot.slane %v5306, 6
  %v5309 = vshll.u32 %v5155, 16
  %v5311 = vrot.slane %v5309, 7
  %v5312 = vor.u32 %v5308, %v5311
  %v5313 = vsel %vm5225, %v5304, %v5312
  %v5314 = vrot.slane %v5312, 4
  %v5316 = vshrl.u32 %v5156, 16
  %v5318 = vrot.slane %v5316, 6
  %v5319 = vshll.u32 %v5156, 16
  %v5321 = vrot.slane %v5319, 7
  %v5322 = vor.u32 %v5318, %v5321
  %v5323 = vsel %vm5225, %v5314, %v5322
  %v5324 = vrot.slane %v5322, 4
  %v5326 = vshrl.u32 %v5157, 16
  %v5328 = vrot.slane %v5326, 6
  %v5329 = vshll.u32 %v5157, 16
  %v5331 = vrot.slane %v5329, 7
  %v5332 = vor.u32 %v5328, %v5331
  %v5333 = vsel %vm5225, %v5324, %v5332
  %v5334 = vrot.slane %v5332, 4
  %v5336 = vshrl.u32 %v5158, 16
  %v5338 = vrot.slane %v5336, 6
  %v5339 = vshll.u32 %v5158, 16
  %v5341 = vrot.slane %v5339, 7
  %v5342 = vor.u32 %v5338, %v5341
  %v5343 = vsel %vm5225, %v5334, %v5342
  %v5344 = vrot.slane %v5342, 4
  %v5346 = vshrl.u32 %v5159, 16
  %v5348 = vrot.slane %v5346, 6
  %v5349 = vshll.u32 %v5159, 16
  %v5351 = vrot.slane %v5349, 7
  %v5352 = vor.u32 %v5348, %v5351
  %v5353 = vsel %vm5225, %v5344, %v5352
  %v5354 = vrot.slane %v5352, 4
  %v5356 = vshrl.u32 %v5160, 16
  %v5358 = vrot.slane %v5356, 6
  %v5359 = vshll.u32 %v5160, 16
  %v5361 = vrot.slane %v5359, 7
  %v5362 = vor.u32 %v5358, %v5361
  %v5363 = vsel %vm5225, %v5354, %v5362
  %v5364 = vrot.slane %v5362, 4
  %v5366 = vshrl.u32 %v5161, 16
  %v5368 = vrot.slane %v5366, 6
  %v5369 = vshll.u32 %v5161, 16
  %v5371 = vrot.slane %v5369, 7
  %v5372 = vor.u32 %v5368, %v5371
  %v5373 = vsel %vm5225, %v5364, %v5372
  %v5374 = vrot.slane %v5372, 4
  %v5376 = vshrl.u32 %v5162, 16
  %v5378 = vrot.slane %v5376, 6
  %v5379 = vshll.u32 %v5162, 16
  %v5381 = vrot.slane %v5379, 7
  %v5382 = vor.u32 %v5378, %v5381
  %v5383 = vsel %vm5225, %v5374, %v5382
  %v5384 = vrot.slane %v5382, 4
  %v5386 = vshrl.u32 %v5163, 16
  %v5388 = vrot.slane %v5386, 6
  %v5389 = vshll.u32 %v5163, 16
  %v5391 = vrot.slane %v5389, 7
  %v5392 = vor.u32 %v5388, %v5391
  %v5393 = vsel %vm5225, %v5384, %v5392
  %v5394 = vrot.slane %v5392, 4
  %v5396 = vshrl.u32 %v5164, 16
  %v5398 = vrot.slane %v5396, 6
  %v5399 = vshll.u32 %v5164, 16
  %v5401 = vrot.slane %v5399, 7
  %v5402 = vor.u32 %v5398, %v5401
  %v5403 = vsel %vm5225, %v5394, %v5402
  %v5404 = vrot.slane %v5402, 4
  %v5406 = vshrl.u32 %v5165, 16
  %v5408 = vrot.slane %v5406, 6
  %v5409 = vshll.u32 %v5165, 16
  %v5411 = vrot.slane %v5409, 7
  %v5412 = vor.u32 %v5408, %v5411
  %v5413 = vsel %vm5225, %v5404, %v5412
  %v5414 = vrot.slane %v5412, 4
  %v5416 = vshrl.u32 %v5166, 16
  %v5418 = vrot.slane %v5416, 6
  %v5419 = vshll.u32 %v5166, 16
  %v5421 = vrot.slane %v5419, 7
  %v5422 = vor.u32 %v5418, %v5421
  %v5423 = vsel %vm5225, %v5414, %v5422
  %v5424 = vrot.slane %v5422, 4
  %v5426 = vshrl.u32 %v5167, 16
  %v5428 = vrot.slane %v5426, 6
  %v5429 = vshll.u32 %v5167, 16
  %v5431 = vrot.slane %v5429, 7
  %v5432 = vor.u32 %v5428, %v5431
  %v5433 = vsel %vm5225, %v5424, %v5432
  %v5434 = vrot.slane %v5432, 4
  %v5436 = vshrl.u32 %v5168, 16
  %v5438 = vrot.slane %v5436, 6
  %v5439 = vshll.u32 %v5168, 16
  %v5441 = vrot.slane %v5439, 7
  %v5442 = vor.u32 %v5438, %v5441
  %v5443 = vsel %vm5225, %v5434, %v5442
  %v5444 = vrot.slane %v5442, 4
  %v5446 = vshrl.u32 %v5169, 16
  %v5448 = vrot.slane %v5446, 6
  %v5449 = vshll.u32 %v5169, 16
  %v5451 = vrot.slane %v5449, 7
  %v5452 = vor.u32 %v5448, %v5451
  %v5453 = vsel %vm5225, %v5444, %v5452
  %v5454 = vrot.slane %v5452, 4
  %v5456 = vshrl.u32 %v5170, 16
  %v5458 = vrot.slane %v5456, 6
  %v5459 = vshll.u32 %v5170, 16
  %v5461 = vrot.slane %v5459, 7
  %v5462 = vor.u32 %v5458, %v5461
  %v5463 = vsel %vm5225, %v5454, %v5462
  %v5464 = vrot.slane %v5462, 4
  %v5466 = vshrl.u32 %v5171, 16
  %v5468 = vrot.slane %v5466, 6
  %v5469 = vshll.u32 %v5171, 16
  %v5471 = vrot.slane %v5469, 7
  %v5472 = vor.u32 %v5468, %v5471
  %v5473 = vsel %vm5225, %v5464, %v5472
  %v5474 = vrot.slane %v5472, 4
  %v5476 = vshrl.u32 %v5172, 16
  %v5478 = vrot.slane %v5476, 6
  %v5479 = vshll.u32 %v5172, 16
  %v5481 = vrot.slane %v5479, 7
  %v5482 = vor.u32 %v5478, %v5481
  %v5483 = vsel %vm5225, %v5474, %v5482
  %v5484 = vrot.slane %v5482, 4
  %v5486 = vshrl.u32 %v5173, 16
  %v5488 = vrot.slane %v5486, 6
  %v5489 = vshll.u32 %v5173, 16
  %v5491 = vrot.slane %v5489, 7
  %v5492 = vor.u32 %v5488, %v5491
  %v5493 = vsel %vm5225, %v5484, %v5492
  %v5494 = vrot.slane %v5492, 4
  %v5496 = vshrl.u32 %v5174, 16
  %v5498 = vrot.slane %v5496, 6
  %v5499 = vshll.u32 %v5174, 16
  %v5501 = vrot.slane %v5499, 7
  %v5502 = vor.u32 %v5498, %v5501
  %v5503 = vsel %vm5225, %v5494, %v5502
  %v5504 = vrot.slane %v5502, 4
  %v5506 = vshrl.u32 %v5175, 16
  %v5508 = vrot.slane %v5506, 6
  %v5509 = vshll.u32 %v5175, 16
  %v5511 = vrot.slane %v5509, 7
  %v5512 = vor.u32 %v5508, %v5511
  %v5513 = vsel %vm5225, %v5504, %v5512
  %v5514 = vrot.slane %v5512, 4
  %v5516 = vshrl.u32 %v5176, 16
  %v5518 = vrot.slane %v5516, 6
  %v5519 = vshll.u32 %v5176, 16
  %v5521 = vrot.slane %v5519, 7
  %v5522 = vor.u32 %v5518, %v5521
  %v5523 = vsel %vm5225, %v5514, %v5522
  %v5524 = vrot.slane %v5522, 4
  %v5526 = vshrl.u32 %v5177, 16
  %v5528 = vrot.slane %v5526, 6
  %v5529 = vshll.u32 %v5177, 16
  %v5531 = vrot.slane %v5529, 7
  %v5532 = vor.u32 %v5528, %v5531
  %v5533 = vsel %vm5225, %v5524, %v5532
  %v5534 = vrot.slane %v5532, 4
  %v5536 = vshrl.u32 %v5178, 16
  %v5538 = vrot.slane %v5536, 6
  %v5539 = vshll.u32 %v5178, 16
  %v5541 = vrot.slane %v5539, 7
  %v5542 = vor.u32 %v5538, %v5541
  %v5543 = vsel %vm5225, %v5534, %v5542
  %v5544 = vrot.slane %v5542, 4
  %v5546 = vshrl.u32 %v5179, 16
  %v5548 = vrot.slane %v5546, 6
  %v5549 = vshll.u32 %v5179, 16
  %v5551 = vrot.slane %v5549, 7
  %v5552 = vor.u32 %v5548, %v5551
  %v5553 = vsel %vm5225, %v5544, %v5552
  %v5554 = vrot.slane %v5552, 4
  %v5556 = vshrl.u32 %v5180, 16
  %v5558 = vrot.slane %v5556, 6
  %v5559 = vshll.u32 %v5180, 16
  %v5561 = vrot.slane %v5559, 7
  %v5562 = vor.u32 %v5558, %v5561
  %v5563 = vsel %vm5225, %v5554, %v5562
  %v5564 = vrot.slane %v5562, 4
  %v5566 = vshrl.u32 %v5181, 16
  %v5568 = vrot.slane %v5566, 6
  %v5569 = vshll.u32 %v5181, 16
  %v5571 = vrot.slane %v5569, 7
  %v5572 = vor.u32 %v5568, %v5571
  %v5573 = vsel %vm5225, %v5564, %v5572
  %v5574 = vrot.slane %v5572, 4
  %v5576 = vshrl.u32 %v5182, 16
  %v5578 = vrot.slane %v5576, 6
  %v5579 = vshll.u32 %v5182, 16
  %v5581 = vrot.slane %v5579, 7
  %v5582 = vor.u32 %v5578, %v5581
  %v5583 = vsel %vm5225, %v5574, %v5582
  %v5584 = vrot.slane %v5582, 4
  %v5586 = vshrl.u32 %v5183, 16
  %v5588 = vrot.slane %v5586, 6
  %v5589 = vshll.u32 %v5183, 16
  %v5591 = vrot.slane %v5589, 7
  %v5592 = vor.u32 %v5588, %v5591
  %v5593 = vsel %vm5225, %v5584, %v5592
  %v5594 = vrot.slane %v5592, 4
  %v5596 = vshrl.u32 %v5184, 16
  %v5598 = vrot.slane %v5596, 6
  %v5599 = vshll.u32 %v5184, 16
  %v5601 = vrot.slane %v5599, 7
  %v5602 = vor.u32 %v5598, %v5601
  %v5603 = vsel %vm5225, %v5594, %v5602
  %v5604 = vrot.slane %v5602, 4
  %v5606 = vshrl.u32 %v5185, 16
  %v5608 = vrot.slane %v5606, 6
  %v5609 = vshll.u32 %v5185, 16
  %v5611 = vrot.slane %v5609, 7
  %v5612 = vor.u32 %v5608, %v5611
  %v5613 = vsel %vm5225, %v5604, %v5612
  %v5614 = vrot.slane %v5612, 4
  %v5616 = vshrl.u32 %v5186, 16
  %v5618 = vrot.slane %v5616, 6
  %v5619 = vshll.u32 %v5186, 16
  %v5621 = vrot.slane %v5619, 7
  %v5622 = vor.u32 %v5618, %v5621
  %v5623 = vsel %vm5225, %v5614, %v5622
  %v5624 = vrot.slane %v5622, 4
  %v5626 = vshrl.u32 %v5187, 16
  %v5628 = vrot.slane %v5626, 6
  %v5629 = vshll.u32 %v5187, 16
  %v5631 = vrot.slane %v5629, 7
  %v5632 = vor.u32 %v5628, %v5631
  %v5633 = vsel %vm5225, %v5624, %v5632
  %v5634 = vrot.slane %v5632, 4
  %v5636 = vshrl.u32 %v5188, 16
  %v5638 = vrot.slane %v5636, 6
  %v5639 = vshll.u32 %v5188, 16
  %v5641 = vrot.slane %v5639, 7
  %v5642 = vor.u32 %v5638, %v5641
  %v5643 = vsel %vm5225, %v5634, %v5642
  %v5644 = vrot.slane %v5642, 4
  %v5646 = vshrl.u32 %v5189, 16
  %v5648 = vrot.slane %v5646, 6
  %v5649 = vshll.u32 %v5189, 16
  %v5651 = vrot.slane %v5649, 7
  %v5652 = vor.u32 %v5648, %v5651
  %v5653 = vsel %vm5225, %v5644, %v5652
  %v5654 = vrot.slane %v5652, 4
  %v5656 = vshrl.u32 %v5190, 16
  %v5658 = vrot.slane %v5656, 6
  %v5659 = vshll.u32 %v5190, 16
  %v5661 = vrot.slane %v5659, 7
  %v5662 = vor.u32 %v5658, %v5661
  %v5663 = vsel %vm5225, %v5654, %v5662
  %v5664 = vrot.slane %v5662, 4
  %v5666 = vshrl.u32 %v5191, 16
  %v5668 = vrot.slane %v5666, 6
  %v5669 = vshll.u32 %v5191, 16
  %v5671 = vrot.slane %v5669, 7
  %v5672 = vor.u32 %v5668, %v5671
  %v5673 = vsel %vm5225, %v5664, %v5672
  %v5674 = vrot.slane %v5672, 4
  %v5676 = vshrl.u32 %v5192, 16
  %v5678 = vrot.slane %v5676, 6
  %v5679 = vshll.u32 %v5192, 16
  %v5681 = vrot.slane %v5679, 7
  %v5682 = vor.u32 %v5678, %v5681
  %v5683 = vsel %vm5225, %v5674, %v5682
  %v5684 = vrot.slane %v5682, 4
  %v5686 = vshrl.u32 %v5193, 16
  %v5688 = vrot.slane %v5686, 6
  %v5689 = vshll.u32 %v5193, 16
  %v5691 = vrot.slane %v5689, 7
  %v5692 = vor.u32 %v5688, %v5691
  %v5693 = vsel %vm5225, %v5684, %v5692
  %v5694 = vrot.slane %v5692, 4
  %v5696 = vshrl.u32 %v5194, 16
  %v5698 = vrot.slane %v5696, 6
  %v5699 = vshll.u32 %v5194, 16
  %v5701 = vrot.slane %v5699, 7
  %v5702 = vor.u32 %v5698, %v5701
  %v5703 = vsel %vm5225, %v5694, %v5702
  %v5704 = vrot.slane %v5702, 4
  %v5706 = vshrl.u32 %v5195, 16
  %v5708 = vrot.slane %v5706, 6
  %v5709 = vshll.u32 %v5195, 16
  %v5711 = vrot.slane %v5709, 7
  %v5712 = vor.u32 %v5708, %v5711
  %v5713 = vsel %vm5225, %v5704, %v5712
  %v5714 = vrot.slane %v5712, 4
  %v5716 = vshrl.u32 %v5196, 16
  %v5718 = vrot.slane %v5716, 6
  %v5719 = vshll.u32 %v5196, 16
  %v5721 = vrot.slane %v5719, 7
  %v5722 = vor.u32 %v5718, %v5721
  %v5723 = vsel %vm5225, %v5714, %v5722
  %v5724 = vrot.slane %v5722, 4
  %v5726 = vshrl.u32 %v5197, 16
  %v5728 = vrot.slane %v5726, 6
  %v5729 = vshll.u32 %v5197, 16
  %v5731 = vrot.slane %v5729, 7
  %v5732 = vor.u32 %v5728, %v5731
  %v5733 = vsel %vm5225, %v5724, %v5732
  %v5734 = vrot.slane %v5732, 4
  %v5736 = vshrl.u32 %v5198, 16
  %v5738 = vrot.slane %v5736, 6
  %v5739 = vshll.u32 %v5198, 16
  %v5741 = vrot.slane %v5739, 7
  %v5742 = vor.u32 %v5738, %v5741
  %v5743 = vsel %vm5225, %v5734, %v5742
  %v5744 = vrot.slane %v5742, 4
  %v5746 = vshrl.u32 %v5199, 16
  %v5748 = vrot.slane %v5746, 6
  %v5749 = vshll.u32 %v5199, 16
  %v5751 = vrot.slane %v5749, 7
  %v5752 = vor.u32 %v5748, %v5751
  %v5753 = vsel %vm5225, %v5744, %v5752
  %v5754 = vrot.slane %v5752, 4
  %v5756 = vshrl.u32 %v5200, 16
  %v5758 = vrot.slane %v5756, 6
  %v5759 = vshll.u32 %v5200, 16
  %v5761 = vrot.slane %v5759, 7
  %v5762 = vor.u32 %v5758, %v5761
  %v5763 = vsel %vm5225, %v5754, %v5762
  %v5764 = vrot.slane %v5762, 4
  %v5766 = vshrl.u32 %v5201, 16
  %v5768 = vrot.slane %v5766, 6
  %v5769 = vshll.u32 %v5201, 16
  %v5771 = vrot.slane %v5769, 7
  %v5772 = vor.u32 %v5768, %v5771
  %v5773 = vsel %vm5225, %v5764, %v5772
  %v5774 = vrot.slane %v5772, 4
  %v5776 = vshrl.u32 %v5202, 16
  %v5778 = vrot.slane %v5776, 6
  %v5779 = vshll.u32 %v5202, 16
  %v5781 = vrot.slane %v5779, 7
  %v5782 = vor.u32 %v5778, %v5781
  %v5783 = vsel %vm5225, %v5774, %v5782
  %v5784 = vrot.slane %v5782, 4
  %v5786 = vshrl.u32 %v5203, 16
  %v5788 = vrot.slane %v5786, 6
  %v5789 = vshll.u32 %v5203, 16
  %v5791 = vrot.slane %v5789, 7
  %v5792 = vor.u32 %v5788, %v5791
  %v5793 = vsel %vm5225, %v5784, %v5792
  %v5794 = vrot.slane %v5792, 4
  %v5796 = vshrl.u32 %v5204, 16
  %v5798 = vrot.slane %v5796, 6
  %v5799 = vshll.u32 %v5204, 16
  %v5801 = vrot.slane %v5799, 7
  %v5802 = vor.u32 %v5798, %v5801
  %v5803 = vsel %vm5225, %v5794, %v5802
  %v5804 = vrot.slane %v5802, 4
  %v5806 = vshrl.u32 %v5205, 16
  %v5808 = vrot.slane %v5806, 6
  %v5809 = vshll.u32 %v5205, 16
  %v5811 = vrot.slane %v5809, 7
  %v5812 = vor.u32 %v5808, %v5811
  %v5813 = vsel %vm5225, %v5804, %v5812
  %v5814 = vrot.slane %v5812, 4
  %v5816 = vshrl.u32 %v5206, 16
  %v5818 = vrot.slane %v5816, 6
  %v5819 = vshll.u32 %v5206, 16
  %v5821 = vrot.slane %v5819, 7
  %v5822 = vor.u32 %v5818, %v5821
  %v5823 = vsel %vm5225, %v5814, %v5822
  %v5824 = vrot.slane %v5822, 4
  %v5826 = vshrl.u32 %v5207, 16
  %v5828 = vrot.slane %v5826, 6
  %v5829 = vshll.u32 %v5207, 16
  %v5831 = vrot.slane %v5829, 7
  %v5832 = vor.u32 %v5828, %v5831
  %v5833 = vsel %vm5225, %v5824, %v5832
  %v5834 = vrot.slane %v5832, 4
  %v5836 = vshrl.u32 %v5208, 16
  %v5838 = vrot.slane %v5836, 6
  %v5839 = vshll.u32 %v5208, 16
  %v5841 = vrot.slane %v5839, 7
  %v5842 = vor.u32 %v5838, %v5841
  %v5843 = vsel %vm5225, %v5834, %v5842
  %v5844 = vrot.slane %v5842, 4
  %v5846 = vshrl.u32 %v5209, 16
  %v5848 = vrot.slane %v5846, 6
  %v5849 = vshll.u32 %v5209, 16
  %v5851 = vrot.slane %v5849, 7
  %v5852 = vor.u32 %v5848, %v5851
  %v5853 = vsel %vm5225, %v5844, %v5852
  %v5854 = vrot.slane %v5852, 4
  %v5856 = vshrl.u32 %v5210, 16
  %v5858 = vrot.slane %v5856, 6
  %v5859 = vshll.u32 %v5210, 16
  %v5861 = vrot.slane %v5859, 7
  %v5862 = vor.u32 %v5858, %v5861
  %v5863 = vsel %vm5225, %v5854, %v5862
  %v5864 = vrot.slane %v5862, 4
  %v5866 = vshrl.u32 %v5211, 16
  %v5868 = vrot.slane %v5866, 6
  %v5869 = vshll.u32 %v5211, 16
  %v5871 = vrot.slane %v5869, 7
  %v5872 = vor.u32 %v5868, %v5871
  %v5873 = vsel %vm5225, %v5864, %v5872
  %v5874 = vrot.slane %v5872, 4
  %v5876 = vshrl.u32 %v5212, 16
  %v5878 = vrot.slane %v5876, 6
  %v5879 = vshll.u32 %v5212, 16
  %v5881 = vrot.slane %v5879, 7
  %v5882 = vor.u32 %v5878, %v5881
  %v5883 = vsel %vm5225, %v5874, %v5882
  %v5884 = vrot.slane %v5882, 4
  %v5886 = vshrl.u32 %v5213, 16
  %v5888 = vrot.slane %v5886, 6
  %v5889 = vshll.u32 %v5213, 16
  %v5891 = vrot.slane %v5889, 7
  %v5892 = vor.u32 %v5888, %v5891
  %v5893 = vsel %vm5225, %v5884, %v5892
  %v5894 = vrot.slane %v5892, 4
  %v5896 = vshrl.u32 %v5214, 16
  %v5898 = vrot.slane %v5896, 6
  %v5899 = vshll.u32 %v5214, 16
  %v5901 = vrot.slane %v5899, 7
  %v5902 = vor.u32 %v5898, %v5901
  %v5903 = vsel %vm5225, %v5894, %v5902
  %v5904 = vrot.slane %v5902, 4
  %v5906 = vshrl.u32 %v5215, 16
  %v5908 = vrot.slane %v5906, 6
  %v5909 = vshll.u32 %v5215, 16
  %v5911 = vrot.slane %v5909, 7
  %v5912 = vor.u32 %v5908, %v5911
  %v5913 = vsel %vm5225, %v5904, %v5912
  %v5914 = vrot.slane %v5912, 4
  %v5916 = vshrl.u32 %v5216, 16
  %v5918 = vrot.slane %v5916, 6
  %v5919 = vshll.u32 %v5216, 16
  %v5921 = vrot.slane %v5919, 7
  %v5922 = vor.u32 %v5918, %v5921
  %v5923 = vsel %vm5225, %v5914, %v5922
  %v5924 = vrot.slane %v5922, 4
  %v5926 = vshrl.u32 %v5217, 16
  %v5928 = vrot.slane %v5926, 6
  %v5929 = vshll.u32 %v5217, 16
  %v5931 = vrot.slane %v5929, 7
  %v5932 = vor.u32 %v5928, %v5931
  %v5933 = vsel %vm5225, %v5924, %v5932
  %v5934 = vrot.slane %v5932, 4
  %v5936 = vshrl.u32 %v5218, 16
  %v5938 = vrot.slane %v5936, 6
  %v5939 = vshll.u32 %v5218, 16
  %v5941 = vrot.slane %v5939, 7
  %v5942 = vor.u32 %v5938, %v5941
  %v5943 = vsel %vm5225, %v5934, %v5942
  %v5944 = vrot.slane %v5942, 4
  %v5946 = vshrl.u32 %v5219, 16
  %v5948 = vrot.slane %v5946, 6
  %v5949 = vshll.u32 %v5219, 16
  %v5951 = vrot.slane %v5949, 7
  %v5952 = vor.u32 %v5948, %v5951
  %v5953 = vsel %vm5225, %v5944, %v5952
  %v5954 = vrot.slane %v5952, 4
  %v5956 = vshrl.u32 %v5220, 16
  %v5958 = vrot.slane %v5956, 6
  %v5959 = vshll.u32 %v5220, 16
  %v5961 = vrot.slane %v5959, 7
  %v5962 = vor.u32 %v5958, %v5961
  %v5963 = vsel %vm5225, %v5954, %v5962
  %v5964 = vrot.slane %v5962, 4
  %v5966 = vshrl.u32 %v5221, 16
  %v5968 = vrot.slane %v5966, 6
  %v5969 = vshll.u32 %v5221, 16
  %v5971 = vrot.slane %v5969, 7
  %v5972 = vor.u32 %v5968, %v5971
  %v5973 = vsel %vm5225, %v5964, %v5972
  %v5974 = vrot.slane %v5972, 4
  %v5976 = vshrl.u32 %v5222, 16
  %v5978 = vrot.slane %v5976, 6
  %v5979 = vshll.u32 %v5222, 16
  %v5981 = vrot.slane %v5979, 7
  %v5982 = vor.u32 %v5978, %v5981
  %v5983 = vsel %vm5225, %v5974, %v5982
  %v5984 = vrot.slane %v5982, 4
  %v5986 = vshrl.u32 %v5223, 16
  %v5988 = vrot.slane %v5986, 6
  %v5989 = vshll.u32 %v5223, 16
  %v5991 = vrot.slane %v5989, 7
  %v5992 = vor.u32 %v5988, %v5991
  %v5993 = vsel %vm5225, %v5984, %v5992
  %v5994 = vrot.slane %v5992, 4
  %v6073 = vld [vmem:[#allocation2 + $0x8] sm:$0xe]
  %v6074 = vsel %vm5141, %v5233, %v6073
  %6075 = vst [vmem:[#allocation2 + $0x8] sm:$0xe] %v6074
  %6076 = vst [vmem:[#allocation2 + $0xc] sm:$0xf] %v5243
  %6077 = vst [vmem:[#allocation2 + $0x10] sm:$0xf] %v5253
  %6078 = vst [vmem:[#allocation2 + $0x14] sm:$0xf] %v5263
  %6079 = vst [vmem:[#allocation2 + $0x18] sm:$0xf] %v5273
  %6080 = vst [vmem:[#allocation2 + $0x1c] sm:$0xf] %v5283
  %6081 = vst [vmem:[#allocation2 + $0x20] sm:$0xf] %v5293
  %6082 = vst [vmem:[#allocation2 + $0x24] sm:$0xf] %v5303
  %6083 = vst [vmem:[#allocation2 + $0x28] sm:$0xf] %v5313
  %6084 = vst [vmem:[#allocation2 + $0x2c] sm:$0xf] %v5323
  %6085 = vst [vmem:[#allocation2 + $0x30] sm:$0xf] %v5333
  %6086 = vst [vmem:[#allocation2 + $0x34] sm:$0xf] %v5343
  %6087 = vst [vmem:[#allocation2 + $0x38] sm:$0xf] %v5353
  %6088 = vst [vmem:[#allocation2 + $0x3c] sm:$0xf] %v5363
  %6089 = vst [vmem:[#allocation2 + $0x40] sm:$0xf] %v5373
  %6090 = vst [vmem:[#allocation2 + $0x44] sm:$0xf] %v5383
  %6091 = vst [vmem:[#allocation2 + $0x48] sm:$0xf] %v5393
  %6092 = vst [vmem:[#allocation2 + $0x4c] sm:$0xf] %v5403
  %6093 = vst [vmem:[#allocation2 + $0x50] sm:$0xf] %v5413
  %6094 = vst [vmem:[#allocation2 + $0x54] sm:$0xf] %v5423
  %6095 = vst [vmem:[#allocation2 + $0x58] sm:$0xf] %v5433
  %6096 = vst [vmem:[#allocation2 + $0x5c] sm:$0xf] %v5443
  %6097 = vst [vmem:[#allocation2 + $0x60] sm:$0xf] %v5453
  %6098 = vst [vmem:[#allocation2 + $0x64] sm:$0xf] %v5463
  %6099 = vst [vmem:[#allocation2 + $0x68] sm:$0xf] %v5473
  %6100 = vst [vmem:[#allocation2 + $0x6c] sm:$0xf] %v5483
  %6101 = vst [vmem:[#allocation2 + $0x70] sm:$0xf] %v5493
  %6102 = vst [vmem:[#allocation2 + $0x74] sm:$0xf] %v5503
  %6103 = vst [vmem:[#allocation2 + $0x78] sm:$0xf] %v5513
  %6104 = vst [vmem:[#allocation2 + $0x7c] sm:$0xf] %v5523
  %6105 = vst [vmem:[#allocation2 + $0x80] sm:$0xf] %v5533
  %6106 = vst [vmem:[#allocation2 + $0x84] sm:$0xf] %v5543
  %6107 = vst [vmem:[#allocation2 + $0x88] sm:$0xf] %v5553
  %6108 = vst [vmem:[#allocation2 + $0x8c] sm:$0xf] %v5563
  %6109 = vst [vmem:[#allocation2 + $0x90] sm:$0xf] %v5573
  %6110 = vst [vmem:[#allocation2 + $0x94] sm:$0xf] %v5583
  %6111 = vst [vmem:[#allocation2 + $0x98] sm:$0xf] %v5593
  %6112 = vst [vmem:[#allocation2 + $0x9c] sm:$0xf] %v5603
  %6113 = vst [vmem:[#allocation2 + $0xa0] sm:$0xf] %v5613
  %6114 = vst [vmem:[#allocation2 + $0xa4] sm:$0xf] %v5623
  %6115 = vst [vmem:[#allocation2 + $0xa8] sm:$0xf] %v5633
  %6116 = vst [vmem:[#allocation2 + $0xac] sm:$0xf] %v5643
  %6117 = vst [vmem:[#allocation2 + $0xb0] sm:$0xf] %v5653
  %6118 = vst [vmem:[#allocation2 + $0xb4] sm:$0xf] %v5663
  %6119 = vst [vmem:[#allocation2 + $0xb8] sm:$0xf] %v5673
  %6120 = vst [vmem:[#allocation2 + $0xbc] sm:$0xf] %v5683
  %6121 = vst [vmem:[#allocation2 + $0xc0] sm:$0xf] %v5693
  %6122 = vst [vmem:[#allocation2 + $0xc4] sm:$0xf] %v5703
  %6123 = vst [vmem:[#allocation2 + $0xc8] sm:$0xf] %v5713
  %6124 = vst [vmem:[#allocation2 + $0xcc] sm:$0xf] %v5723
  %6125 = vst [vmem:[#allocation2 + $0xd0] sm:$0xf] %v5733
  %6126 = vst [vmem:[#allocation2 + $0xd4] sm:$0xf] %v5743
  %6127 = vst [vmem:[#allocation2 + $0xd8] sm:$0xf] %v5753
  %6128 = vst [vmem:[#allocation2 + $0xdc] sm:$0xf] %v5763
  %6129 = vst [vmem:[#allocation2 + $0xe0] sm:$0xf] %v5773
  %6130 = vst [vmem:[#allocation2 + $0xe4] sm:$0xf] %v5783
  %6131 = vst [vmem:[#allocation2 + $0xe8] sm:$0xf] %v5793
  %6132 = vst [vmem:[#allocation2 + $0xec] sm:$0xf] %v5803
  %6133 = vst [vmem:[#allocation2 + $0xf0] sm:$0xf] %v5813
  %6134 = vst [vmem:[#allocation2 + $0xf4] sm:$0xf] %v5823
  %6135 = vst [vmem:[#allocation2 + $0xf8] sm:$0xf] %v5833
  %6136 = vst [vmem:[#allocation2 + $0xfc] sm:$0xf] %v5843
  %6137 = vst [vmem:[#allocation2 + $0x100] sm:$0xf] %v5853
  %6138 = vst [vmem:[#allocation2 + $0x104] sm:$0xf] %v5863
  %6139 = vst [vmem:[#allocation2 + $0x108] sm:$0xf] %v5873
  %6140 = vst [vmem:[#allocation2 + $0x10c] sm:$0xf] %v5883
  %6141 = vst [vmem:[#allocation2 + $0x110] sm:$0xf] %v5893
  %6142 = vst [vmem:[#allocation2 + $0x114] sm:$0xf] %v5903
  %6143 = vst [vmem:[#allocation2 + $0x118] sm:$0xf] %v5913
  %6144 = vst [vmem:[#allocation2 + $0x11c] sm:$0xf] %v5923
  %6145 = vst [vmem:[#allocation2 + $0x120] sm:$0xf] %v5933
  %6146 = vst [vmem:[#allocation2 + $0x124] sm:$0xf] %v5943
  %6147 = vst [vmem:[#allocation2 + $0x128] sm:$0xf] %v5953
  %6148 = vst [vmem:[#allocation2 + $0x12c] sm:$0xf] %v5963
  %6149 = vst [vmem:[#allocation2 + $0x130] sm:$0xf] %v5973
  %6150 = vst [vmem:[#allocation2 + $0x134] sm:$0xf] %v5983
  %6151 = vst [vmem:[#allocation2 + $0x138] sm:$0xf] %v5993
  %v6152 = vld [vmem:[#allocation2 + $0x13c] sm:$0x3]
  %v6153 = vsel %vm5135, %v5994, %v6152
  %6154 = vst [vmem:[#allocation2 + $0x13c] sm:$0x3] %v6153
  %v6155 = vld [vmem:[#allocation2] sm:$0xf]
  %v6156 = vld [vmem:[#allocation2 + $0x4] sm:$0xf]
  %v6157 = vld [vmem:[#allocation2 + $0x8] sm:$0xf]
  %v6158 = vld [vmem:[#allocation2 + $0xc] sm:$0xf]
  %v6159 = vld [vmem:[#allocation2 + $0x10] sm:$0xf]
  %v6160 = vld [vmem:[#allocation2 + $0x14] sm:$0xf]
  %v6161 = vld [vmem:[#allocation2 + $0x18] sm:$0xf]
  %v6162 = vld [vmem:[#allocation2 + $0x1c] sm:$0xf]
  %v6163 = vld [vmem:[#allocation2 + $0x20] sm:$0xf]
  %v6164 = vld [vmem:[#allocation2 + $0x24] sm:$0xf]
  %v6165 = vld [vmem:[#allocation2 + $0x28] sm:$0xf]
  %v6166 = vld [vmem:[#allocation2 + $0x2c] sm:$0xf]
  %v6167 = vld [vmem:[#allocation2 + $0x30] sm:$0xf]
  %v6168 = vld [vmem:[#allocation2 + $0x34] sm:$0xf]
  %v6169 = vld [vmem:[#allocation2 + $0x38] sm:$0xf]
  %v6170 = vld [vmem:[#allocation2 + $0x3c] sm:$0xf]
  %v6171 = vld [vmem:[#allocation2 + $0x40] sm:$0xf]
  %v6172 = vld [vmem:[#allocation2 + $0x44] sm:$0xf]
  %v6173 = vld [vmem:[#allocation2 + $0x48] sm:$0xf]
  %v6174 = vld [vmem:[#allocation2 + $0x4c] sm:$0xf]
  %v6175 = vld [vmem:[#allocation2 + $0x50] sm:$0xf]
  %v6176 = vld [vmem:[#allocation2 + $0x54] sm:$0xf]
  %v6177 = vld [vmem:[#allocation2 + $0x58] sm:$0xf]
  %v6178 = vld [vmem:[#allocation2 + $0x5c] sm:$0xf]
  %v6179 = vld [vmem:[#allocation2 + $0x60] sm:$0xf]
  %v6180 = vld [vmem:[#allocation2 + $0x64] sm:$0xf]
  %v6181 = vld [vmem:[#allocation2 + $0x68] sm:$0xf]
  %v6182 = vld [vmem:[#allocation2 + $0x6c] sm:$0xf]
  %v6183 = vld [vmem:[#allocation2 + $0x70] sm:$0xf]
  %v6184 = vld [vmem:[#allocation2 + $0x74] sm:$0xf]
  %v6185 = vld [vmem:[#allocation2 + $0x78] sm:$0xf]
  %v6186 = vld [vmem:[#allocation2 + $0x7c] sm:$0xf]
  %v6187 = vld [vmem:[#allocation2 + $0x80] sm:$0xf]
  %v6188 = vld [vmem:[#allocation2 + $0x84] sm:$0xf]
  %v6189 = vld [vmem:[#allocation2 + $0x88] sm:$0xf]
  %v6190 = vld [vmem:[#allocation2 + $0x8c] sm:$0xf]
  %v6191 = vld [vmem:[#allocation2 + $0x90] sm:$0xf]
  %v6192 = vld [vmem:[#allocation2 + $0x94] sm:$0xf]
  %v6193 = vld [vmem:[#allocation2 + $0x98] sm:$0xf]
  %v6194 = vld [vmem:[#allocation2 + $0x9c] sm:$0xf]
  %v6195 = vld [vmem:[#allocation2 + $0xa0] sm:$0xf]
  %v6196 = vld [vmem:[#allocation2 + $0xa4] sm:$0xf]
  %v6197 = vld [vmem:[#allocation2 + $0xa8] sm:$0xf]
  %v6198 = vld [vmem:[#allocation2 + $0xac] sm:$0xf]
  %v6199 = vld [vmem:[#allocation2 + $0xb0] sm:$0xf]
  %v6200 = vld [vmem:[#allocation2 + $0xb4] sm:$0xf]
  %v6201 = vld [vmem:[#allocation2 + $0xb8] sm:$0xf]
  %v6202 = vld [vmem:[#allocation2 + $0xbc] sm:$0xf]
  %v6203 = vld [vmem:[#allocation2 + $0xc0] sm:$0xf]
  %v6204 = vld [vmem:[#allocation2 + $0xc4] sm:$0xf]
  %v6205 = vld [vmem:[#allocation2 + $0xc8] sm:$0xf]
  %v6206 = vld [vmem:[#allocation2 + $0xcc] sm:$0xf]
  %v6207 = vld [vmem:[#allocation2 + $0xd0] sm:$0xf]
  %v6208 = vld [vmem:[#allocation2 + $0xd4] sm:$0xf]
  %v6209 = vld [vmem:[#allocation2 + $0xd8] sm:$0xf]
  %v6210 = vld [vmem:[#allocation2 + $0xdc] sm:$0xf]
  %v6211 = vld [vmem:[#allocation2 + $0xe0] sm:$0xf]
  %v6212 = vld [vmem:[#allocation2 + $0xe4] sm:$0xf]
  %v6213 = vld [vmem:[#allocation2 + $0xe8] sm:$0xf]
  %v6214 = vld [vmem:[#allocation2 + $0xec] sm:$0xf]
  %v6215 = vld [vmem:[#allocation2 + $0xf0] sm:$0xf]
  %v6216 = vld [vmem:[#allocation2 + $0xf4] sm:$0xf]
  %v6217 = vld [vmem:[#allocation2 + $0xf8] sm:$0xf]
  %v6218 = vld [vmem:[#allocation2 + $0xfc] sm:$0xf]
  %v6219 = vld [vmem:[#allocation2 + $0x100] sm:$0xf]
  %v6220 = vld [vmem:[#allocation2 + $0x104] sm:$0xf]
  %v6221 = vld [vmem:[#allocation2 + $0x108] sm:$0xf]
  %v6222 = vld [vmem:[#allocation2 + $0x10c] sm:$0xf]
  %v6223 = vld [vmem:[#allocation2 + $0x110] sm:$0xf]
  %v6224 = vld [vmem:[#allocation2 + $0x114] sm:$0xf]
  %v6225 = vld [vmem:[#allocation2 + $0x118] sm:$0xf]
  %v6226 = vld [vmem:[#allocation2 + $0x11c] sm:$0xf]
  %v6227 = vld [vmem:[#allocation2 + $0x120] sm:$0xf]
  %v6228 = vld [vmem:[#allocation2 + $0x124] sm:$0xf]
  %v6229 = vld [vmem:[#allocation2 + $0x128] sm:$0xf]
  %v6230 = vld [vmem:[#allocation2 + $0x12c] sm:$0xf]
  %v6231 = vld [vmem:[#allocation2 + $0x130] sm:$0xf]
  %v6232 = vld [vmem:[%s2] sm:$0xf]
  %v6233 = vld [vmem:[%s2 + $0x4] sm:$0xf]
  %v6234 = vld [vmem:[%s2 + $0x8] sm:$0xf]
  %v6235 = vld [vmem:[%s2 + $0xc] sm:$0xf]
  %v6236 = vld [vmem:[%s2 + $0x10] sm:$0xf]
  %v6237 = vld [vmem:[%s2 + $0x14] sm:$0xf]
  %v6238 = vld [vmem:[%s2 + $0x18] sm:$0xf]
  %v6239 = vld [vmem:[%s2 + $0x1c] sm:$0xf]
  %v6240 = vld [vmem:[%s2 + $0x20] sm:$0xf]
  %v6241 = vld [vmem:[%s2 + $0x24] sm:$0xf]
  %v6242 = vld [vmem:[%s2 + $0x28] sm:$0xf]
  %v6243 = vld [vmem:[%s2 + $0x2c] sm:$0xf]
  %v6244 = vld [vmem:[%s2 + $0x30] sm:$0xf]
  %v6245 = vld [vmem:[%s2 + $0x34] sm:$0xf]
  %v6246 = vld [vmem:[%s2 + $0x38] sm:$0xf]
  %v6247 = vld [vmem:[%s2 + $0x3c] sm:$0xf]
  %v6248 = vld [vmem:[#allocation2 + $0x134] sm:$0x1]
  %v6249 = vld [vmem:[%s2 + $0x40] sm:$0xf]
  %v6250 = vld [vmem:[%s2 + $0x44] sm:$0xf]
  %v6251 = vld [vmem:[%s2 + $0x48] sm:$0xf]
  %v6252 = vld [vmem:[%s2 + $0x4c] sm:$0xf]
  %v6253 = vld [vmem:[%s2 + $0x50] sm:$0xf]
  %v6254 = vld [vmem:[%s2 + $0x54] sm:$0xf]
  %v6255 = vld [vmem:[%s2 + $0x58] sm:$0xf]
  %v6256 = vld [vmem:[%s2 + $0x5c] sm:$0xf]
  %v6257 = vld [vmem:[%s2 + $0x60] sm:$0xf]
  %v6258 = vld [vmem:[%s2 + $0x64] sm:$0xf]
  %v6259 = vld [vmem:[%s2 + $0x68] sm:$0xf]
  %v6260 = vld [vmem:[%s2 + $0x6c] sm:$0xf]
  %v6261 = vld [vmem:[%s2 + $0x70] sm:$0xf]
  %v6262 = vld [vmem:[%s2 + $0x74] sm:$0xf]
  %v6263 = vld [vmem:[%s2 + $0x78] sm:$0xf]
  %v6264 = vld [vmem:[%s2 + $0x7c] sm:$0xf]
  %v6343 = vunpack.c.l.b16 %v6155
  %v6344 = vunpack.c.l.b16 %v6156
  %v6345 = vunpack.c.l.b16 %v6157
  %v6346 = vunpack.c.l.b16 %v6158
  %v6347 = vunpack.c.l.b16 %v6159
  %v6348 = vunpack.c.l.b16 %v6160
  %v6349 = vunpack.c.l.b16 %v6161
  %v6350 = vunpack.c.l.b16 %v6162
  %v6351 = vunpack.c.l.b16 %v6163
  %v6352 = vunpack.c.l.b16 %v6164
  %v6353 = vunpack.c.l.b16 %v6165
  %v6354 = vunpack.c.l.b16 %v6166
  %v6355 = vunpack.c.l.b16 %v6167
  %v6356 = vunpack.c.l.b16 %v6168
  %v6357 = vunpack.c.l.b16 %v6169
  %v6358 = vunpack.c.l.b16 %v6170
  %v6359 = vunpack.c.l.b16 %v6171
  %v6360 = vunpack.c.l.b16 %v6172
  %v6361 = vunpack.c.l.b16 %v6173
  %v6362 = vunpack.c.l.b16 %v6174
  %v6363 = vunpack.c.l.b16 %v6175
  %v6364 = vunpack.c.l.b16 %v6176
  %v6365 = vunpack.c.l.b16 %v6177
  %v6366 = vunpack.c.l.b16 %v6178
  %v6367 = vunpack.c.l.b16 %v6179
  %v6368 = vunpack.c.l.b16 %v6180
  %v6369 = vunpack.c.l.b16 %v6181
  %v6370 = vunpack.c.l.b16 %v6182
  %v6371 = vunpack.c.l.b16 %v6183
  %v6372 = vunpack.c.l.b16 %v6184
  %v6373 = vunpack.c.l.b16 %v6185
  %v6374 = vunpack.c.l.b16 %v6186
  %v6375 = vunpack.c.l.b16 %v6187
  %v6376 = vunpack.c.l.b16 %v6188
  %v6377 = vunpack.c.l.b16 %v6189
  %v6378 = vunpack.c.l.b16 %v6190
  %v6379 = vunpack.c.l.b16 %v6191
  %v6380 = vunpack.c.l.b16 %v6192
  %v6381 = vunpack.c.l.b16 %v6193
  %v6382 = vunpack.c.l.b16 %v6194
  %v6383 = vunpack.c.l.b16 %v6195
  %v6384 = vunpack.c.l.b16 %v6196
  %v6385 = vunpack.c.l.b16 %v6197
  %v6386 = vunpack.c.l.b16 %v6198
  %v6387 = vunpack.c.l.b16 %v6199
  %v6388 = vunpack.c.l.b16 %v6200
  %v6389 = vunpack.c.l.b16 %v6201
  %v6390 = vunpack.c.l.b16 %v6202
  %v6391 = vunpack.c.l.b16 %v6203
  %v6392 = vunpack.c.l.b16 %v6204
  %v6393 = vunpack.c.l.b16 %v6205
  %v6394 = vunpack.c.l.b16 %v6206
  %v6395 = vunpack.c.l.b16 %v6207
  %v6396 = vunpack.c.l.b16 %v6208
  %v6397 = vunpack.c.l.b16 %v6209
  %v6398 = vunpack.c.l.b16 %v6210
  %v6399 = vunpack.c.l.b16 %v6211
  %v6400 = vunpack.c.l.b16 %v6212
  %v6401 = vunpack.c.l.b16 %v6213
  %v6402 = vunpack.c.l.b16 %v6214
  %v6403 = vunpack.c.l.b16 %v6215
  %v6404 = vunpack.c.l.b16 %v6216
  %v6405 = vunpack.c.l.b16 %v6217
  %v6406 = vunpack.c.l.b16 %v6218
  %v6407 = vunpack.c.l.b16 %v6219
  %v6408 = vunpack.c.l.b16 %v6220
  %v6409 = vunpack.c.l.b16 %v6221
  %v6410 = vunpack.c.l.b16 %v6222
  %v6411 = vunpack.c.l.b16 %v6223
  %v6412 = vunpack.c.l.b16 %v6224
  %v6413 = vunpack.c.l.b16 %v6225
  %v6414 = vunpack.c.l.b16 %v6226
  %v6415 = vunpack.c.l.b16 %v6227
  %v6416 = vunpack.c.l.b16 %v6228
  %v6417 = vunpack.c.l.b16 %v6229
  %v6418 = vunpack.c.l.b16 %v6230
  %v6419 = vunpack.c.l.b16 %v6231
  %v6420 = vunpack.c.l.b16 %v6248
  %v6421 = vpack.c.b16 %v6344, %v6343
  %v6422 = vpack.c.b16 %v6346, %v6345
  %v6423 = vpack.c.b16 %v6348, %v6347
  %v6424 = vpack.c.b16 %v6350, %v6349
  %v6425 = vpack.c.b16 %v6352, %v6351
  %v6426 = vpack.c.b16 %v6354, %v6353
  %v6427 = vpack.c.b16 %v6356, %v6355
  %v6428 = vpack.c.b16 %v6358, %v6357
  %v6429 = vpack.c.b16 %v6360, %v6359
  %v6430 = vpack.c.b16 %v6362, %v6361
  %v6431 = vpack.c.b16 %v6364, %v6363
  %v6432 = vpack.c.b16 %v6366, %v6365
  %v6433 = vpack.c.b16 %v6368, %v6367
  %v6434 = vpack.c.b16 %v6370, %v6369
  %v6435 = vpack.c.b16 %v6372, %v6371
  %v6436 = vpack.c.b16 %v6374, %v6373
  %v6437 = vpack.c.b16 %v6376, %v6375
  %v6438 = vpack.c.b16 %v6378, %v6377
  %v6439 = vpack.c.b16 %v6380, %v6379
  %v6440 = vpack.c.b16 %v6382, %v6381
  %v6441 = vpack.c.b16 %v6384, %v6383
  %v6442 = vpack.c.b16 %v6386, %v6385
  %v6443 = vpack.c.b16 %v6388, %v6387
  %v6444 = vpack.c.b16 %v6390, %v6389
  %v6445 = vpack.c.b16 %v6392, %v6391
  %v6446 = vpack.c.b16 %v6394, %v6393
  %v6447 = vpack.c.b16 %v6396, %v6395
  %v6448 = vpack.c.b16 %v6398, %v6397
  %v6449 = vpack.c.b16 %v6400, %v6399
  %v6450 = vpack.c.b16 %v6402, %v6401
  %v6451 = vpack.c.b16 %v6404, %v6403
  %v6452 = vpack.c.b16 %v6406, %v6405
  %v6453 = vpack.c.b16 %v6408, %v6407
  %v6454 = vpack.c.b16 %v6410, %v6409
  %v6455 = vpack.c.b16 %v6412, %v6411
  %v6456 = vpack.c.b16 %v6414, %v6413
  %v6457 = vpack.c.b16 %v6416, %v6415
  %v6458 = vpack.c.b16 %v6418, %v6417
  %v6459 = vpack.c.b16 %v6420, %v6419
  %vm6460 = vsmask.f32 7424
  %v6462 = vshrl.u32 %v6421, 16
  %v6464 = vshll.u32 %v6421, 16
  %v6466 = vrot.slane %v6464, 1
  %v6467 = vor.u32 %v6462, %v6466
  %v6469 = vshll.u32 %v6422, 16
  %v6471 = vrot.slane %v6469, 1
  %v6472 = vsel %vm6460, %v6467, %v6471
  %v6473 = vshrl.u32 %v6422, 16
  %v6475 = vor.u32 %v6473, %v6471
  %v6477 = vshll.u32 %v6423, 16
  %v6479 = vrot.slane %v6477, 1
  %v6480 = vsel %vm6460, %v6475, %v6479
  %v6481 = vshrl.u32 %v6423, 16
  %v6483 = vor.u32 %v6481, %v6479
  %v6485 = vshll.u32 %v6424, 16
  %v6487 = vrot.slane %v6485, 1
  %v6488 = vsel %vm6460, %v6483, %v6487
  %v6489 = vshrl.u32 %v6424, 16
  %v6491 = vor.u32 %v6489, %v6487
  %v6493 = vshll.u32 %v6425, 16
  %v6495 = vrot.slane %v6493, 1
  %v6496 = vsel %vm6460, %v6491, %v6495
  %v6497 = vshrl.u32 %v6425, 16
  %v6499 = vor.u32 %v6497, %v6495
  %v6501 = vshll.u32 %v6426, 16
  %v6503 = vrot.slane %v6501, 1
  %v6504 = vsel %vm6460, %v6499, %v6503
  %v6505 = vshrl.u32 %v6426, 16
  %v6507 = vor.u32 %v6505, %v6503
  %v6509 = vshll.u32 %v6427, 16
  %v6511 = vrot.slane %v6509, 1
  %v6512 = vsel %vm6460, %v6507, %v6511
  %v6513 = vshrl.u32 %v6427, 16
  %v6515 = vor.u32 %v6513, %v6511
  %v6517 = vshll.u32 %v6428, 16
  %v6519 = vrot.slane %v6517, 1
  %v6520 = vsel %vm6460, %v6515, %v6519
  %v6521 = vshrl.u32 %v6428, 16
  %v6523 = vor.u32 %v6521, %v6519
  %v6525 = vshll.u32 %v6429, 16
  %v6527 = vrot.slane %v6525, 1
  %v6528 = vsel %vm6460, %v6523, %v6527
  %v6529 = vshrl.u32 %v6429, 16
  %v6531 = vor.u32 %v6529, %v6527
  %v6533 = vshll.u32 %v6430, 16
  %v6535 = vrot.slane %v6533, 1
  %v6536 = vsel %vm6460, %v6531, %v6535
  %v6537 = vshrl.u32 %v6430, 16
  %v6539 = vor.u32 %v6537, %v6535
  %v6541 = vshll.u32 %v6431, 16
  %v6543 = vrot.slane %v6541, 1
  %v6544 = vsel %vm6460, %v6539, %v6543
  %v6545 = vshrl.u32 %v6431, 16
  %v6547 = vor.u32 %v6545, %v6543
  %v6549 = vshll.u32 %v6432, 16
  %v6551 = vrot.slane %v6549, 1
  %v6552 = vsel %vm6460, %v6547, %v6551
  %v6553 = vshrl.u32 %v6432, 16
  %v6555 = vor.u32 %v6553, %v6551
  %v6557 = vshll.u32 %v6433, 16
  %v6559 = vrot.slane %v6557, 1
  %v6560 = vsel %vm6460, %v6555, %v6559
  %v6561 = vshrl.u32 %v6433, 16
  %v6563 = vor.u32 %v6561, %v6559
  %v6565 = vshll.u32 %v6434, 16
  %v6567 = vrot.slane %v6565, 1
  %v6568 = vsel %vm6460, %v6563, %v6567
  %v6569 = vshrl.u32 %v6434, 16
  %v6571 = vor.u32 %v6569, %v6567
  %v6573 = vshll.u32 %v6435, 16
  %v6575 = vrot.slane %v6573, 1
  %v6576 = vsel %vm6460, %v6571, %v6575
  %v6577 = vshrl.u32 %v6435, 16
  %v6579 = vor.u32 %v6577, %v6575
  %v6581 = vshll.u32 %v6436, 16
  %v6583 = vrot.slane %v6581, 1
  %v6584 = vsel %vm6460, %v6579, %v6583
  %v6585 = vshrl.u32 %v6436, 16
  %v6587 = vor.u32 %v6585, %v6583
  %v6589 = vshll.u32 %v6437, 16
  %v6591 = vrot.slane %v6589, 1
  %v6592 = vsel %vm6460, %v6587, %v6591
  %v6593 = vshrl.u32 %v6437, 16
  %v6595 = vor.u32 %v6593, %v6591
  %v6597 = vshll.u32 %v6438, 16
  %v6599 = vrot.slane %v6597, 1
  %v6600 = vsel %vm6460, %v6595, %v6599
  %v6601 = vshrl.u32 %v6438, 16
  %v6603 = vor.u32 %v6601, %v6599
  %v6605 = vshll.u32 %v6439, 16
  %v6607 = vrot.slane %v6605, 1
  %v6608 = vsel %vm6460, %v6603, %v6607
  %v6609 = vshrl.u32 %v6439, 16
  %v6611 = vor.u32 %v6609, %v6607
  %v6613 = vshll.u32 %v6440, 16
  %v6615 = vrot.slane %v6613, 1
  %v6616 = vsel %vm6460, %v6611, %v6615
  %v6617 = vshrl.u32 %v6440, 16
  %v6619 = vor.u32 %v6617, %v6615
  %v6621 = vshll.u32 %v6441, 16
  %v6623 = vrot.slane %v6621, 1
  %v6624 = vsel %vm6460, %v6619, %v6623
  %v6625 = vshrl.u32 %v6441, 16
  %v6627 = vor.u32 %v6625, %v6623
  %v6629 = vshll.u32 %v6442, 16
  %v6631 = vrot.slane %v6629, 1
  %v6632 = vsel %vm6460, %v6627, %v6631
  %v6633 = vshrl.u32 %v6442, 16
  %v6635 = vor.u32 %v6633, %v6631
  %v6637 = vshll.u32 %v6443, 16
  %v6639 = vrot.slane %v6637, 1
  %v6640 = vsel %vm6460, %v6635, %v6639
  %v6641 = vshrl.u32 %v6443, 16
  %v6643 = vor.u32 %v6641, %v6639
  %v6645 = vshll.u32 %v6444, 16
  %v6647 = vrot.slane %v6645, 1
  %v6648 = vsel %vm6460, %v6643, %v6647
  %v6649 = vshrl.u32 %v6444, 16
  %v6651 = vor.u32 %v6649, %v6647
  %v6653 = vshll.u32 %v6445, 16
  %v6655 = vrot.slane %v6653, 1
  %v6656 = vsel %vm6460, %v6651, %v6655
  %v6657 = vshrl.u32 %v6445, 16
  %v6659 = vor.u32 %v6657, %v6655
  %v6661 = vshll.u32 %v6446, 16
  %v6663 = vrot.slane %v6661, 1
  %v6664 = vsel %vm6460, %v6659, %v6663
  %v6665 = vshrl.u32 %v6446, 16
  %v6667 = vor.u32 %v6665, %v6663
  %v6669 = vshll.u32 %v6447, 16
  %v6671 = vrot.slane %v6669, 1
  %v6672 = vsel %vm6460, %v6667, %v6671
  %v6673 = vshrl.u32 %v6447, 16
  %v6675 = vor.u32 %v6673, %v6671
  %v6677 = vshll.u32 %v6448, 16
  %v6679 = vrot.slane %v6677, 1
  %v6680 = vsel %vm6460, %v6675, %v6679
  %v6681 = vshrl.u32 %v6448, 16
  %v6683 = vor.u32 %v6681, %v6679
  %v6685 = vshll.u32 %v6449, 16
  %v6687 = vrot.slane %v6685, 1
  %v6688 = vsel %vm6460, %v6683, %v6687
  %v6689 = vshrl.u32 %v6449, 16
  %v6691 = vor.u32 %v6689, %v6687
  %v6693 = vshll.u32 %v6450, 16
  %v6695 = vrot.slane %v6693, 1
  %v6696 = vsel %vm6460, %v6691, %v6695
  %v6697 = vshrl.u32 %v6450, 16
  %v6699 = vor.u32 %v6697, %v6695
  %v6701 = vshll.u32 %v6451, 16
  %v6703 = vrot.slane %v6701, 1
  %v6704 = vsel %vm6460, %v6699, %v6703
  %v6705 = vshrl.u32 %v6451, 16
  %v6707 = vor.u32 %v6705, %v6703
  %v6709 = vshll.u32 %v6452, 16
  %v6711 = vrot.slane %v6709, 1
  %v6712 = vsel %vm6460, %v6707, %v6711
  %v6713 = vshrl.u32 %v6452, 16
  %v6715 = vor.u32 %v6713, %v6711
  %v6717 = vshll.u32 %v6453, 16
  %v6719 = vrot.slane %v6717, 1
  %v6720 = vsel %vm6460, %v6715, %v6719
  %v6721 = vshrl.u32 %v6453, 16
  %v6723 = vor.u32 %v6721, %v6719
  %v6725 = vshll.u32 %v6454, 16
  %v6727 = vrot.slane %v6725, 1
  %v6728 = vsel %vm6460, %v6723, %v6727
  %v6729 = vshrl.u32 %v6454, 16
  %v6731 = vor.u32 %v6729, %v6727
  %v6733 = vshll.u32 %v6455, 16
  %v6735 = vrot.slane %v6733, 1
  %v6736 = vsel %vm6460, %v6731, %v6735
  %v6737 = vshrl.u32 %v6455, 16
  %v6739 = vor.u32 %v6737, %v6735
  %v6741 = vshll.u32 %v6456, 16
  %v6743 = vrot.slane %v6741, 1
  %v6744 = vsel %vm6460, %v6739, %v6743
  %v6745 = vshrl.u32 %v6456, 16
  %v6747 = vor.u32 %v6745, %v6743
  %v6749 = vshll.u32 %v6457, 16
  %v6751 = vrot.slane %v6749, 1
  %v6752 = vsel %vm6460, %v6747, %v6751
  %v6753 = vshrl.u32 %v6457, 16
  %v6755 = vor.u32 %v6753, %v6751
  %v6757 = vshll.u32 %v6458, 16
  %v6759 = vrot.slane %v6757, 1
  %v6760 = vsel %vm6460, %v6755, %v6759
  %v6761 = vshrl.u32 %v6458, 16
  %v6763 = vor.u32 %v6761, %v6759
  %v6765 = vshll.u32 %v6459, 16
  %v6767 = vrot.slane %v6765, 1
  %v6768 = vsel %vm6460, %v6763, %v6767
  %v6769 = vshrl.u32 %v6459, 16
  %v6771 = vor.u32 %v6769, %v6767
  %v6827 = vunpack.c.l.b16 %v6249
  %v6828 = vunpack.c.l.b16 %v6250
  %v6829 = vunpack.c.l.b16 %v6251
  %v6830 = vunpack.c.l.b16 %v6252
  %v6831 = vunpack.c.l.b16 %v6253
  %v6832 = vunpack.c.l.b16 %v6254
  %v6833 = vunpack.c.l.b16 %v6255
  %v6834 = vunpack.c.l.b16 %v6256
  %v6835 = vunpack.c.l.b16 %v6257
  %v6836 = vunpack.c.l.b16 %v6258
  %v6837 = vunpack.c.l.b16 %v6259
  %v6838 = vunpack.c.l.b16 %v6260
  %v6839 = vunpack.c.l.b16 %v6261
  %v6840 = vunpack.c.l.b16 %v6262
  %v6841 = vunpack.c.l.b16 %v6263
  %v6842 = vunpack.c.l.b16 %v6264
  %v6843 = vpack.c.b16 %v6828, %v6827
  %v6844 = vpack.c.b16 %v6830, %v6829
  %v6845 = vpack.c.b16 %v6832, %v6831
  %v6846 = vpack.c.b16 %v6834, %v6833
  %v6847 = vpack.c.b16 %v6836, %v6835
  %v6848 = vpack.c.b16 %v6838, %v6837
  %v6849 = vpack.c.b16 %v6840, %v6839
  %v6850 = vpack.c.b16 %v6842, %v6841
  %6859 = vmatpush.bf16.msra.mxu0 %v6850
  %6860 = vmatpush.bf16.msra.mxu0 %v6849
  %6861 = vmatpush.bf16.msra.mxu0 %v6848
  %6862 = vmatpush.bf16.msra.mxu0 %v6847
  %6863 = vmatpush.bf16.msra.mxu0 %v6846
  %6864 = vmatpush.bf16.msra.mxu0 %v6845
  %6865 = vmatpush.bf16.msra.mxu0 %v6844
  %6866 = vmatpush.bf16.msra.mxu0 %v6843
  %6867 = vmatmul.bf16.gmra.mxu0 %v6472
  %v6868 = vpop.f32.mrf.mxu0
  %v6869 = vadd.f32 0.0, %v6868
  %v6870 = vpop.f32.mrf.mxu0
  %v6871 = vadd.f32 0.0, %v6870
  %6872 = vmatmul.bf16.gmra.mxu0 %v6480
  %v6873 = vpop.f32.mrf.mxu0
  %v6874 = vadd.f32 0.0, %v6873
  %v6875 = vpop.f32.mrf.mxu0
  %v6876 = vadd.f32 0.0, %v6875
  %6877 = vmatmul.bf16.gmra.mxu0 %v6488
  %v6878 = vpop.f32.mrf.mxu0
  %v6879 = vadd.f32 0.0, %v6878
  %v6880 = vpop.f32.mrf.mxu0
  %v6881 = vadd.f32 0.0, %v6880
  %6882 = vmatmul.bf16.gmra.mxu0 %v6496
  %v6883 = vpop.f32.mrf.mxu0
  %v6884 = vadd.f32 0.0, %v6883
  %v6885 = vpop.f32.mrf.mxu0
  %v6886 = vadd.f32 0.0, %v6885
  %6887 = vmatmul.bf16.gmra.mxu0 %v6504
  %v6888 = vpop.f32.mrf.mxu0
  %v6889 = vadd.f32 0.0, %v6888
  %v6890 = vpop.f32.mrf.mxu0
  %v6891 = vadd.f32 0.0, %v6890
  %6892 = vmatmul.bf16.gmra.mxu0 %v6512
  %v6893 = vpop.f32.mrf.mxu0
  %v6894 = vadd.f32 0.0, %v6893
  %v6895 = vpop.f32.mrf.mxu0
  %v6896 = vadd.f32 0.0, %v6895
  %6897 = vmatmul.bf16.gmra.mxu0 %v6520
  %v6898 = vpop.f32.mrf.mxu0
  %v6899 = vadd.f32 0.0, %v6898
  %v6900 = vpop.f32.mrf.mxu0
  %v6901 = vadd.f32 0.0, %v6900
  %6902 = vmatmul.bf16.gmra.mxu0 %v6528
  %v6903 = vpop.f32.mrf.mxu0
  %v6904 = vadd.f32 0.0, %v6903
  %v6905 = vpop.f32.mrf.mxu0
  %v6906 = vadd.f32 0.0, %v6905
  %6907 = vmatmul.bf16.gmra.mxu0 %v6536
  %v6908 = vpop.f32.mrf.mxu0
  %v6909 = vadd.f32 0.0, %v6908
  %v6910 = vpop.f32.mrf.mxu0
  %v6911 = vadd.f32 0.0, %v6910
  %6912 = vmatmul.bf16.gmra.mxu0 %v6544
  %v6913 = vpop.f32.mrf.mxu0
  %v6914 = vadd.f32 0.0, %v6913
  %v6915 = vpop.f32.mrf.mxu0
  %v6916 = vadd.f32 0.0, %v6915
  %6917 = vmatmul.bf16.gmra.mxu0 %v6552
  %v6918 = vpop.f32.mrf.mxu0
  %v6919 = vadd.f32 0.0, %v6918
  %v6920 = vpop.f32.mrf.mxu0
  %v6921 = vadd.f32 0.0, %v6920
  %6922 = vmatmul.bf16.gmra.mxu0 %v6560
  %v6923 = vpop.f32.mrf.mxu0
  %v6924 = vadd.f32 0.0, %v6923
  %v6925 = vpop.f32.mrf.mxu0
  %v6926 = vadd.f32 0.0, %v6925
  %6927 = vmatmul.bf16.gmra.mxu0 %v6568
  %v6928 = vpop.f32.mrf.mxu0
  %v6929 = vadd.f32 0.0, %v6928
  %v6930 = vpop.f32.mrf.mxu0
  %v6931 = vadd.f32 0.0, %v6930
  %6932 = vmatmul.bf16.gmra.mxu0 %v6576
  %v6933 = vpop.f32.mrf.mxu0
  %v6934 = vadd.f32 0.0, %v6933
  %v6935 = vpop.f32.mrf.mxu0
  %v6936 = vadd.f32 0.0, %v6935
  %6937 = vmatmul.bf16.gmra.mxu0 %v6584
  %v6938 = vpop.f32.mrf.mxu0
  %v6939 = vadd.f32 0.0, %v6938
  %v6940 = vpop.f32.mrf.mxu0
  %v6941 = vadd.f32 0.0, %v6940
  %6942 = vmatmul.bf16.gmra.mxu0 %v6592
  %v6943 = vpop.f32.mrf.mxu0
  %v6944 = vadd.f32 0.0, %v6943
  %v6945 = vpop.f32.mrf.mxu0
  %v6946 = vadd.f32 0.0, %v6945
  %6947 = vmatmul.bf16.gmra.mxu0 %v6600
  %v6948 = vpop.f32.mrf.mxu0
  %v6949 = vadd.f32 0.0, %v6948
  %v6950 = vpop.f32.mrf.mxu0
  %v6951 = vadd.f32 0.0, %v6950
  %6952 = vmatmul.bf16.gmra.mxu0 %v6608
  %v6953 = vpop.f32.mrf.mxu0
  %v6954 = vadd.f32 0.0, %v6953
  %v6955 = vpop.f32.mrf.mxu0
  %v6956 = vadd.f32 0.0, %v6955
  %6957 = vmatmul.bf16.gmra.mxu0 %v6616
  %v6958 = vpop.f32.mrf.mxu0
  %v6959 = vadd.f32 0.0, %v6958
  %v6960 = vpop.f32.mrf.mxu0
  %v6961 = vadd.f32 0.0, %v6960
  %6962 = vmatmul.bf16.gmra.mxu0 %v6624
  %v6963 = vpop.f32.mrf.mxu0
  %v6964 = vadd.f32 0.0, %v6963
  %v6965 = vpop.f32.mrf.mxu0
  %v6966 = vadd.f32 0.0, %v6965
  %6967 = vmatmul.bf16.gmra.mxu0 %v6632
  %v6968 = vpop.f32.mrf.mxu0
  %v6969 = vadd.f32 0.0, %v6968
  %v6970 = vpop.f32.mrf.mxu0
  %v6971 = vadd.f32 0.0, %v6970
  %6972 = vmatmul.bf16.gmra.mxu0 %v6640
  %v6973 = vpop.f32.mrf.mxu0
  %v6974 = vadd.f32 0.0, %v6973
  %v6975 = vpop.f32.mrf.mxu0
  %v6976 = vadd.f32 0.0, %v6975
  %6977 = vmatmul.bf16.gmra.mxu0 %v6648
  %v6978 = vpop.f32.mrf.mxu0
  %v6979 = vadd.f32 0.0, %v6978
  %v6980 = vpop.f32.mrf.mxu0
  %v6981 = vadd.f32 0.0, %v6980
  %6982 = vmatmul.bf16.gmra.mxu0 %v6656
  %v6983 = vpop.f32.mrf.mxu0
  %v6984 = vadd.f32 0.0, %v6983
  %v6985 = vpop.f32.mrf.mxu0
  %v6986 = vadd.f32 0.0, %v6985
  %6987 = vmatmul.bf16.gmra.mxu0 %v6664
  %v6988 = vpop.f32.mrf.mxu0
  %v6989 = vadd.f32 0.0, %v6988
  %v6990 = vpop.f32.mrf.mxu0
  %v6991 = vadd.f32 0.0, %v6990
  %6992 = vmatmul.bf16.gmra.mxu0 %v6672
  %v6993 = vpop.f32.mrf.mxu0
  %v6994 = vadd.f32 0.0, %v6993
  %v6995 = vpop.f32.mrf.mxu0
  %v6996 = vadd.f32 0.0, %v6995
  %6997 = vmatmul.bf16.gmra.mxu0 %v6680
  %v6998 = vpop.f32.mrf.mxu0
  %v6999 = vadd.f32 0.0, %v6998
  %v7000 = vpop.f32.mrf.mxu0
  %v7001 = vadd.f32 0.0, %v7000
  %7002 = vmatmul.bf16.gmra.mxu0 %v6688
  %v7003 = vpop.f32.mrf.mxu0
  %v7004 = vadd.f32 0.0, %v7003
  %v7005 = vpop.f32.mrf.mxu0
  %v7006 = vadd.f32 0.0, %v7005
  %7007 = vmatmul.bf16.gmra.mxu0 %v6696
  %v7008 = vpop.f32.mrf.mxu0
  %v7009 = vadd.f32 0.0, %v7008
  %v7010 = vpop.f32.mrf.mxu0
  %v7011 = vadd.f32 0.0, %v7010
  %7012 = vmatmul.bf16.gmra.mxu0 %v6704
  %v7013 = vpop.f32.mrf.mxu0
  %v7014 = vadd.f32 0.0, %v7013
  %v7015 = vpop.f32.mrf.mxu0
  %v7016 = vadd.f32 0.0, %v7015
  %7017 = vmatmul.bf16.gmra.mxu0 %v6712
  %v7018 = vpop.f32.mrf.mxu0
  %v7019 = vadd.f32 0.0, %v7018
  %v7020 = vpop.f32.mrf.mxu0
  %v7021 = vadd.f32 0.0, %v7020
  %7022 = vmatmul.bf16.gmra.mxu0 %v6720
  %v7023 = vpop.f32.mrf.mxu0
  %v7024 = vadd.f32 0.0, %v7023
  %v7025 = vpop.f32.mrf.mxu0
  %v7026 = vadd.f32 0.0, %v7025
  %7027 = vmatmul.bf16.gmra.mxu0 %v6728
  %v7028 = vpop.f32.mrf.mxu0
  %v7029 = vadd.f32 0.0, %v7028
  %v7030 = vpop.f32.mrf.mxu0
  %v7031 = vadd.f32 0.0, %v7030
  %7032 = vmatmul.bf16.gmra.mxu0 %v6736
  %v7033 = vpop.f32.mrf.mxu0
  %v7034 = vadd.f32 0.0, %v7033
  %v7035 = vpop.f32.mrf.mxu0
  %v7036 = vadd.f32 0.0, %v7035
  %7037 = vmatmul.bf16.gmra.mxu0 %v6744
  %v7038 = vpop.f32.mrf.mxu0
  %v7039 = vadd.f32 0.0, %v7038
  %v7040 = vpop.f32.mrf.mxu0
  %v7041 = vadd.f32 0.0, %v7040
  %7042 = vmatmul.bf16.gmra.mxu0 %v6752
  %v7043 = vpop.f32.mrf.mxu0
  %v7044 = vadd.f32 0.0, %v7043
  %v7045 = vpop.f32.mrf.mxu0
  %v7046 = vadd.f32 0.0, %v7045
  %7047 = vmatmul.bf16.gmra.mxu0 %v6760
  %v7048 = vpop.f32.mrf.mxu0
  %v7049 = vadd.f32 0.0, %v7048
  %v7050 = vpop.f32.mrf.mxu0
  %v7051 = vadd.f32 0.0, %v7050
  %7052 = vmatmul.bf16.gmra.mxu0 %v6768
  %v7053 = vpop.f32.mrf.mxu0
  %v7054 = vadd.f32 0.0, %v7053
  %v7055 = vpop.f32.mrf.mxu0
  %v7056 = vadd.f32 0.0, %v7055
  %7057 = vmatmul.bf16.gmra.mxu0 %v6771
  %v7058 = vpop.f32.mrf.mxu0
  %v7059 = vadd.f32 0.0, %v7058
  %v7060 = vpop.f32.mrf.mxu0
  %7061 = vdwg.mxu0
  %v7062 = vpack.c.b16 %v6419, %v6419
  %v7118 = vunpack.c.l.b16 %v6232
  %v7119 = vunpack.c.l.b16 %v6233
  %v7120 = vunpack.c.l.b16 %v6234
  %v7121 = vunpack.c.l.b16 %v6235
  %v7122 = vunpack.c.l.b16 %v6236
  %v7123 = vunpack.c.l.b16 %v6237
  %v7124 = vunpack.c.l.b16 %v6238
  %v7125 = vunpack.c.l.b16 %v6239
  %v7126 = vunpack.c.l.b16 %v6240
  %v7127 = vunpack.c.l.b16 %v6241
  %v7128 = vunpack.c.l.b16 %v6242
  %v7129 = vunpack.c.l.b16 %v6243
  %v7130 = vunpack.c.l.b16 %v6244
  %v7131 = vunpack.c.l.b16 %v6245
  %v7132 = vunpack.c.l.b16 %v6246
  %v7133 = vunpack.c.l.b16 %v6247
  %v7134 = vpack.c.b16 %v7119, %v7118
  %v7135 = vpack.c.b16 %v7121, %v7120
  %v7136 = vpack.c.b16 %v7123, %v7122
  %v7137 = vpack.c.b16 %v7125, %v7124
  %v7138 = vpack.c.b16 %v7127, %v7126
  %v7139 = vpack.c.b16 %v7129, %v7128
  %v7140 = vpack.c.b16 %v7131, %v7130
  %v7141 = vpack.c.b16 %v7133, %v7132
  %7150 = vmatpush.bf16.msra.mxu0 %v7141
  %7151 = vmatpush.bf16.msra.mxu0 %v7140
  %7152 = vmatpush.bf16.msra.mxu0 %v7139
  %7153 = vmatpush.bf16.msra.mxu0 %v7138
  %7154 = vmatpush.bf16.msra.mxu0 %v7137
  %7155 = vmatpush.bf16.msra.mxu0 %v7136
  %7156 = vmatpush.bf16.msra.mxu0 %v7135
  %7157 = vmatpush.bf16.msra.mxu0 %v7134
  %7158 = vmatmul.bf16.gmra.mxu0 %v6421
  %v7159 = vpop.f32.mrf.mxu0
  %v7160 = vadd.f32 %v6869, %v7159
  %v7161 = vpop.f32.mrf.mxu0
  %v7162 = vadd.f32 %v6871, %v7161
  %7163 = vmatmul.bf16.gmra.mxu0 %v6422
  %v7164 = vpop.f32.mrf.mxu0
  %v7165 = vadd.f32 %v6874, %v7164
  %v7166 = vpop.f32.mrf.mxu0
  %v7167 = vadd.f32 %v6876, %v7166
  %7168 = vmatmul.bf16.gmra.mxu0 %v6423
  %v7169 = vpop.f32.mrf.mxu0
  %v7170 = vadd.f32 %v6879, %v7169
  %v7171 = vpop.f32.mrf.mxu0
  %v7172 = vadd.f32 %v6881, %v7171
  %7173 = vmatmul.bf16.gmra.mxu0 %v6424
  %v7174 = vpop.f32.mrf.mxu0
  %v7175 = vadd.f32 %v6884, %v7174
  %v7176 = vpop.f32.mrf.mxu0
  %v7177 = vadd.f32 %v6886, %v7176
  %7178 = vmatmul.bf16.gmra.mxu0 %v6425
  %v7179 = vpop.f32.mrf.mxu0
  %v7180 = vadd.f32 %v6889, %v7179
  %v7181 = vpop.f32.mrf.mxu0
  %v7182 = vadd.f32 %v6891, %v7181
  %7183 = vmatmul.bf16.gmra.mxu0 %v6426
  %v7184 = vpop.f32.mrf.mxu0
  %v7185 = vadd.f32 %v6894, %v7184
  %v7186 = vpop.f32.mrf.mxu0
  %v7187 = vadd.f32 %v6896, %v7186
  %7188 = vmatmul.bf16.gmra.mxu0 %v6427
  %v7189 = vpop.f32.mrf.mxu0
  %v7190 = vadd.f32 %v6899, %v7189
  %v7191 = vpop.f32.mrf.mxu0
  %v7192 = vadd.f32 %v6901, %v7191
  %7193 = vmatmul.bf16.gmra.mxu0 %v6428
  %v7194 = vpop.f32.mrf.mxu0
  %v7195 = vadd.f32 %v6904, %v7194
  %v7196 = vpop.f32.mrf.mxu0
  %v7197 = vadd.f32 %v6906, %v7196
  %7198 = vmatmul.bf16.gmra.mxu0 %v6429
  %v7199 = vpop.f32.mrf.mxu0
  %v7200 = vadd.f32 %v6909, %v7199
  %v7201 = vpop.f32.mrf.mxu0
  %v7202 = vadd.f32 %v6911, %v7201
  %7203 = vmatmul.bf16.gmra.mxu0 %v6430
  %v7204 = vpop.f32.mrf.mxu0
  %v7205 = vadd.f32 %v6914, %v7204
  %v7206 = vpop.f32.mrf.mxu0
  %v7207 = vadd.f32 %v6916, %v7206
  %7208 = vmatmul.bf16.gmra.mxu0 %v6431
  %v7209 = vpop.f32.mrf.mxu0
  %v7210 = vadd.f32 %v6919, %v7209
  %v7211 = vpop.f32.mrf.mxu0
  %v7212 = vadd.f32 %v6921, %v7211
  %7213 = vmatmul.bf16.gmra.mxu0 %v6432
  %v7214 = vpop.f32.mrf.mxu0
  %v7215 = vadd.f32 %v6924, %v7214
  %v7216 = vpop.f32.mrf.mxu0
  %v7217 = vadd.f32 %v6926, %v7216
  %7218 = vmatmul.bf16.gmra.mxu0 %v6433
  %v7219 = vpop.f32.mrf.mxu0
  %v7220 = vadd.f32 %v6929, %v7219
  %v7221 = vpop.f32.mrf.mxu0
  %v7222 = vadd.f32 %v6931, %v7221
  %7223 = vmatmul.bf16.gmra.mxu0 %v6434
  %v7224 = vpop.f32.mrf.mxu0
  %v7225 = vadd.f32 %v6934, %v7224
  %v7226 = vpop.f32.mrf.mxu0
  %v7227 = vadd.f32 %v6936, %v7226
  %7228 = vmatmul.bf16.gmra.mxu0 %v6435
  %v7229 = vpop.f32.mrf.mxu0
  %v7230 = vadd.f32 %v6939, %v7229
  %v7231 = vpop.f32.mrf.mxu0
  %v7232 = vadd.f32 %v6941, %v7231
  %7233 = vmatmul.bf16.gmra.mxu0 %v6436
  %v7234 = vpop.f32.mrf.mxu0
  %v7235 = vadd.f32 %v6944, %v7234
  %v7236 = vpop.f32.mrf.mxu0
  %v7237 = vadd.f32 %v6946, %v7236
  %7238 = vmatmul.bf16.gmra.mxu0 %v6437
  %v7239 = vpop.f32.mrf.mxu0
  %v7240 = vadd.f32 %v6949, %v7239
  %v7241 = vpop.f32.mrf.mxu0
  %v7242 = vadd.f32 %v6951, %v7241
  %7243 = vmatmul.bf16.gmra.mxu0 %v6438
  %v7244 = vpop.f32.mrf.mxu0
  %v7245 = vadd.f32 %v6954, %v7244
  %v7246 = vpop.f32.mrf.mxu0
  %v7247 = vadd.f32 %v6956, %v7246
  %7248 = vmatmul.bf16.gmra.mxu0 %v6439
  %v7249 = vpop.f32.mrf.mxu0
  %v7250 = vadd.f32 %v6959, %v7249
  %v7251 = vpop.f32.mrf.mxu0
  %v7252 = vadd.f32 %v6961, %v7251
  %7253 = vmatmul.bf16.gmra.mxu0 %v6440
  %v7254 = vpop.f32.mrf.mxu0
  %v7255 = vadd.f32 %v6964, %v7254
  %v7256 = vpop.f32.mrf.mxu0
  %v7257 = vadd.f32 %v6966, %v7256
  %7258 = vmatmul.bf16.gmra.mxu0 %v6441
  %v7259 = vpop.f32.mrf.mxu0
  %v7260 = vadd.f32 %v6969, %v7259
  %v7261 = vpop.f32.mrf.mxu0
  %v7262 = vadd.f32 %v6971, %v7261
  %7263 = vmatmul.bf16.gmra.mxu0 %v6442
  %v7264 = vpop.f32.mrf.mxu0
  %v7265 = vadd.f32 %v6974, %v7264
  %v7266 = vpop.f32.mrf.mxu0
  %v7267 = vadd.f32 %v6976, %v7266
  %7268 = vmatmul.bf16.gmra.mxu0 %v6443
  %v7269 = vpop.f32.mrf.mxu0
  %v7270 = vadd.f32 %v6979, %v7269
  %v7271 = vpop.f32.mrf.mxu0
  %v7272 = vadd.f32 %v6981, %v7271
  %7273 = vmatmul.bf16.gmra.mxu0 %v6444
  %v7274 = vpop.f32.mrf.mxu0
  %v7275 = vadd.f32 %v6984, %v7274
  %v7276 = vpop.f32.mrf.mxu0
  %v7277 = vadd.f32 %v6986, %v7276
  %7278 = vmatmul.bf16.gmra.mxu0 %v6445
  %v7279 = vpop.f32.mrf.mxu0
  %v7280 = vadd.f32 %v6989, %v7279
  %v7281 = vpop.f32.mrf.mxu0
  %v7282 = vadd.f32 %v6991, %v7281
  %7283 = vmatmul.bf16.gmra.mxu0 %v6446
  %v7284 = vpop.f32.mrf.mxu0
  %v7285 = vadd.f32 %v6994, %v7284
  %v7286 = vpop.f32.mrf.mxu0
  %v7287 = vadd.f32 %v6996, %v7286
  %7288 = vmatmul.bf16.gmra.mxu0 %v6447
  %v7289 = vpop.f32.mrf.mxu0
  %v7290 = vadd.f32 %v6999, %v7289
  %v7291 = vpop.f32.mrf.mxu0
  %v7292 = vadd.f32 %v7001, %v7291
  %7293 = vmatmul.bf16.gmra.mxu0 %v6448
  %v7294 = vpop.f32.mrf.mxu0
  %v7295 = vadd.f32 %v7004, %v7294
  %v7296 = vpop.f32.mrf.mxu0
  %v7297 = vadd.f32 %v7006, %v7296
  %7298 = vmatmul.bf16.gmra.mxu0 %v6449
  %v7299 = vpop.f32.mrf.mxu0
  %v7300 = vadd.f32 %v7009, %v7299
  %v7301 = vpop.f32.mrf.mxu0
  %v7302 = vadd.f32 %v7011, %v7301
  %7303 = vmatmul.bf16.gmra.mxu0 %v6450
  %v7304 = vpop.f32.mrf.mxu0
  %v7305 = vadd.f32 %v7014, %v7304
  %v7306 = vpop.f32.mrf.mxu0
  %v7307 = vadd.f32 %v7016, %v7306
  %7308 = vmatmul.bf16.gmra.mxu0 %v6451
  %v7309 = vpop.f32.mrf.mxu0
  %v7310 = vadd.f32 %v7019, %v7309
  %v7311 = vpop.f32.mrf.mxu0
  %v7312 = vadd.f32 %v7021, %v7311
  %7313 = vmatmul.bf16.gmra.mxu0 %v6452
  %v7314 = vpop.f32.mrf.mxu0
  %v7315 = vadd.f32 %v7024, %v7314
  %v7316 = vpop.f32.mrf.mxu0
  %v7317 = vadd.f32 %v7026, %v7316
  %7318 = vmatmul.bf16.gmra.mxu0 %v6453
  %v7319 = vpop.f32.mrf.mxu0
  %v7320 = vadd.f32 %v7029, %v7319
  %v7321 = vpop.f32.mrf.mxu0
  %v7322 = vadd.f32 %v7031, %v7321
  %7323 = vmatmul.bf16.gmra.mxu0 %v6454
  %v7324 = vpop.f32.mrf.mxu0
  %v7325 = vadd.f32 %v7034, %v7324
  %v7326 = vpop.f32.mrf.mxu0
  %v7327 = vadd.f32 %v7036, %v7326
  %7328 = vmatmul.bf16.gmra.mxu0 %v6455
  %v7329 = vpop.f32.mrf.mxu0
  %v7330 = vadd.f32 %v7039, %v7329
  %v7331 = vpop.f32.mrf.mxu0
  %v7332 = vadd.f32 %v7041, %v7331
  %7333 = vmatmul.bf16.gmra.mxu0 %v6456
  %v7334 = vpop.f32.mrf.mxu0
  %v7335 = vadd.f32 %v7044, %v7334
  %v7336 = vpop.f32.mrf.mxu0
  %v7337 = vadd.f32 %v7046, %v7336
  %7338 = vmatmul.bf16.gmra.mxu0 %v6457
  %v7339 = vpop.f32.mrf.mxu0
  %v7340 = vadd.f32 %v7049, %v7339
  %v7341 = vpop.f32.mrf.mxu0
  %v7342 = vadd.f32 %v7051, %v7341
  %7343 = vmatmul.bf16.gmra.mxu0 %v6458
  %v7344 = vpop.f32.mrf.mxu0
  %v7345 = vadd.f32 %v7054, %v7344
  %v7346 = vpop.f32.mrf.mxu0
  %v7347 = vadd.f32 %v7056, %v7346
  %7348 = vmatmul.bf16.gmra.mxu0 %v7062
  %v7349 = vpop.f32.mrf.mxu0
  %v7350 = vadd.f32 %v7059, %v7349
  %v7351 = vpop.f32.mrf.mxu0
  %7352 = vdwg.mxu0
  %v7353 = vld [vmem:[#allocation2] sm:$0xe]
  %v7354 = vld [vmem:[%s2 + $0x80] sm:$0xf]
  %v7355 = vld [vmem:[%s2 + $0x84] sm:$0xf]
  %v7356 = vld [vmem:[%s2 + $0x88] sm:$0xf]
  %v7357 = vld [vmem:[%s2 + $0x8c] sm:$0xf]
  %v7358 = vld [vmem:[%s2 + $0x90] sm:$0xf]
  %v7359 = vld [vmem:[%s2 + $0x94] sm:$0xf]
  %v7360 = vld [vmem:[%s2 + $0x98] sm:$0xf]
  %v7361 = vld [vmem:[%s2 + $0x9c] sm:$0xf]
  %v7362 = vld [vmem:[%s2 + $0xa0] sm:$0xf]
  %v7363 = vld [vmem:[%s2 + $0xa4] sm:$0xf]
  %v7364 = vld [vmem:[%s2 + $0xa8] sm:$0xf]
  %v7365 = vld [vmem:[%s2 + $0xac] sm:$0xf]
  %v7366 = vld [vmem:[%s2 + $0xb0] sm:$0xf]
  %v7367 = vld [vmem:[%s2 + $0xb4] sm:$0xf]
  %v7368 = vld [vmem:[%s2 + $0xb8] sm:$0xf]
  %v7369 = vld [vmem:[%s2 + $0xbc] sm:$0xf]
  %v7371 = vunpack.c.l.b16 %v7353
  %v7372 = vpack.c.b16 %v6344, %v7371
  %vm7373 = vcmask 1046528
  %v7374 = vrot.slane %v7372, 1
  %v7375 = vrot.slane %v6422, 1
  %v7376 = vsel %vm7373, %v7374, %v7375
  %v7377 = vrot.slane %v6423, 1
  %v7378 = vsel %vm7373, %v7375, %v7377
  %v7379 = vrot.slane %v6424, 1
  %v7380 = vsel %vm7373, %v7377, %v7379
  %v7381 = vrot.slane %v6425, 1
  %v7382 = vsel %vm7373, %v7379, %v7381
  %v7383 = vrot.slane %v6426, 1
  %v7384 = vsel %vm7373, %v7381, %v7383
  %v7385 = vrot.slane %v6427, 1
  %v7386 = vsel %vm7373, %v7383, %v7385
  %v7387 = vrot.slane %v6428, 1
  %v7388 = vsel %vm7373, %v7385, %v7387
  %v7389 = vrot.slane %v6429, 1
  %v7390 = vsel %vm7373, %v7387, %v7389
  %v7391 = vrot.slane %v6430, 1
  %v7392 = vsel %vm7373, %v7389, %v7391
  %v7393 = vrot.slane %v6431, 1
  %v7394 = vsel %vm7373, %v7391, %v7393
  %v7395 = vrot.slane %v6432, 1
  %v7396 = vsel %vm7373, %v7393, %v7395
  %v7397 = vrot.slane %v6433, 1
  %v7398 = vsel %vm7373, %v7395, %v7397
  %v7399 = vrot.slane %v6434, 1
  %v7400 = vsel %vm7373, %v7397, %v7399
  %v7401 = vrot.slane %v6435, 1
  %v7402 = vsel %vm7373, %v7399, %v7401
  %v7403 = vrot.slane %v6436, 1
  %v7404 = vsel %vm7373, %v7401, %v7403
  %v7405 = vrot.slane %v6437, 1
  %v7406 = vsel %vm7373, %v7403, %v7405
  %v7407 = vrot.slane %v6438, 1
  %v7408 = vsel %vm7373, %v7405, %v7407
  %v7409 = vrot.slane %v6439, 1
  %v7410 = vsel %vm7373, %v7407, %v7409
  %v7411 = vrot.slane %v6440, 1
  %v7412 = vsel %vm7373, %v7409, %v7411
  %v7413 = vrot.slane %v6441, 1
  %v7414 = vsel %vm7373, %v7411, %v7413
  %v7415 = vrot.slane %v6442, 1
  %v7416 = vsel %vm7373, %v7413, %v7415
  %v7417 = vrot.slane %v6443, 1
  %v7418 = vsel %vm7373, %v7415, %v7417
  %v7419 = vrot.slane %v6444, 1
  %v7420 = vsel %vm7373, %v7417, %v7419
  %v7421 = vrot.slane %v6445, 1
  %v7422 = vsel %vm7373, %v7419, %v7421
  %v7423 = vrot.slane %v6446, 1
  %v7424 = vsel %vm7373, %v7421, %v7423
  %v7425 = vrot.slane %v6447, 1
  %v7426 = vsel %vm7373, %v7423, %v7425
  %v7427 = vrot.slane %v6448, 1
  %v7428 = vsel %vm7373, %v7425, %v7427
  %v7429 = vrot.slane %v6449, 1
  %v7430 = vsel %vm7373, %v7427, %v7429
  %v7431 = vrot.slane %v6450, 1
  %v7432 = vsel %vm7373, %v7429, %v7431
  %v7433 = vrot.slane %v6451, 1
  %v7434 = vsel %vm7373, %v7431, %v7433
  %v7435 = vrot.slane %v6452, 1
  %v7436 = vsel %vm7373, %v7433, %v7435
  %v7437 = vrot.slane %v6453, 1
  %v7438 = vsel %vm7373, %v7435, %v7437
  %v7439 = vrot.slane %v6454, 1
  %v7440 = vsel %vm7373, %v7437, %v7439
  %v7441 = vrot.slane %v6455, 1
  %v7442 = vsel %vm7373, %v7439, %v7441
  %v7443 = vrot.slane %v6456, 1
  %v7444 = vsel %vm7373, %v7441, %v7443
  %v7445 = vrot.slane %v6457, 1
  %v7446 = vsel %vm7373, %v7443, %v7445
  %v7447 = vrot.slane %v6458, 1
  %v7448 = vsel %vm7373, %v7445, %v7447
  %v7449 = vrot.slane %v6459, 1
  %v7450 = vsel %vm7373, %v7447, %v7449
  %v7506 = vunpack.c.l.b16 %v7354
  %v7507 = vunpack.c.l.b16 %v7355
  %v7508 = vunpack.c.l.b16 %v7356
  %v7509 = vunpack.c.l.b16 %v7357
  %v7510 = vunpack.c.l.b16 %v7358
  %v7511 = vunpack.c.l.b16 %v7359
  %v7512 = vunpack.c.l.b16 %v7360
  %v7513 = vunpack.c.l.b16 %v7361
  %v7514 = vunpack.c.l.b16 %v7362
  %v7515 = vunpack.c.l.b16 %v7363
  %v7516 = vunpack.c.l.b16 %v7364
  %v7517 = vunpack.c.l.b16 %v7365
  %v7518 = vunpack.c.l.b16 %v7366
  %v7519 = vunpack.c.l.b16 %v7367
  %v7520 = vunpack.c.l.b16 %v7368
  %v7521 = vunpack.c.l.b16 %v7369
  %v7522 = vpack.c.b16 %v7507, %v7506
  %v7523 = vpack.c.b16 %v7509, %v7508
  %v7524 = vpack.c.b16 %v7511, %v7510
  %v7525 = vpack.c.b16 %v7513, %v7512
  %v7526 = vpack.c.b16 %v7515, %v7514
  %v7527 = vpack.c.b16 %v7517, %v7516
  %v7528 = vpack.c.b16 %v7519, %v7518
  %v7529 = vpack.c.b16 %v7521, %v7520
  %7538 = vmatpush.bf16.msra.mxu0 %v7529
  %7539 = vmatpush.bf16.msra.mxu0 %v7528
  %7540 = vmatpush.bf16.msra.mxu0 %v7527
  %7541 = vmatpush.bf16.msra.mxu0 %v7526
  %7542 = vmatpush.bf16.msra.mxu0 %v7525
  %7543 = vmatpush.bf16.msra.mxu0 %v7524
  %7544 = vmatpush.bf16.msra.mxu0 %v7523
  %7545 = vmatpush.bf16.msra.mxu0 %v7522
  %7546 = vmatmul.bf16.gmra.mxu0 %v7376
  %v7547 = vpop.f32.mrf.mxu0
  %v7548 = vadd.f32 0.0, %v7547
  %v7549 = vpop.f32.mrf.mxu0
  %v7550 = vadd.f32 0.0, %v7549
  %7551 = vmatmul.bf16.gmra.mxu0 %v7378
  %v7552 = vpop.f32.mrf.mxu0
  %v7553 = vadd.f32 0.0, %v7552
  %v7554 = vpop.f32.mrf.mxu0
  %v7555 = vadd.f32 0.0, %v7554
  %7556 = vmatmul.bf16.gmra.mxu0 %v7380
  %v7557 = vpop.f32.mrf.mxu0
  %v7558 = vadd.f32 0.0, %v7557
  %v7559 = vpop.f32.mrf.mxu0
  %v7560 = vadd.f32 0.0, %v7559
  %7561 = vmatmul.bf16.gmra.mxu0 %v7382
  %v7562 = vpop.f32.mrf.mxu0
  %v7563 = vadd.f32 0.0, %v7562
  %v7564 = vpop.f32.mrf.mxu0
  %v7565 = vadd.f32 0.0, %v7564
  %7566 = vmatmul.bf16.gmra.mxu0 %v7384
  %v7567 = vpop.f32.mrf.mxu0
  %v7568 = vadd.f32 0.0, %v7567
  %v7569 = vpop.f32.mrf.mxu0
  %v7570 = vadd.f32 0.0, %v7569
  %7571 = vmatmul.bf16.gmra.mxu0 %v7386
  %v7572 = vpop.f32.mrf.mxu0
  %v7573 = vadd.f32 0.0, %v7572
  %v7574 = vpop.f32.mrf.mxu0
  %v7575 = vadd.f32 0.0, %v7574
  %7576 = vmatmul.bf16.gmra.mxu0 %v7388
  %v7577 = vpop.f32.mrf.mxu0
  %v7578 = vadd.f32 0.0, %v7577
  %v7579 = vpop.f32.mrf.mxu0
  %v7580 = vadd.f32 0.0, %v7579
  %7581 = vmatmul.bf16.gmra.mxu0 %v7390
  %v7582 = vpop.f32.mrf.mxu0
  %v7583 = vadd.f32 0.0, %v7582
  %v7584 = vpop.f32.mrf.mxu0
  %v7585 = vadd.f32 0.0, %v7584
  %7586 = vmatmul.bf16.gmra.mxu0 %v7392
  %v7587 = vpop.f32.mrf.mxu0
  %v7588 = vadd.f32 0.0, %v7587
  %v7589 = vpop.f32.mrf.mxu0
  %v7590 = vadd.f32 0.0, %v7589
  %7591 = vmatmul.bf16.gmra.mxu0 %v7394
  %v7592 = vpop.f32.mrf.mxu0
  %v7593 = vadd.f32 0.0, %v7592
  %v7594 = vpop.f32.mrf.mxu0
  %v7595 = vadd.f32 0.0, %v7594
  %7596 = vmatmul.bf16.gmra.mxu0 %v7396
  %v7597 = vpop.f32.mrf.mxu0
  %v7598 = vadd.f32 0.0, %v7597
  %v7599 = vpop.f32.mrf.mxu0
  %v7600 = vadd.f32 0.0, %v7599
  %7601 = vmatmul.bf16.gmra.mxu0 %v7398
  %v7602 = vpop.f32.mrf.mxu0
  %v7603 = vadd.f32 0.0, %v7602
  %v7604 = vpop.f32.mrf.mxu0
  %v7605 = vadd.f32 0.0, %v7604
  %7606 = vmatmul.bf16.gmra.mxu0 %v7400
  %v7607 = vpop.f32.mrf.mxu0
  %v7608 = vadd.f32 0.0, %v7607
  %v7609 = vpop.f32.mrf.mxu0
  %v7610 = vadd.f32 0.0, %v7609
  %7611 = vmatmul.bf16.gmra.mxu0 %v7402
  %v7612 = vpop.f32.mrf.mxu0
  %v7613 = vadd.f32 0.0, %v7612
  %v7614 = vpop.f32.mrf.mxu0
  %v7615 = vadd.f32 0.0, %v7614
  %7616 = vmatmul.bf16.gmra.mxu0 %v7404
  %v7617 = vpop.f32.mrf.mxu0
  %v7618 = vadd.f32 0.0, %v7617
  %v7619 = vpop.f32.mrf.mxu0
  %v7620 = vadd.f32 0.0, %v7619
  %7621 = vmatmul.bf16.gmra.mxu0 %v7406
  %v7622 = vpop.f32.mrf.mxu0
  %v7623 = vadd.f32 0.0, %v7622
  %v7624 = vpop.f32.mrf.mxu0
  %v7625 = vadd.f32 0.0, %v7624
  %7626 = vmatmul.bf16.gmra.mxu0 %v7408
  %v7627 = vpop.f32.mrf.mxu0
  %v7628 = vadd.f32 0.0, %v7627
  %v7629 = vpop.f32.mrf.mxu0
  %v7630 = vadd.f32 0.0, %v7629
  %7631 = vmatmul.bf16.gmra.mxu0 %v7410
  %v7632 = vpop.f32.mrf.mxu0
  %v7633 = vadd.f32 0.0, %v7632
  %v7634 = vpop.f32.mrf.mxu0
  %v7635 = vadd.f32 0.0, %v7634
  %7636 = vmatmul.bf16.gmra.mxu0 %v7412
  %v7637 = vpop.f32.mrf.mxu0
  %v7638 = vadd.f32 0.0, %v7637
  %v7639 = vpop.f32.mrf.mxu0
  %v7640 = vadd.f32 0.0, %v7639
  %7641 = vmatmul.bf16.gmra.mxu0 %v7414
  %v7642 = vpop.f32.mrf.mxu0
  %v7643 = vadd.f32 0.0, %v7642
  %v7644 = vpop.f32.mrf.mxu0
  %v7645 = vadd.f32 0.0, %v7644
  %7646 = vmatmul.bf16.gmra.mxu0 %v7416
  %v7647 = vpop.f32.mrf.mxu0
  %v7648 = vadd.f32 0.0, %v7647
  %v7649 = vpop.f32.mrf.mxu0
  %v7650 = vadd.f32 0.0, %v7649
  %7651 = vmatmul.bf16.gmra.mxu0 %v7418
  %v7652 = vpop.f32.mrf.mxu0
  %v7653 = vadd.f32 0.0, %v7652
  %v7654 = vpop.f32.mrf.mxu0
  %v7655 = vadd.f32 0.0, %v7654
  %7656 = vmatmul.bf16.gmra.mxu0 %v7420
  %v7657 = vpop.f32.mrf.mxu0
  %v7658 = vadd.f32 0.0, %v7657
  %v7659 = vpop.f32.mrf.mxu0
  %v7660 = vadd.f32 0.0, %v7659
  %7661 = vmatmul.bf16.gmra.mxu0 %v7422
  %v7662 = vpop.f32.mrf.mxu0
  %v7663 = vadd.f32 0.0, %v7662
  %v7664 = vpop.f32.mrf.mxu0
  %v7665 = vadd.f32 0.0, %v7664
  %7666 = vmatmul.bf16.gmra.mxu0 %v7424
  %v7667 = vpop.f32.mrf.mxu0
  %v7668 = vadd.f32 0.0, %v7667
  %v7669 = vpop.f32.mrf.mxu0
  %v7670 = vadd.f32 0.0, %v7669
  %7671 = vmatmul.bf16.gmra.mxu0 %v7426
  %v7672 = vpop.f32.mrf.mxu0
  %v7673 = vadd.f32 0.0, %v7672
  %v7674 = vpop.f32.mrf.mxu0
  %v7675 = vadd.f32 0.0, %v7674
  %7676 = vmatmul.bf16.gmra.mxu0 %v7428
  %v7677 = vpop.f32.mrf.mxu0
  %v7678 = vadd.f32 0.0, %v7677
  %v7679 = vpop.f32.mrf.mxu0
  %v7680 = vadd.f32 0.0, %v7679
  %7681 = vmatmul.bf16.gmra.mxu0 %v7430
  %v7682 = vpop.f32.mrf.mxu0
  %v7683 = vadd.f32 0.0, %v7682
  %v7684 = vpop.f32.mrf.mxu0
  %v7685 = vadd.f32 0.0, %v7684
  %7686 = vmatmul.bf16.gmra.mxu0 %v7432
  %v7687 = vpop.f32.mrf.mxu0
  %v7688 = vadd.f32 0.0, %v7687
  %v7689 = vpop.f32.mrf.mxu0
  %v7690 = vadd.f32 0.0, %v7689
  %7691 = vmatmul.bf16.gmra.mxu0 %v7434
  %v7692 = vpop.f32.mrf.mxu0
  %v7693 = vadd.f32 0.0, %v7692
  %v7694 = vpop.f32.mrf.mxu0
  %v7695 = vadd.f32 0.0, %v7694
  %7696 = vmatmul.bf16.gmra.mxu0 %v7436
  %v7697 = vpop.f32.mrf.mxu0
  %v7698 = vadd.f32 0.0, %v7697
  %v7699 = vpop.f32.mrf.mxu0
  %v7700 = vadd.f32 0.0, %v7699
  %7701 = vmatmul.bf16.gmra.mxu0 %v7438
  %v7702 = vpop.f32.mrf.mxu0
  %v7703 = vadd.f32 0.0, %v7702
  %v7704 = vpop.f32.mrf.mxu0
  %v7705 = vadd.f32 0.0, %v7704
  %7706 = vmatmul.bf16.gmra.mxu0 %v7440
  %v7707 = vpop.f32.mrf.mxu0
  %v7708 = vadd.f32 0.0, %v7707
  %v7709 = vpop.f32.mrf.mxu0
  %v7710 = vadd.f32 0.0, %v7709
  %7711 = vmatmul.bf16.gmra.mxu0 %v7442
  %v7712 = vpop.f32.mrf.mxu0
  %v7713 = vadd.f32 0.0, %v7712
  %v7714 = vpop.f32.mrf.mxu0
  %v7715 = vadd.f32 0.0, %v7714
  %7716 = vmatmul.bf16.gmra.mxu0 %v7444
  %v7717 = vpop.f32.mrf.mxu0
  %v7718 = vadd.f32 0.0, %v7717
  %v7719 = vpop.f32.mrf.mxu0
  %v7720 = vadd.f32 0.0, %v7719
  %7721 = vmatmul.bf16.gmra.mxu0 %v7446
  %v7722 = vpop.f32.mrf.mxu0
  %v7723 = vadd.f32 0.0, %v7722
  %v7724 = vpop.f32.mrf.mxu0
  %v7725 = vadd.f32 0.0, %v7724
  %7726 = vmatmul.bf16.gmra.mxu0 %v7448
  %v7727 = vpop.f32.mrf.mxu0
  %v7728 = vadd.f32 0.0, %v7727
  %v7729 = vpop.f32.mrf.mxu0
  %v7730 = vadd.f32 0.0, %v7729
  %7731 = vmatmul.bf16.gmra.mxu0 %v7450
  %v7732 = vpop.f32.mrf.mxu0
  %v7733 = vadd.f32 0.0, %v7732
  %v7734 = vpop.f32.mrf.mxu0
  %v7735 = vadd.f32 0.0, %v7734
  %7736 = vmatmul.bf16.gmra.mxu0 %v7449
  %v7737 = vpop.f32.mrf.mxu0
  %v7738 = vadd.f32 0.0, %v7737
  %v7739 = vpop.f32.mrf.mxu0
  %7740 = vdwg.mxu0
  %v7741 = vadd.f32 %v7160, %v7548
  %v7742 = vadd.f32 %v7162, %v7550
  %v7743 = vadd.f32 %v7165, %v7553
  %v7744 = vadd.f32 %v7167, %v7555
  %v7745 = vadd.f32 %v7170, %v7558
  %v7746 = vadd.f32 %v7172, %v7560
  %v7747 = vadd.f32 %v7175, %v7563
  %v7748 = vadd.f32 %v7177, %v7565
  %v7749 = vadd.f32 %v7180, %v7568
  %v7750 = vadd.f32 %v7182, %v7570
  %v7751 = vadd.f32 %v7185, %v7573
  %v7752 = vadd.f32 %v7187, %v7575
  %v7753 = vadd.f32 %v7190, %v7578
  %v7754 = vadd.f32 %v7192, %v7580
  %v7755 = vadd.f32 %v7195, %v7583
  %v7756 = vadd.f32 %v7197, %v7585
  %v7757 = vadd.f32 %v7200, %v7588
  %v7758 = vadd.f32 %v7202, %v7590
  %v7759 = vadd.f32 %v7205, %v7593
  %v7760 = vadd.f32 %v7207, %v7595
  %v7761 = vadd.f32 %v7210, %v7598
  %v7762 = vadd.f32 %v7212, %v7600
  %v7763 = vadd.f32 %v7215, %v7603
  %v7764 = vadd.f32 %v7217, %v7605
  %v7765 = vadd.f32 %v7220, %v7608
  %v7766 = vadd.f32 %v7222, %v7610
  %v7767 = vadd.f32 %v7225, %v7613
  %v7768 = vadd.f32 %v7227, %v7615
  %v7769 = vadd.f32 %v7230, %v7618
  %v7770 = vadd.f32 %v7232, %v7620
  %v7771 = vadd.f32 %v7235, %v7623
  %v7772 = vadd.f32 %v7237, %v7625
  %v7773 = vadd.f32 %v7240, %v7628
  %v7774 = vadd.f32 %v7242, %v7630
  %v7775 = vadd.f32 %v7245, %v7633
  %v7776 = vadd.f32 %v7247, %v7635
  %v7777 = vadd.f32 %v7250, %v7638
  %v7778 = vadd.f32 %v7252, %v7640
  %v7779 = vadd.f32 %v7255, %v7643
  %v7780 = vadd.f32 %v7257, %v7645
  %v7781 = vadd.f32 %v7260, %v7648
  %v7782 = vadd.f32 %v7262, %v7650
  %v7783 = vadd.f32 %v7265, %v7653
  %v7784 = vadd.f32 %v7267, %v7655
  %v7785 = vadd.f32 %v7270, %v7658
  %v7786 = vadd.f32 %v7272, %v7660
  %v7787 = vadd.f32 %v7275, %v7663
  %v7788 = vadd.f32 %v7277, %v7665
  %v7789 = vadd.f32 %v7280, %v7668
  %v7790 = vadd.f32 %v7282, %v7670
  %v7791 = vadd.f32 %v7285, %v7673
  %v7792 = vadd.f32 %v7287, %v7675
  %v7793 = vadd.f32 %v7290, %v7678
  %v7794 = vadd.f32 %v7292, %v7680
  %v7795 = vadd.f32 %v7295, %v7683
  %v7796 = vadd.f32 %v7297, %v7685
  %v7797 = vadd.f32 %v7300, %v7688
  %v7798 = vadd.f32 %v7302, %v7690
  %v7799 = vadd.f32 %v7305, %v7693
  %v7800 = vadd.f32 %v7307, %v7695
  %v7801 = vadd.f32 %v7310, %v7698
  %v7802 = vadd.f32 %v7312, %v7700
  %v7803 = vadd.f32 %v7315, %v7703
  %v7804 = vadd.f32 %v7317, %v7705
  %v7805 = vadd.f32 %v7320, %v7708
  %v7806 = vadd.f32 %v7322, %v7710
  %v7807 = vadd.f32 %v7325, %v7713
  %v7808 = vadd.f32 %v7327, %v7715
  %v7809 = vadd.f32 %v7330, %v7718
  %v7810 = vadd.f32 %v7332, %v7720
  %v7811 = vadd.f32 %v7335, %v7723
  %v7812 = vadd.f32 %v7337, %v7725
  %v7813 = vadd.f32 %v7340, %v7728
  %v7814 = vadd.f32 %v7342, %v7730
  %v7815 = vadd.f32 %v7345, %v7733
  %v7816 = vadd.f32 %v7347, %v7735
  %v7817 = vadd.f32 %v7350, %v7738
  %v7818 = vld [vmem:[#allocation2 + $0x8] sm:$0xe]
  %v7819 = vld [vmem:[#allocation2 + $0xc] sm:$0xf]
  %v7820 = vld [vmem:[#allocation2 + $0x10] sm:$0xf]
  %v7821 = vld [vmem:[#allocation2 + $0x14] sm:$0xf]
  %v7822 = vld [vmem:[#allocation2 + $0x18] sm:$0xf]
  %v7823 = vld [vmem:[#allocation2 + $0x1c] sm:$0xf]
  %v7824 = vld [vmem:[#allocation2 + $0x20] sm:$0xf]
  %v7825 = vld [vmem:[#allocation2 + $0x24] sm:$0xf]
  %v7826 = vld [vmem:[#allocation2 + $0x28] sm:$0xf]
  %v7827 = vld [vmem:[#allocation2 + $0x2c] sm:$0xf]
  %v7828 = vld [vmem:[#allocation2 + $0x30] sm:$0xf]
  %v7829 = vld [vmem:[#allocation2 + $0x34] sm:$0xf]
  %v7830 = vld [vmem:[#allocation2 + $0x38] sm:$0xf]
  %v7831 = vld [vmem:[#allocation2 + $0x3c] sm:$0xf]
  %v7832 = vld [vmem:[#allocation2 + $0x40] sm:$0xf]
  %v7833 = vld [vmem:[#allocation2 + $0x44] sm:$0xf]
  %v7834 = vld [vmem:[#allocation2 + $0x48] sm:$0xf]
  %v7835 = vld [vmem:[#allocation2 + $0x4c] sm:$0xf]
  %v7836 = vld [vmem:[#allocation2 + $0x50] sm:$0xf]
  %v7837 = vld [vmem:[#allocation2 + $0x54] sm:$0xf]
  %v7838 = vld [vmem:[#allocation2 + $0x58] sm:$0xf]
  %v7839 = vld [vmem:[#allocation2 + $0x5c] sm:$0xf]
  %v7840 = vld [vmem:[#allocation2 + $0x60] sm:$0xf]
  %v7841 = vld [vmem:[#allocation2 + $0x64] sm:$0xf]
  %v7842 = vld [vmem:[#allocation2 + $0x68] sm:$0xf]
  %v7843 = vld [vmem:[#allocation2 + $0x6c] sm:$0xf]
  %v7844 = vld [vmem:[#allocation2 + $0x70] sm:$0xf]
  %v7845 = vld [vmem:[#allocation2 + $0x74] sm:$0xf]
  %v7846 = vld [vmem:[#allocation2 + $0x78] sm:$0xf]
  %v7847 = vld [vmem:[#allocation2 + $0x7c] sm:$0xf]
  %v7848 = vld [vmem:[#allocation2 + $0x80] sm:$0xf]
  %v7849 = vld [vmem:[#allocation2 + $0x84] sm:$0xf]
  %v7850 = vld [vmem:[#allocation2 + $0x88] sm:$0xf]
  %v7851 = vld [vmem:[#allocation2 + $0x8c] sm:$0xf]
  %v7852 = vld [vmem:[#allocation2 + $0x90] sm:$0xf]
  %v7853 = vld [vmem:[#allocation2 + $0x94] sm:$0xf]
  %v7854 = vld [vmem:[#allocation2 + $0x98] sm:$0xf]
  %v7855 = vld [vmem:[#allocation2 + $0x9c] sm:$0xf]
  %v7856 = vld [vmem:[#allocation2 + $0xa0] sm:$0xf]
  %v7857 = vld [vmem:[#allocation2 + $0xa4] sm:$0xf]
  %v7858 = vld [vmem:[#allocation2 + $0xa8] sm:$0xf]
  %v7859 = vld [vmem:[#allocation2 + $0xac] sm:$0xf]
  %v7860 = vld [vmem:[#allocation2 + $0xb0] sm:$0xf]
  %v7861 = vld [vmem:[#allocation2 + $0xb4] sm:$0xf]
  %v7862 = vld [vmem:[#allocation2 + $0xb8] sm:$0xf]
  %v7863 = vld [vmem:[#allocation2 + $0xbc] sm:$0xf]
  %v7864 = vld [vmem:[#allocation2 + $0xc0] sm:$0xf]
  %v7865 = vld [vmem:[#allocation2 + $0xc4] sm:$0xf]
  %v7866 = vld [vmem:[#allocation2 + $0xc8] sm:$0xf]
  %v7867 = vld [vmem:[#allocation2 + $0xcc] sm:$0xf]
  %v7868 = vld [vmem:[#allocation2 + $0xd0] sm:$0xf]
  %v7869 = vld [vmem:[#allocation2 + $0xd4] sm:$0xf]
  %v7870 = vld [vmem:[#allocation2 + $0xd8] sm:$0xf]
  %v7871 = vld [vmem:[#allocation2 + $0xdc] sm:$0xf]
  %v7872 = vld [vmem:[#allocation2 + $0xe0] sm:$0xf]
  %v7873 = vld [vmem:[#allocation2 + $0xe4] sm:$0xf]
  %v7874 = vld [vmem:[#allocation2 + $0xe8] sm:$0xf]
  %v7875 = vld [vmem:[#allocation2 + $0xec] sm:$0xf]
  %v7876 = vld [vmem:[#allocation2 + $0xf0] sm:$0xf]
  %v7877 = vld [vmem:[#allocation2 + $0xf4] sm:$0xf]
  %v7878 = vld [vmem:[#allocation2 + $0xf8] sm:$0xf]
  %v7879 = vld [vmem:[#allocation2 + $0xfc] sm:$0xf]
  %v7880 = vld [vmem:[#allocation2 + $0x100] sm:$0xf]
  %v7881 = vld [vmem:[#allocation2 + $0x104] sm:$0xf]
  %v7882 = vld [vmem:[#allocation2 + $0x108] sm:$0xf]
  %v7883 = vld [vmem:[#allocation2 + $0x10c] sm:$0xf]
  %v7884 = vld [vmem:[#allocation2 + $0x110] sm:$0xf]
  %v7885 = vld [vmem:[#allocation2 + $0x114] sm:$0xf]
  %v7886 = vld [vmem:[#allocation2 + $0x118] sm:$0xf]
  %v7887 = vld [vmem:[#allocation2 + $0x11c] sm:$0xf]
  %v7888 = vld [vmem:[#allocation2 + $0x120] sm:$0xf]
  %v7889 = vld [vmem:[#allocation2 + $0x124] sm:$0xf]
  %v7890 = vld [vmem:[#allocation2 + $0x128] sm:$0xf]
  %v7891 = vld [vmem:[#allocation2 + $0x12c] sm:$0xf]
  %v7892 = vld [vmem:[#allocation2 + $0x130] sm:$0xf]
  %v7893 = vld [vmem:[#allocation2 + $0x134] sm:$0xf]
  %v7894 = vld [vmem:[#allocation2 + $0x138] sm:$0xf]
  %v7895 = vld [vmem:[#allocation2 + $0x13c] sm:$0x1]
  %v7896 = vld [vmem:[%s2 + $0xc0] sm:$0xf]
  %v7897 = vld [vmem:[%s2 + $0xc4] sm:$0xf]
  %v7898 = vld [vmem:[%s2 + $0xc8] sm:$0xf]
  %v7899 = vld [vmem:[%s2 + $0xcc] sm:$0xf]
  %v7900 = vld [vmem:[%s2 + $0xd0] sm:$0xf]
  %v7901 = vld [vmem:[%s2 + $0xd4] sm:$0xf]
  %v7902 = vld [vmem:[%s2 + $0xd8] sm:$0xf]
  %v7903 = vld [vmem:[%s2 + $0xdc] sm:$0xf]
  %v7904 = vld [vmem:[%s2 + $0xe0] sm:$0xf]
  %v7905 = vld [vmem:[%s2 + $0xe4] sm:$0xf]
  %v7906 = vld [vmem:[%s2 + $0xe8] sm:$0xf]
  %v7907 = vld [vmem:[%s2 + $0xec] sm:$0xf]
  %v7908 = vld [vmem:[%s2 + $0xf0] sm:$0xf]
  %v7909 = vld [vmem:[%s2 + $0xf4] sm:$0xf]
  %v7910 = vld [vmem:[%s2 + $0xf8] sm:$0xf]
  %v7911 = vld [vmem:[%s2 + $0xfc] sm:$0xf]
  %v7990 = vunpack.c.l.b16 %v7818
  %v7991 = vunpack.c.l.b16 %v7819
  %v7992 = vunpack.c.l.b16 %v7820
  %v7993 = vunpack.c.l.b16 %v7821
  %v7994 = vunpack.c.l.b16 %v7822
  %v7995 = vunpack.c.l.b16 %v7823
  %v7996 = vunpack.c.l.b16 %v7824
  %v7997 = vunpack.c.l.b16 %v7825
  %v7998 = vunpack.c.l.b16 %v7826
  %v7999 = vunpack.c.l.b16 %v7827
  %v8000 = vunpack.c.l.b16 %v7828
  %v8001 = vunpack.c.l.b16 %v7829
  %v8002 = vunpack.c.l.b16 %v7830
  %v8003 = vunpack.c.l.b16 %v7831
  %v8004 = vunpack.c.l.b16 %v7832
  %v8005 = vunpack.c.l.b16 %v7833
  %v8006 = vunpack.c.l.b16 %v7834
  %v8007 = vunpack.c.l.b16 %v7835
  %v8008 = vunpack.c.l.b16 %v7836
  %v8009 = vunpack.c.l.b16 %v7837
  %v8010 = vunpack.c.l.b16 %v7838
  %v8011 = vunpack.c.l.b16 %v7839
  %v8012 = vunpack.c.l.b16 %v7840
  %v8013 = vunpack.c.l.b16 %v7841
  %v8014 = vunpack.c.l.b16 %v7842
  %v8015 = vunpack.c.l.b16 %v7843
  %v8016 = vunpack.c.l.b16 %v7844
  %v8017 = vunpack.c.l.b16 %v7845
  %v8018 = vunpack.c.l.b16 %v7846
  %v8019 = vunpack.c.l.b16 %v7847
  %v8020 = vunpack.c.l.b16 %v7848
  %v8021 = vunpack.c.l.b16 %v7849
  %v8022 = vunpack.c.l.b16 %v7850
  %v8023 = vunpack.c.l.b16 %v7851
  %v8024 = vunpack.c.l.b16 %v7852
  %v8025 = vunpack.c.l.b16 %v7853
  %v8026 = vunpack.c.l.b16 %v7854
  %v8027 = vunpack.c.l.b16 %v7855
  %v8028 = vunpack.c.l.b16 %v7856
  %v8029 = vunpack.c.l.b16 %v7857
  %v8030 = vunpack.c.l.b16 %v7858
  %v8031 = vunpack.c.l.b16 %v7859
  %v8032 = vunpack.c.l.b16 %v7860
  %v8033 = vunpack.c.l.b16 %v7861
  %v8034 = vunpack.c.l.b16 %v7862
  %v8035 = vunpack.c.l.b16 %v7863
  %v8036 = vunpack.c.l.b16 %v7864
  %v8037 = vunpack.c.l.b16 %v7865
  %v8038 = vunpack.c.l.b16 %v7866
  %v8039 = vunpack.c.l.b16 %v7867
  %v8040 = vunpack.c.l.b16 %v7868
  %v8041 = vunpack.c.l.b16 %v7869
  %v8042 = vunpack.c.l.b16 %v7870
  %v8043 = vunpack.c.l.b16 %v7871
  %v8044 = vunpack.c.l.b16 %v7872
  %v8045 = vunpack.c.l.b16 %v7873
  %v8046 = vunpack.c.l.b16 %v7874
  %v8047 = vunpack.c.l.b16 %v7875
  %v8048 = vunpack.c.l.b16 %v7876
  %v8049 = vunpack.c.l.b16 %v7877
  %v8050 = vunpack.c.l.b16 %v7878
  %v8051 = vunpack.c.l.b16 %v7879
  %v8052 = vunpack.c.l.b16 %v7880
  %v8053 = vunpack.c.l.b16 %v7881
  %v8054 = vunpack.c.l.b16 %v7882
  %v8055 = vunpack.c.l.b16 %v7883
  %v8056 = vunpack.c.l.b16 %v7884
  %v8057 = vunpack.c.l.b16 %v7885
  %v8058 = vunpack.c.l.b16 %v7886
  %v8059 = vunpack.c.l.b16 %v7887
  %v8060 = vunpack.c.l.b16 %v7888
  %v8061 = vunpack.c.l.b16 %v7889
  %v8062 = vunpack.c.l.b16 %v7890
  %v8063 = vunpack.c.l.b16 %v7891
  %v8064 = vunpack.c.l.b16 %v7892
  %v8065 = vunpack.c.l.b16 %v7893
  %v8066 = vunpack.c.l.b16 %v7894
  %v8067 = vunpack.c.l.b16 %v7895
  %v8068 = vpack.c.b16 %v7991, %v7990
  %v8069 = vpack.c.b16 %v7993, %v7992
  %v8070 = vpack.c.b16 %v7995, %v7994
  %v8071 = vpack.c.b16 %v7997, %v7996
  %v8072 = vpack.c.b16 %v7999, %v7998
  %v8073 = vpack.c.b16 %v8001, %v8000
  %v8074 = vpack.c.b16 %v8003, %v8002
  %v8075 = vpack.c.b16 %v8005, %v8004
  %v8076 = vpack.c.b16 %v8007, %v8006
  %v8077 = vpack.c.b16 %v8009, %v8008
  %v8078 = vpack.c.b16 %v8011, %v8010
  %v8079 = vpack.c.b16 %v8013, %v8012
  %v8080 = vpack.c.b16 %v8015, %v8014
  %v8081 = vpack.c.b16 %v8017, %v8016
  %v8082 = vpack.c.b16 %v8019, %v8018
  %v8083 = vpack.c.b16 %v8021, %v8020
  %v8084 = vpack.c.b16 %v8023, %v8022
  %v8085 = vpack.c.b16 %v8025, %v8024
  %v8086 = vpack.c.b16 %v8027, %v8026
  %v8087 = vpack.c.b16 %v8029, %v8028
  %v8088 = vpack.c.b16 %v8031, %v8030
  %v8089 = vpack.c.b16 %v8033, %v8032
  %v8090 = vpack.c.b16 %v8035, %v8034
  %v8091 = vpack.c.b16 %v8037, %v8036
  %v8092 = vpack.c.b16 %v8039, %v8038
  %v8093 = vpack.c.b16 %v8041, %v8040
  %v8094 = vpack.c.b16 %v8043, %v8042
  %v8095 = vpack.c.b16 %v8045, %v8044
  %v8096 = vpack.c.b16 %v8047, %v8046
  %v8097 = vpack.c.b16 %v8049, %v8048
  %v8098 = vpack.c.b16 %v8051, %v8050
  %v8099 = vpack.c.b16 %v8053, %v8052
  %v8100 = vpack.c.b16 %v8055, %v8054
  %v8101 = vpack.c.b16 %v8057, %v8056
  %v8102 = vpack.c.b16 %v8059, %v8058
  %v8103 = vpack.c.b16 %v8061, %v8060
  %v8104 = vpack.c.b16 %v8063, %v8062
  %v8105 = vpack.c.b16 %v8065, %v8064
  %v8106 = vpack.c.b16 %v8067, %v8066
  %v8107 = vrot.slane %v8068, 1
  %v8108 = vrot.slane %v8069, 1
  %v8109 = vsel %vm7373, %v8107, %v8108
  %v8110 = vrot.slane %v8070, 1
  %v8111 = vsel %vm7373, %v8108, %v8110
  %v8112 = vrot.slane %v8071, 1
  %v8113 = vsel %vm7373, %v8110, %v8112
  %v8114 = vrot.slane %v8072, 1
  %v8115 = vsel %vm7373, %v8112, %v8114
  %v8116 = vrot.slane %v8073, 1
  %v8117 = vsel %vm7373, %v8114, %v8116
  %v8118 = vrot.slane %v8074, 1
  %v8119 = vsel %vm7373, %v8116, %v8118
  %v8120 = vrot.slane %v8075, 1
  %v8121 = vsel %vm7373, %v8118, %v8120
  %v8122 = vrot.slane %v8076, 1
  %v8123 = vsel %vm7373, %v8120, %v8122
  %v8124 = vrot.slane %v8077, 1
  %v8125 = vsel %vm7373, %v8122, %v8124
  %v8126 = vrot.slane %v8078, 1
  %v8127 = vsel %vm7373, %v8124, %v8126
  %v8128 = vrot.slane %v8079, 1
  %v8129 = vsel %vm7373, %v8126, %v8128
  %v8130 = vrot.slane %v8080, 1
  %v8131 = vsel %vm7373, %v8128, %v8130
  %v8132 = vrot.slane %v8081, 1
  %v8133 = vsel %vm7373, %v8130, %v8132
  %v8134 = vrot.slane %v8082, 1
  %v8135 = vsel %vm7373, %v8132, %v8134
  %v8136 = vrot.slane %v8083, 1
  %v8137 = vsel %vm7373, %v8134, %v8136
  %v8138 = vrot.slane %v8084, 1
  %v8139 = vsel %vm7373, %v8136, %v8138
  %v8140 = vrot.slane %v8085, 1
  %v8141 = vsel %vm7373, %v8138, %v8140
  %v8142 = vrot.slane %v8086, 1
  %v8143 = vsel %vm7373, %v8140, %v8142
  %v8144 = vrot.slane %v8087, 1
  %v8145 = vsel %vm7373, %v8142, %v8144
  %v8146 = vrot.slane %v8088, 1
  %v8147 = vsel %vm7373, %v8144, %v8146
  %v8148 = vrot.slane %v8089, 1
  %v8149 = vsel %vm7373, %v8146, %v8148
  %v8150 = vrot.slane %v8090, 1
  %v8151 = vsel %vm7373, %v8148, %v8150
  %v8152 = vrot.slane %v8091, 1
  %v8153 = vsel %vm7373, %v8150, %v8152
  %v8154 = vrot.slane %v8092, 1
  %v8155 = vsel %vm7373, %v8152, %v8154
  %v8156 = vrot.slane %v8093, 1
  %v8157 = vsel %vm7373, %v8154, %v8156
  %v8158 = vrot.slane %v8094, 1
  %v8159 = vsel %vm7373, %v8156, %v8158
  %v8160 = vrot.slane %v8095, 1
  %v8161 = vsel %vm7373, %v8158, %v8160
  %v8162 = vrot.slane %v8096, 1
  %v8163 = vsel %vm7373, %v8160, %v8162
  %v8164 = vrot.slane %v8097, 1
  %v8165 = vsel %vm7373, %v8162, %v8164
  %v8166 = vrot.slane %v8098, 1
  %v8167 = vsel %vm7373, %v8164, %v8166
  %v8168 = vrot.slane %v8099, 1
  %v8169 = vsel %vm7373, %v8166, %v8168
  %v8170 = vrot.slane %v8100, 1
  %v8171 = vsel %vm7373, %v8168, %v8170
  %v8172 = vrot.slane %v8101, 1
  %v8173 = vsel %vm7373, %v8170, %v8172
  %v8174 = vrot.slane %v8102, 1
  %v8175 = vsel %vm7373, %v8172, %v8174
  %v8176 = vrot.slane %v8103, 1
  %v8177 = vsel %vm7373, %v8174, %v8176
  %v8178 = vrot.slane %v8104, 1
  %v8179 = vsel %vm7373, %v8176, %v8178
  %v8180 = vrot.slane %v8105, 1
  %v8181 = vsel %vm7373, %v8178, %v8180
  %v8182 = vrot.slane %v8106, 1
  %v8183 = vsel %vm7373, %v8180, %v8182
  %v8239 = vunpack.c.l.b16 %v7896
  %v8240 = vunpack.c.l.b16 %v7897
  %v8241 = vunpack.c.l.b16 %v7898
  %v8242 = vunpack.c.l.b16 %v7899
  %v8243 = vunpack.c.l.b16 %v7900
  %v8244 = vunpack.c.l.b16 %v7901
  %v8245 = vunpack.c.l.b16 %v7902
  %v8246 = vunpack.c.l.b16 %v7903
  %v8247 = vunpack.c.l.b16 %v7904
  %v8248 = vunpack.c.l.b16 %v7905
  %v8249 = vunpack.c.l.b16 %v7906
  %v8250 = vunpack.c.l.b16 %v7907
  %v8251 = vunpack.c.l.b16 %v7908
  %v8252 = vunpack.c.l.b16 %v7909
  %v8253 = vunpack.c.l.b16 %v7910
  %v8254 = vunpack.c.l.b16 %v7911
  %v8255 = vpack.c.b16 %v8240, %v8239
  %v8256 = vpack.c.b16 %v8242, %v8241
  %v8257 = vpack.c.b16 %v8244, %v8243
  %v8258 = vpack.c.b16 %v8246, %v8245
  %v8259 = vpack.c.b16 %v8248, %v8247
  %v8260 = vpack.c.b16 %v8250, %v8249
  %v8261 = vpack.c.b16 %v8252, %v8251
  %v8262 = vpack.c.b16 %v8254, %v8253
  %8271 = vmatpush.bf16.msra.mxu0 %v8262
  %8272 = vmatpush.bf16.msra.mxu0 %v8261
  %8273 = vmatpush.bf16.msra.mxu0 %v8260
  %8274 = vmatpush.bf16.msra.mxu0 %v8259
  %8275 = vmatpush.bf16.msra.mxu0 %v8258
  %8276 = vmatpush.bf16.msra.mxu0 %v8257
  %8277 = vmatpush.bf16.msra.mxu0 %v8256
  %8278 = vmatpush.bf16.msra.mxu0 %v8255
  %8279 = vmatmul.bf16.gmra.mxu0 %v8109
  %v8280 = vpop.f32.mrf.mxu0
  %v8281 = vadd.f32 0.0, %v8280
  %v8282 = vpop.f32.mrf.mxu0
  %v8283 = vadd.f32 0.0, %v8282
  %8284 = vmatmul.bf16.gmra.mxu0 %v8111
  %v8285 = vpop.f32.mrf.mxu0
  %v8286 = vadd.f32 0.0, %v8285
  %v8287 = vpop.f32.mrf.mxu0
  %v8288 = vadd.f32 0.0, %v8287
  %8289 = vmatmul.bf16.gmra.mxu0 %v8113
  %v8290 = vpop.f32.mrf.mxu0
  %v8291 = vadd.f32 0.0, %v8290
  %v8292 = vpop.f32.mrf.mxu0
  %v8293 = vadd.f32 0.0, %v8292
  %8294 = vmatmul.bf16.gmra.mxu0 %v8115
  %v8295 = vpop.f32.mrf.mxu0
  %v8296 = vadd.f32 0.0, %v8295
  %v8297 = vpop.f32.mrf.mxu0
  %v8298 = vadd.f32 0.0, %v8297
  %8299 = vmatmul.bf16.gmra.mxu0 %v8117
  %v8300 = vpop.f32.mrf.mxu0
  %v8301 = vadd.f32 0.0, %v8300
  %v8302 = vpop.f32.mrf.mxu0
  %v8303 = vadd.f32 0.0, %v8302
  %8304 = vmatmul.bf16.gmra.mxu0 %v8119
  %v8305 = vpop.f32.mrf.mxu0
  %v8306 = vadd.f32 0.0, %v8305
  %v8307 = vpop.f32.mrf.mxu0
  %v8308 = vadd.f32 0.0, %v8307
  %8309 = vmatmul.bf16.gmra.mxu0 %v8121
  %v8310 = vpop.f32.mrf.mxu0
  %v8311 = vadd.f32 0.0, %v8310
  %v8312 = vpop.f32.mrf.mxu0
  %v8313 = vadd.f32 0.0, %v8312
  %8314 = vmatmul.bf16.gmra.mxu0 %v8123
  %v8315 = vpop.f32.mrf.mxu0
  %v8316 = vadd.f32 0.0, %v8315
  %v8317 = vpop.f32.mrf.mxu0
  %v8318 = vadd.f32 0.0, %v8317
  %8319 = vmatmul.bf16.gmra.mxu0 %v8125
  %v8320 = vpop.f32.mrf.mxu0
  %v8321 = vadd.f32 0.0, %v8320
  %v8322 = vpop.f32.mrf.mxu0
  %v8323 = vadd.f32 0.0, %v8322
  %8324 = vmatmul.bf16.gmra.mxu0 %v8127
  %v8325 = vpop.f32.mrf.mxu0
  %v8326 = vadd.f32 0.0, %v8325
  %v8327 = vpop.f32.mrf.mxu0
  %v8328 = vadd.f32 0.0, %v8327
  %8329 = vmatmul.bf16.gmra.mxu0 %v8129
  %v8330 = vpop.f32.mrf.mxu0
  %v8331 = vadd.f32 0.0, %v8330
  %v8332 = vpop.f32.mrf.mxu0
  %v8333 = vadd.f32 0.0, %v8332
  %8334 = vmatmul.bf16.gmra.mxu0 %v8131
  %v8335 = vpop.f32.mrf.mxu0
  %v8336 = vadd.f32 0.0, %v8335
  %v8337 = vpop.f32.mrf.mxu0
  %v8338 = vadd.f32 0.0, %v8337
  %8339 = vmatmul.bf16.gmra.mxu0 %v8133
  %v8340 = vpop.f32.mrf.mxu0
  %v8341 = vadd.f32 0.0, %v8340
  %v8342 = vpop.f32.mrf.mxu0
  %v8343 = vadd.f32 0.0, %v8342
  %8344 = vmatmul.bf16.gmra.mxu0 %v8135
  %v8345 = vpop.f32.mrf.mxu0
  %v8346 = vadd.f32 0.0, %v8345
  %v8347 = vpop.f32.mrf.mxu0
  %v8348 = vadd.f32 0.0, %v8347
  %8349 = vmatmul.bf16.gmra.mxu0 %v8137
  %v8350 = vpop.f32.mrf.mxu0
  %v8351 = vadd.f32 0.0, %v8350
  %v8352 = vpop.f32.mrf.mxu0
  %v8353 = vadd.f32 0.0, %v8352
  %8354 = vmatmul.bf16.gmra.mxu0 %v8139
  %v8355 = vpop.f32.mrf.mxu0
  %v8356 = vadd.f32 0.0, %v8355
  %v8357 = vpop.f32.mrf.mxu0
  %v8358 = vadd.f32 0.0, %v8357
  %8359 = vmatmul.bf16.gmra.mxu0 %v8141
  %v8360 = vpop.f32.mrf.mxu0
  %v8361 = vadd.f32 0.0, %v8360
  %v8362 = vpop.f32.mrf.mxu0
  %v8363 = vadd.f32 0.0, %v8362
  %8364 = vmatmul.bf16.gmra.mxu0 %v8143
  %v8365 = vpop.f32.mrf.mxu0
  %v8366 = vadd.f32 0.0, %v8365
  %v8367 = vpop.f32.mrf.mxu0
  %v8368 = vadd.f32 0.0, %v8367
  %8369 = vmatmul.bf16.gmra.mxu0 %v8145
  %v8370 = vpop.f32.mrf.mxu0
  %v8371 = vadd.f32 0.0, %v8370
  %v8372 = vpop.f32.mrf.mxu0
  %v8373 = vadd.f32 0.0, %v8372
  %8374 = vmatmul.bf16.gmra.mxu0 %v8147
  %v8375 = vpop.f32.mrf.mxu0
  %v8376 = vadd.f32 0.0, %v8375
  %v8377 = vpop.f32.mrf.mxu0
  %v8378 = vadd.f32 0.0, %v8377
  %8379 = vmatmul.bf16.gmra.mxu0 %v8149
  %v8380 = vpop.f32.mrf.mxu0
  %v8381 = vadd.f32 0.0, %v8380
  %v8382 = vpop.f32.mrf.mxu0
  %v8383 = vadd.f32 0.0, %v8382
  %8384 = vmatmul.bf16.gmra.mxu0 %v8151
  %v8385 = vpop.f32.mrf.mxu0
  %v8386 = vadd.f32 0.0, %v8385
  %v8387 = vpop.f32.mrf.mxu0
  %v8388 = vadd.f32 0.0, %v8387
  %8389 = vmatmul.bf16.gmra.mxu0 %v8153
  %v8390 = vpop.f32.mrf.mxu0
  %v8391 = vadd.f32 0.0, %v8390
  %v8392 = vpop.f32.mrf.mxu0
  %v8393 = vadd.f32 0.0, %v8392
  %8394 = vmatmul.bf16.gmra.mxu0 %v8155
  %v8395 = vpop.f32.mrf.mxu0
  %v8396 = vadd.f32 0.0, %v8395
  %v8397 = vpop.f32.mrf.mxu0
  %v8398 = vadd.f32 0.0, %v8397
  %8399 = vmatmul.bf16.gmra.mxu0 %v8157
  %v8400 = vpop.f32.mrf.mxu0
  %v8401 = vadd.f32 0.0, %v8400
  %v8402 = vpop.f32.mrf.mxu0
  %v8403 = vadd.f32 0.0, %v8402
  %8404 = vmatmul.bf16.gmra.mxu0 %v8159
  %v8405 = vpop.f32.mrf.mxu0
  %v8406 = vadd.f32 0.0, %v8405
  %v8407 = vpop.f32.mrf.mxu0
  %v8408 = vadd.f32 0.0, %v8407
  %8409 = vmatmul.bf16.gmra.mxu0 %v8161
  %v8410 = vpop.f32.mrf.mxu0
  %v8411 = vadd.f32 0.0, %v8410
  %v8412 = vpop.f32.mrf.mxu0
  %v8413 = vadd.f32 0.0, %v8412
  %8414 = vmatmul.bf16.gmra.mxu0 %v8163
  %v8415 = vpop.f32.mrf.mxu0
  %v8416 = vadd.f32 0.0, %v8415
  %v8417 = vpop.f32.mrf.mxu0
  %v8418 = vadd.f32 0.0, %v8417
  %8419 = vmatmul.bf16.gmra.mxu0 %v8165
  %v8420 = vpop.f32.mrf.mxu0
  %v8421 = vadd.f32 0.0, %v8420
  %v8422 = vpop.f32.mrf.mxu0
  %v8423 = vadd.f32 0.0, %v8422
  %8424 = vmatmul.bf16.gmra.mxu0 %v8167
  %v8425 = vpop.f32.mrf.mxu0
  %v8426 = vadd.f32 0.0, %v8425
  %v8427 = vpop.f32.mrf.mxu0
  %v8428 = vadd.f32 0.0, %v8427
  %8429 = vmatmul.bf16.gmra.mxu0 %v8169
  %v8430 = vpop.f32.mrf.mxu0
  %v8431 = vadd.f32 0.0, %v8430
  %v8432 = vpop.f32.mrf.mxu0
  %v8433 = vadd.f32 0.0, %v8432
  %8434 = vmatmul.bf16.gmra.mxu0 %v8171
  %v8435 = vpop.f32.mrf.mxu0
  %v8436 = vadd.f32 0.0, %v8435
  %v8437 = vpop.f32.mrf.mxu0
  %v8438 = vadd.f32 0.0, %v8437
  %8439 = vmatmul.bf16.gmra.mxu0 %v8173
  %v8440 = vpop.f32.mrf.mxu0
  %v8441 = vadd.f32 0.0, %v8440
  %v8442 = vpop.f32.mrf.mxu0
  %v8443 = vadd.f32 0.0, %v8442
  %8444 = vmatmul.bf16.gmra.mxu0 %v8175
  %v8445 = vpop.f32.mrf.mxu0
  %v8446 = vadd.f32 0.0, %v8445
  %v8447 = vpop.f32.mrf.mxu0
  %v8448 = vadd.f32 0.0, %v8447
  %8449 = vmatmul.bf16.gmra.mxu0 %v8177
  %v8450 = vpop.f32.mrf.mxu0
  %v8451 = vadd.f32 0.0, %v8450
  %v8452 = vpop.f32.mrf.mxu0
  %v8453 = vadd.f32 0.0, %v8452
  %8454 = vmatmul.bf16.gmra.mxu0 %v8179
  %v8455 = vpop.f32.mrf.mxu0
  %v8456 = vadd.f32 0.0, %v8455
  %v8457 = vpop.f32.mrf.mxu0
  %v8458 = vadd.f32 0.0, %v8457
  %8459 = vmatmul.bf16.gmra.mxu0 %v8181
  %v8460 = vpop.f32.mrf.mxu0
  %v8461 = vadd.f32 0.0, %v8460
  %v8462 = vpop.f32.mrf.mxu0
  %v8463 = vadd.f32 0.0, %v8462
  %8464 = vmatmul.bf16.gmra.mxu0 %v8183
  %v8465 = vpop.f32.mrf.mxu0
  %v8466 = vadd.f32 0.0, %v8465
  %v8467 = vpop.f32.mrf.mxu0
  %v8468 = vadd.f32 0.0, %v8467
  %8469 = vmatmul.bf16.gmra.mxu0 %v8182
  %v8470 = vpop.f32.mrf.mxu0
  %v8471 = vadd.f32 0.0, %v8470
  %v8472 = vpop.f32.mrf.mxu0
  %8473 = vdwg.mxu0
  %v8474 = vadd.f32 %v7741, %v8281
  %v8475 = vadd.f32 %v7742, %v8283
  %v8476 = vadd.f32 %v7743, %v8286
  %v8477 = vadd.f32 %v7744, %v8288
  %v8478 = vadd.f32 %v7745, %v8291
  %v8479 = vadd.f32 %v7746, %v8293
  %v8480 = vadd.f32 %v7747, %v8296
  %v8481 = vadd.f32 %v7748, %v8298
  %v8482 = vadd.f32 %v7749, %v8301
  %v8483 = vadd.f32 %v7750, %v8303
  %v8484 = vadd.f32 %v7751, %v8306
  %v8485 = vadd.f32 %v7752, %v8308
  %v8486 = vadd.f32 %v7753, %v8311
  %v8487 = vadd.f32 %v7754, %v8313
  %v8488 = vadd.f32 %v7755, %v8316
  %v8489 = vadd.f32 %v7756, %v8318
  %v8490 = vadd.f32 %v7757, %v8321
  %v8491 = vadd.f32 %v7758, %v8323
  %v8492 = vadd.f32 %v7759, %v8326
  %v8493 = vadd.f32 %v7760, %v8328
  %v8494 = vadd.f32 %v7761, %v8331
  %v8495 = vadd.f32 %v7762, %v8333
  %v8496 = vadd.f32 %v7763, %v8336
  %v8497 = vadd.f32 %v7764, %v8338
  %v8498 = vadd.f32 %v7765, %v8341
  %v8499 = vadd.f32 %v7766, %v8343
  %v8500 = vadd.f32 %v7767, %v8346
  %v8501 = vadd.f32 %v7768, %v8348
  %v8502 = vadd.f32 %v7769, %v8351
  %v8503 = vadd.f32 %v7770, %v8353
  %v8504 = vadd.f32 %v7771, %v8356
  %v8505 = vadd.f32 %v7772, %v8358
  %v8506 = vadd.f32 %v7773, %v8361
  %v8507 = vadd.f32 %v7774, %v8363
  %v8508 = vadd.f32 %v7775, %v8366
  %v8509 = vadd.f32 %v7776, %v8368
  %v8510 = vadd.f32 %v7777, %v8371
  %v8511 = vadd.f32 %v7778, %v8373
  %v8512 = vadd.f32 %v7779, %v8376
  %v8513 = vadd.f32 %v7780, %v8378
  %v8514 = vadd.f32 %v7781, %v8381
  %v8515 = vadd.f32 %v7782, %v8383
  %v8516 = vadd.f32 %v7783, %v8386
  %v8517 = vadd.f32 %v7784, %v8388
  %v8518 = vadd.f32 %v7785, %v8391
  %v8519 = vadd.f32 %v7786, %v8393
  %v8520 = vadd.f32 %v7787, %v8396
  %v8521 = vadd.f32 %v7788, %v8398
  %v8522 = vadd.f32 %v7789, %v8401
  %v8523 = vadd.f32 %v7790, %v8403
  %v8524 = vadd.f32 %v7791, %v8406
  %v8525 = vadd.f32 %v7792, %v8408
  %v8526 = vadd.f32 %v7793, %v8411
  %v8527 = vadd.f32 %v7794, %v8413
  %v8528 = vadd.f32 %v7795, %v8416
  %v8529 = vadd.f32 %v7796, %v8418
  %v8530 = vadd.f32 %v7797, %v8421
  %v8531 = vadd.f32 %v7798, %v8423
  %v8532 = vadd.f32 %v7799, %v8426
  %v8533 = vadd.f32 %v7800, %v8428
  %v8534 = vadd.f32 %v7801, %v8431
  %v8535 = vadd.f32 %v7802, %v8433
  %v8536 = vadd.f32 %v7803, %v8436
  %v8537 = vadd.f32 %v7804, %v8438
  %v8538 = vadd.f32 %v7805, %v8441
  %v8539 = vadd.f32 %v7806, %v8443
  %v8540 = vadd.f32 %v7807, %v8446
  %v8541 = vadd.f32 %v7808, %v8448
  %v8542 = vadd.f32 %v7809, %v8451
  %v8543 = vadd.f32 %v7810, %v8453
  %v8544 = vadd.f32 %v7811, %v8456
  %v8545 = vadd.f32 %v7812, %v8458
  %v8546 = vadd.f32 %v7813, %v8461
  %v8547 = vadd.f32 %v7814, %v8463
  %v8548 = vadd.f32 %v7815, %v8466
  %v8549 = vadd.f32 %v7816, %v8468
  %v8550 = vadd.f32 %v7817, %v8471
  %v8551 = vld [vmem:[#allocation2 + $0x13c] sm:$0x3]
  %v8552 = vld [vmem:[%s2 + $0x100] sm:$0xf]
  %v8553 = vld [vmem:[%s2 + $0x104] sm:$0xf]
  %v8554 = vld [vmem:[%s2 + $0x108] sm:$0xf]
  %v8555 = vld [vmem:[%s2 + $0x10c] sm:$0xf]
  %v8556 = vld [vmem:[%s2 + $0x110] sm:$0xf]
  %v8557 = vld [vmem:[%s2 + $0x114] sm:$0xf]
  %v8558 = vld [vmem:[%s2 + $0x118] sm:$0xf]
  %v8559 = vld [vmem:[%s2 + $0x11c] sm:$0xf]
  %v8560 = vld [vmem:[%s2 + $0x120] sm:$0xf]
  %v8561 = vld [vmem:[%s2 + $0x124] sm:$0xf]
  %v8562 = vld [vmem:[%s2 + $0x128] sm:$0xf]
  %v8563 = vld [vmem:[%s2 + $0x12c] sm:$0xf]
  %v8564 = vld [vmem:[%s2 + $0x130] sm:$0xf]
  %v8565 = vld [vmem:[%s2 + $0x134] sm:$0xf]
  %v8566 = vld [vmem:[%s2 + $0x138] sm:$0xf]
  %v8567 = vld [vmem:[%s2 + $0x13c] sm:$0xf]
  %v8569 = vunpack.c.l.b16 %v8551
  %v8570 = vpack.c.b16 %v8569, %v8066
  %vm8571 = vsmask.f32 6400
  %v8573 = vshrl.u32 %v8068, 16
  %v8575 = vrot.slane %v8573, 1
  %v8576 = vshll.u32 %v8068, 16
  %v8578 = vrot.slane %v8576, 2
  %v8579 = vor.u32 %v8575, %v8578
  %v8581 = vshrl.u32 %v8069, 16
  %v8583 = vrot.slane %v8581, 1
  %v8584 = vshll.u32 %v8069, 16
  %v8586 = vrot.slane %v8584, 2
  %v8587 = vor.u32 %v8583, %v8586
  %v8588 = vsel %vm8571, %v8579, %v8587
  %v8590 = vshrl.u32 %v8070, 16
  %v8592 = vrot.slane %v8590, 1
  %v8593 = vshll.u32 %v8070, 16
  %v8595 = vrot.slane %v8593, 2
  %v8596 = vor.u32 %v8592, %v8595
  %v8597 = vsel %vm8571, %v8587, %v8596
  %v8599 = vshrl.u32 %v8071, 16
  %v8601 = vrot.slane %v8599, 1
  %v8602 = vshll.u32 %v8071, 16
  %v8604 = vrot.slane %v8602, 2
  %v8605 = vor.u32 %v8601, %v8604
  %v8606 = vsel %vm8571, %v8596, %v8605
  %v8608 = vshrl.u32 %v8072, 16
  %v8610 = vrot.slane %v8608, 1
  %v8611 = vshll.u32 %v8072, 16
  %v8613 = vrot.slane %v8611, 2
  %v8614 = vor.u32 %v8610, %v8613
  %v8615 = vsel %vm8571, %v8605, %v8614
  %v8617 = vshrl.u32 %v8073, 16
  %v8619 = vrot.slane %v8617, 1
  %v8620 = vshll.u32 %v8073, 16
  %v8622 = vrot.slane %v8620, 2
  %v8623 = vor.u32 %v8619, %v8622
  %v8624 = vsel %vm8571, %v8614, %v8623
  %v8626 = vshrl.u32 %v8074, 16
  %v8628 = vrot.slane %v8626, 1
  %v8629 = vshll.u32 %v8074, 16
  %v8631 = vrot.slane %v8629, 2
  %v8632 = vor.u32 %v8628, %v8631
  %v8633 = vsel %vm8571, %v8623, %v8632
  %v8635 = vshrl.u32 %v8075, 16
  %v8637 = vrot.slane %v8635, 1
  %v8638 = vshll.u32 %v8075, 16
  %v8640 = vrot.slane %v8638, 2
  %v8641 = vor.u32 %v8637, %v8640
  %v8642 = vsel %vm8571, %v8632, %v8641
  %v8644 = vshrl.u32 %v8076, 16
  %v8646 = vrot.slane %v8644, 1
  %v8647 = vshll.u32 %v8076, 16
  %v8649 = vrot.slane %v8647, 2
  %v8650 = vor.u32 %v8646, %v8649
  %v8651 = vsel %vm8571, %v8641, %v8650
  %v8653 = vshrl.u32 %v8077, 16
  %v8655 = vrot.slane %v8653, 1
  %v8656 = vshll.u32 %v8077, 16
  %v8658 = vrot.slane %v8656, 2
  %v8659 = vor.u32 %v8655, %v8658
  %v8660 = vsel %vm8571, %v8650, %v8659
  %v8662 = vshrl.u32 %v8078, 16
  %v8664 = vrot.slane %v8662, 1
  %v8665 = vshll.u32 %v8078, 16
  %v8667 = vrot.slane %v8665, 2
  %v8668 = vor.u32 %v8664, %v8667
  %v8669 = vsel %vm8571, %v8659, %v8668
  %v8671 = vshrl.u32 %v8079, 16
  %v8673 = vrot.slane %v8671, 1
  %v8674 = vshll.u32 %v8079, 16
  %v8676 = vrot.slane %v8674, 2
  %v8677 = vor.u32 %v8673, %v8676
  %v8678 = vsel %vm8571, %v8668, %v8677
  %v8680 = vshrl.u32 %v8080, 16
  %v8682 = vrot.slane %v8680, 1
  %v8683 = vshll.u32 %v8080, 16
  %v8685 = vrot.slane %v8683, 2
  %v8686 = vor.u32 %v8682, %v8685
  %v8687 = vsel %vm8571, %v8677, %v8686
  %v8689 = vshrl.u32 %v8081, 16
  %v8691 = vrot.slane %v8689, 1
  %v8692 = vshll.u32 %v8081, 16
  %v8694 = vrot.slane %v8692, 2
  %v8695 = vor.u32 %v8691, %v8694
  %v8696 = vsel %vm8571, %v8686, %v8695
  %v8698 = vshrl.u32 %v8082, 16
  %v8700 = vrot.slane %v8698, 1
  %v8701 = vshll.u32 %v8082, 16
  %v8703 = vrot.slane %v8701, 2
  %v8704 = vor.u32 %v8700, %v8703
  %v8705 = vsel %vm8571, %v8695, %v8704
  %v8707 = vshrl.u32 %v8083, 16
  %v8709 = vrot.slane %v8707, 1
  %v8710 = vshll.u32 %v8083, 16
  %v8712 = vrot.slane %v8710, 2
  %v8713 = vor.u32 %v8709, %v8712
  %v8714 = vsel %vm8571, %v8704, %v8713
  %v8716 = vshrl.u32 %v8084, 16
  %v8718 = vrot.slane %v8716, 1
  %v8719 = vshll.u32 %v8084, 16
  %v8721 = vrot.slane %v8719, 2
  %v8722 = vor.u32 %v8718, %v8721
  %v8723 = vsel %vm8571, %v8713, %v8722
  %v8725 = vshrl.u32 %v8085, 16
  %v8727 = vrot.slane %v8725, 1
  %v8728 = vshll.u32 %v8085, 16
  %v8730 = vrot.slane %v8728, 2
  %v8731 = vor.u32 %v8727, %v8730
  %v8732 = vsel %vm8571, %v8722, %v8731
  %v8734 = vshrl.u32 %v8086, 16
  %v8736 = vrot.slane %v8734, 1
  %v8737 = vshll.u32 %v8086, 16
  %v8739 = vrot.slane %v8737, 2
  %v8740 = vor.u32 %v8736, %v8739
  %v8741 = vsel %vm8571, %v8731, %v8740
  %v8743 = vshrl.u32 %v8087, 16
  %v8745 = vrot.slane %v8743, 1
  %v8746 = vshll.u32 %v8087, 16
  %v8748 = vrot.slane %v8746, 2
  %v8749 = vor.u32 %v8745, %v8748
  %v8750 = vsel %vm8571, %v8740, %v8749
  %v8752 = vshrl.u32 %v8088, 16
  %v8754 = vrot.slane %v8752, 1
  %v8755 = vshll.u32 %v8088, 16
  %v8757 = vrot.slane %v8755, 2
  %v8758 = vor.u32 %v8754, %v8757
  %v8759 = vsel %vm8571, %v8749, %v8758
  %v8761 = vshrl.u32 %v8089, 16
  %v8763 = vrot.slane %v8761, 1
  %v8764 = vshll.u32 %v8089, 16
  %v8766 = vrot.slane %v8764, 2
  %v8767 = vor.u32 %v8763, %v8766
  %v8768 = vsel %vm8571, %v8758, %v8767
  %v8770 = vshrl.u32 %v8090, 16
  %v8772 = vrot.slane %v8770, 1
  %v8773 = vshll.u32 %v8090, 16
  %v8775 = vrot.slane %v8773, 2
  %v8776 = vor.u32 %v8772, %v8775
  %v8777 = vsel %vm8571, %v8767, %v8776
  %v8779 = vshrl.u32 %v8091, 16
  %v8781 = vrot.slane %v8779, 1
  %v8782 = vshll.u32 %v8091, 16
  %v8784 = vrot.slane %v8782, 2
  %v8785 = vor.u32 %v8781, %v8784
  %v8786 = vsel %vm8571, %v8776, %v8785
  %v8788 = vshrl.u32 %v8092, 16
  %v8790 = vrot.slane %v8788, 1
  %v8791 = vshll.u32 %v8092, 16
  %v8793 = vrot.slane %v8791, 2
  %v8794 = vor.u32 %v8790, %v8793
  %v8795 = vsel %vm8571, %v8785, %v8794
  %v8797 = vshrl.u32 %v8093, 16
  %v8799 = vrot.slane %v8797, 1
  %v8800 = vshll.u32 %v8093, 16
  %v8802 = vrot.slane %v8800, 2
  %v8803 = vor.u32 %v8799, %v8802
  %v8804 = vsel %vm8571, %v8794, %v8803
  %v8806 = vshrl.u32 %v8094, 16
  %v8808 = vrot.slane %v8806, 1
  %v8809 = vshll.u32 %v8094, 16
  %v8811 = vrot.slane %v8809, 2
  %v8812 = vor.u32 %v8808, %v8811
  %v8813 = vsel %vm8571, %v8803, %v8812
  %v8815 = vshrl.u32 %v8095, 16
  %v8817 = vrot.slane %v8815, 1
  %v8818 = vshll.u32 %v8095, 16
  %v8820 = vrot.slane %v8818, 2
  %v8821 = vor.u32 %v8817, %v8820
  %v8822 = vsel %vm8571, %v8812, %v8821
  %v8824 = vshrl.u32 %v8096, 16
  %v8826 = vrot.slane %v8824, 1
  %v8827 = vshll.u32 %v8096, 16
  %v8829 = vrot.slane %v8827, 2
  %v8830 = vor.u32 %v8826, %v8829
  %v8831 = vsel %vm8571, %v8821, %v8830
  %v8833 = vshrl.u32 %v8097, 16
  %v8835 = vrot.slane %v8833, 1
  %v8836 = vshll.u32 %v8097, 16
  %v8838 = vrot.slane %v8836, 2
  %v8839 = vor.u32 %v8835, %v8838
  %v8840 = vsel %vm8571, %v8830, %v8839
  %v8842 = vshrl.u32 %v8098, 16
  %v8844 = vrot.slane %v8842, 1
  %v8845 = vshll.u32 %v8098, 16
  %v8847 = vrot.slane %v8845, 2
  %v8848 = vor.u32 %v8844, %v8847
  %v8849 = vsel %vm8571, %v8839, %v8848
  %v8851 = vshrl.u32 %v8099, 16
  %v8853 = vrot.slane %v8851, 1
  %v8854 = vshll.u32 %v8099, 16
  %v8856 = vrot.slane %v8854, 2
  %v8857 = vor.u32 %v8853, %v8856
  %v8858 = vsel %vm8571, %v8848, %v8857
  %v8860 = vshrl.u32 %v8100, 16
  %v8862 = vrot.slane %v8860, 1
  %v8863 = vshll.u32 %v8100, 16
  %v8865 = vrot.slane %v8863, 2
  %v8866 = vor.u32 %v8862, %v8865
  %v8867 = vsel %vm8571, %v8857, %v8866
  %v8869 = vshrl.u32 %v8101, 16
  %v8871 = vrot.slane %v8869, 1
  %v8872 = vshll.u32 %v8101, 16
  %v8874 = vrot.slane %v8872, 2
  %v8875 = vor.u32 %v8871, %v8874
  %v8876 = vsel %vm8571, %v8866, %v8875
  %v8878 = vshrl.u32 %v8102, 16
  %v8880 = vrot.slane %v8878, 1
  %v8881 = vshll.u32 %v8102, 16
  %v8883 = vrot.slane %v8881, 2
  %v8884 = vor.u32 %v8880, %v8883
  %v8885 = vsel %vm8571, %v8875, %v8884
  %v8887 = vshrl.u32 %v8103, 16
  %v8889 = vrot.slane %v8887, 1
  %v8890 = vshll.u32 %v8103, 16
  %v8892 = vrot.slane %v8890, 2
  %v8893 = vor.u32 %v8889, %v8892
  %v8894 = vsel %vm8571, %v8884, %v8893
  %v8896 = vshrl.u32 %v8104, 16
  %v8898 = vrot.slane %v8896, 1
  %v8899 = vshll.u32 %v8104, 16
  %v8901 = vrot.slane %v8899, 2
  %v8902 = vor.u32 %v8898, %v8901
  %v8903 = vsel %vm8571, %v8893, %v8902
  %v8905 = vshrl.u32 %v8105, 16
  %v8907 = vrot.slane %v8905, 1
  %v8908 = vshll.u32 %v8105, 16
  %v8910 = vrot.slane %v8908, 2
  %v8911 = vor.u32 %v8907, %v8910
  %v8912 = vsel %vm8571, %v8902, %v8911
  %v8914 = vshrl.u32 %v8570, 16
  %v8916 = vrot.slane %v8914, 1
  %v8917 = vshll.u32 %v8570, 16
  %v8919 = vrot.slane %v8917, 2
  %v8920 = vor.u32 %v8916, %v8919
  %v8921 = vsel %vm8571, %v8911, %v8920
  %v8977 = vunpack.c.l.b16 %v8552
  %v8978 = vunpack.c.l.b16 %v8553
  %v8979 = vunpack.c.l.b16 %v8554
  %v8980 = vunpack.c.l.b16 %v8555
  %v8981 = vunpack.c.l.b16 %v8556
  %v8982 = vunpack.c.l.b16 %v8557
  %v8983 = vunpack.c.l.b16 %v8558
  %v8984 = vunpack.c.l.b16 %v8559
  %v8985 = vunpack.c.l.b16 %v8560
  %v8986 = vunpack.c.l.b16 %v8561
  %v8987 = vunpack.c.l.b16 %v8562
  %v8988 = vunpack.c.l.b16 %v8563
  %v8989 = vunpack.c.l.b16 %v8564
  %v8990 = vunpack.c.l.b16 %v8565
  %v8991 = vunpack.c.l.b16 %v8566
  %v8992 = vunpack.c.l.b16 %v8567
  %v8993 = vpack.c.b16 %v8978, %v8977
  %v8994 = vpack.c.b16 %v8980, %v8979
  %v8995 = vpack.c.b16 %v8982, %v8981
  %v8996 = vpack.c.b16 %v8984, %v8983
  %v8997 = vpack.c.b16 %v8986, %v8985
  %v8998 = vpack.c.b16 %v8988, %v8987
  %v8999 = vpack.c.b16 %v8990, %v8989
  %v9000 = vpack.c.b16 %v8992, %v8991
  %9009 = vmatpush.bf16.msra.mxu0 %v9000
  %9010 = vmatpush.bf16.msra.mxu0 %v8999
  %9011 = vmatpush.bf16.msra.mxu0 %v8998
  %9012 = vmatpush.bf16.msra.mxu0 %v8997
  %9013 = vmatpush.bf16.msra.mxu0 %v8996
  %9014 = vmatpush.bf16.msra.mxu0 %v8995
  %9015 = vmatpush.bf16.msra.mxu0 %v8994
  %9016 = vmatpush.bf16.msra.mxu0 %v8993
  %9017 = vmatmul.bf16.gmra.mxu0 %v8588
  %v9018 = vpop.f32.mrf.mxu0
  %v9019 = vadd.f32 0.0, %v9018
  %v9020 = vpop.f32.mrf.mxu0
  %v9021 = vadd.f32 0.0, %v9020
  %9022 = vmatmul.bf16.gmra.mxu0 %v8597
  %v9023 = vpop.f32.mrf.mxu0
  %v9024 = vadd.f32 0.0, %v9023
  %v9025 = vpop.f32.mrf.mxu0
  %v9026 = vadd.f32 0.0, %v9025
  %9027 = vmatmul.bf16.gmra.mxu0 %v8606
  %v9028 = vpop.f32.mrf.mxu0
  %v9029 = vadd.f32 0.0, %v9028
  %v9030 = vpop.f32.mrf.mxu0
  %v9031 = vadd.f32 0.0, %v9030
  %9032 = vmatmul.bf16.gmra.mxu0 %v8615
  %v9033 = vpop.f32.mrf.mxu0
  %v9034 = vadd.f32 0.0, %v9033
  %v9035 = vpop.f32.mrf.mxu0
  %v9036 = vadd.f32 0.0, %v9035
  %9037 = vmatmul.bf16.gmra.mxu0 %v8624
  %v9038 = vpop.f32.mrf.mxu0
  %v9039 = vadd.f32 0.0, %v9038
  %v9040 = vpop.f32.mrf.mxu0
  %v9041 = vadd.f32 0.0, %v9040
  %9042 = vmatmul.bf16.gmra.mxu0 %v8633
  %v9043 = vpop.f32.mrf.mxu0
  %v9044 = vadd.f32 0.0, %v9043
  %v9045 = vpop.f32.mrf.mxu0
  %v9046 = vadd.f32 0.0, %v9045
  %9047 = vmatmul.bf16.gmra.mxu0 %v8642
  %v9048 = vpop.f32.mrf.mxu0
  %v9049 = vadd.f32 0.0, %v9048
  %v9050 = vpop.f32.mrf.mxu0
  %v9051 = vadd.f32 0.0, %v9050
  %9052 = vmatmul.bf16.gmra.mxu0 %v8651
  %v9053 = vpop.f32.mrf.mxu0
  %v9054 = vadd.f32 0.0, %v9053
  %v9055 = vpop.f32.mrf.mxu0
  %v9056 = vadd.f32 0.0, %v9055
  %9057 = vmatmul.bf16.gmra.mxu0 %v8660
  %v9058 = vpop.f32.mrf.mxu0
  %v9059 = vadd.f32 0.0, %v9058
  %v9060 = vpop.f32.mrf.mxu0
  %v9061 = vadd.f32 0.0, %v9060
  %9062 = vmatmul.bf16.gmra.mxu0 %v8669
  %v9063 = vpop.f32.mrf.mxu0
  %v9064 = vadd.f32 0.0, %v9063
  %v9065 = vpop.f32.mrf.mxu0
  %v9066 = vadd.f32 0.0, %v9065
  %9067 = vmatmul.bf16.gmra.mxu0 %v8678
  %v9068 = vpop.f32.mrf.mxu0
  %v9069 = vadd.f32 0.0, %v9068
  %v9070 = vpop.f32.mrf.mxu0
  %v9071 = vadd.f32 0.0, %v9070
  %9072 = vmatmul.bf16.gmra.mxu0 %v8687
  %v9073 = vpop.f32.mrf.mxu0
  %v9074 = vadd.f32 0.0, %v9073
  %v9075 = vpop.f32.mrf.mxu0
  %v9076 = vadd.f32 0.0, %v9075
  %9077 = vmatmul.bf16.gmra.mxu0 %v8696
  %v9078 = vpop.f32.mrf.mxu0
  %v9079 = vadd.f32 0.0, %v9078
  %v9080 = vpop.f32.mrf.mxu0
  %v9081 = vadd.f32 0.0, %v9080
  %9082 = vmatmul.bf16.gmra.mxu0 %v8705
  %v9083 = vpop.f32.mrf.mxu0
  %v9084 = vadd.f32 0.0, %v9083
  %v9085 = vpop.f32.mrf.mxu0
  %v9086 = vadd.f32 0.0, %v9085
  %9087 = vmatmul.bf16.gmra.mxu0 %v8714
  %v9088 = vpop.f32.mrf.mxu0
  %v9089 = vadd.f32 0.0, %v9088
  %v9090 = vpop.f32.mrf.mxu0
  %v9091 = vadd.f32 0.0, %v9090
  %9092 = vmatmul.bf16.gmra.mxu0 %v8723
  %v9093 = vpop.f32.mrf.mxu0
  %v9094 = vadd.f32 0.0, %v9093
  %v9095 = vpop.f32.mrf.mxu0
  %v9096 = vadd.f32 0.0, %v9095
  %9097 = vmatmul.bf16.gmra.mxu0 %v8732
  %v9098 = vpop.f32.mrf.mxu0
  %v9099 = vadd.f32 0.0, %v9098
  %v9100 = vpop.f32.mrf.mxu0
  %v9101 = vadd.f32 0.0, %v9100
  %9102 = vmatmul.bf16.gmra.mxu0 %v8741
  %v9103 = vpop.f32.mrf.mxu0
  %v9104 = vadd.f32 0.0, %v9103
  %v9105 = vpop.f32.mrf.mxu0
  %v9106 = vadd.f32 0.0, %v9105
  %9107 = vmatmul.bf16.gmra.mxu0 %v8750
  %v9108 = vpop.f32.mrf.mxu0
  %v9109 = vadd.f32 0.0, %v9108
  %v9110 = vpop.f32.mrf.mxu0
  %v9111 = vadd.f32 0.0, %v9110
  %9112 = vmatmul.bf16.gmra.mxu0 %v8759
  %v9113 = vpop.f32.mrf.mxu0
  %v9114 = vadd.f32 0.0, %v9113
  %v9115 = vpop.f32.mrf.mxu0
  %v9116 = vadd.f32 0.0, %v9115
  %9117 = vmatmul.bf16.gmra.mxu0 %v8768
  %v9118 = vpop.f32.mrf.mxu0
  %v9119 = vadd.f32 0.0, %v9118
  %v9120 = vpop.f32.mrf.mxu0
  %v9121 = vadd.f32 0.0, %v9120
  %9122 = vmatmul.bf16.gmra.mxu0 %v8777
  %v9123 = vpop.f32.mrf.mxu0
  %v9124 = vadd.f32 0.0, %v9123
  %v9125 = vpop.f32.mrf.mxu0
  %v9126 = vadd.f32 0.0, %v9125
  %9127 = vmatmul.bf16.gmra.mxu0 %v8786
  %v9128 = vpop.f32.mrf.mxu0
  %v9129 = vadd.f32 0.0, %v9128
  %v9130 = vpop.f32.mrf.mxu0
  %v9131 = vadd.f32 0.0, %v9130
  %9132 = vmatmul.bf16.gmra.mxu0 %v8795
  %v9133 = vpop.f32.mrf.mxu0
  %v9134 = vadd.f32 0.0, %v9133
  %v9135 = vpop.f32.mrf.mxu0
  %v9136 = vadd.f32 0.0, %v9135
  %9137 = vmatmul.bf16.gmra.mxu0 %v8804
  %v9138 = vpop.f32.mrf.mxu0
  %v9139 = vadd.f32 0.0, %v9138
  %v9140 = vpop.f32.mrf.mxu0
  %v9141 = vadd.f32 0.0, %v9140
  %9142 = vmatmul.bf16.gmra.mxu0 %v8813
  %v9143 = vpop.f32.mrf.mxu0
  %v9144 = vadd.f32 0.0, %v9143
  %v9145 = vpop.f32.mrf.mxu0
  %v9146 = vadd.f32 0.0, %v9145
  %9147 = vmatmul.bf16.gmra.mxu0 %v8822
  %v9148 = vpop.f32.mrf.mxu0
  %v9149 = vadd.f32 0.0, %v9148
  %v9150 = vpop.f32.mrf.mxu0
  %v9151 = vadd.f32 0.0, %v9150
  %9152 = vmatmul.bf16.gmra.mxu0 %v8831
  %v9153 = vpop.f32.mrf.mxu0
  %v9154 = vadd.f32 0.0, %v9153
  %v9155 = vpop.f32.mrf.mxu0
  %v9156 = vadd.f32 0.0, %v9155
  %9157 = vmatmul.bf16.gmra.mxu0 %v8840
  %v9158 = vpop.f32.mrf.mxu0
  %v9159 = vadd.f32 0.0, %v9158
  %v9160 = vpop.f32.mrf.mxu0
  %v9161 = vadd.f32 0.0, %v9160
  %9162 = vmatmul.bf16.gmra.mxu0 %v8849
  %v9163 = vpop.f32.mrf.mxu0
  %v9164 = vadd.f32 0.0, %v9163
  %v9165 = vpop.f32.mrf.mxu0
  %v9166 = vadd.f32 0.0, %v9165
  %9167 = vmatmul.bf16.gmra.mxu0 %v8858
  %v9168 = vpop.f32.mrf.mxu0
  %v9169 = vadd.f32 0.0, %v9168
  %v9170 = vpop.f32.mrf.mxu0
  %v9171 = vadd.f32 0.0, %v9170
  %9172 = vmatmul.bf16.gmra.mxu0 %v8867
  %v9173 = vpop.f32.mrf.mxu0
  %v9174 = vadd.f32 0.0, %v9173
  %v9175 = vpop.f32.mrf.mxu0
  %v9176 = vadd.f32 0.0, %v9175
  %9177 = vmatmul.bf16.gmra.mxu0 %v8876
  %v9178 = vpop.f32.mrf.mxu0
  %v9179 = vadd.f32 0.0, %v9178
  %v9180 = vpop.f32.mrf.mxu0
  %v9181 = vadd.f32 0.0, %v9180
  %9182 = vmatmul.bf16.gmra.mxu0 %v8885
  %v9183 = vpop.f32.mrf.mxu0
  %v9184 = vadd.f32 0.0, %v9183
  %v9185 = vpop.f32.mrf.mxu0
  %v9186 = vadd.f32 0.0, %v9185
  %9187 = vmatmul.bf16.gmra.mxu0 %v8894
  %v9188 = vpop.f32.mrf.mxu0
  %v9189 = vadd.f32 0.0, %v9188
  %v9190 = vpop.f32.mrf.mxu0
  %v9191 = vadd.f32 0.0, %v9190
  %9192 = vmatmul.bf16.gmra.mxu0 %v8903
  %v9193 = vpop.f32.mrf.mxu0
  %v9194 = vadd.f32 0.0, %v9193
  %v9195 = vpop.f32.mrf.mxu0
  %v9196 = vadd.f32 0.0, %v9195
  %9197 = vmatmul.bf16.gmra.mxu0 %v8912
  %v9198 = vpop.f32.mrf.mxu0
  %v9199 = vadd.f32 0.0, %v9198
  %v9200 = vpop.f32.mrf.mxu0
  %v9201 = vadd.f32 0.0, %v9200
  %9202 = vmatmul.bf16.gmra.mxu0 %v8921
  %v9203 = vpop.f32.mrf.mxu0
  %v9204 = vadd.f32 0.0, %v9203
  %v9205 = vpop.f32.mrf.mxu0
  %v9206 = vadd.f32 0.0, %v9205
  %9207 = vmatmul.bf16.gmra.mxu0 %v8920
  %v9208 = vpop.f32.mrf.mxu0
  %v9209 = vadd.f32 0.0, %v9208
  %v9210 = vpop.f32.mrf.mxu0
  %9211 = vdwg.mxu0
  %v9212 = vadd.f32 %v8474, %v9019
  %v9213 = vadd.f32 %v8475, %v9021
  %v9214 = vadd.f32 %v8476, %v9024
  %v9215 = vadd.f32 %v8477, %v9026
  %v9216 = vadd.f32 %v8478, %v9029
  %v9217 = vadd.f32 %v8479, %v9031
  %v9218 = vadd.f32 %v8480, %v9034
  %v9219 = vadd.f32 %v8481, %v9036
  %v9220 = vadd.f32 %v8482, %v9039
  %v9221 = vadd.f32 %v8483, %v9041
  %v9222 = vadd.f32 %v8484, %v9044
  %v9223 = vadd.f32 %v8485, %v9046
  %v9224 = vadd.f32 %v8486, %v9049
  %v9225 = vadd.f32 %v8487, %v9051
  %v9226 = vadd.f32 %v8488, %v9054
  %v9227 = vadd.f32 %v8489, %v9056
  %v9228 = vadd.f32 %v8490, %v9059
  %v9229 = vadd.f32 %v8491, %v9061
  %v9230 = vadd.f32 %v8492, %v9064
  %v9231 = vadd.f32 %v8493, %v9066
  %v9232 = vadd.f32 %v8494, %v9069
  %v9233 = vadd.f32 %v8495, %v9071
  %v9234 = vadd.f32 %v8496, %v9074
  %v9235 = vadd.f32 %v8497, %v9076
  %v9236 = vadd.f32 %v8498, %v9079
  %v9237 = vadd.f32 %v8499, %v9081
  %v9238 = vadd.f32 %v8500, %v9084
  %v9239 = vadd.f32 %v8501, %v9086
  %v9240 = vadd.f32 %v8502, %v9089
  %v9241 = vadd.f32 %v8503, %v9091
  %v9242 = vadd.f32 %v8504, %v9094
  %v9243 = vadd.f32 %v8505, %v9096
  %v9244 = vadd.f32 %v8506, %v9099
  %v9245 = vadd.f32 %v8507, %v9101
  %v9246 = vadd.f32 %v8508, %v9104
  %v9247 = vadd.f32 %v8509, %v9106
  %v9248 = vadd.f32 %v8510, %v9109
  %v9249 = vadd.f32 %v8511, %v9111
  %v9250 = vadd.f32 %v8512, %v9114
  %v9251 = vadd.f32 %v8513, %v9116
  %v9252 = vadd.f32 %v8514, %v9119
  %v9253 = vadd.f32 %v8515, %v9121
  %v9254 = vadd.f32 %v8516, %v9124
  %v9255 = vadd.f32 %v8517, %v9126
  %v9256 = vadd.f32 %v8518, %v9129
  %v9257 = vadd.f32 %v8519, %v9131
  %v9258 = vadd.f32 %v8520, %v9134
  %v9259 = vadd.f32 %v8521, %v9136
  %v9260 = vadd.f32 %v8522, %v9139
  %v9261 = vadd.f32 %v8523, %v9141
  %v9262 = vadd.f32 %v8524, %v9144
  %v9263 = vadd.f32 %v8525, %v9146
  %v9264 = vadd.f32 %v8526, %v9149
  %v9265 = vadd.f32 %v8527, %v9151
  %v9266 = vadd.f32 %v8528, %v9154
  %v9267 = vadd.f32 %v8529, %v9156
  %v9268 = vadd.f32 %v8530, %v9159
  %v9269 = vadd.f32 %v8531, %v9161
  %v9270 = vadd.f32 %v8532, %v9164
  %v9271 = vadd.f32 %v8533, %v9166
  %v9272 = vadd.f32 %v8534, %v9169
  %v9273 = vadd.f32 %v8535, %v9171
  %v9274 = vadd.f32 %v8536, %v9174
  %v9275 = vadd.f32 %v8537, %v9176
  %v9276 = vadd.f32 %v8538, %v9179
  %v9277 = vadd.f32 %v8539, %v9181
  %v9278 = vadd.f32 %v8540, %v9184
  %v9279 = vadd.f32 %v8541, %v9186
  %v9280 = vadd.f32 %v8542, %v9189
  %v9281 = vadd.f32 %v8543, %v9191
  %v9282 = vadd.f32 %v8544, %v9194
  %v9283 = vadd.f32 %v8545, %v9196
  %v9284 = vadd.f32 %v8546, %v9199
  %v9285 = vadd.f32 %v8547, %v9201
  %v9286 = vadd.f32 %v8548, %v9204
  %v9287 = vadd.f32 %v8549, %v9206
  %v9288 = vadd.f32 %v8550, %v9209
  %v9289 = vld [vmem:[#allocation2 + $0x8] sm:$0xc]
  %v9290 = vld [vmem:[%s2 + $0x140] sm:$0xf]
  %v9291 = vld [vmem:[%s2 + $0x144] sm:$0xf]
  %v9292 = vld [vmem:[%s2 + $0x148] sm:$0xf]
  %v9293 = vld [vmem:[%s2 + $0x14c] sm:$0xf]
  %v9294 = vld [vmem:[%s2 + $0x150] sm:$0xf]
  %v9295 = vld [vmem:[%s2 + $0x154] sm:$0xf]
  %v9296 = vld [vmem:[%s2 + $0x158] sm:$0xf]
  %v9297 = vld [vmem:[%s2 + $0x15c] sm:$0xf]
  %v9298 = vld [vmem:[%s2 + $0x160] sm:$0xf]
  %v9299 = vld [vmem:[%s2 + $0x164] sm:$0xf]
  %v9300 = vld [vmem:[%s2 + $0x168] sm:$0xf]
  %v9301 = vld [vmem:[%s2 + $0x16c] sm:$0xf]
  %v9302 = vld [vmem:[%s2 + $0x170] sm:$0xf]
  %v9303 = vld [vmem:[%s2 + $0x174] sm:$0xf]
  %v9304 = vld [vmem:[%s2 + $0x178] sm:$0xf]
  %v9305 = vld [vmem:[%s2 + $0x17c] sm:$0xf]
  %v9307 = vunpack.c.l.b16 %v9289
  %v9308 = vpack.c.b16 %v7991, %v9307
  %vm9309 = vcmask 1045504
  %v9310 = vrot.slane %v9308, 2
  %v9311 = vrot.slane %v8069, 2
  %v9312 = vsel %vm9309, %v9310, %v9311
  %v9313 = vrot.slane %v8070, 2
  %v9314 = vsel %vm9309, %v9311, %v9313
  %v9315 = vrot.slane %v8071, 2
  %v9316 = vsel %vm9309, %v9313, %v9315
  %v9317 = vrot.slane %v8072, 2
  %v9318 = vsel %vm9309, %v9315, %v9317
  %v9319 = vrot.slane %v8073, 2
  %v9320 = vsel %vm9309, %v9317, %v9319
  %v9321 = vrot.slane %v8074, 2
  %v9322 = vsel %vm9309, %v9319, %v9321
  %v9323 = vrot.slane %v8075, 2
  %v9324 = vsel %vm9309, %v9321, %v9323
  %v9325 = vrot.slane %v8076, 2
  %v9326 = vsel %vm9309, %v9323, %v9325
  %v9327 = vrot.slane %v8077, 2
  %v9328 = vsel %vm9309, %v9325, %v9327
  %v9329 = vrot.slane %v8078, 2
  %v9330 = vsel %vm9309, %v9327, %v9329
  %v9331 = vrot.slane %v8079, 2
  %v9332 = vsel %vm9309, %v9329, %v9331
  %v9333 = vrot.slane %v8080, 2
  %v9334 = vsel %vm9309, %v9331, %v9333
  %v9335 = vrot.slane %v8081, 2
  %v9336 = vsel %vm9309, %v9333, %v9335
  %v9337 = vrot.slane %v8082, 2
  %v9338 = vsel %vm9309, %v9335, %v9337
  %v9339 = vrot.slane %v8083, 2
  %v9340 = vsel %vm9309, %v9337, %v9339
  %v9341 = vrot.slane %v8084, 2
  %v9342 = vsel %vm9309, %v9339, %v9341
  %v9343 = vrot.slane %v8085, 2
  %v9344 = vsel %vm9309, %v9341, %v9343
  %v9345 = vrot.slane %v8086, 2
  %v9346 = vsel %vm9309, %v9343, %v9345
  %v9347 = vrot.slane %v8087, 2
  %v9348 = vsel %vm9309, %v9345, %v9347
  %v9349 = vrot.slane %v8088, 2
  %v9350 = vsel %vm9309, %v9347, %v9349
  %v9351 = vrot.slane %v8089, 2
  %v9352 = vsel %vm9309, %v9349, %v9351
  %v9353 = vrot.slane %v8090, 2
  %v9354 = vsel %vm9309, %v9351, %v9353
  %v9355 = vrot.slane %v8091, 2
  %v9356 = vsel %vm9309, %v9353, %v9355
  %v9357 = vrot.slane %v8092, 2
  %v9358 = vsel %vm9309, %v9355, %v9357
  %v9359 = vrot.slane %v8093, 2
  %v9360 = vsel %vm9309, %v9357, %v9359
  %v9361 = vrot.slane %v8094, 2
  %v9362 = vsel %vm9309, %v9359, %v9361
  %v9363 = vrot.slane %v8095, 2
  %v9364 = vsel %vm9309, %v9361, %v9363
  %v9365 = vrot.slane %v8096, 2
  %v9366 = vsel %vm9309, %v9363, %v9365
  %v9367 = vrot.slane %v8097, 2
  %v9368 = vsel %vm9309, %v9365, %v9367
  %v9369 = vrot.slane %v8098, 2
  %v9370 = vsel %vm9309, %v9367, %v9369
  %v9371 = vrot.slane %v8099, 2
  %v9372 = vsel %vm9309, %v9369, %v9371
  %v9373 = vrot.slane %v8100, 2
  %v9374 = vsel %vm9309, %v9371, %v9373
  %v9375 = vrot.slane %v8101, 2
  %v9376 = vsel %vm9309, %v9373, %v9375
  %v9377 = vrot.slane %v8102, 2
  %v9378 = vsel %vm9309, %v9375, %v9377
  %v9379 = vrot.slane %v8103, 2
  %v9380 = vsel %vm9309, %v9377, %v9379
  %v9381 = vrot.slane %v8104, 2
  %v9382 = vsel %vm9309, %v9379, %v9381
  %v9383 = vrot.slane %v8105, 2
  %v9384 = vsel %vm9309, %v9381, %v9383
  %v9385 = vrot.slane %v8570, 2
  %v9386 = vsel %vm9309, %v9383, %v9385
  %v9442 = vunpack.c.l.b16 %v9290
  %v9443 = vunpack.c.l.b16 %v9291
  %v9444 = vunpack.c.l.b16 %v9292
  %v9445 = vunpack.c.l.b16 %v9293
  %v9446 = vunpack.c.l.b16 %v9294
  %v9447 = vunpack.c.l.b16 %v9295
  %v9448 = vunpack.c.l.b16 %v9296
  %v9449 = vunpack.c.l.b16 %v9297
  %v9450 = vunpack.c.l.b16 %v9298
  %v9451 = vunpack.c.l.b16 %v9299
  %v9452 = vunpack.c.l.b16 %v9300
  %v9453 = vunpack.c.l.b16 %v9301
  %v9454 = vunpack.c.l.b16 %v9302
  %v9455 = vunpack.c.l.b16 %v9303
  %v9456 = vunpack.c.l.b16 %v9304
  %v9457 = vunpack.c.l.b16 %v9305
  %v9458 = vpack.c.b16 %v9443, %v9442
  %v9459 = vpack.c.b16 %v9445, %v9444
  %v9460 = vpack.c.b16 %v9447, %v9446
  %v9461 = vpack.c.b16 %v9449, %v9448
  %v9462 = vpack.c.b16 %v9451, %v9450
  %v9463 = vpack.c.b16 %v9453, %v9452
  %v9464 = vpack.c.b16 %v9455, %v9454
  %v9465 = vpack.c.b16 %v9457, %v9456
  %9474 = vmatpush.bf16.msra.mxu0 %v9465
  %9475 = vmatpush.bf16.msra.mxu0 %v9464
  %9476 = vmatpush.bf16.msra.mxu0 %v9463
  %9477 = vmatpush.bf16.msra.mxu0 %v9462
  %9478 = vmatpush.bf16.msra.mxu0 %v9461
  %9479 = vmatpush.bf16.msra.mxu0 %v9460
  %9480 = vmatpush.bf16.msra.mxu0 %v9459
  %9481 = vmatpush.bf16.msra.mxu0 %v9458
  %9482 = vmatmul.bf16.gmra.mxu0 %v9312
  %v9483 = vpop.f32.mrf.mxu0
  %v9484 = vadd.f32 0.0, %v9483
  %v9485 = vpop.f32.mrf.mxu0
  %v9486 = vadd.f32 0.0, %v9485
  %9487 = vmatmul.bf16.gmra.mxu0 %v9314
  %v9488 = vpop.f32.mrf.mxu0
  %v9489 = vadd.f32 0.0, %v9488
  %v9490 = vpop.f32.mrf.mxu0
  %v9491 = vadd.f32 0.0, %v9490
  %9492 = vmatmul.bf16.gmra.mxu0 %v9316
  %v9493 = vpop.f32.mrf.mxu0
  %v9494 = vadd.f32 0.0, %v9493
  %v9495 = vpop.f32.mrf.mxu0
  %v9496 = vadd.f32 0.0, %v9495
  %9497 = vmatmul.bf16.gmra.mxu0 %v9318
  %v9498 = vpop.f32.mrf.mxu0
  %v9499 = vadd.f32 0.0, %v9498
  %v9500 = vpop.f32.mrf.mxu0
  %v9501 = vadd.f32 0.0, %v9500
  %9502 = vmatmul.bf16.gmra.mxu0 %v9320
  %v9503 = vpop.f32.mrf.mxu0
  %v9504 = vadd.f32 0.0, %v9503
  %v9505 = vpop.f32.mrf.mxu0
  %v9506 = vadd.f32 0.0, %v9505
  %9507 = vmatmul.bf16.gmra.mxu0 %v9322
  %v9508 = vpop.f32.mrf.mxu0
  %v9509 = vadd.f32 0.0, %v9508
  %v9510 = vpop.f32.mrf.mxu0
  %v9511 = vadd.f32 0.0, %v9510
  %9512 = vmatmul.bf16.gmra.mxu0 %v9324
  %v9513 = vpop.f32.mrf.mxu0
  %v9514 = vadd.f32 0.0, %v9513
  %v9515 = vpop.f32.mrf.mxu0
  %v9516 = vadd.f32 0.0, %v9515
  %9517 = vmatmul.bf16.gmra.mxu0 %v9326
  %v9518 = vpop.f32.mrf.mxu0
  %v9519 = vadd.f32 0.0, %v9518
  %v9520 = vpop.f32.mrf.mxu0
  %v9521 = vadd.f32 0.0, %v9520
  %9522 = vmatmul.bf16.gmra.mxu0 %v9328
  %v9523 = vpop.f32.mrf.mxu0
  %v9524 = vadd.f32 0.0, %v9523
  %v9525 = vpop.f32.mrf.mxu0
  %v9526 = vadd.f32 0.0, %v9525
  %9527 = vmatmul.bf16.gmra.mxu0 %v9330
  %v9528 = vpop.f32.mrf.mxu0
  %v9529 = vadd.f32 0.0, %v9528
  %v9530 = vpop.f32.mrf.mxu0
  %v9531 = vadd.f32 0.0, %v9530
  %9532 = vmatmul.bf16.gmra.mxu0 %v9332
  %v9533 = vpop.f32.mrf.mxu0
  %v9534 = vadd.f32 0.0, %v9533
  %v9535 = vpop.f32.mrf.mxu0
  %v9536 = vadd.f32 0.0, %v9535
  %9537 = vmatmul.bf16.gmra.mxu0 %v9334
  %v9538 = vpop.f32.mrf.mxu0
  %v9539 = vadd.f32 0.0, %v9538
  %v9540 = vpop.f32.mrf.mxu0
  %v9541 = vadd.f32 0.0, %v9540
  %9542 = vmatmul.bf16.gmra.mxu0 %v9336
  %v9543 = vpop.f32.mrf.mxu0
  %v9544 = vadd.f32 0.0, %v9543
  %v9545 = vpop.f32.mrf.mxu0
  %v9546 = vadd.f32 0.0, %v9545
  %9547 = vmatmul.bf16.gmra.mxu0 %v9338
  %v9548 = vpop.f32.mrf.mxu0
  %v9549 = vadd.f32 0.0, %v9548
  %v9550 = vpop.f32.mrf.mxu0
  %v9551 = vadd.f32 0.0, %v9550
  %9552 = vmatmul.bf16.gmra.mxu0 %v9340
  %v9553 = vpop.f32.mrf.mxu0
  %v9554 = vadd.f32 0.0, %v9553
  %v9555 = vpop.f32.mrf.mxu0
  %v9556 = vadd.f32 0.0, %v9555
  %9557 = vmatmul.bf16.gmra.mxu0 %v9342
  %v9558 = vpop.f32.mrf.mxu0
  %v9559 = vadd.f32 0.0, %v9558
  %v9560 = vpop.f32.mrf.mxu0
  %v9561 = vadd.f32 0.0, %v9560
  %9562 = vmatmul.bf16.gmra.mxu0 %v9344
  %v9563 = vpop.f32.mrf.mxu0
  %v9564 = vadd.f32 0.0, %v9563
  %v9565 = vpop.f32.mrf.mxu0
  %v9566 = vadd.f32 0.0, %v9565
  %9567 = vmatmul.bf16.gmra.mxu0 %v9346
  %v9568 = vpop.f32.mrf.mxu0
  %v9569 = vadd.f32 0.0, %v9568
  %v9570 = vpop.f32.mrf.mxu0
  %v9571 = vadd.f32 0.0, %v9570
  %9572 = vmatmul.bf16.gmra.mxu0 %v9348
  %v9573 = vpop.f32.mrf.mxu0
  %v9574 = vadd.f32 0.0, %v9573
  %v9575 = vpop.f32.mrf.mxu0
  %v9576 = vadd.f32 0.0, %v9575
  %9577 = vmatmul.bf16.gmra.mxu0 %v9350
  %v9578 = vpop.f32.mrf.mxu0
  %v9579 = vadd.f32 0.0, %v9578
  %v9580 = vpop.f32.mrf.mxu0
  %v9581 = vadd.f32 0.0, %v9580
  %9582 = vmatmul.bf16.gmra.mxu0 %v9352
  %v9583 = vpop.f32.mrf.mxu0
  %v9584 = vadd.f32 0.0, %v9583
  %v9585 = vpop.f32.mrf.mxu0
  %v9586 = vadd.f32 0.0, %v9585
  %9587 = vmatmul.bf16.gmra.mxu0 %v9354
  %v9588 = vpop.f32.mrf.mxu0
  %v9589 = vadd.f32 0.0, %v9588
  %v9590 = vpop.f32.mrf.mxu0
  %v9591 = vadd.f32 0.0, %v9590
  %9592 = vmatmul.bf16.gmra.mxu0 %v9356
  %v9593 = vpop.f32.mrf.mxu0
  %v9594 = vadd.f32 0.0, %v9593
  %v9595 = vpop.f32.mrf.mxu0
  %v9596 = vadd.f32 0.0, %v9595
  %9597 = vmatmul.bf16.gmra.mxu0 %v9358
  %v9598 = vpop.f32.mrf.mxu0
  %v9599 = vadd.f32 0.0, %v9598
  %v9600 = vpop.f32.mrf.mxu0
  %v9601 = vadd.f32 0.0, %v9600
  %9602 = vmatmul.bf16.gmra.mxu0 %v9360
  %v9603 = vpop.f32.mrf.mxu0
  %v9604 = vadd.f32 0.0, %v9603
  %v9605 = vpop.f32.mrf.mxu0
  %v9606 = vadd.f32 0.0, %v9605
  %9607 = vmatmul.bf16.gmra.mxu0 %v9362
  %v9608 = vpop.f32.mrf.mxu0
  %v9609 = vadd.f32 0.0, %v9608
  %v9610 = vpop.f32.mrf.mxu0
  %v9611 = vadd.f32 0.0, %v9610
  %9612 = vmatmul.bf16.gmra.mxu0 %v9364
  %v9613 = vpop.f32.mrf.mxu0
  %v9614 = vadd.f32 0.0, %v9613
  %v9615 = vpop.f32.mrf.mxu0
  %v9616 = vadd.f32 0.0, %v9615
  %9617 = vmatmul.bf16.gmra.mxu0 %v9366
  %v9618 = vpop.f32.mrf.mxu0
  %v9619 = vadd.f32 0.0, %v9618
  %v9620 = vpop.f32.mrf.mxu0
  %v9621 = vadd.f32 0.0, %v9620
  %9622 = vmatmul.bf16.gmra.mxu0 %v9368
  %v9623 = vpop.f32.mrf.mxu0
  %v9624 = vadd.f32 0.0, %v9623
  %v9625 = vpop.f32.mrf.mxu0
  %v9626 = vadd.f32 0.0, %v9625
  %9627 = vmatmul.bf16.gmra.mxu0 %v9370
  %v9628 = vpop.f32.mrf.mxu0
  %v9629 = vadd.f32 0.0, %v9628
  %v9630 = vpop.f32.mrf.mxu0
  %v9631 = vadd.f32 0.0, %v9630
  %9632 = vmatmul.bf16.gmra.mxu0 %v9372
  %v9633 = vpop.f32.mrf.mxu0
  %v9634 = vadd.f32 0.0, %v9633
  %v9635 = vpop.f32.mrf.mxu0
  %v9636 = vadd.f32 0.0, %v9635
  %9637 = vmatmul.bf16.gmra.mxu0 %v9374
  %v9638 = vpop.f32.mrf.mxu0
  %v9639 = vadd.f32 0.0, %v9638
  %v9640 = vpop.f32.mrf.mxu0
  %v9641 = vadd.f32 0.0, %v9640
  %9642 = vmatmul.bf16.gmra.mxu0 %v9376
  %v9643 = vpop.f32.mrf.mxu0
  %v9644 = vadd.f32 0.0, %v9643
  %v9645 = vpop.f32.mrf.mxu0
  %v9646 = vadd.f32 0.0, %v9645
  %9647 = vmatmul.bf16.gmra.mxu0 %v9378
  %v9648 = vpop.f32.mrf.mxu0
  %v9649 = vadd.f32 0.0, %v9648
  %v9650 = vpop.f32.mrf.mxu0
  %v9651 = vadd.f32 0.0, %v9650
  %9652 = vmatmul.bf16.gmra.mxu0 %v9380
  %v9653 = vpop.f32.mrf.mxu0
  %v9654 = vadd.f32 0.0, %v9653
  %v9655 = vpop.f32.mrf.mxu0
  %v9656 = vadd.f32 0.0, %v9655
  %9657 = vmatmul.bf16.gmra.mxu0 %v9382
  %v9658 = vpop.f32.mrf.mxu0
  %v9659 = vadd.f32 0.0, %v9658
  %v9660 = vpop.f32.mrf.mxu0
  %v9661 = vadd.f32 0.0, %v9660
  %9662 = vmatmul.bf16.gmra.mxu0 %v9384
  %v9663 = vpop.f32.mrf.mxu0
  %v9664 = vadd.f32 0.0, %v9663
  %v9665 = vpop.f32.mrf.mxu0
  %v9666 = vadd.f32 0.0, %v9665
  %9667 = vmatmul.bf16.gmra.mxu0 %v9386
  %v9668 = vpop.f32.mrf.mxu0
  %v9669 = vadd.f32 0.0, %v9668
  %v9670 = vpop.f32.mrf.mxu0
  %v9671 = vadd.f32 0.0, %v9670
  %9672 = vmatmul.bf16.gmra.mxu0 %v9385
  %v9673 = vpop.f32.mrf.mxu0
  %v9674 = vadd.f32 0.0, %v9673
  %v9675 = vpop.f32.mrf.mxu0
  %9676 = vdwg.mxu0
  %v9677 = vadd.f32 %v9212, %v9484
  %v9678 = vadd.f32 %v9213, %v9486
  %v9679 = vadd.f32 %v9214, %v9489
  %v9680 = vadd.f32 %v9215, %v9491
  %v9681 = vadd.f32 %v9216, %v9494
  %v9682 = vadd.f32 %v9217, %v9496
  %v9683 = vadd.f32 %v9218, %v9499
  %v9684 = vadd.f32 %v9219, %v9501
  %v9685 = vadd.f32 %v9220, %v9504
  %v9686 = vadd.f32 %v9221, %v9506
  %v9687 = vadd.f32 %v9222, %v9509
  %v9688 = vadd.f32 %v9223, %v9511
  %v9689 = vadd.f32 %v9224, %v9514
  %v9690 = vadd.f32 %v9225, %v9516
  %v9691 = vadd.f32 %v9226, %v9519
  %v9692 = vadd.f32 %v9227, %v9521
  %v9693 = vadd.f32 %v9228, %v9524
  %v9694 = vadd.f32 %v9229, %v9526
  %v9695 = vadd.f32 %v9230, %v9529
  %v9696 = vadd.f32 %v9231, %v9531
  %v9697 = vadd.f32 %v9232, %v9534
  %v9698 = vadd.f32 %v9233, %v9536
  %v9699 = vadd.f32 %v9234, %v9539
  %v9700 = vadd.f32 %v9235, %v9541
  %v9701 = vadd.f32 %v9236, %v9544
  %v9702 = vadd.f32 %v9237, %v9546
  %v9703 = vadd.f32 %v9238, %v9549
  %v9704 = vadd.f32 %v9239, %v9551
  %v9705 = vadd.f32 %v9240, %v9554
  %v9706 = vadd.f32 %v9241, %v9556
  %v9707 = vadd.f32 %v9242, %v9559
  %v9708 = vadd.f32 %v9243, %v9561
  %v9709 = vadd.f32 %v9244, %v9564
  %v9710 = vadd.f32 %v9245, %v9566
  %v9711 = vadd.f32 %v9246, %v9569
  %v9712 = vadd.f32 %v9247, %v9571
  %v9713 = vadd.f32 %v9248, %v9574
  %v9714 = vadd.f32 %v9249, %v9576
  %v9715 = vadd.f32 %v9250, %v9579
  %v9716 = vadd.f32 %v9251, %v9581
  %v9717 = vadd.f32 %v9252, %v9584
  %v9718 = vadd.f32 %v9253, %v9586
  %v9719 = vadd.f32 %v9254, %v9589
  %v9720 = vadd.f32 %v9255, %v9591
  %v9721 = vadd.f32 %v9256, %v9594
  %v9722 = vadd.f32 %v9257, %v9596
  %v9723 = vadd.f32 %v9258, %v9599
  %v9724 = vadd.f32 %v9259, %v9601
  %v9725 = vadd.f32 %v9260, %v9604
  %v9726 = vadd.f32 %v9261, %v9606
  %v9727 = vadd.f32 %v9262, %v9609
  %v9728 = vadd.f32 %v9263, %v9611
  %v9729 = vadd.f32 %v9264, %v9614
  %v9730 = vadd.f32 %v9265, %v9616
  %v9731 = vadd.f32 %v9266, %v9619
  %v9732 = vadd.f32 %v9267, %v9621
  %v9733 = vadd.f32 %v9268, %v9624
  %v9734 = vadd.f32 %v9269, %v9626
  %v9735 = vadd.f32 %v9270, %v9629
  %v9736 = vadd.f32 %v9271, %v9631
  %v9737 = vadd.f32 %v9272, %v9634
  %v9738 = vadd.f32 %v9273, %v9636
  %v9739 = vadd.f32 %v9274, %v9639
  %v9740 = vadd.f32 %v9275, %v9641
  %v9741 = vadd.f32 %v9276, %v9644
  %v9742 = vadd.f32 %v9277, %v9646
  %v9743 = vadd.f32 %v9278, %v9649
  %v9744 = vadd.f32 %v9279, %v9651
  %v9745 = vadd.f32 %v9280, %v9654
  %v9746 = vadd.f32 %v9281, %v9656
  %v9747 = vadd.f32 %v9282, %v9659
  %v9748 = vadd.f32 %v9283, %v9661
  %v9749 = vadd.f32 %v9284, %v9664
  %v9750 = vadd.f32 %v9285, %v9666
  %v9751 = vadd.f32 %v9286, %v9669
  %v9752 = vadd.f32 %v9287, %v9671
  %v9753 = vadd.f32 %v9288, %v9674
  %v9754 = vld [vmem:[#allocation2 + $0x10] sm:$0xc]
  %v9755 = vld [vmem:[#allocation2 + $0x14] sm:$0xf]
  %v9756 = vld [vmem:[#allocation2 + $0x18] sm:$0xf]
  %v9757 = vld [vmem:[#allocation2 + $0x1c] sm:$0xf]
  %v9758 = vld [vmem:[#allocation2 + $0x20] sm:$0xf]
  %v9759 = vld [vmem:[#allocation2 + $0x24] sm:$0xf]
  %v9760 = vld [vmem:[#allocation2 + $0x28] sm:$0xf]
  %v9761 = vld [vmem:[#allocation2 + $0x2c] sm:$0xf]
  %v9762 = vld [vmem:[#allocation2 + $0x30] sm:$0xf]
  %v9763 = vld [vmem:[#allocation2 + $0x34] sm:$0xf]
  %v9764 = vld [vmem:[#allocation2 + $0x38] sm:$0xf]
  %v9765 = vld [vmem:[#allocation2 + $0x3c] sm:$0xf]
  %v9766 = vld [vmem:[#allocation2 + $0x40] sm:$0xf]
  %v9767 = vld [vmem:[#allocation2 + $0x44] sm:$0xf]
  %v9768 = vld [vmem:[#allocation2 + $0x48] sm:$0xf]
  %v9769 = vld [vmem:[#allocation2 + $0x4c] sm:$0xf]
  %v9770 = vld [vmem:[#allocation2 + $0x50] sm:$0xf]
  %v9771 = vld [vmem:[#allocation2 + $0x54] sm:$0xf]
  %v9772 = vld [vmem:[#allocation2 + $0x58] sm:$0xf]
  %v9773 = vld [vmem:[#allocation2 + $0x5c] sm:$0xf]
  %v9774 = vld [vmem:[#allocation2 + $0x60] sm:$0xf]
  %v9775 = vld [vmem:[#allocation2 + $0x64] sm:$0xf]
  %v9776 = vld [vmem:[#allocation2 + $0x68] sm:$0xf]
  %v9777 = vld [vmem:[#allocation2 + $0x6c] sm:$0xf]
  %v9778 = vld [vmem:[#allocation2 + $0x70] sm:$0xf]
  %v9779 = vld [vmem:[#allocation2 + $0x74] sm:$0xf]
  %v9780 = vld [vmem:[#allocation2 + $0x78] sm:$0xf]
  %v9781 = vld [vmem:[#allocation2 + $0x7c] sm:$0xf]
  %v9782 = vld [vmem:[#allocation2 + $0x80] sm:$0xf]
  %v9783 = vld [vmem:[#allocation2 + $0x84] sm:$0xf]
  %v9784 = vld [vmem:[#allocation2 + $0x88] sm:$0xf]
  %v9785 = vld [vmem:[#allocation2 + $0x8c] sm:$0xf]
  %v9786 = vld [vmem:[#allocation2 + $0x90] sm:$0xf]
  %v9787 = vld [vmem:[#allocation2 + $0x94] sm:$0xf]
  %v9788 = vld [vmem:[#allocation2 + $0x98] sm:$0xf]
  %v9789 = vld [vmem:[#allocation2 + $0x9c] sm:$0xf]
  %v9790 = vld [vmem:[#allocation2 + $0xa0] sm:$0xf]
  %v9791 = vld [vmem:[#allocation2 + $0xa4] sm:$0xf]
  %v9792 = vld [vmem:[#allocation2 + $0xa8] sm:$0xf]
  %v9793 = vld [vmem:[#allocation2 + $0xac] sm:$0xf]
  %v9794 = vld [vmem:[#allocation2 + $0xb0] sm:$0xf]
  %v9795 = vld [vmem:[#allocation2 + $0xb4] sm:$0xf]
  %v9796 = vld [vmem:[#allocation2 + $0xb8] sm:$0xf]
  %v9797 = vld [vmem:[#allocation2 + $0xbc] sm:$0xf]
  %v9798 = vld [vmem:[#allocation2 + $0xc0] sm:$0xf]
  %v9799 = vld [vmem:[#allocation2 + $0xc4] sm:$0xf]
  %v9800 = vld [vmem:[#allocation2 + $0xc8] sm:$0xf]
  %v9801 = vld [vmem:[#allocation2 + $0xcc] sm:$0xf]
  %v9802 = vld [vmem:[#allocation2 + $0xd0] sm:$0xf]
  %v9803 = vld [vmem:[#allocation2 + $0xd4] sm:$0xf]
  %v9804 = vld [vmem:[#allocation2 + $0xd8] sm:$0xf]
  %v9805 = vld [vmem:[#allocation2 + $0xdc] sm:$0xf]
  %v9806 = vld [vmem:[#allocation2 + $0xe0] sm:$0xf]
  %v9807 = vld [vmem:[#allocation2 + $0xe4] sm:$0xf]
  %v9808 = vld [vmem:[#allocation2 + $0xe8] sm:$0xf]
  %v9809 = vld [vmem:[#allocation2 + $0xec] sm:$0xf]
  %v9810 = vld [vmem:[#allocation2 + $0xf0] sm:$0xf]
  %v9811 = vld [vmem:[#allocation2 + $0xf4] sm:$0xf]
  %v9812 = vld [vmem:[#allocation2 + $0xf8] sm:$0xf]
  %v9813 = vld [vmem:[#allocation2 + $0xfc] sm:$0xf]
  %v9814 = vld [vmem:[#allocation2 + $0x100] sm:$0xf]
  %v9815 = vld [vmem:[#allocation2 + $0x104] sm:$0xf]
  %v9816 = vld [vmem:[#allocation2 + $0x108] sm:$0xf]
  %v9817 = vld [vmem:[#allocation2 + $0x10c] sm:$0xf]
  %v9818 = vld [vmem:[#allocation2 + $0x110] sm:$0xf]
  %v9819 = vld [vmem:[#allocation2 + $0x114] sm:$0xf]
  %v9820 = vld [vmem:[#allocation2 + $0x118] sm:$0xf]
  %v9821 = vld [vmem:[#allocation2 + $0x11c] sm:$0xf]
  %v9822 = vld [vmem:[#allocation2 + $0x120] sm:$0xf]
  %v9823 = vld [vmem:[#allocation2 + $0x124] sm:$0xf]
  %v9824 = vld [vmem:[#allocation2 + $0x128] sm:$0xf]
  %v9825 = vld [vmem:[#allocation2 + $0x12c] sm:$0xf]
  %v9826 = vld [vmem:[#allocation2 + $0x130] sm:$0xf]
  %v9827 = vld [vmem:[#allocation2 + $0x134] sm:$0xf]
  %v9828 = vld [vmem:[#allocation2 + $0x138] sm:$0xf]
  %v9829 = vld [vmem:[#allocation2 + $0x13c] sm:$0xf]
  %v9830 = vld [vmem:[#allocation2 + $0x140] sm:$0xf]
  %v9831 = vld [vmem:[#allocation2 + $0x144] sm:$0x3]
  %v9832 = vld [vmem:[%s2 + $0x180] sm:$0xf]
  %v9833 = vld [vmem:[%s2 + $0x184] sm:$0xf]
  %v9834 = vld [vmem:[%s2 + $0x188] sm:$0xf]
  %v9835 = vld [vmem:[%s2 + $0x18c] sm:$0xf]
  %v9836 = vld [vmem:[%s2 + $0x190] sm:$0xf]
  %v9837 = vld [vmem:[%s2 + $0x194] sm:$0xf]
  %v9838 = vld [vmem:[%s2 + $0x198] sm:$0xf]
  %v9839 = vld [vmem:[%s2 + $0x19c] sm:$0xf]
  %v9840 = vld [vmem:[%s2 + $0x1a0] sm:$0xf]
  %v9841 = vld [vmem:[%s2 + $0x1a4] sm:$0xf]
  %v9842 = vld [vmem:[%s2 + $0x1a8] sm:$0xf]
  %v9843 = vld [vmem:[%s2 + $0x1ac] sm:$0xf]
  %v9844 = vld [vmem:[%s2 + $0x1b0] sm:$0xf]
  %v9845 = vld [vmem:[%s2 + $0x1b4] sm:$0xf]
  %v9846 = vld [vmem:[%s2 + $0x1b8] sm:$0xf]
  %v9847 = vld [vmem:[%s2 + $0x1bc] sm:$0xf]
  %v9926 = vunpack.c.l.b16 %v9754
  %v9927 = vunpack.c.l.b16 %v9755
  %v9928 = vunpack.c.l.b16 %v9756
  %v9929 = vunpack.c.l.b16 %v9757
  %v9930 = vunpack.c.l.b16 %v9758
  %v9931 = vunpack.c.l.b16 %v9759
  %v9932 = vunpack.c.l.b16 %v9760
  %v9933 = vunpack.c.l.b16 %v9761
  %v9934 = vunpack.c.l.b16 %v9762
  %v9935 = vunpack.c.l.b16 %v9763
  %v9936 = vunpack.c.l.b16 %v9764
  %v9937 = vunpack.c.l.b16 %v9765
  %v9938 = vunpack.c.l.b16 %v9766
  %v9939 = vunpack.c.l.b16 %v9767
  %v9940 = vunpack.c.l.b16 %v9768
  %v9941 = vunpack.c.l.b16 %v9769
  %v9942 = vunpack.c.l.b16 %v9770
  %v9943 = vunpack.c.l.b16 %v9771
  %v9944 = vunpack.c.l.b16 %v9772
  %v9945 = vunpack.c.l.b16 %v9773
  %v9946 = vunpack.c.l.b16 %v9774
  %v9947 = vunpack.c.l.b16 %v9775
  %v9948 = vunpack.c.l.b16 %v9776
  %v9949 = vunpack.c.l.b16 %v9777
  %v9950 = vunpack.c.l.b16 %v9778
  %v9951 = vunpack.c.l.b16 %v9779
  %v9952 = vunpack.c.l.b16 %v9780
  %v9953 = vunpack.c.l.b16 %v9781
  %v9954 = vunpack.c.l.b16 %v9782
  %v9955 = vunpack.c.l.b16 %v9783
  %v9956 = vunpack.c.l.b16 %v9784
  %v9957 = vunpack.c.l.b16 %v9785
  %v9958 = vunpack.c.l.b16 %v9786
  %v9959 = vunpack.c.l.b16 %v9787
  %v9960 = vunpack.c.l.b16 %v9788
  %v9961 = vunpack.c.l.b16 %v9789
  %v9962 = vunpack.c.l.b16 %v9790
  %v9963 = vunpack.c.l.b16 %v9791
  %v9964 = vunpack.c.l.b16 %v9792
  %v9965 = vunpack.c.l.b16 %v9793
  %v9966 = vunpack.c.l.b16 %v9794
  %v9967 = vunpack.c.l.b16 %v9795
  %v9968 = vunpack.c.l.b16 %v9796
  %v9969 = vunpack.c.l.b16 %v9797
  %v9970 = vunpack.c.l.b16 %v9798
  %v9971 = vunpack.c.l.b16 %v9799
  %v9972 = vunpack.c.l.b16 %v9800
  %v9973 = vunpack.c.l.b16 %v9801
  %v9974 = vunpack.c.l.b16 %v9802
  %v9975 = vunpack.c.l.b16 %v9803
  %v9976 = vunpack.c.l.b16 %v9804
  %v9977 = vunpack.c.l.b16 %v9805
  %v9978 = vunpack.c.l.b16 %v9806
  %v9979 = vunpack.c.l.b16 %v9807
  %v9980 = vunpack.c.l.b16 %v9808
  %v9981 = vunpack.c.l.b16 %v9809
  %v9982 = vunpack.c.l.b16 %v9810
  %v9983 = vunpack.c.l.b16 %v9811
  %v9984 = vunpack.c.l.b16 %v9812
  %v9985 = vunpack.c.l.b16 %v9813
  %v9986 = vunpack.c.l.b16 %v9814
  %v9987 = vunpack.c.l.b16 %v9815
  %v9988 = vunpack.c.l.b16 %v9816
  %v9989 = vunpack.c.l.b16 %v9817
  %v9990 = vunpack.c.l.b16 %v9818
  %v9991 = vunpack.c.l.b16 %v9819
  %v9992 = vunpack.c.l.b16 %v9820
  %v9993 = vunpack.c.l.b16 %v9821
  %v9994 = vunpack.c.l.b16 %v9822
  %v9995 = vunpack.c.l.b16 %v9823
  %v9996 = vunpack.c.l.b16 %v9824
  %v9997 = vunpack.c.l.b16 %v9825
  %v9998 = vunpack.c.l.b16 %v9826
  %v9999 = vunpack.c.l.b16 %v9827
  %v10000 = vunpack.c.l.b16 %v9828
  %v10001 = vunpack.c.l.b16 %v9829
  %v10002 = vunpack.c.l.b16 %v9830
  %v10003 = vunpack.c.l.b16 %v9831
  %v10004 = vpack.c.b16 %v9927, %v9926
  %v10005 = vpack.c.b16 %v9929, %v9928
  %v10006 = vpack.c.b16 %v9931, %v9930
  %v10007 = vpack.c.b16 %v9933, %v9932
  %v10008 = vpack.c.b16 %v9935, %v9934
  %v10009 = vpack.c.b16 %v9937, %v9936
  %v10010 = vpack.c.b16 %v9939, %v9938
  %v10011 = vpack.c.b16 %v9941, %v9940
  %v10012 = vpack.c.b16 %v9943, %v9942
  %v10013 = vpack.c.b16 %v9945, %v9944
  %v10014 = vpack.c.b16 %v9947, %v9946
  %v10015 = vpack.c.b16 %v9949, %v9948
  %v10016 = vpack.c.b16 %v9951, %v9950
  %v10017 = vpack.c.b16 %v9953, %v9952
  %v10018 = vpack.c.b16 %v9955, %v9954
  %v10019 = vpack.c.b16 %v9957, %v9956
  %v10020 = vpack.c.b16 %v9959, %v9958
  %v10021 = vpack.c.b16 %v9961, %v9960
  %v10022 = vpack.c.b16 %v9963, %v9962
  %v10023 = vpack.c.b16 %v9965, %v9964
  %v10024 = vpack.c.b16 %v9967, %v9966
  %v10025 = vpack.c.b16 %v9969, %v9968
  %v10026 = vpack.c.b16 %v9971, %v9970
  %v10027 = vpack.c.b16 %v9973, %v9972
  %v10028 = vpack.c.b16 %v9975, %v9974
  %v10029 = vpack.c.b16 %v9977, %v9976
  %v10030 = vpack.c.b16 %v9979, %v9978
  %v10031 = vpack.c.b16 %v9981, %v9980
  %v10032 = vpack.c.b16 %v9983, %v9982
  %v10033 = vpack.c.b16 %v9985, %v9984
  %v10034 = vpack.c.b16 %v9987, %v9986
  %v10035 = vpack.c.b16 %v9989, %v9988
  %v10036 = vpack.c.b16 %v9991, %v9990
  %v10037 = vpack.c.b16 %v9993, %v9992
  %v10038 = vpack.c.b16 %v9995, %v9994
  %v10039 = vpack.c.b16 %v9997, %v9996
  %v10040 = vpack.c.b16 %v9999, %v9998
  %v10041 = vpack.c.b16 %v10001, %v10000
  %v10042 = vpack.c.b16 %v10003, %v10002
  %v10043 = vrot.slane %v10004, 2
  %v10044 = vrot.slane %v10005, 2
  %v10045 = vsel %vm9309, %v10043, %v10044
  %v10046 = vrot.slane %v10006, 2
  %v10047 = vsel %vm9309, %v10044, %v10046
  %v10048 = vrot.slane %v10007, 2
  %v10049 = vsel %vm9309, %v10046, %v10048
  %v10050 = vrot.slane %v10008, 2
  %v10051 = vsel %vm9309, %v10048, %v10050
  %v10052 = vrot.slane %v10009, 2
  %v10053 = vsel %vm9309, %v10050, %v10052
  %v10054 = vrot.slane %v10010, 2
  %v10055 = vsel %vm9309, %v10052, %v10054
  %v10056 = vrot.slane %v10011, 2
  %v10057 = vsel %vm9309, %v10054, %v10056
  %v10058 = vrot.slane %v10012, 2
  %v10059 = vsel %vm9309, %v10056, %v10058
  %v10060 = vrot.slane %v10013, 2
  %v10061 = vsel %vm9309, %v10058, %v10060
  %v10062 = vrot.slane %v10014, 2
  %v10063 = vsel %vm9309, %v10060, %v10062
  %v10064 = vrot.slane %v10015, 2
  %v10065 = vsel %vm9309, %v10062, %v10064
  %v10066 = vrot.slane %v10016, 2
  %v10067 = vsel %vm9309, %v10064, %v10066
  %v10068 = vrot.slane %v10017, 2
  %v10069 = vsel %vm9309, %v10066, %v10068
  %v10070 = vrot.slane %v10018, 2
  %v10071 = vsel %vm9309, %v10068, %v10070
  %v10072 = vrot.slane %v10019, 2
  %v10073 = vsel %vm9309, %v10070, %v10072
  %v10074 = vrot.slane %v10020, 2
  %v10075 = vsel %vm9309, %v10072, %v10074
  %v10076 = vrot.slane %v10021, 2
  %v10077 = vsel %vm9309, %v10074, %v10076
  %v10078 = vrot.slane %v10022, 2
  %v10079 = vsel %vm9309, %v10076, %v10078
  %v10080 = vrot.slane %v10023, 2
  %v10081 = vsel %vm9309, %v10078, %v10080
  %v10082 = vrot.slane %v10024, 2
  %v10083 = vsel %vm9309, %v10080, %v10082
  %v10084 = vrot.slane %v10025, 2
  %v10085 = vsel %vm9309, %v10082, %v10084
  %v10086 = vrot.slane %v10026, 2
  %v10087 = vsel %vm9309, %v10084, %v10086
  %v10088 = vrot.slane %v10027, 2
  %v10089 = vsel %vm9309, %v10086, %v10088
  %v10090 = vrot.slane %v10028, 2
  %v10091 = vsel %vm9309, %v10088, %v10090
  %v10092 = vrot.slane %v10029, 2
  %v10093 = vsel %vm9309, %v10090, %v10092
  %v10094 = vrot.slane %v10030, 2
  %v10095 = vsel %vm9309, %v10092, %v10094
  %v10096 = vrot.slane %v10031, 2
  %v10097 = vsel %vm9309, %v10094, %v10096
  %v10098 = vrot.slane %v10032, 2
  %v10099 = vsel %vm9309, %v10096, %v10098
  %v10100 = vrot.slane %v10033, 2
  %v10101 = vsel %vm9309, %v10098, %v10100
  %v10102 = vrot.slane %v10034, 2
  %v10103 = vsel %vm9309, %v10100, %v10102
  %v10104 = vrot.slane %v10035, 2
  %v10105 = vsel %vm9309, %v10102, %v10104
  %v10106 = vrot.slane %v10036, 2
  %v10107 = vsel %vm9309, %v10104, %v10106
  %v10108 = vrot.slane %v10037, 2
  %v10109 = vsel %vm9309, %v10106, %v10108
  %v10110 = vrot.slane %v10038, 2
  %v10111 = vsel %vm9309, %v10108, %v10110
  %v10112 = vrot.slane %v10039, 2
  %v10113 = vsel %vm9309, %v10110, %v10112
  %v10114 = vrot.slane %v10040, 2
  %v10115 = vsel %vm9309, %v10112, %v10114
  %v10116 = vrot.slane %v10041, 2
  %v10117 = vsel %vm9309, %v10114, %v10116
  %v10118 = vrot.slane %v10042, 2
  %v10119 = vsel %vm9309, %v10116, %v10118
  %v10175 = vunpack.c.l.b16 %v9832
  %v10176 = vunpack.c.l.b16 %v9833
  %v10177 = vunpack.c.l.b16 %v9834
  %v10178 = vunpack.c.l.b16 %v9835
  %v10179 = vunpack.c.l.b16 %v9836
  %v10180 = vunpack.c.l.b16 %v9837
  %v10181 = vunpack.c.l.b16 %v9838
  %v10182 = vunpack.c.l.b16 %v9839
  %v10183 = vunpack.c.l.b16 %v9840
  %v10184 = vunpack.c.l.b16 %v9841
  %v10185 = vunpack.c.l.b16 %v9842
  %v10186 = vunpack.c.l.b16 %v9843
  %v10187 = vunpack.c.l.b16 %v9844
  %v10188 = vunpack.c.l.b16 %v9845
  %v10189 = vunpack.c.l.b16 %v9846
  %v10190 = vunpack.c.l.b16 %v9847
  %v10191 = vpack.c.b16 %v10176, %v10175
  %v10192 = vpack.c.b16 %v10178, %v10177
  %v10193 = vpack.c.b16 %v10180, %v10179
  %v10194 = vpack.c.b16 %v10182, %v10181
  %v10195 = vpack.c.b16 %v10184, %v10183
  %v10196 = vpack.c.b16 %v10186, %v10185
  %v10197 = vpack.c.b16 %v10188, %v10187
  %v10198 = vpack.c.b16 %v10190, %v10189
  %10207 = vmatpush.bf16.msra.mxu0 %v10198
  %10208 = vmatpush.bf16.msra.mxu0 %v10197
  %10209 = vmatpush.bf16.msra.mxu0 %v10196
  %10210 = vmatpush.bf16.msra.mxu0 %v10195
  %10211 = vmatpush.bf16.msra.mxu0 %v10194
  %10212 = vmatpush.bf16.msra.mxu0 %v10193
  %10213 = vmatpush.bf16.msra.mxu0 %v10192
  %10214 = vmatpush.bf16.msra.mxu0 %v10191
  %10215 = vmatmul.bf16.gmra.mxu0 %v10045
  %v10216 = vpop.f32.mrf.mxu0
  %v10217 = vadd.f32 0.0, %v10216
  %v10218 = vpop.f32.mrf.mxu0
  %v10219 = vadd.f32 0.0, %v10218
  %10220 = vmatmul.bf16.gmra.mxu0 %v10047
  %v10221 = vpop.f32.mrf.mxu0
  %v10222 = vadd.f32 0.0, %v10221
  %v10223 = vpop.f32.mrf.mxu0
  %v10224 = vadd.f32 0.0, %v10223
  %10225 = vmatmul.bf16.gmra.mxu0 %v10049
  %v10226 = vpop.f32.mrf.mxu0
  %v10227 = vadd.f32 0.0, %v10226
  %v10228 = vpop.f32.mrf.mxu0
  %v10229 = vadd.f32 0.0, %v10228
  %10230 = vmatmul.bf16.gmra.mxu0 %v10051
  %v10231 = vpop.f32.mrf.mxu0
  %v10232 = vadd.f32 0.0, %v10231
  %v10233 = vpop.f32.mrf.mxu0
  %v10234 = vadd.f32 0.0, %v10233
  %10235 = vmatmul.bf16.gmra.mxu0 %v10053
  %v10236 = vpop.f32.mrf.mxu0
  %v10237 = vadd.f32 0.0, %v10236
  %v10238 = vpop.f32.mrf.mxu0
  %v10239 = vadd.f32 0.0, %v10238
  %10240 = vmatmul.bf16.gmra.mxu0 %v10055
  %v10241 = vpop.f32.mrf.mxu0
  %v10242 = vadd.f32 0.0, %v10241
  %v10243 = vpop.f32.mrf.mxu0
  %v10244 = vadd.f32 0.0, %v10243
  %10245 = vmatmul.bf16.gmra.mxu0 %v10057
  %v10246 = vpop.f32.mrf.mxu0
  %v10247 = vadd.f32 0.0, %v10246
  %v10248 = vpop.f32.mrf.mxu0
  %v10249 = vadd.f32 0.0, %v10248
  %10250 = vmatmul.bf16.gmra.mxu0 %v10059
  %v10251 = vpop.f32.mrf.mxu0
  %v10252 = vadd.f32 0.0, %v10251
  %v10253 = vpop.f32.mrf.mxu0
  %v10254 = vadd.f32 0.0, %v10253
  %10255 = vmatmul.bf16.gmra.mxu0 %v10061
  %v10256 = vpop.f32.mrf.mxu0
  %v10257 = vadd.f32 0.0, %v10256
  %v10258 = vpop.f32.mrf.mxu0
  %v10259 = vadd.f32 0.0, %v10258
  %10260 = vmatmul.bf16.gmra.mxu0 %v10063
  %v10261 = vpop.f32.mrf.mxu0
  %v10262 = vadd.f32 0.0, %v10261
  %v10263 = vpop.f32.mrf.mxu0
  %v10264 = vadd.f32 0.0, %v10263
  %10265 = vmatmul.bf16.gmra.mxu0 %v10065
  %v10266 = vpop.f32.mrf.mxu0
  %v10267 = vadd.f32 0.0, %v10266
  %v10268 = vpop.f32.mrf.mxu0
  %v10269 = vadd.f32 0.0, %v10268
  %10270 = vmatmul.bf16.gmra.mxu0 %v10067
  %v10271 = vpop.f32.mrf.mxu0
  %v10272 = vadd.f32 0.0, %v10271
  %v10273 = vpop.f32.mrf.mxu0
  %v10274 = vadd.f32 0.0, %v10273
  %10275 = vmatmul.bf16.gmra.mxu0 %v10069
  %v10276 = vpop.f32.mrf.mxu0
  %v10277 = vadd.f32 0.0, %v10276
  %v10278 = vpop.f32.mrf.mxu0
  %v10279 = vadd.f32 0.0, %v10278
  %10280 = vmatmul.bf16.gmra.mxu0 %v10071
  %v10281 = vpop.f32.mrf.mxu0
  %v10282 = vadd.f32 0.0, %v10281
  %v10283 = vpop.f32.mrf.mxu0
  %v10284 = vadd.f32 0.0, %v10283
  %10285 = vmatmul.bf16.gmra.mxu0 %v10073
  %v10286 = vpop.f32.mrf.mxu0
  %v10287 = vadd.f32 0.0, %v10286
  %v10288 = vpop.f32.mrf.mxu0
  %v10289 = vadd.f32 0.0, %v10288
  %10290 = vmatmul.bf16.gmra.mxu0 %v10075
  %v10291 = vpop.f32.mrf.mxu0
  %v10292 = vadd.f32 0.0, %v10291
  %v10293 = vpop.f32.mrf.mxu0
  %v10294 = vadd.f32 0.0, %v10293
  %10295 = vmatmul.bf16.gmra.mxu0 %v10077
  %v10296 = vpop.f32.mrf.mxu0
  %v10297 = vadd.f32 0.0, %v10296
  %v10298 = vpop.f32.mrf.mxu0
  %v10299 = vadd.f32 0.0, %v10298
  %10300 = vmatmul.bf16.gmra.mxu0 %v10079
  %v10301 = vpop.f32.mrf.mxu0
  %v10302 = vadd.f32 0.0, %v10301
  %v10303 = vpop.f32.mrf.mxu0
  %v10304 = vadd.f32 0.0, %v10303
  %10305 = vmatmul.bf16.gmra.mxu0 %v10081
  %v10306 = vpop.f32.mrf.mxu0
  %v10307 = vadd.f32 0.0, %v10306
  %v10308 = vpop.f32.mrf.mxu0
  %v10309 = vadd.f32 0.0, %v10308
  %10310 = vmatmul.bf16.gmra.mxu0 %v10083
  %v10311 = vpop.f32.mrf.mxu0
  %v10312 = vadd.f32 0.0, %v10311
  %v10313 = vpop.f32.mrf.mxu0
  %v10314 = vadd.f32 0.0, %v10313
  %10315 = vmatmul.bf16.gmra.mxu0 %v10085
  %v10316 = vpop.f32.mrf.mxu0
  %v10317 = vadd.f32 0.0, %v10316
  %v10318 = vpop.f32.mrf.mxu0
  %v10319 = vadd.f32 0.0, %v10318
  %10320 = vmatmul.bf16.gmra.mxu0 %v10087
  %v10321 = vpop.f32.mrf.mxu0
  %v10322 = vadd.f32 0.0, %v10321
  %v10323 = vpop.f32.mrf.mxu0
  %v10324 = vadd.f32 0.0, %v10323
  %10325 = vmatmul.bf16.gmra.mxu0 %v10089
  %v10326 = vpop.f32.mrf.mxu0
  %v10327 = vadd.f32 0.0, %v10326
  %v10328 = vpop.f32.mrf.mxu0
  %v10329 = vadd.f32 0.0, %v10328
  %10330 = vmatmul.bf16.gmra.mxu0 %v10091
  %v10331 = vpop.f32.mrf.mxu0
  %v10332 = vadd.f32 0.0, %v10331
  %v10333 = vpop.f32.mrf.mxu0
  %v10334 = vadd.f32 0.0, %v10333
  %10335 = vmatmul.bf16.gmra.mxu0 %v10093
  %v10336 = vpop.f32.mrf.mxu0
  %v10337 = vadd.f32 0.0, %v10336
  %v10338 = vpop.f32.mrf.mxu0
  %v10339 = vadd.f32 0.0, %v10338
  %10340 = vmatmul.bf16.gmra.mxu0 %v10095
  %v10341 = vpop.f32.mrf.mxu0
  %v10342 = vadd.f32 0.0, %v10341
  %v10343 = vpop.f32.mrf.mxu0
  %v10344 = vadd.f32 0.0, %v10343
  %10345 = vmatmul.bf16.gmra.mxu0 %v10097
  %v10346 = vpop.f32.mrf.mxu0
  %v10347 = vadd.f32 0.0, %v10346
  %v10348 = vpop.f32.mrf.mxu0
  %v10349 = vadd.f32 0.0, %v10348
  %10350 = vmatmul.bf16.gmra.mxu0 %v10099
  %v10351 = vpop.f32.mrf.mxu0
  %v10352 = vadd.f32 0.0, %v10351
  %v10353 = vpop.f32.mrf.mxu0
  %v10354 = vadd.f32 0.0, %v10353
  %10355 = vmatmul.bf16.gmra.mxu0 %v10101
  %v10356 = vpop.f32.mrf.mxu0
  %v10357 = vadd.f32 0.0, %v10356
  %v10358 = vpop.f32.mrf.mxu0
  %v10359 = vadd.f32 0.0, %v10358
  %10360 = vmatmul.bf16.gmra.mxu0 %v10103
  %v10361 = vpop.f32.mrf.mxu0
  %v10362 = vadd.f32 0.0, %v10361
  %v10363 = vpop.f32.mrf.mxu0
  %v10364 = vadd.f32 0.0, %v10363
  %10365 = vmatmul.bf16.gmra.mxu0 %v10105
  %v10366 = vpop.f32.mrf.mxu0
  %v10367 = vadd.f32 0.0, %v10366
  %v10368 = vpop.f32.mrf.mxu0
  %v10369 = vadd.f32 0.0, %v10368
  %10370 = vmatmul.bf16.gmra.mxu0 %v10107
  %v10371 = vpop.f32.mrf.mxu0
  %v10372 = vadd.f32 0.0, %v10371
  %v10373 = vpop.f32.mrf.mxu0
  %v10374 = vadd.f32 0.0, %v10373
  %10375 = vmatmul.bf16.gmra.mxu0 %v10109
  %v10376 = vpop.f32.mrf.mxu0
  %v10377 = vadd.f32 0.0, %v10376
  %v10378 = vpop.f32.mrf.mxu0
  %v10379 = vadd.f32 0.0, %v10378
  %10380 = vmatmul.bf16.gmra.mxu0 %v10111
  %v10381 = vpop.f32.mrf.mxu0
  %v10382 = vadd.f32 0.0, %v10381
  %v10383 = vpop.f32.mrf.mxu0
  %v10384 = vadd.f32 0.0, %v10383
  %10385 = vmatmul.bf16.gmra.mxu0 %v10113
  %v10386 = vpop.f32.mrf.mxu0
  %v10387 = vadd.f32 0.0, %v10386
  %v10388 = vpop.f32.mrf.mxu0
  %v10389 = vadd.f32 0.0, %v10388
  %10390 = vmatmul.bf16.gmra.mxu0 %v10115
  %v10391 = vpop.f32.mrf.mxu0
  %v10392 = vadd.f32 0.0, %v10391
  %v10393 = vpop.f32.mrf.mxu0
  %v10394 = vadd.f32 0.0, %v10393
  %10395 = vmatmul.bf16.gmra.mxu0 %v10117
  %v10396 = vpop.f32.mrf.mxu0
  %v10397 = vadd.f32 0.0, %v10396
  %v10398 = vpop.f32.mrf.mxu0
  %v10399 = vadd.f32 0.0, %v10398
  %10400 = vmatmul.bf16.gmra.mxu0 %v10119
  %v10401 = vpop.f32.mrf.mxu0
  %v10402 = vadd.f32 0.0, %v10401
  %v10403 = vpop.f32.mrf.mxu0
  %v10404 = vadd.f32 0.0, %v10403
  %10405 = vmatmul.bf16.gmra.mxu0 %v10118
  %v10406 = vpop.f32.mrf.mxu0
  %v10407 = vadd.f32 0.0, %v10406
  %v10408 = vpop.f32.mrf.mxu0
  %10409 = vdwg.mxu0
  %v10410 = vadd.f32 %v9677, %v10217
  %v10411 = vadd.f32 %v9678, %v10219
  %v10412 = vadd.f32 %v9679, %v10222
  %v10413 = vadd.f32 %v9680, %v10224
  %v10414 = vadd.f32 %v9681, %v10227
  %v10415 = vadd.f32 %v9682, %v10229
  %v10416 = vadd.f32 %v9683, %v10232
  %v10417 = vadd.f32 %v9684, %v10234
  %v10418 = vadd.f32 %v9685, %v10237
  %v10419 = vadd.f32 %v9686, %v10239
  %v10420 = vadd.f32 %v9687, %v10242
  %v10421 = vadd.f32 %v9688, %v10244
  %v10422 = vadd.f32 %v9689, %v10247
  %v10423 = vadd.f32 %v9690, %v10249
  %v10424 = vadd.f32 %v9691, %v10252
  %v10425 = vadd.f32 %v9692, %v10254
  %v10426 = vadd.f32 %v9693, %v10257
  %v10427 = vadd.f32 %v9694, %v10259
  %v10428 = vadd.f32 %v9695, %v10262
  %v10429 = vadd.f32 %v9696, %v10264
  %v10430 = vadd.f32 %v9697, %v10267
  %v10431 = vadd.f32 %v9698, %v10269
  %v10432 = vadd.f32 %v9699, %v10272
  %v10433 = vadd.f32 %v9700, %v10274
  %v10434 = vadd.f32 %v9701, %v10277
  %v10435 = vadd.f32 %v9702, %v10279
  %v10436 = vadd.f32 %v9703, %v10282
  %v10437 = vadd.f32 %v9704, %v10284
  %v10438 = vadd.f32 %v9705, %v10287
  %v10439 = vadd.f32 %v9706, %v10289
  %v10440 = vadd.f32 %v9707, %v10292
  %v10441 = vadd.f32 %v9708, %v10294
  %v10442 = vadd.f32 %v9709, %v10297
  %v10443 = vadd.f32 %v9710, %v10299
  %v10444 = vadd.f32 %v9711, %v10302
  %v10445 = vadd.f32 %v9712, %v10304
  %v10446 = vadd.f32 %v9713, %v10307
  %v10447 = vadd.f32 %v9714, %v10309
  %v10448 = vadd.f32 %v9715, %v10312
  %v10449 = vadd.f32 %v9716, %v10314
  %v10450 = vadd.f32 %v9717, %v10317
  %v10451 = vadd.f32 %v9718, %v10319
  %v10452 = vadd.f32 %v9719, %v10322
  %v10453 = vadd.f32 %v9720, %v10324
  %v10454 = vadd.f32 %v9721, %v10327
  %v10455 = vadd.f32 %v9722, %v10329
  %v10456 = vadd.f32 %v9723, %v10332
  %v10457 = vadd.f32 %v9724, %v10334
  %v10458 = vadd.f32 %v9725, %v10337
  %v10459 = vadd.f32 %v9726, %v10339
  %v10460 = vadd.f32 %v9727, %v10342
  %v10461 = vadd.f32 %v9728, %v10344
  %v10462 = vadd.f32 %v9729, %v10347
  %v10463 = vadd.f32 %v9730, %v10349
  %v10464 = vadd.f32 %v9731, %v10352
  %v10465 = vadd.f32 %v9732, %v10354
  %v10466 = vadd.f32 %v9733, %v10357
  %v10467 = vadd.f32 %v9734, %v10359
  %v10468 = vadd.f32 %v9735, %v10362
  %v10469 = vadd.f32 %v9736, %v10364
  %v10470 = vadd.f32 %v9737, %v10367
  %v10471 = vadd.f32 %v9738, %v10369
  %v10472 = vadd.f32 %v9739, %v10372
  %v10473 = vadd.f32 %v9740, %v10374
  %v10474 = vadd.f32 %v9741, %v10377
  %v10475 = vadd.f32 %v9742, %v10379
  %v10476 = vadd.f32 %v9743, %v10382
  %v10477 = vadd.f32 %v9744, %v10384
  %v10478 = vadd.f32 %v9745, %v10387
  %v10479 = vadd.f32 %v9746, %v10389
  %v10480 = vadd.f32 %v9747, %v10392
  %v10481 = vadd.f32 %v9748, %v10394
  %v10482 = vadd.f32 %v9749, %v10397
  %v10483 = vadd.f32 %v9750, %v10399
  %v10484 = vadd.f32 %v9751, %v10402
  %v10485 = vadd.f32 %v9752, %v10404
  %v10486 = vadd.f32 %v9753, %v10407
  %v10487 = vld [vmem:[#allocation2 + $0x144] sm:$0x7]
  %v10488 = vld [vmem:[%s2 + $0x1c0] sm:$0xf]
  %v10489 = vld [vmem:[%s2 + $0x1c4] sm:$0xf]
  %v10490 = vld [vmem:[%s2 + $0x1c8] sm:$0xf]
  %v10491 = vld [vmem:[%s2 + $0x1cc] sm:$0xf]
  %v10492 = vld [vmem:[%s2 + $0x1d0] sm:$0xf]
  %v10493 = vld [vmem:[%s2 + $0x1d4] sm:$0xf]
  %v10494 = vld [vmem:[%s2 + $0x1d8] sm:$0xf]
  %v10495 = vld [vmem:[%s2 + $0x1dc] sm:$0xf]
  %v10496 = vld [vmem:[%s2 + $0x1e0] sm:$0xf]
  %v10497 = vld [vmem:[%s2 + $0x1e4] sm:$0xf]
  %v10498 = vld [vmem:[%s2 + $0x1e8] sm:$0xf]
  %v10499 = vld [vmem:[%s2 + $0x1ec] sm:$0xf]
  %v10500 = vld [vmem:[%s2 + $0x1f0] sm:$0xf]
  %v10501 = vld [vmem:[%s2 + $0x1f4] sm:$0xf]
  %v10502 = vld [vmem:[%s2 + $0x1f8] sm:$0xf]
  %v10503 = vld [vmem:[%s2 + $0x1fc] sm:$0xf]
  %v10505 = vunpack.c.l.b16 %v10487
  %v10506 = vpack.c.b16 %v10505, %v10002
  %vm10507 = vsmask.f32 5376
  %v10509 = vshrl.u32 %v10004, 16
  %v10511 = vrot.slane %v10509, 2
  %v10512 = vshll.u32 %v10004, 16
  %v10514 = vrot.slane %v10512, 3
  %v10515 = vor.u32 %v10511, %v10514
  %v10517 = vshrl.u32 %v10005, 16
  %v10519 = vrot.slane %v10517, 2
  %v10520 = vshll.u32 %v10005, 16
  %v10522 = vrot.slane %v10520, 3
  %v10523 = vor.u32 %v10519, %v10522
  %v10524 = vsel %vm10507, %v10515, %v10523
  %v10526 = vshrl.u32 %v10006, 16
  %v10528 = vrot.slane %v10526, 2
  %v10529 = vshll.u32 %v10006, 16
  %v10531 = vrot.slane %v10529, 3
  %v10532 = vor.u32 %v10528, %v10531
  %v10533 = vsel %vm10507, %v10523, %v10532
  %v10535 = vshrl.u32 %v10007, 16
  %v10537 = vrot.slane %v10535, 2
  %v10538 = vshll.u32 %v10007, 16
  %v10540 = vrot.slane %v10538, 3
  %v10541 = vor.u32 %v10537, %v10540
  %v10542 = vsel %vm10507, %v10532, %v10541
  %v10544 = vshrl.u32 %v10008, 16
  %v10546 = vrot.slane %v10544, 2
  %v10547 = vshll.u32 %v10008, 16
  %v10549 = vrot.slane %v10547, 3
  %v10550 = vor.u32 %v10546, %v10549
  %v10551 = vsel %vm10507, %v10541, %v10550
  %v10553 = vshrl.u32 %v10009, 16
  %v10555 = vrot.slane %v10553, 2
  %v10556 = vshll.u32 %v10009, 16
  %v10558 = vrot.slane %v10556, 3
  %v10559 = vor.u32 %v10555, %v10558
  %v10560 = vsel %vm10507, %v10550, %v10559
  %v10562 = vshrl.u32 %v10010, 16
  %v10564 = vrot.slane %v10562, 2
  %v10565 = vshll.u32 %v10010, 16
  %v10567 = vrot.slane %v10565, 3
  %v10568 = vor.u32 %v10564, %v10567
  %v10569 = vsel %vm10507, %v10559, %v10568
  %v10571 = vshrl.u32 %v10011, 16
  %v10573 = vrot.slane %v10571, 2
  %v10574 = vshll.u32 %v10011, 16
  %v10576 = vrot.slane %v10574, 3
  %v10577 = vor.u32 %v10573, %v10576
  %v10578 = vsel %vm10507, %v10568, %v10577
  %v10580 = vshrl.u32 %v10012, 16
  %v10582 = vrot.slane %v10580, 2
  %v10583 = vshll.u32 %v10012, 16
  %v10585 = vrot.slane %v10583, 3
  %v10586 = vor.u32 %v10582, %v10585
  %v10587 = vsel %vm10507, %v10577, %v10586
  %v10589 = vshrl.u32 %v10013, 16
  %v10591 = vrot.slane %v10589, 2
  %v10592 = vshll.u32 %v10013, 16
  %v10594 = vrot.slane %v10592, 3
  %v10595 = vor.u32 %v10591, %v10594
  %v10596 = vsel %vm10507, %v10586, %v10595
  %v10598 = vshrl.u32 %v10014, 16
  %v10600 = vrot.slane %v10598, 2
  %v10601 = vshll.u32 %v10014, 16
  %v10603 = vrot.slane %v10601, 3
  %v10604 = vor.u32 %v10600, %v10603
  %v10605 = vsel %vm10507, %v10595, %v10604
  %v10607 = vshrl.u32 %v10015, 16
  %v10609 = vrot.slane %v10607, 2
  %v10610 = vshll.u32 %v10015, 16
  %v10612 = vrot.slane %v10610, 3
  %v10613 = vor.u32 %v10609, %v10612
  %v10614 = vsel %vm10507, %v10604, %v10613
  %v10616 = vshrl.u32 %v10016, 16
  %v10618 = vrot.slane %v10616, 2
  %v10619 = vshll.u32 %v10016, 16
  %v10621 = vrot.slane %v10619, 3
  %v10622 = vor.u32 %v10618, %v10621
  %v10623 = vsel %vm10507, %v10613, %v10622
  %v10625 = vshrl.u32 %v10017, 16
  %v10627 = vrot.slane %v10625, 2
  %v10628 = vshll.u32 %v10017, 16
  %v10630 = vrot.slane %v10628, 3
  %v10631 = vor.u32 %v10627, %v10630
  %v10632 = vsel %vm10507, %v10622, %v10631
  %v10634 = vshrl.u32 %v10018, 16
  %v10636 = vrot.slane %v10634, 2
  %v10637 = vshll.u32 %v10018, 16
  %v10639 = vrot.slane %v10637, 3
  %v10640 = vor.u32 %v10636, %v10639
  %v10641 = vsel %vm10507, %v10631, %v10640
  %v10643 = vshrl.u32 %v10019, 16
  %v10645 = vrot.slane %v10643, 2
  %v10646 = vshll.u32 %v10019, 16
  %v10648 = vrot.slane %v10646, 3
  %v10649 = vor.u32 %v10645, %v10648
  %v10650 = vsel %vm10507, %v10640, %v10649
  %v10652 = vshrl.u32 %v10020, 16
  %v10654 = vrot.slane %v10652, 2
  %v10655 = vshll.u32 %v10020, 16
  %v10657 = vrot.slane %v10655, 3
  %v10658 = vor.u32 %v10654, %v10657
  %v10659 = vsel %vm10507, %v10649, %v10658
  %v10661 = vshrl.u32 %v10021, 16
  %v10663 = vrot.slane %v10661, 2
  %v10664 = vshll.u32 %v10021, 16
  %v10666 = vrot.slane %v10664, 3
  %v10667 = vor.u32 %v10663, %v10666
  %v10668 = vsel %vm10507, %v10658, %v10667
  %v10670 = vshrl.u32 %v10022, 16
  %v10672 = vrot.slane %v10670, 2
  %v10673 = vshll.u32 %v10022, 16
  %v10675 = vrot.slane %v10673, 3
  %v10676 = vor.u32 %v10672, %v10675
  %v10677 = vsel %vm10507, %v10667, %v10676
  %v10679 = vshrl.u32 %v10023, 16
  %v10681 = vrot.slane %v10679, 2
  %v10682 = vshll.u32 %v10023, 16
  %v10684 = vrot.slane %v10682, 3
  %v10685 = vor.u32 %v10681, %v10684
  %v10686 = vsel %vm10507, %v10676, %v10685
  %v10688 = vshrl.u32 %v10024, 16
  %v10690 = vrot.slane %v10688, 2
  %v10691 = vshll.u32 %v10024, 16
  %v10693 = vrot.slane %v10691, 3
  %v10694 = vor.u32 %v10690, %v10693
  %v10695 = vsel %vm10507, %v10685, %v10694
  %v10697 = vshrl.u32 %v10025, 16
  %v10699 = vrot.slane %v10697, 2
  %v10700 = vshll.u32 %v10025, 16
  %v10702 = vrot.slane %v10700, 3
  %v10703 = vor.u32 %v10699, %v10702
  %v10704 = vsel %vm10507, %v10694, %v10703
  %v10706 = vshrl.u32 %v10026, 16
  %v10708 = vrot.slane %v10706, 2
  %v10709 = vshll.u32 %v10026, 16
  %v10711 = vrot.slane %v10709, 3
  %v10712 = vor.u32 %v10708, %v10711
  %v10713 = vsel %vm10507, %v10703, %v10712
  %v10715 = vshrl.u32 %v10027, 16
  %v10717 = vrot.slane %v10715, 2
  %v10718 = vshll.u32 %v10027, 16
  %v10720 = vrot.slane %v10718, 3
  %v10721 = vor.u32 %v10717, %v10720
  %v10722 = vsel %vm10507, %v10712, %v10721
  %v10724 = vshrl.u32 %v10028, 16
  %v10726 = vrot.slane %v10724, 2
  %v10727 = vshll.u32 %v10028, 16
  %v10729 = vrot.slane %v10727, 3
  %v10730 = vor.u32 %v10726, %v10729
  %v10731 = vsel %vm10507, %v10721, %v10730
  %v10733 = vshrl.u32 %v10029, 16
  %v10735 = vrot.slane %v10733, 2
  %v10736 = vshll.u32 %v10029, 16
  %v10738 = vrot.slane %v10736, 3
  %v10739 = vor.u32 %v10735, %v10738
  %v10740 = vsel %vm10507, %v10730, %v10739
  %v10742 = vshrl.u32 %v10030, 16
  %v10744 = vrot.slane %v10742, 2
  %v10745 = vshll.u32 %v10030, 16
  %v10747 = vrot.slane %v10745, 3
  %v10748 = vor.u32 %v10744, %v10747
  %v10749 = vsel %vm10507, %v10739, %v10748
  %v10751 = vshrl.u32 %v10031, 16
  %v10753 = vrot.slane %v10751, 2
  %v10754 = vshll.u32 %v10031, 16
  %v10756 = vrot.slane %v10754, 3
  %v10757 = vor.u32 %v10753, %v10756
  %v10758 = vsel %vm10507, %v10748, %v10757
  %v10760 = vshrl.u32 %v10032, 16
  %v10762 = vrot.slane %v10760, 2
  %v10763 = vshll.u32 %v10032, 16
  %v10765 = vrot.slane %v10763, 3
  %v10766 = vor.u32 %v10762, %v10765
  %v10767 = vsel %vm10507, %v10757, %v10766
  %v10769 = vshrl.u32 %v10033, 16
  %v10771 = vrot.slane %v10769, 2
  %v10772 = vshll.u32 %v10033, 16
  %v10774 = vrot.slane %v10772, 3
  %v10775 = vor.u32 %v10771, %v10774
  %v10776 = vsel %vm10507, %v10766, %v10775
  %v10778 = vshrl.u32 %v10034, 16
  %v10780 = vrot.slane %v10778, 2
  %v10781 = vshll.u32 %v10034, 16
  %v10783 = vrot.slane %v10781, 3
  %v10784 = vor.u32 %v10780, %v10783
  %v10785 = vsel %vm10507, %v10775, %v10784
  %v10787 = vshrl.u32 %v10035, 16
  %v10789 = vrot.slane %v10787, 2
  %v10790 = vshll.u32 %v10035, 16
  %v10792 = vrot.slane %v10790, 3
  %v10793 = vor.u32 %v10789, %v10792
  %v10794 = vsel %vm10507, %v10784, %v10793
  %v10796 = vshrl.u32 %v10036, 16
  %v10798 = vrot.slane %v10796, 2
  %v10799 = vshll.u32 %v10036, 16
  %v10801 = vrot.slane %v10799, 3
  %v10802 = vor.u32 %v10798, %v10801
  %v10803 = vsel %vm10507, %v10793, %v10802
  %v10805 = vshrl.u32 %v10037, 16
  %v10807 = vrot.slane %v10805, 2
  %v10808 = vshll.u32 %v10037, 16
  %v10810 = vrot.slane %v10808, 3
  %v10811 = vor.u32 %v10807, %v10810
  %v10812 = vsel %vm10507, %v10802, %v10811
  %v10814 = vshrl.u32 %v10038, 16
  %v10816 = vrot.slane %v10814, 2
  %v10817 = vshll.u32 %v10038, 16
  %v10819 = vrot.slane %v10817, 3
  %v10820 = vor.u32 %v10816, %v10819
  %v10821 = vsel %vm10507, %v10811, %v10820
  %v10823 = vshrl.u32 %v10039, 16
  %v10825 = vrot.slane %v10823, 2
  %v10826 = vshll.u32 %v10039, 16
  %v10828 = vrot.slane %v10826, 3
  %v10829 = vor.u32 %v10825, %v10828
  %v10830 = vsel %vm10507, %v10820, %v10829
  %v10832 = vshrl.u32 %v10040, 16
  %v10834 = vrot.slane %v10832, 2
  %v10835 = vshll.u32 %v10040, 16
  %v10837 = vrot.slane %v10835, 3
  %v10838 = vor.u32 %v10834, %v10837
  %v10839 = vsel %vm10507, %v10829, %v10838
  %v10841 = vshrl.u32 %v10041, 16
  %v10843 = vrot.slane %v10841, 2
  %v10844 = vshll.u32 %v10041, 16
  %v10846 = vrot.slane %v10844, 3
  %v10847 = vor.u32 %v10843, %v10846
  %v10848 = vsel %vm10507, %v10838, %v10847
  %v10850 = vshrl.u32 %v10506, 16
  %v10852 = vrot.slane %v10850, 2
  %v10853 = vshll.u32 %v10506, 16
  %v10855 = vrot.slane %v10853, 3
  %v10856 = vor.u32 %v10852, %v10855
  %v10857 = vsel %vm10507, %v10847, %v10856
  %v10913 = vunpack.c.l.b16 %v10488
  %v10914 = vunpack.c.l.b16 %v10489
  %v10915 = vunpack.c.l.b16 %v10490
  %v10916 = vunpack.c.l.b16 %v10491
  %v10917 = vunpack.c.l.b16 %v10492
  %v10918 = vunpack.c.l.b16 %v10493
  %v10919 = vunpack.c.l.b16 %v10494
  %v10920 = vunpack.c.l.b16 %v10495
  %v10921 = vunpack.c.l.b16 %v10496
  %v10922 = vunpack.c.l.b16 %v10497
  %v10923 = vunpack.c.l.b16 %v10498
  %v10924 = vunpack.c.l.b16 %v10499
  %v10925 = vunpack.c.l.b16 %v10500
  %v10926 = vunpack.c.l.b16 %v10501
  %v10927 = vunpack.c.l.b16 %v10502
  %v10928 = vunpack.c.l.b16 %v10503
  %v10929 = vpack.c.b16 %v10914, %v10913
  %v10930 = vpack.c.b16 %v10916, %v10915
  %v10931 = vpack.c.b16 %v10918, %v10917
  %v10932 = vpack.c.b16 %v10920, %v10919
  %v10933 = vpack.c.b16 %v10922, %v10921
  %v10934 = vpack.c.b16 %v10924, %v10923
  %v10935 = vpack.c.b16 %v10926, %v10925
  %v10936 = vpack.c.b16 %v10928, %v10927
  %10945 = vmatpush.bf16.msra.mxu0 %v10936
  %10946 = vmatpush.bf16.msra.mxu0 %v10935
  %10947 = vmatpush.bf16.msra.mxu0 %v10934
  %10948 = vmatpush.bf16.msra.mxu0 %v10933
  %10949 = vmatpush.bf16.msra.mxu0 %v10932
  %10950 = vmatpush.bf16.msra.mxu0 %v10931
  %10951 = vmatpush.bf16.msra.mxu0 %v10930
  %10952 = vmatpush.bf16.msra.mxu0 %v10929
  %10953 = vmatmul.bf16.gmra.mxu0 %v10524
  %v10954 = vpop.f32.mrf.mxu0
  %v10955 = vadd.f32 0.0, %v10954
  %v10956 = vpop.f32.mrf.mxu0
  %v10957 = vadd.f32 0.0, %v10956
  %10958 = vmatmul.bf16.gmra.mxu0 %v10533
  %v10959 = vpop.f32.mrf.mxu0
  %v10960 = vadd.f32 0.0, %v10959
  %v10961 = vpop.f32.mrf.mxu0
  %v10962 = vadd.f32 0.0, %v10961
  %10963 = vmatmul.bf16.gmra.mxu0 %v10542
  %v10964 = vpop.f32.mrf.mxu0
  %v10965 = vadd.f32 0.0, %v10964
  %v10966 = vpop.f32.mrf.mxu0
  %v10967 = vadd.f32 0.0, %v10966
  %10968 = vmatmul.bf16.gmra.mxu0 %v10551
  %v10969 = vpop.f32.mrf.mxu0
  %v10970 = vadd.f32 0.0, %v10969
  %v10971 = vpop.f32.mrf.mxu0
  %v10972 = vadd.f32 0.0, %v10971
  %10973 = vmatmul.bf16.gmra.mxu0 %v10560
  %v10974 = vpop.f32.mrf.mxu0
  %v10975 = vadd.f32 0.0, %v10974
  %v10976 = vpop.f32.mrf.mxu0
  %v10977 = vadd.f32 0.0, %v10976
  %10978 = vmatmul.bf16.gmra.mxu0 %v10569
  %v10979 = vpop.f32.mrf.mxu0
  %v10980 = vadd.f32 0.0, %v10979
  %v10981 = vpop.f32.mrf.mxu0
  %v10982 = vadd.f32 0.0, %v10981
  %10983 = vmatmul.bf16.gmra.mxu0 %v10578
  %v10984 = vpop.f32.mrf.mxu0
  %v10985 = vadd.f32 0.0, %v10984
  %v10986 = vpop.f32.mrf.mxu0
  %v10987 = vadd.f32 0.0, %v10986
  %10988 = vmatmul.bf16.gmra.mxu0 %v10587
  %v10989 = vpop.f32.mrf.mxu0
  %v10990 = vadd.f32 0.0, %v10989
  %v10991 = vpop.f32.mrf.mxu0
  %v10992 = vadd.f32 0.0, %v10991
  %10993 = vmatmul.bf16.gmra.mxu0 %v10596
  %v10994 = vpop.f32.mrf.mxu0
  %v10995 = vadd.f32 0.0, %v10994
  %v10996 = vpop.f32.mrf.mxu0
  %v10997 = vadd.f32 0.0, %v10996
  %10998 = vmatmul.bf16.gmra.mxu0 %v10605
  %v10999 = vpop.f32.mrf.mxu0
  %v11000 = vadd.f32 0.0, %v10999
  %v11001 = vpop.f32.mrf.mxu0
  %v11002 = vadd.f32 0.0, %v11001
  %11003 = vmatmul.bf16.gmra.mxu0 %v10614
  %v11004 = vpop.f32.mrf.mxu0
  %v11005 = vadd.f32 0.0, %v11004
  %v11006 = vpop.f32.mrf.mxu0
  %v11007 = vadd.f32 0.0, %v11006
  %11008 = vmatmul.bf16.gmra.mxu0 %v10623
  %v11009 = vpop.f32.mrf.mxu0
  %v11010 = vadd.f32 0.0, %v11009
  %v11011 = vpop.f32.mrf.mxu0
  %v11012 = vadd.f32 0.0, %v11011
  %11013 = vmatmul.bf16.gmra.mxu0 %v10632
  %v11014 = vpop.f32.mrf.mxu0
  %v11015 = vadd.f32 0.0, %v11014
  %v11016 = vpop.f32.mrf.mxu0
  %v11017 = vadd.f32 0.0, %v11016
  %11018 = vmatmul.bf16.gmra.mxu0 %v10641
  %v11019 = vpop.f32.mrf.mxu0
  %v11020 = vadd.f32 0.0, %v11019
  %v11021 = vpop.f32.mrf.mxu0
  %v11022 = vadd.f32 0.0, %v11021
  %11023 = vmatmul.bf16.gmra.mxu0 %v10650
  %v11024 = vpop.f32.mrf.mxu0
  %v11025 = vadd.f32 0.0, %v11024
  %v11026 = vpop.f32.mrf.mxu0
  %v11027 = vadd.f32 0.0, %v11026
  %11028 = vmatmul.bf16.gmra.mxu0 %v10659
  %v11029 = vpop.f32.mrf.mxu0
  %v11030 = vadd.f32 0.0, %v11029
  %v11031 = vpop.f32.mrf.mxu0
  %v11032 = vadd.f32 0.0, %v11031
  %11033 = vmatmul.bf16.gmra.mxu0 %v10668
  %v11034 = vpop.f32.mrf.mxu0
  %v11035 = vadd.f32 0.0, %v11034
  %v11036 = vpop.f32.mrf.mxu0
  %v11037 = vadd.f32 0.0, %v11036
  %11038 = vmatmul.bf16.gmra.mxu0 %v10677
  %v11039 = vpop.f32.mrf.mxu0
  %v11040 = vadd.f32 0.0, %v11039
  %v11041 = vpop.f32.mrf.mxu0
  %v11042 = vadd.f32 0.0, %v11041
  %11043 = vmatmul.bf16.gmra.mxu0 %v10686
  %v11044 = vpop.f32.mrf.mxu0
  %v11045 = vadd.f32 0.0, %v11044
  %v11046 = vpop.f32.mrf.mxu0
  %v11047 = vadd.f32 0.0, %v11046
  %11048 = vmatmul.bf16.gmra.mxu0 %v10695
  %v11049 = vpop.f32.mrf.mxu0
  %v11050 = vadd.f32 0.0, %v11049
  %v11051 = vpop.f32.mrf.mxu0
  %v11052 = vadd.f32 0.0, %v11051
  %11053 = vmatmul.bf16.gmra.mxu0 %v10704
  %v11054 = vpop.f32.mrf.mxu0
  %v11055 = vadd.f32 0.0, %v11054
  %v11056 = vpop.f32.mrf.mxu0
  %v11057 = vadd.f32 0.0, %v11056
  %11058 = vmatmul.bf16.gmra.mxu0 %v10713
  %v11059 = vpop.f32.mrf.mxu0
  %v11060 = vadd.f32 0.0, %v11059
  %v11061 = vpop.f32.mrf.mxu0
  %v11062 = vadd.f32 0.0, %v11061
  %11063 = vmatmul.bf16.gmra.mxu0 %v10722
  %v11064 = vpop.f32.mrf.mxu0
  %v11065 = vadd.f32 0.0, %v11064
  %v11066 = vpop.f32.mrf.mxu0
  %v11067 = vadd.f32 0.0, %v11066
  %11068 = vmatmul.bf16.gmra.mxu0 %v10731
  %v11069 = vpop.f32.mrf.mxu0
  %v11070 = vadd.f32 0.0, %v11069
  %v11071 = vpop.f32.mrf.mxu0
  %v11072 = vadd.f32 0.0, %v11071
  %11073 = vmatmul.bf16.gmra.mxu0 %v10740
  %v11074 = vpop.f32.mrf.mxu0
  %v11075 = vadd.f32 0.0, %v11074
  %v11076 = vpop.f32.mrf.mxu0
  %v11077 = vadd.f32 0.0, %v11076
  %11078 = vmatmul.bf16.gmra.mxu0 %v10749
  %v11079 = vpop.f32.mrf.mxu0
  %v11080 = vadd.f32 0.0, %v11079
  %v11081 = vpop.f32.mrf.mxu0
  %v11082 = vadd.f32 0.0, %v11081
  %11083 = vmatmul.bf16.gmra.mxu0 %v10758
  %v11084 = vpop.f32.mrf.mxu0
  %v11085 = vadd.f32 0.0, %v11084
  %v11086 = vpop.f32.mrf.mxu0
  %v11087 = vadd.f32 0.0, %v11086
  %11088 = vmatmul.bf16.gmra.mxu0 %v10767
  %v11089 = vpop.f32.mrf.mxu0
  %v11090 = vadd.f32 0.0, %v11089
  %v11091 = vpop.f32.mrf.mxu0
  %v11092 = vadd.f32 0.0, %v11091
  %11093 = vmatmul.bf16.gmra.mxu0 %v10776
  %v11094 = vpop.f32.mrf.mxu0
  %v11095 = vadd.f32 0.0, %v11094
  %v11096 = vpop.f32.mrf.mxu0
  %v11097 = vadd.f32 0.0, %v11096
  %11098 = vmatmul.bf16.gmra.mxu0 %v10785
  %v11099 = vpop.f32.mrf.mxu0
  %v11100 = vadd.f32 0.0, %v11099
  %v11101 = vpop.f32.mrf.mxu0
  %v11102 = vadd.f32 0.0, %v11101
  %11103 = vmatmul.bf16.gmra.mxu0 %v10794
  %v11104 = vpop.f32.mrf.mxu0
  %v11105 = vadd.f32 0.0, %v11104
  %v11106 = vpop.f32.mrf.mxu0
  %v11107 = vadd.f32 0.0, %v11106
  %11108 = vmatmul.bf16.gmra.mxu0 %v10803
  %v11109 = vpop.f32.mrf.mxu0
  %v11110 = vadd.f32 0.0, %v11109
  %v11111 = vpop.f32.mrf.mxu0
  %v11112 = vadd.f32 0.0, %v11111
  %11113 = vmatmul.bf16.gmra.mxu0 %v10812
  %v11114 = vpop.f32.mrf.mxu0
  %v11115 = vadd.f32 0.0, %v11114
  %v11116 = vpop.f32.mrf.mxu0
  %v11117 = vadd.f32 0.0, %v11116
  %11118 = vmatmul.bf16.gmra.mxu0 %v10821
  %v11119 = vpop.f32.mrf.mxu0
  %v11120 = vadd.f32 0.0, %v11119
  %v11121 = vpop.f32.mrf.mxu0
  %v11122 = vadd.f32 0.0, %v11121
  %11123 = vmatmul.bf16.gmra.mxu0 %v10830
  %v11124 = vpop.f32.mrf.mxu0
  %v11125 = vadd.f32 0.0, %v11124
  %v11126 = vpop.f32.mrf.mxu0
  %v11127 = vadd.f32 0.0, %v11126
  %11128 = vmatmul.bf16.gmra.mxu0 %v10839
  %v11129 = vpop.f32.mrf.mxu0
  %v11130 = vadd.f32 0.0, %v11129
  %v11131 = vpop.f32.mrf.mxu0
  %v11132 = vadd.f32 0.0, %v11131
  %11133 = vmatmul.bf16.gmra.mxu0 %v10848
  %v11134 = vpop.f32.mrf.mxu0
  %v11135 = vadd.f32 0.0, %v11134
  %v11136 = vpop.f32.mrf.mxu0
  %v11137 = vadd.f32 0.0, %v11136
  %11138 = vmatmul.bf16.gmra.mxu0 %v10857
  %v11139 = vpop.f32.mrf.mxu0
  %v11140 = vadd.f32 0.0, %v11139
  %v11141 = vpop.f32.mrf.mxu0
  %v11142 = vadd.f32 0.0, %v11141
  %11143 = vmatmul.bf16.gmra.mxu0 %v10856
  %v11144 = vpop.f32.mrf.mxu0
  %v11145 = vadd.f32 0.0, %v11144
  %v11146 = vpop.f32.mrf.mxu0
  %11147 = vdwg.mxu0
  %v11148 = vadd.f32 %v10410, %v10955
  %v11149 = vadd.f32 %v10411, %v10957
  %v11150 = vadd.f32 %v10412, %v10960
  %v11151 = vadd.f32 %v10413, %v10962
  %v11152 = vadd.f32 %v10414, %v10965
  %v11153 = vadd.f32 %v10415, %v10967
  %v11154 = vadd.f32 %v10416, %v10970
  %v11155 = vadd.f32 %v10417, %v10972
  %v11156 = vadd.f32 %v10418, %v10975
  %v11157 = vadd.f32 %v10419, %v10977
  %v11158 = vadd.f32 %v10420, %v10980
  %v11159 = vadd.f32 %v10421, %v10982
  %v11160 = vadd.f32 %v10422, %v10985
  %v11161 = vadd.f32 %v10423, %v10987
  %v11162 = vadd.f32 %v10424, %v10990
  %v11163 = vadd.f32 %v10425, %v10992
  %v11164 = vadd.f32 %v10426, %v10995
  %v11165 = vadd.f32 %v10427, %v10997
  %v11166 = vadd.f32 %v10428, %v11000
  %v11167 = vadd.f32 %v10429, %v11002
  %v11168 = vadd.f32 %v10430, %v11005
  %v11169 = vadd.f32 %v10431, %v11007
  %v11170 = vadd.f32 %v10432, %v11010
  %v11171 = vadd.f32 %v10433, %v11012
  %v11172 = vadd.f32 %v10434, %v11015
  %v11173 = vadd.f32 %v10435, %v11017
  %v11174 = vadd.f32 %v10436, %v11020
  %v11175 = vadd.f32 %v10437, %v11022
  %v11176 = vadd.f32 %v10438, %v11025
  %v11177 = vadd.f32 %v10439, %v11027
  %v11178 = vadd.f32 %v10440, %v11030
  %v11179 = vadd.f32 %v10441, %v11032
  %v11180 = vadd.f32 %v10442, %v11035
  %v11181 = vadd.f32 %v10443, %v11037
  %v11182 = vadd.f32 %v10444, %v11040
  %v11183 = vadd.f32 %v10445, %v11042
  %v11184 = vadd.f32 %v10446, %v11045
  %v11185 = vadd.f32 %v10447, %v11047
  %v11186 = vadd.f32 %v10448, %v11050
  %v11187 = vadd.f32 %v10449, %v11052
  %v11188 = vadd.f32 %v10450, %v11055
  %v11189 = vadd.f32 %v10451, %v11057
  %v11190 = vadd.f32 %v10452, %v11060
  %v11191 = vadd.f32 %v10453, %v11062
  %v11192 = vadd.f32 %v10454, %v11065
  %v11193 = vadd.f32 %v10455, %v11067
  %v11194 = vadd.f32 %v10456, %v11070
  %v11195 = vadd.f32 %v10457, %v11072
  %v11196 = vadd.f32 %v10458, %v11075
  %v11197 = vadd.f32 %v10459, %v11077
  %v11198 = vadd.f32 %v10460, %v11080
  %v11199 = vadd.f32 %v10461, %v11082
  %v11200 = vadd.f32 %v10462, %v11085
  %v11201 = vadd.f32 %v10463, %v11087
  %v11202 = vadd.f32 %v10464, %v11090
  %v11203 = vadd.f32 %v10465, %v11092
  %v11204 = vadd.f32 %v10466, %v11095
  %v11205 = vadd.f32 %v10467, %v11097
  %v11206 = vadd.f32 %v10468, %v11100
  %v11207 = vadd.f32 %v10469, %v11102
  %v11208 = vadd.f32 %v10470, %v11105
  %v11209 = vadd.f32 %v10471, %v11107
  %v11210 = vadd.f32 %v10472, %v11110
  %v11211 = vadd.f32 %v10473, %v11112
  %v11212 = vadd.f32 %v10474, %v11115
  %v11213 = vadd.f32 %v10475, %v11117
  %v11214 = vadd.f32 %v10476, %v11120
  %v11215 = vadd.f32 %v10477, %v11122
  %v11216 = vadd.f32 %v10478, %v11125
  %v11217 = vadd.f32 %v10479, %v11127
  %v11218 = vadd.f32 %v10480, %v11130
  %v11219 = vadd.f32 %v10481, %v11132
  %v11220 = vadd.f32 %v10482, %v11135
  %v11221 = vadd.f32 %v10483, %v11137
  %v11222 = vadd.f32 %v10484, %v11140
  %v11223 = vadd.f32 %v10485, %v11142
  %v11224 = vadd.f32 %v10486, %v11145
  %v11225 = vld [vmem:[#allocation2 + $0x10] sm:$0x8]
  %v11226 = vld [vmem:[%s2 + $0x200] sm:$0xf]
  %v11227 = vld [vmem:[%s2 + $0x204] sm:$0xf]
  %v11228 = vld [vmem:[%s2 + $0x208] sm:$0xf]
  %v11229 = vld [vmem:[%s2 + $0x20c] sm:$0xf]
  %v11230 = vld [vmem:[%s2 + $0x210] sm:$0xf]
  %v11231 = vld [vmem:[%s2 + $0x214] sm:$0xf]
  %v11232 = vld [vmem:[%s2 + $0x218] sm:$0xf]
  %v11233 = vld [vmem:[%s2 + $0x21c] sm:$0xf]
  %v11234 = vld [vmem:[%s2 + $0x220] sm:$0xf]
  %v11235 = vld [vmem:[%s2 + $0x224] sm:$0xf]
  %v11236 = vld [vmem:[%s2 + $0x228] sm:$0xf]
  %v11237 = vld [vmem:[%s2 + $0x22c] sm:$0xf]
  %v11238 = vld [vmem:[%s2 + $0x230] sm:$0xf]
  %v11239 = vld [vmem:[%s2 + $0x234] sm:$0xf]
  %v11240 = vld [vmem:[%s2 + $0x238] sm:$0xf]
  %v11241 = vld [vmem:[%s2 + $0x23c] sm:$0xf]
  %v11243 = vunpack.c.l.b16 %v11225
  %v11244 = vpack.c.b16 %v9927, %v11243
  %vm11245 = vcmask 1044480
  %v11246 = vrot.slane %v11244, 3
  %v11247 = vrot.slane %v10005, 3
  %v11248 = vsel %vm11245, %v11246, %v11247
  %v11249 = vrot.slane %v10006, 3
  %v11250 = vsel %vm11245, %v11247, %v11249
  %v11251 = vrot.slane %v10007, 3
  %v11252 = vsel %vm11245, %v11249, %v11251
  %v11253 = vrot.slane %v10008, 3
  %v11254 = vsel %vm11245, %v11251, %v11253
  %v11255 = vrot.slane %v10009, 3
  %v11256 = vsel %vm11245, %v11253, %v11255
  %v11257 = vrot.slane %v10010, 3
  %v11258 = vsel %vm11245, %v11255, %v11257
  %v11259 = vrot.slane %v10011, 3
  %v11260 = vsel %vm11245, %v11257, %v11259
  %v11261 = vrot.slane %v10012, 3
  %v11262 = vsel %vm11245, %v11259, %v11261
  %v11263 = vrot.slane %v10013, 3
  %v11264 = vsel %vm11245, %v11261, %v11263
  %v11265 = vrot.slane %v10014, 3
  %v11266 = vsel %vm11245, %v11263, %v11265
  %v11267 = vrot.slane %v10015, 3
  %v11268 = vsel %vm11245, %v11265, %v11267
  %v11269 = vrot.slane %v10016, 3
  %v11270 = vsel %vm11245, %v11267, %v11269
  %v11271 = vrot.slane %v10017, 3
  %v11272 = vsel %vm11245, %v11269, %v11271
  %v11273 = vrot.slane %v10018, 3
  %v11274 = vsel %vm11245, %v11271, %v11273
  %v11275 = vrot.slane %v10019, 3
  %v11276 = vsel %vm11245, %v11273, %v11275
  %v11277 = vrot.slane %v10020, 3
  %v11278 = vsel %vm11245, %v11275, %v11277
  %v11279 = vrot.slane %v10021, 3
  %v11280 = vsel %vm11245, %v11277, %v11279
  %v11281 = vrot.slane %v10022, 3
  %v11282 = vsel %vm11245, %v11279, %v11281
  %v11283 = vrot.slane %v10023, 3
  %v11284 = vsel %vm11245, %v11281, %v11283
  %v11285 = vrot.slane %v10024, 3
  %v11286 = vsel %vm11245, %v11283, %v11285
  %v11287 = vrot.slane %v10025, 3
  %v11288 = vsel %vm11245, %v11285, %v11287
  %v11289 = vrot.slane %v10026, 3
  %v11290 = vsel %vm11245, %v11287, %v11289
  %v11291 = vrot.slane %v10027, 3
  %v11292 = vsel %vm11245, %v11289, %v11291
  %v11293 = vrot.slane %v10028, 3
  %v11294 = vsel %vm11245, %v11291, %v11293
  %v11295 = vrot.slane %v10029, 3
  %v11296 = vsel %vm11245, %v11293, %v11295
  %v11297 = vrot.slane %v10030, 3
  %v11298 = vsel %vm11245, %v11295, %v11297
  %v11299 = vrot.slane %v10031, 3
  %v11300 = vsel %vm11245, %v11297, %v11299
  %v11301 = vrot.slane %v10032, 3
  %v11302 = vsel %vm11245, %v11299, %v11301
  %v11303 = vrot.slane %v10033, 3
  %v11304 = vsel %vm11245, %v11301, %v11303
  %v11305 = vrot.slane %v10034, 3
  %v11306 = vsel %vm11245, %v11303, %v11305
  %v11307 = vrot.slane %v10035, 3
  %v11308 = vsel %vm11245, %v11305, %v11307
  %v11309 = vrot.slane %v10036, 3
  %v11310 = vsel %vm11245, %v11307, %v11309
  %v11311 = vrot.slane %v10037, 3
  %v11312 = vsel %vm11245, %v11309, %v11311
  %v11313 = vrot.slane %v10038, 3
  %v11314 = vsel %vm11245, %v11311, %v11313
  %v11315 = vrot.slane %v10039, 3
  %v11316 = vsel %vm11245, %v11313, %v11315
  %v11317 = vrot.slane %v10040, 3
  %v11318 = vsel %vm11245, %v11315, %v11317
  %v11319 = vrot.slane %v10041, 3
  %v11320 = vsel %vm11245, %v11317, %v11319
  %v11321 = vrot.slane %v10506, 3
  %v11322 = vsel %vm11245, %v11319, %v11321
  %v11378 = vunpack.c.l.b16 %v11226
  %v11379 = vunpack.c.l.b16 %v11227
  %v11380 = vunpack.c.l.b16 %v11228
  %v11381 = vunpack.c.l.b16 %v11229
  %v11382 = vunpack.c.l.b16 %v11230
  %v11383 = vunpack.c.l.b16 %v11231
  %v11384 = vunpack.c.l.b16 %v11232
  %v11385 = vunpack.c.l.b16 %v11233
  %v11386 = vunpack.c.l.b16 %v11234
  %v11387 = vunpack.c.l.b16 %v11235
  %v11388 = vunpack.c.l.b16 %v11236
  %v11389 = vunpack.c.l.b16 %v11237
  %v11390 = vunpack.c.l.b16 %v11238
  %v11391 = vunpack.c.l.b16 %v11239
  %v11392 = vunpack.c.l.b16 %v11240
  %v11393 = vunpack.c.l.b16 %v11241
  %v11394 = vpack.c.b16 %v11379, %v11378
  %v11395 = vpack.c.b16 %v11381, %v11380
  %v11396 = vpack.c.b16 %v11383, %v11382
  %v11397 = vpack.c.b16 %v11385, %v11384
  %v11398 = vpack.c.b16 %v11387, %v11386
  %v11399 = vpack.c.b16 %v11389, %v11388
  %v11400 = vpack.c.b16 %v11391, %v11390
  %v11401 = vpack.c.b16 %v11393, %v11392
  %11410 = vmatpush.bf16.msra.mxu0 %v11401
  %11411 = vmatpush.bf16.msra.mxu0 %v11400
  %11412 = vmatpush.bf16.msra.mxu0 %v11399
  %11413 = vmatpush.bf16.msra.mxu0 %v11398
  %11414 = vmatpush.bf16.msra.mxu0 %v11397
  %11415 = vmatpush.bf16.msra.mxu0 %v11396
  %11416 = vmatpush.bf16.msra.mxu0 %v11395
  %11417 = vmatpush.bf16.msra.mxu0 %v11394
  %11418 = vmatmul.bf16.gmra.mxu0 %v11248
  %v11419 = vpop.f32.mrf.mxu0
  %v11420 = vadd.f32 0.0, %v11419
  %v11421 = vpop.f32.mrf.mxu0
  %v11422 = vadd.f32 0.0, %v11421
  %11423 = vmatmul.bf16.gmra.mxu0 %v11250
  %v11424 = vpop.f32.mrf.mxu0
  %v11425 = vadd.f32 0.0, %v11424
  %v11426 = vpop.f32.mrf.mxu0
  %v11427 = vadd.f32 0.0, %v11426
  %11428 = vmatmul.bf16.gmra.mxu0 %v11252
  %v11429 = vpop.f32.mrf.mxu0
  %v11430 = vadd.f32 0.0, %v11429
  %v11431 = vpop.f32.mrf.mxu0
  %v11432 = vadd.f32 0.0, %v11431
  %11433 = vmatmul.bf16.gmra.mxu0 %v11254
  %v11434 = vpop.f32.mrf.mxu0
  %v11435 = vadd.f32 0.0, %v11434
  %v11436 = vpop.f32.mrf.mxu0
  %v11437 = vadd.f32 0.0, %v11436
  %11438 = vmatmul.bf16.gmra.mxu0 %v11256
  %v11439 = vpop.f32.mrf.mxu0
  %v11440 = vadd.f32 0.0, %v11439
  %v11441 = vpop.f32.mrf.mxu0
  %v11442 = vadd.f32 0.0, %v11441
  %11443 = vmatmul.bf16.gmra.mxu0 %v11258
  %v11444 = vpop.f32.mrf.mxu0
  %v11445 = vadd.f32 0.0, %v11444
  %v11446 = vpop.f32.mrf.mxu0
  %v11447 = vadd.f32 0.0, %v11446
  %11448 = vmatmul.bf16.gmra.mxu0 %v11260
  %v11449 = vpop.f32.mrf.mxu0
  %v11450 = vadd.f32 0.0, %v11449
  %v11451 = vpop.f32.mrf.mxu0
  %v11452 = vadd.f32 0.0, %v11451
  %11453 = vmatmul.bf16.gmra.mxu0 %v11262
  %v11454 = vpop.f32.mrf.mxu0
  %v11455 = vadd.f32 0.0, %v11454
  %v11456 = vpop.f32.mrf.mxu0
  %v11457 = vadd.f32 0.0, %v11456
  %11458 = vmatmul.bf16.gmra.mxu0 %v11264
  %v11459 = vpop.f32.mrf.mxu0
  %v11460 = vadd.f32 0.0, %v11459
  %v11461 = vpop.f32.mrf.mxu0
  %v11462 = vadd.f32 0.0, %v11461
  %11463 = vmatmul.bf16.gmra.mxu0 %v11266
  %v11464 = vpop.f32.mrf.mxu0
  %v11465 = vadd.f32 0.0, %v11464
  %v11466 = vpop.f32.mrf.mxu0
  %v11467 = vadd.f32 0.0, %v11466
  %11468 = vmatmul.bf16.gmra.mxu0 %v11268
  %v11469 = vpop.f32.mrf.mxu0
  %v11470 = vadd.f32 0.0, %v11469
  %v11471 = vpop.f32.mrf.mxu0
  %v11472 = vadd.f32 0.0, %v11471
  %11473 = vmatmul.bf16.gmra.mxu0 %v11270
  %v11474 = vpop.f32.mrf.mxu0
  %v11475 = vadd.f32 0.0, %v11474
  %v11476 = vpop.f32.mrf.mxu0
  %v11477 = vadd.f32 0.0, %v11476
  %11478 = vmatmul.bf16.gmra.mxu0 %v11272
  %v11479 = vpop.f32.mrf.mxu0
  %v11480 = vadd.f32 0.0, %v11479
  %v11481 = vpop.f32.mrf.mxu0
  %v11482 = vadd.f32 0.0, %v11481
  %11483 = vmatmul.bf16.gmra.mxu0 %v11274
  %v11484 = vpop.f32.mrf.mxu0
  %v11485 = vadd.f32 0.0, %v11484
  %v11486 = vpop.f32.mrf.mxu0
  %v11487 = vadd.f32 0.0, %v11486
  %11488 = vmatmul.bf16.gmra.mxu0 %v11276
  %v11489 = vpop.f32.mrf.mxu0
  %v11490 = vadd.f32 0.0, %v11489
  %v11491 = vpop.f32.mrf.mxu0
  %v11492 = vadd.f32 0.0, %v11491
  %11493 = vmatmul.bf16.gmra.mxu0 %v11278
  %v11494 = vpop.f32.mrf.mxu0
  %v11495 = vadd.f32 0.0, %v11494
  %v11496 = vpop.f32.mrf.mxu0
  %v11497 = vadd.f32 0.0, %v11496
  %11498 = vmatmul.bf16.gmra.mxu0 %v11280
  %v11499 = vpop.f32.mrf.mxu0
  %v11500 = vadd.f32 0.0, %v11499
  %v11501 = vpop.f32.mrf.mxu0
  %v11502 = vadd.f32 0.0, %v11501
  %11503 = vmatmul.bf16.gmra.mxu0 %v11282
  %v11504 = vpop.f32.mrf.mxu0
  %v11505 = vadd.f32 0.0, %v11504
  %v11506 = vpop.f32.mrf.mxu0
  %v11507 = vadd.f32 0.0, %v11506
  %11508 = vmatmul.bf16.gmra.mxu0 %v11284
  %v11509 = vpop.f32.mrf.mxu0
  %v11510 = vadd.f32 0.0, %v11509
  %v11511 = vpop.f32.mrf.mxu0
  %v11512 = vadd.f32 0.0, %v11511
  %11513 = vmatmul.bf16.gmra.mxu0 %v11286
  %v11514 = vpop.f32.mrf.mxu0
  %v11515 = vadd.f32 0.0, %v11514
  %v11516 = vpop.f32.mrf.mxu0
  %v11517 = vadd.f32 0.0, %v11516
  %11518 = vmatmul.bf16.gmra.mxu0 %v11288
  %v11519 = vpop.f32.mrf.mxu0
  %v11520 = vadd.f32 0.0, %v11519
  %v11521 = vpop.f32.mrf.mxu0
  %v11522 = vadd.f32 0.0, %v11521
  %11523 = vmatmul.bf16.gmra.mxu0 %v11290
  %v11524 = vpop.f32.mrf.mxu0
  %v11525 = vadd.f32 0.0, %v11524
  %v11526 = vpop.f32.mrf.mxu0
  %v11527 = vadd.f32 0.0, %v11526
  %11528 = vmatmul.bf16.gmra.mxu0 %v11292
  %v11529 = vpop.f32.mrf.mxu0
  %v11530 = vadd.f32 0.0, %v11529
  %v11531 = vpop.f32.mrf.mxu0
  %v11532 = vadd.f32 0.0, %v11531
  %11533 = vmatmul.bf16.gmra.mxu0 %v11294
  %v11534 = vpop.f32.mrf.mxu0
  %v11535 = vadd.f32 0.0, %v11534
  %v11536 = vpop.f32.mrf.mxu0
  %v11537 = vadd.f32 0.0, %v11536
  %11538 = vmatmul.bf16.gmra.mxu0 %v11296
  %v11539 = vpop.f32.mrf.mxu0
  %v11540 = vadd.f32 0.0, %v11539
  %v11541 = vpop.f32.mrf.mxu0
  %v11542 = vadd.f32 0.0, %v11541
  %11543 = vmatmul.bf16.gmra.mxu0 %v11298
  %v11544 = vpop.f32.mrf.mxu0
  %v11545 = vadd.f32 0.0, %v11544
  %v11546 = vpop.f32.mrf.mxu0
  %v11547 = vadd.f32 0.0, %v11546
  %11548 = vmatmul.bf16.gmra.mxu0 %v11300
  %v11549 = vpop.f32.mrf.mxu0
  %v11550 = vadd.f32 0.0, %v11549
  %v11551 = vpop.f32.mrf.mxu0
  %v11552 = vadd.f32 0.0, %v11551
  %11553 = vmatmul.bf16.gmra.mxu0 %v11302
  %v11554 = vpop.f32.mrf.mxu0
  %v11555 = vadd.f32 0.0, %v11554
  %v11556 = vpop.f32.mrf.mxu0
  %v11557 = vadd.f32 0.0, %v11556
  %11558 = vmatmul.bf16.gmra.mxu0 %v11304
  %v11559 = vpop.f32.mrf.mxu0
  %v11560 = vadd.f32 0.0, %v11559
  %v11561 = vpop.f32.mrf.mxu0
  %v11562 = vadd.f32 0.0, %v11561
  %11563 = vmatmul.bf16.gmra.mxu0 %v11306
  %v11564 = vpop.f32.mrf.mxu0
  %v11565 = vadd.f32 0.0, %v11564
  %v11566 = vpop.f32.mrf.mxu0
  %v11567 = vadd.f32 0.0, %v11566
  %11568 = vmatmul.bf16.gmra.mxu0 %v11308
  %v11569 = vpop.f32.mrf.mxu0
  %v11570 = vadd.f32 0.0, %v11569
  %v11571 = vpop.f32.mrf.mxu0
  %v11572 = vadd.f32 0.0, %v11571
  %11573 = vmatmul.bf16.gmra.mxu0 %v11310
  %v11574 = vpop.f32.mrf.mxu0
  %v11575 = vadd.f32 0.0, %v11574
  %v11576 = vpop.f32.mrf.mxu0
  %v11577 = vadd.f32 0.0, %v11576
  %11578 = vmatmul.bf16.gmra.mxu0 %v11312
  %v11579 = vpop.f32.mrf.mxu0
  %v11580 = vadd.f32 0.0, %v11579
  %v11581 = vpop.f32.mrf.mxu0
  %v11582 = vadd.f32 0.0, %v11581
  %11583 = vmatmul.bf16.gmra.mxu0 %v11314
  %v11584 = vpop.f32.mrf.mxu0
  %v11585 = vadd.f32 0.0, %v11584
  %v11586 = vpop.f32.mrf.mxu0
  %v11587 = vadd.f32 0.0, %v11586
  %11588 = vmatmul.bf16.gmra.mxu0 %v11316
  %v11589 = vpop.f32.mrf.mxu0
  %v11590 = vadd.f32 0.0, %v11589
  %v11591 = vpop.f32.mrf.mxu0
  %v11592 = vadd.f32 0.0, %v11591
  %11593 = vmatmul.bf16.gmra.mxu0 %v11318
  %v11594 = vpop.f32.mrf.mxu0
  %v11595 = vadd.f32 0.0, %v11594
  %v11596 = vpop.f32.mrf.mxu0
  %v11597 = vadd.f32 0.0, %v11596
  %11598 = vmatmul.bf16.gmra.mxu0 %v11320
  %v11599 = vpop.f32.mrf.mxu0
  %v11600 = vadd.f32 0.0, %v11599
  %v11601 = vpop.f32.mrf.mxu0
  %v11602 = vadd.f32 0.0, %v11601
  %11603 = vmatmul.bf16.gmra.mxu0 %v11322
  %v11604 = vpop.f32.mrf.mxu0
  %v11605 = vadd.f32 0.0, %v11604
  %v11606 = vpop.f32.mrf.mxu0
  %v11607 = vadd.f32 0.0, %v11606
  %11608 = vmatmul.bf16.gmra.mxu0 %v11321
  %v11609 = vpop.f32.mrf.mxu0
  %v11610 = vadd.f32 0.0, %v11609
  %v11611 = vpop.f32.mrf.mxu0
  %11612 = vdwg.mxu0
  %v11613 = vadd.f32 %v11148, %v11420
  %v11614 = vadd.f32 %v11149, %v11422
  %v11615 = vadd.f32 %v11150, %v11425
  %v11616 = vadd.f32 %v11151, %v11427
  %v11617 = vadd.f32 %v11152, %v11430
  %v11618 = vadd.f32 %v11153, %v11432
  %v11619 = vadd.f32 %v11154, %v11435
  %v11620 = vadd.f32 %v11155, %v11437
  %v11621 = vadd.f32 %v11156, %v11440
  %v11622 = vadd.f32 %v11157, %v11442
  %v11623 = vadd.f32 %v11158, %v11445
  %v11624 = vadd.f32 %v11159, %v11447
  %v11625 = vadd.f32 %v11160, %v11450
  %v11626 = vadd.f32 %v11161, %v11452
  %v11627 = vadd.f32 %v11162, %v11455
  %v11628 = vadd.f32 %v11163, %v11457
  %v11629 = vadd.f32 %v11164, %v11460
  %v11630 = vadd.f32 %v11165, %v11462
  %v11631 = vadd.f32 %v11166, %v11465
  %v11632 = vadd.f32 %v11167, %v11467
  %v11633 = vadd.f32 %v11168, %v11470
  %v11634 = vadd.f32 %v11169, %v11472
  %v11635 = vadd.f32 %v11170, %v11475
  %v11636 = vadd.f32 %v11171, %v11477
  %v11637 = vadd.f32 %v11172, %v11480
  %v11638 = vadd.f32 %v11173, %v11482
  %v11639 = vadd.f32 %v11174, %v11485
  %v11640 = vadd.f32 %v11175, %v11487
  %v11641 = vadd.f32 %v11176, %v11490
  %v11642 = vadd.f32 %v11177, %v11492
  %v11643 = vadd.f32 %v11178, %v11495
  %v11644 = vadd.f32 %v11179, %v11497
  %v11645 = vadd.f32 %v11180, %v11500
  %v11646 = vadd.f32 %v11181, %v11502
  %v11647 = vadd.f32 %v11182, %v11505
  %v11648 = vadd.f32 %v11183, %v11507
  %v11649 = vadd.f32 %v11184, %v11510
  %v11650 = vadd.f32 %v11185, %v11512
  %v11651 = vadd.f32 %v11186, %v11515
  %v11652 = vadd.f32 %v11187, %v11517
  %v11653 = vadd.f32 %v11188, %v11520
  %v11654 = vadd.f32 %v11189, %v11522
  %v11655 = vadd.f32 %v11190, %v11525
  %v11656 = vadd.f32 %v11191, %v11527
  %v11657 = vadd.f32 %v11192, %v11530
  %v11658 = vadd.f32 %v11193, %v11532
  %v11659 = vadd.f32 %v11194, %v11535
  %v11660 = vadd.f32 %v11195, %v11537
  %v11661 = vadd.f32 %v11196, %v11540
  %v11662 = vadd.f32 %v11197, %v11542
  %v11663 = vadd.f32 %v11198, %v11545
  %v11664 = vadd.f32 %v11199, %v11547
  %v11665 = vadd.f32 %v11200, %v11550
  %v11666 = vadd.f32 %v11201, %v11552
  %v11667 = vadd.f32 %v11202, %v11555
  %v11668 = vadd.f32 %v11203, %v11557
  %v11669 = vadd.f32 %v11204, %v11560
  %v11670 = vadd.f32 %v11205, %v11562
  %v11671 = vadd.f32 %v11206, %v11565
  %v11672 = vadd.f32 %v11207, %v11567
  %v11673 = vadd.f32 %v11208, %v11570
  %v11674 = vadd.f32 %v11209, %v11572
  %v11675 = vadd.f32 %v11210, %v11575
  %v11676 = vadd.f32 %v11211, %v11577
  %v11677 = vadd.f32 %v11212, %v11580
  %v11678 = vadd.f32 %v11213, %v11582
  %v11679 = vadd.f32 %v11214, %v11585
  %v11680 = vadd.f32 %v11215, %v11587
  %v11681 = vadd.f32 %v11216, %v11590
  %v11682 = vadd.f32 %v11217, %v11592
  %v11683 = vadd.f32 %v11218, %v11595
  %v11684 = vadd.f32 %v11219, %v11597
  %v11685 = vadd.f32 %v11220, %v11600
  %v11686 = vadd.f32 %v11221, %v11602
  %v11687 = vadd.f32 %v11222, %v11605
  %v11688 = vadd.f32 %v11223, %v11607
  %v11689 = vadd.f32 %v11224, %v11610
  %v11690 = vmul.f32 %v11613, %v4096
  %v11691 = vmul.f32 %v11614, %v4101
  %v11692 = vmul.f32 %v11615, %v4106
  %v11693 = vmul.f32 %v11616, %v4111
  %v11694 = vmul.f32 %v11617, %v4116
  %v11695 = vmul.f32 %v11618, %v4121
  %v11696 = vmul.f32 %v11619, %v4126
  %v11697 = vmul.f32 %v11620, %v4131
  %v11698 = vmul.f32 %v11621, %v4136
  %v11699 = vmul.f32 %v11622, %v4141
  %v11700 = vmul.f32 %v11623, %v4146
  %v11701 = vmul.f32 %v11624, %v4151
  %v11702 = vmul.f32 %v11625, %v4156
  %v11703 = vmul.f32 %v11626, %v4161
  %v11704 = vmul.f32 %v11627, %v4166
  %v11705 = vmul.f32 %v11628, %v4171
  %v11706 = vmul.f32 %v11629, %v4176
  %v11707 = vmul.f32 %v11630, %v4181
  %v11708 = vmul.f32 %v11631, %v4186
  %v11709 = vmul.f32 %v11632, %v4191
  %v11710 = vmul.f32 %v11633, %v4196
  %v11711 = vmul.f32 %v11634, %v4201
  %v11712 = vmul.f32 %v11635, %v4206
  %v11713 = vmul.f32 %v11636, %v4211
  %v11714 = vmul.f32 %v11637, %v4216
  %v11715 = vmul.f32 %v11638, %v4221
  %v11716 = vmul.f32 %v11639, %v4226
  %v11717 = vmul.f32 %v11640, %v4231
  %v11718 = vmul.f32 %v11641, %v4236
  %v11719 = vmul.f32 %v11642, %v4241
  %v11720 = vmul.f32 %v11643, %v4246
  %v11721 = vmul.f32 %v11644, %v4251
  %v11722 = vmul.f32 %v11645, %v4256
  %v11723 = vmul.f32 %v11646, %v4261
  %v11724 = vmul.f32 %v11647, %v4266
  %v11725 = vmul.f32 %v11648, %v4271
  %v11726 = vmul.f32 %v11649, %v4276
  %v11727 = vmul.f32 %v11650, %v4281
  %v11728 = vmul.f32 %v11651, %v4286
  %v11729 = vmul.f32 %v11652, %v4291
  %v11730 = vmul.f32 %v11653, %v4296
  %v11731 = vmul.f32 %v11654, %v4301
  %v11732 = vmul.f32 %v11655, %v4306
  %v11733 = vmul.f32 %v11656, %v4311
  %v11734 = vmul.f32 %v11657, %v4316
  %v11735 = vmul.f32 %v11658, %v4321
  %v11736 = vmul.f32 %v11659, %v4326
  %v11737 = vmul.f32 %v11660, %v4331
  %v11738 = vmul.f32 %v11661, %v4336
  %v11739 = vmul.f32 %v11662, %v4341
  %v11740 = vmul.f32 %v11663, %v4346
  %v11741 = vmul.f32 %v11664, %v4351
  %v11742 = vmul.f32 %v11665, %v4356
  %v11743 = vmul.f32 %v11666, %v4361
  %v11744 = vmul.f32 %v11667, %v4366
  %v11745 = vmul.f32 %v11668, %v4371
  %v11746 = vmul.f32 %v11669, %v4376
  %v11747 = vmul.f32 %v11670, %v4381
  %v11748 = vmul.f32 %v11671, %v4386
  %v11749 = vmul.f32 %v11672, %v4391
  %v11750 = vmul.f32 %v11673, %v4396
  %v11751 = vmul.f32 %v11674, %v4401
  %v11752 = vmul.f32 %v11675, %v4406
  %v11753 = vmul.f32 %v11676, %v4411
  %v11754 = vmul.f32 %v11677, %v4416
  %v11755 = vmul.f32 %v11678, %v4421
  %v11756 = vmul.f32 %v11679, %v4426
  %v11757 = vmul.f32 %v11680, %v4431
  %v11758 = vmul.f32 %v11681, %v4436
  %v11759 = vmul.f32 %v11682, %v4441
  %v11760 = vmul.f32 %v11683, %v4446
  %v11761 = vmul.f32 %v11684, %v4451
  %v11762 = vmul.f32 %v11685, %v4456
  %v11763 = vmul.f32 %v11686, %v4461
  %v11764 = vmul.f32 %v11687, %v4466
  %v11765 = vmul.f32 %v11688, %v4471
  %v11766 = vmul.f32 %v11689, %v4476
  %v11767 = vadd.f32 %v11690, %v11691
  %v11768 = vadd.f32 %v11767, %v11692
  %v11769 = vadd.f32 %v11768, %v11693
  %v11770 = vadd.f32 %v11769, %v11694
  %v11771 = vadd.f32 %v11770, %v11695
  %v11772 = vadd.f32 %v11771, %v11696
  %v11773 = vadd.f32 %v11772, %v11697
  %v11774 = vadd.f32 %v11773, %v11698
  %v11775 = vadd.f32 %v11774, %v11699
  %v11776 = vadd.f32 %v11775, %v11700
  %v11777 = vadd.f32 %v11776, %v11701
  %v11778 = vadd.f32 %v11777, %v11702
  %v11779 = vadd.f32 %v11778, %v11703
  %v11780 = vadd.f32 %v11779, %v11704
  %v11781 = vadd.f32 %v11780, %v11705
  %v11782 = vadd.f32 %v11781, %v11706
  %v11783 = vadd.f32 %v11782, %v11707
  %v11784 = vadd.f32 %v11783, %v11708
  %v11785 = vadd.f32 %v11784, %v11709
  %v11786 = vadd.f32 %v11785, %v11710
  %v11787 = vadd.f32 %v11786, %v11711
  %v11788 = vadd.f32 %v11787, %v11712
  %v11789 = vadd.f32 %v11788, %v11713
  %v11790 = vadd.f32 %v11789, %v11714
  %v11791 = vadd.f32 %v11790, %v11715
  %v11792 = vadd.f32 %v11791, %v11716
  %v11793 = vadd.f32 %v11792, %v11717
  %v11794 = vadd.f32 %v11793, %v11718
  %v11795 = vadd.f32 %v11794, %v11719
  %v11796 = vadd.f32 %v11795, %v11720
  %v11797 = vadd.f32 %v11796, %v11721
  %v11798 = vadd.f32 %v11797, %v11722
  %v11799 = vadd.f32 %v11798, %v11723
  %v11800 = vadd.f32 %v11799, %v11724
  %v11801 = vadd.f32 %v11800, %v11725
  %v11802 = vadd.f32 %v11801, %v11726
  %v11803 = vadd.f32 %v11802, %v11727
  %v11804 = vadd.f32 %v11803, %v11728
  %v11805 = vadd.f32 %v11804, %v11729
  %v11806 = vadd.f32 %v11805, %v11730
  %v11807 = vadd.f32 %v11806, %v11731
  %v11808 = vadd.f32 %v11807, %v11732
  %v11809 = vadd.f32 %v11808, %v11733
  %v11810 = vadd.f32 %v11809, %v11734
  %v11811 = vadd.f32 %v11810, %v11735
  %v11812 = vadd.f32 %v11811, %v11736
  %v11813 = vadd.f32 %v11812, %v11737
  %v11814 = vadd.f32 %v11813, %v11738
  %v11815 = vadd.f32 %v11814, %v11739
  %v11816 = vadd.f32 %v11815, %v11740
  %v11817 = vadd.f32 %v11816, %v11741
  %v11818 = vadd.f32 %v11817, %v11742
  %v11819 = vadd.f32 %v11818, %v11743
  %v11820 = vadd.f32 %v11819, %v11744
  %v11821 = vadd.f32 %v11820, %v11745
  %v11822 = vadd.f32 %v11821, %v11746
  %v11823 = vadd.f32 %v11822, %v11747
  %v11824 = vadd.f32 %v11823, %v11748
  %v11825 = vadd.f32 %v11824, %v11749
  %v11826 = vadd.f32 %v11825, %v11750
  %v11827 = vadd.f32 %v11826, %v11751
  %v11828 = vadd.f32 %v11827, %v11752
  %v11829 = vadd.f32 %v11828, %v11753
  %v11830 = vadd.f32 %v11829, %v11754
  %v11831 = vadd.f32 %v11830, %v11755
  %v11832 = vadd.f32 %v11831, %v11756
  %v11833 = vadd.f32 %v11832, %v11757
  %v11834 = vadd.f32 %v11833, %v11758
  %v11835 = vadd.f32 %v11834, %v11759
  %v11836 = vadd.f32 %v11835, %v11760
  %v11837 = vadd.f32 %v11836, %v11761
  %v11838 = vadd.f32 %v11837, %v11762
  %v11839 = vadd.f32 %v11838, %v11763
  %v11840 = vadd.f32 %v11839, %v11764
  %v11841 = vadd.f32 %v11840, %v11765
  %v11842 = vadd.f32 %v11841, %v11766
  %v11843 = vrot.slane %v11842, 4
  %v11844 = vadd.f32 %v11842, %v11843
  %v11845 = vrot.slane %v11844, 2
  %v11846 = vadd.f32 %v11844, %v11845
  %v11847 = vrot.slane %v11846, 1
  %v11848 = vadd.f32 %v11846, %v11847
  %v11849 = vmul.f32 %v11690, %v11613
  %v11850 = vmul.f32 %v11691, %v11614
  %v11851 = vmul.f32 %v11692, %v11615
  %v11852 = vmul.f32 %v11693, %v11616
  %v11853 = vmul.f32 %v11694, %v11617
  %v11854 = vmul.f32 %v11695, %v11618
  %v11855 = vmul.f32 %v11696, %v11619
  %v11856 = vmul.f32 %v11697, %v11620
  %v11857 = vmul.f32 %v11698, %v11621
  %v11858 = vmul.f32 %v11699, %v11622
  %v11859 = vmul.f32 %v11700, %v11623
  %v11860 = vmul.f32 %v11701, %v11624
  %v11861 = vmul.f32 %v11702, %v11625
  %v11862 = vmul.f32 %v11703, %v11626
  %v11863 = vmul.f32 %v11704, %v11627
  %v11864 = vmul.f32 %v11705, %v11628
  %v11865 = vmul.f32 %v11706, %v11629
  %v11866 = vmul.f32 %v11707, %v11630
  %v11867 = vmul.f32 %v11708, %v11631
  %v11868 = vmul.f32 %v11709, %v11632
  %v11869 = vmul.f32 %v11710, %v11633
  %v11870 = vmul.f32 %v11711, %v11634
  %v11871 = vmul.f32 %v11712, %v11635
  %v11872 = vmul.f32 %v11713, %v11636
  %v11873 = vmul.f32 %v11714, %v11637
  %v11874 = vmul.f32 %v11715, %v11638
  %v11875 = vmul.f32 %v11716, %v11639
  %v11876 = vmul.f32 %v11717, %v11640
  %v11877 = vmul.f32 %v11718, %v11641
  %v11878 = vmul.f32 %v11719, %v11642
  %v11879 = vmul.f32 %v11720, %v11643
  %v11880 = vmul.f32 %v11721, %v11644
  %v11881 = vmul.f32 %v11722, %v11645
  %v11882 = vmul.f32 %v11723, %v11646
  %v11883 = vmul.f32 %v11724, %v11647
  %v11884 = vmul.f32 %v11725, %v11648
  %v11885 = vmul.f32 %v11726, %v11649
  %v11886 = vmul.f32 %v11727, %v11650
  %v11887 = vmul.f32 %v11728, %v11651
  %v11888 = vmul.f32 %v11729, %v11652
  %v11889 = vmul.f32 %v11730, %v11653
  %v11890 = vmul.f32 %v11731, %v11654
  %v11891 = vmul.f32 %v11732, %v11655
  %v11892 = vmul.f32 %v11733, %v11656
  %v11893 = vmul.f32 %v11734, %v11657
  %v11894 = vmul.f32 %v11735, %v11658
  %v11895 = vmul.f32 %v11736, %v11659
  %v11896 = vmul.f32 %v11737, %v11660
  %v11897 = vmul.f32 %v11738, %v11661
  %v11898 = vmul.f32 %v11739, %v11662
  %v11899 = vmul.f32 %v11740, %v11663
  %v11900 = vmul.f32 %v11741, %v11664
  %v11901 = vmul.f32 %v11742, %v11665
  %v11902 = vmul.f32 %v11743, %v11666
  %v11903 = vmul.f32 %v11744, %v11667
  %v11904 = vmul.f32 %v11745, %v11668
  %v11905 = vmul.f32 %v11746, %v11669
  %v11906 = vmul.f32 %v11747, %v11670
  %v11907 = vmul.f32 %v11748, %v11671
  %v11908 = vmul.f32 %v11749, %v11672
  %v11909 = vmul.f32 %v11750, %v11673
  %v11910 = vmul.f32 %v11751, %v11674
  %v11911 = vmul.f32 %v11752, %v11675
  %v11912 = vmul.f32 %v11753, %v11676
  %v11913 = vmul.f32 %v11754, %v11677
  %v11914 = vmul.f32 %v11755, %v11678
  %v11915 = vmul.f32 %v11756, %v11679
  %v11916 = vmul.f32 %v11757, %v11680
  %v11917 = vmul.f32 %v11758, %v11681
  %v11918 = vmul.f32 %v11759, %v11682
  %v11919 = vmul.f32 %v11760, %v11683
  %v11920 = vmul.f32 %v11761, %v11684
  %v11921 = vmul.f32 %v11762, %v11685
  %v11922 = vmul.f32 %v11763, %v11686
  %v11923 = vmul.f32 %v11764, %v11687
  %v11924 = vmul.f32 %v11765, %v11688
  %v11925 = vmul.f32 %v11766, %v11689
  %v11926 = vadd.f32 %v11849, %v11850
  %v11927 = vadd.f32 %v11926, %v11851
  %v11928 = vadd.f32 %v11927, %v11852
  %v11929 = vadd.f32 %v11928, %v11853
  %v11930 = vadd.f32 %v11929, %v11854
  %v11931 = vadd.f32 %v11930, %v11855
  %v11932 = vadd.f32 %v11931, %v11856
  %v11933 = vadd.f32 %v11932, %v11857
  %v11934 = vadd.f32 %v11933, %v11858
  %v11935 = vadd.f32 %v11934, %v11859
  %v11936 = vadd.f32 %v11935, %v11860
  %v11937 = vadd.f32 %v11936, %v11861
  %v11938 = vadd.f32 %v11937, %v11862
  %v11939 = vadd.f32 %v11938, %v11863
  %v11940 = vadd.f32 %v11939, %v11864
  %v11941 = vadd.f32 %v11940, %v11865
  %v11942 = vadd.f32 %v11941, %v11866
  %v11943 = vadd.f32 %v11942, %v11867
  %v11944 = vadd.f32 %v11943, %v11868
  %v11945 = vadd.f32 %v11944, %v11869
  %v11946 = vadd.f32 %v11945, %v11870
  %v11947 = vadd.f32 %v11946, %v11871
  %v11948 = vadd.f32 %v11947, %v11872
  %v11949 = vadd.f32 %v11948, %v11873
  %v11950 = vadd.f32 %v11949, %v11874
  %v11951 = vadd.f32 %v11950, %v11875
  %v11952 = vadd.f32 %v11951, %v11876
  %v11953 = vadd.f32 %v11952, %v11877
  %v11954 = vadd.f32 %v11953, %v11878
  %v11955 = vadd.f32 %v11954, %v11879
  %v11956 = vadd.f32 %v11955, %v11880
  %v11957 = vadd.f32 %v11956, %v11881
  %v11958 = vadd.f32 %v11957, %v11882
  %v11959 = vadd.f32 %v11958, %v11883
  %v11960 = vadd.f32 %v11959, %v11884
  %v11961 = vadd.f32 %v11960, %v11885
  %v11962 = vadd.f32 %v11961, %v11886
  %v11963 = vadd.f32 %v11962, %v11887
  %v11964 = vadd.f32 %v11963, %v11888
  %v11965 = vadd.f32 %v11964, %v11889
  %v11966 = vadd.f32 %v11965, %v11890
  %v11967 = vadd.f32 %v11966, %v11891
  %v11968 = vadd.f32 %v11967, %v11892
  %v11969 = vadd.f32 %v11968, %v11893
  %v11970 = vadd.f32 %v11969, %v11894
  %v11971 = vadd.f32 %v11970, %v11895
  %v11972 = vadd.f32 %v11971, %v11896
  %v11973 = vadd.f32 %v11972, %v11897
  %v11974 = vadd.f32 %v11973, %v11898
  %v11975 = vadd.f32 %v11974, %v11899
  %v11976 = vadd.f32 %v11975, %v11900
  %v11977 = vadd.f32 %v11976, %v11901
  %v11978 = vadd.f32 %v11977, %v11902
  %v11979 = vadd.f32 %v11978, %v11903
  %v11980 = vadd.f32 %v11979, %v11904
  %v11981 = vadd.f32 %v11980, %v11905
  %v11982 = vadd.f32 %v11981, %v11906
  %v11983 = vadd.f32 %v11982, %v11907
  %v11984 = vadd.f32 %v11983, %v11908
  %v11985 = vadd.f32 %v11984, %v11909
  %v11986 = vadd.f32 %v11985, %v11910
  %v11987 = vadd.f32 %v11986, %v11911
  %v11988 = vadd.f32 %v11987, %v11912
  %v11989 = vadd.f32 %v11988, %v11913
  %v11990 = vadd.f32 %v11989, %v11914
  %v11991 = vadd.f32 %v11990, %v11915
  %v11992 = vadd.f32 %v11991, %v11916
  %v11993 = vadd.f32 %v11992, %v11917
  %v11994 = vadd.f32 %v11993, %v11918
  %v11995 = vadd.f32 %v11994, %v11919
  %v11996 = vadd.f32 %v11995, %v11920
  %v11997 = vadd.f32 %v11996, %v11921
  %v11998 = vadd.f32 %v11997, %v11922
  %v11999 = vadd.f32 %v11998, %v11923
  %v12000 = vadd.f32 %v11999, %v11924
  %v12001 = vadd.f32 %v12000, %v11925
  %v12002 = vrot.slane %v12001, 4
  %v12003 = vadd.f32 %v12001, %v12002
  %v12004 = vrot.slane %v12003, 2
  %v12005 = vadd.f32 %v12003, %v12004
  %v12006 = vrot.slane %v12005, 1
  %v12007 = vadd.f32 %v12005, %v12006
  %v12008 = vmul.f32 %v11848, 0.001953125
  %v12009 = vmul.f32 %v12007, 0.001953125
  %v12010 = vmul.f32 %v12008, %v12008
  %v12011 = vsub.f32 %v12009, %v12010
  %v12012 = vmax.f32 %v12011, 0.0
  %v12013 = vld [vmem:[%s5] sm:$0x1]
  %v12014 = vadd.f32 %v12012, 1e-05
  %v12015 = vrsqrt.pop %v12014
  %v12016 = vmul.f32 %v12015, %v12014
  %v12017 = vmul.f32 %v12016, %v12015
  %v12018 = vmul.f32 0.5, %v12017
  %v12019 = vsub.f32 1.5, %v12018
  %v12020 = vmul.f32 %v12015, %v12019
  %vm12021 = vweird.f32 %v12014
  %vm12022 = vweird.f32 %v12015
  %vm12023 = vmor %vm12021, %vm12022
  %v12024 = vsel %vm12023, %v12015, %v12020
  %v12025 = vmul.f32 %v12013, %v12024
  %v12026 = vld [vmem:[%s6] sm:$0x1]
  %v12027 = vmul.f32 %v12008, %v12025
  %v12028 = vsub.f32 %v12026, %v12027
  %v12030 = vperm.slane %v12025, 0
  %v12032 = vmul.f32 %v11613, %v12030
  %v12033 = vmul.f32 %v11614, %v12030
  %v12034 = vmul.f32 %v11615, %v12030
  %v12035 = vmul.f32 %v11616, %v12030
  %v12036 = vmul.f32 %v11617, %v12030
  %v12037 = vmul.f32 %v11618, %v12030
  %v12038 = vmul.f32 %v11619, %v12030
  %v12039 = vmul.f32 %v11620, %v12030
  %v12040 = vmul.f32 %v11621, %v12030
  %v12041 = vmul.f32 %v11622, %v12030
  %v12042 = vmul.f32 %v11623, %v12030
  %v12043 = vmul.f32 %v11624, %v12030
  %v12044 = vmul.f32 %v11625, %v12030
  %v12045 = vmul.f32 %v11626, %v12030
  %v12046 = vmul.f32 %v11627, %v12030
  %v12047 = vmul.f32 %v11628, %v12030
  %v12048 = vmul.f32 %v11629, %v12030
  %v12049 = vmul.f32 %v11630, %v12030
  %v12050 = vmul.f32 %v11631, %v12030
  %v12051 = vmul.f32 %v11632, %v12030
  %v12052 = vmul.f32 %v11633, %v12030
  %v12053 = vmul.f32 %v11634, %v12030
  %v12054 = vmul.f32 %v11635, %v12030
  %v12055 = vmul.f32 %v11636, %v12030
  %v12056 = vmul.f32 %v11637, %v12030
  %v12057 = vmul.f32 %v11638, %v12030
  %v12058 = vmul.f32 %v11639, %v12030
  %v12059 = vmul.f32 %v11640, %v12030
  %v12060 = vmul.f32 %v11641, %v12030
  %v12061 = vmul.f32 %v11642, %v12030
  %v12062 = vmul.f32 %v11643, %v12030
  %v12063 = vmul.f32 %v11644, %v12030
  %v12064 = vmul.f32 %v11645, %v12030
  %v12065 = vmul.f32 %v11646, %v12030
  %v12066 = vmul.f32 %v11647, %v12030
  %v12067 = vmul.f32 %v11648, %v12030
  %v12068 = vmul.f32 %v11649, %v12030
  %v12069 = vmul.f32 %v11650, %v12030
  %v12070 = vmul.f32 %v11651, %v12030
  %v12071 = vmul.f32 %v11652, %v12030
  %v12072 = vmul.f32 %v11653, %v12030
  %v12073 = vmul.f32 %v11654, %v12030
  %v12074 = vmul.f32 %v11655, %v12030
  %v12075 = vmul.f32 %v11656, %v12030
  %v12076 = vmul.f32 %v11657, %v12030
  %v12077 = vmul.f32 %v11658, %v12030
  %v12078 = vmul.f32 %v11659, %v12030
  %v12079 = vmul.f32 %v11660, %v12030
  %v12080 = vmul.f32 %v11661, %v12030
  %v12081 = vmul.f32 %v11662, %v12030
  %v12082 = vmul.f32 %v11663, %v12030
  %v12083 = vmul.f32 %v11664, %v12030
  %v12084 = vmul.f32 %v11665, %v12030
  %v12085 = vmul.f32 %v11666, %v12030
  %v12086 = vmul.f32 %v11667, %v12030
  %v12087 = vmul.f32 %v11668, %v12030
  %v12088 = vmul.f32 %v11669, %v12030
  %v12089 = vmul.f32 %v11670, %v12030
  %v12090 = vmul.f32 %v11671, %v12030
  %v12091 = vmul.f32 %v11672, %v12030
  %v12092 = vmul.f32 %v11673, %v12030
  %v12093 = vmul.f32 %v11674, %v12030
  %v12094 = vmul.f32 %v11675, %v12030
  %v12095 = vmul.f32 %v11676, %v12030
  %v12096 = vmul.f32 %v11677, %v12030
  %v12097 = vmul.f32 %v11678, %v12030
  %v12098 = vmul.f32 %v11679, %v12030
  %v12099 = vmul.f32 %v11680, %v12030
  %v12100 = vmul.f32 %v11681, %v12030
  %v12101 = vmul.f32 %v11682, %v12030
  %v12102 = vmul.f32 %v11683, %v12030
  %v12103 = vmul.f32 %v11684, %v12030
  %v12104 = vmul.f32 %v11685, %v12030
  %v12105 = vmul.f32 %v11686, %v12030
  %v12106 = vmul.f32 %v11687, %v12030
  %v12107 = vmul.f32 %v11688, %v12030
  %v12108 = vmul.f32 %v11689, %v12030
  %v12110 = vperm.slane %v12028, 0
  %v12112 = vadd.f32 %v12032, %v12110
  %v12113 = vadd.f32 %v12033, %v12110
  %v12114 = vadd.f32 %v12034, %v12110
  %v12115 = vadd.f32 %v12035, %v12110
  %v12116 = vadd.f32 %v12036, %v12110
  %v12117 = vadd.f32 %v12037, %v12110
  %v12118 = vadd.f32 %v12038, %v12110
  %v12119 = vadd.f32 %v12039, %v12110
  %v12120 = vadd.f32 %v12040, %v12110
  %v12121 = vadd.f32 %v12041, %v12110
  %v12122 = vadd.f32 %v12042, %v12110
  %v12123 = vadd.f32 %v12043, %v12110
  %v12124 = vadd.f32 %v12044, %v12110
  %v12125 = vadd.f32 %v12045, %v12110
  %v12126 = vadd.f32 %v12046, %v12110
  %v12127 = vadd.f32 %v12047, %v12110
  %v12128 = vadd.f32 %v12048, %v12110
  %v12129 = vadd.f32 %v12049, %v12110
  %v12130 = vadd.f32 %v12050, %v12110
  %v12131 = vadd.f32 %v12051, %v12110
  %v12132 = vadd.f32 %v12052, %v12110
  %v12133 = vadd.f32 %v12053, %v12110
  %v12134 = vadd.f32 %v12054, %v12110
  %v12135 = vadd.f32 %v12055, %v12110
  %v12136 = vadd.f32 %v12056, %v12110
  %v12137 = vadd.f32 %v12057, %v12110
  %v12138 = vadd.f32 %v12058, %v12110
  %v12139 = vadd.f32 %v12059, %v12110
  %v12140 = vadd.f32 %v12060, %v12110
  %v12141 = vadd.f32 %v12061, %v12110
  %v12142 = vadd.f32 %v12062, %v12110
  %v12143 = vadd.f32 %v12063, %v12110
  %v12144 = vadd.f32 %v12064, %v12110
  %v12145 = vadd.f32 %v12065, %v12110
  %v12146 = vadd.f32 %v12066, %v12110
  %v12147 = vadd.f32 %v12067, %v12110
  %v12148 = vadd.f32 %v12068, %v12110
  %v12149 = vadd.f32 %v12069, %v12110
  %v12150 = vadd.f32 %v12070, %v12110
  %v12151 = vadd.f32 %v12071, %v12110
  %v12152 = vadd.f32 %v12072, %v12110
  %v12153 = vadd.f32 %v12073, %v12110
  %v12154 = vadd.f32 %v12074, %v12110
  %v12155 = vadd.f32 %v12075, %v12110
  %v12156 = vadd.f32 %v12076, %v12110
  %v12157 = vadd.f32 %v12077, %v12110
  %v12158 = vadd.f32 %v12078, %v12110
  %v12159 = vadd.f32 %v12079, %v12110
  %v12160 = vadd.f32 %v12080, %v12110
  %v12161 = vadd.f32 %v12081, %v12110
  %v12162 = vadd.f32 %v12082, %v12110
  %v12163 = vadd.f32 %v12083, %v12110
  %v12164 = vadd.f32 %v12084, %v12110
  %v12165 = vadd.f32 %v12085, %v12110
  %v12166 = vadd.f32 %v12086, %v12110
  %v12167 = vadd.f32 %v12087, %v12110
  %v12168 = vadd.f32 %v12088, %v12110
  %v12169 = vadd.f32 %v12089, %v12110
  %v12170 = vadd.f32 %v12090, %v12110
  %v12171 = vadd.f32 %v12091, %v12110
  %v12172 = vadd.f32 %v12092, %v12110
  %v12173 = vadd.f32 %v12093, %v12110
  %v12174 = vadd.f32 %v12094, %v12110
  %v12175 = vadd.f32 %v12095, %v12110
  %v12176 = vadd.f32 %v12096, %v12110
  %v12177 = vadd.f32 %v12097, %v12110
  %v12178 = vadd.f32 %v12098, %v12110
  %v12179 = vadd.f32 %v12099, %v12110
  %v12180 = vadd.f32 %v12100, %v12110
  %v12181 = vadd.f32 %v12101, %v12110
  %v12182 = vadd.f32 %v12102, %v12110
  %v12183 = vadd.f32 %v12103, %v12110
  %v12184 = vadd.f32 %v12104, %v12110
  %v12185 = vadd.f32 %v12105, %v12110
  %v12186 = vadd.f32 %v12106, %v12110
  %v12187 = vadd.f32 %v12107, %v12110
  %v12188 = vadd.f32 %v12108, %v12110
  %v12189 = vadd.f32 %v107, %v12112
  %v12190 = vadd.f32 %v108, %v12113
  %v12191 = vadd.f32 %v109, %v12114
  %v12192 = vadd.f32 %v110, %v12115
  %v12193 = vadd.f32 %v111, %v12116
  %v12194 = vadd.f32 %v112, %v12117
  %v12195 = vadd.f32 %v113, %v12118
  %v12196 = vadd.f32 %v114, %v12119
  %v12197 = vadd.f32 %v115, %v12120
  %v12198 = vadd.f32 %v116, %v12121
  %v12199 = vadd.f32 %v117, %v12122
  %v12200 = vadd.f32 %v118, %v12123
  %v12201 = vadd.f32 %v119, %v12124
  %v12202 = vadd.f32 %v120, %v12125
  %v12203 = vadd.f32 %v121, %v12126
  %v12204 = vadd.f32 %v122, %v12127
  %v12205 = vadd.f32 %v123, %v12128
  %v12206 = vadd.f32 %v124, %v12129
  %v12207 = vadd.f32 %v125, %v12130
  %v12208 = vadd.f32 %v126, %v12131
  %v12209 = vadd.f32 %v127, %v12132
  %v12210 = vadd.f32 %v128, %v12133
  %v12211 = vadd.f32 %v129, %v12134
  %v12212 = vadd.f32 %v130, %v12135
  %v12213 = vadd.f32 %v131, %v12136
  %v12214 = vadd.f32 %v132, %v12137
  %v12215 = vadd.f32 %v133, %v12138
  %v12216 = vadd.f32 %v134, %v12139
  %v12217 = vadd.f32 %v135, %v12140
  %v12218 = vadd.f32 %v136, %v12141
  %v12219 = vadd.f32 %v137, %v12142
  %v12220 = vadd.f32 %v138, %v12143
  %v12221 = vadd.f32 %v139, %v12144
  %v12222 = vadd.f32 %v140, %v12145
  %v12223 = vadd.f32 %v141, %v12146
  %v12224 = vadd.f32 %v142, %v12147
  %v12225 = vadd.f32 %v143, %v12148
  %v12226 = vadd.f32 %v144, %v12149
  %v12227 = vadd.f32 %v145, %v12150
  %v12228 = vadd.f32 %v146, %v12151
  %v12229 = vadd.f32 %v147, %v12152
  %v12230 = vadd.f32 %v148, %v12153
  %v12231 = vadd.f32 %v149, %v12154
  %v12232 = vadd.f32 %v150, %v12155
  %v12233 = vadd.f32 %v151, %v12156
  %v12234 = vadd.f32 %v152, %v12157
  %v12235 = vadd.f32 %v153, %v12158
  %v12236 = vadd.f32 %v154, %v12159
  %v12237 = vadd.f32 %v155, %v12160
  %v12238 = vadd.f32 %v156, %v12161
  %v12239 = vadd.f32 %v157, %v12162
  %v12240 = vadd.f32 %v158, %v12163
  %v12241 = vadd.f32 %v159, %v12164
  %v12242 = vadd.f32 %v160, %v12165
  %v12243 = vadd.f32 %v161, %v12166
  %v12244 = vadd.f32 %v162, %v12167
  %v12245 = vadd.f32 %v163, %v12168
  %v12246 = vadd.f32 %v164, %v12169
  %v12247 = vadd.f32 %v165, %v12170
  %v12248 = vadd.f32 %v166, %v12171
  %v12249 = vadd.f32 %v167, %v12172
  %v12250 = vadd.f32 %v168, %v12173
  %v12251 = vadd.f32 %v169, %v12174
  %v12252 = vadd.f32 %v170, %v12175
  %v12253 = vadd.f32 %v171, %v12176
  %v12254 = vadd.f32 %v172, %v12177
  %v12255 = vadd.f32 %v173, %v12178
  %v12256 = vadd.f32 %v174, %v12179
  %v12257 = vadd.f32 %v175, %v12180
  %v12258 = vadd.f32 %v176, %v12181
  %v12259 = vadd.f32 %v177, %v12182
  %v12260 = vadd.f32 %v178, %v12183
  %v12261 = vadd.f32 %v179, %v12184
  %v12262 = vadd.f32 %v180, %v12185
  %v12263 = vadd.f32 %v181, %v12186
  %v12264 = vadd.f32 %v182, %v12187
  %v12265 = vadd.f32 %v183, %v12188
  %v12266 = vmax.f32 %v12189, 0.0
  %v12267 = vmax.f32 %v12190, 0.0
  %v12268 = vmax.f32 %v12191, 0.0
  %v12269 = vmax.f32 %v12192, 0.0
  %v12270 = vmax.f32 %v12193, 0.0
  %v12271 = vmax.f32 %v12194, 0.0
  %v12272 = vmax.f32 %v12195, 0.0
  %v12273 = vmax.f32 %v12196, 0.0
  %v12274 = vmax.f32 %v12197, 0.0
  %v12275 = vmax.f32 %v12198, 0.0
  %v12276 = vmax.f32 %v12199, 0.0
  %v12277 = vmax.f32 %v12200, 0.0
  %v12278 = vmax.f32 %v12201, 0.0
  %v12279 = vmax.f32 %v12202, 0.0
  %v12280 = vmax.f32 %v12203, 0.0
  %v12281 = vmax.f32 %v12204, 0.0
  %v12282 = vmax.f32 %v12205, 0.0
  %v12283 = vmax.f32 %v12206, 0.0
  %v12284 = vmax.f32 %v12207, 0.0
  %v12285 = vmax.f32 %v12208, 0.0
  %v12286 = vmax.f32 %v12209, 0.0
  %v12287 = vmax.f32 %v12210, 0.0
  %v12288 = vmax.f32 %v12211, 0.0
  %v12289 = vmax.f32 %v12212, 0.0
  %v12290 = vmax.f32 %v12213, 0.0
  %v12291 = vmax.f32 %v12214, 0.0
  %v12292 = vmax.f32 %v12215, 0.0
  %v12293 = vmax.f32 %v12216, 0.0
  %v12294 = vmax.f32 %v12217, 0.0
  %v12295 = vmax.f32 %v12218, 0.0
  %v12296 = vmax.f32 %v12219, 0.0
  %v12297 = vmax.f32 %v12220, 0.0
  %v12298 = vmax.f32 %v12221, 0.0
  %v12299 = vmax.f32 %v12222, 0.0
  %v12300 = vmax.f32 %v12223, 0.0
  %v12301 = vmax.f32 %v12224, 0.0
  %v12302 = vmax.f32 %v12225, 0.0
  %v12303 = vmax.f32 %v12226, 0.0
  %v12304 = vmax.f32 %v12227, 0.0
  %v12305 = vmax.f32 %v12228, 0.0
  %v12306 = vmax.f32 %v12229, 0.0
  %v12307 = vmax.f32 %v12230, 0.0
  %v12308 = vmax.f32 %v12231, 0.0
  %v12309 = vmax.f32 %v12232, 0.0
  %v12310 = vmax.f32 %v12233, 0.0
  %v12311 = vmax.f32 %v12234, 0.0
  %v12312 = vmax.f32 %v12235, 0.0
  %v12313 = vmax.f32 %v12236, 0.0
  %v12314 = vmax.f32 %v12237, 0.0
  %v12315 = vmax.f32 %v12238, 0.0
  %v12316 = vmax.f32 %v12239, 0.0
  %v12317 = vmax.f32 %v12240, 0.0
  %v12318 = vmax.f32 %v12241, 0.0
  %v12319 = vmax.f32 %v12242, 0.0
  %v12320 = vmax.f32 %v12243, 0.0
  %v12321 = vmax.f32 %v12244, 0.0
  %v12322 = vmax.f32 %v12245, 0.0
  %v12323 = vmax.f32 %v12246, 0.0
  %v12324 = vmax.f32 %v12247, 0.0
  %v12325 = vmax.f32 %v12248, 0.0
  %v12326 = vmax.f32 %v12249, 0.0
  %v12327 = vmax.f32 %v12250, 0.0
  %v12328 = vmax.f32 %v12251, 0.0
  %v12329 = vmax.f32 %v12252, 0.0
  %v12330 = vmax.f32 %v12253, 0.0
  %v12331 = vmax.f32 %v12254, 0.0
  %v12332 = vmax.f32 %v12255, 0.0
  %v12333 = vmax.f32 %v12256, 0.0
  %v12334 = vmax.f32 %v12257, 0.0
  %v12335 = vmax.f32 %v12258, 0.0
  %v12336 = vmax.f32 %v12259, 0.0
  %v12337 = vmax.f32 %v12260, 0.0
  %v12338 = vmax.f32 %v12261, 0.0
  %v12339 = vmax.f32 %v12262, 0.0
  %v12340 = vmax.f32 %v12263, 0.0
  %v12341 = vmax.f32 %v12264, 0.0
  %v12342 = vmax.f32 %v12265, 0.0
  %12343 = vst [vmem:[%s8] sm:$0xff] %v12266
  %12344 = vst [vmem:[%s8 + $0x8] sm:$0xff] %v12267
  %12345 = vst [vmem:[%s8 + $0x10] sm:$0xff] %v12268
  %12346 = vst [vmem:[%s8 + $0x18] sm:$0xff] %v12269
  %12347 = vst [vmem:[%s8 + $0x20] sm:$0xff] %v12270
  %12348 = vst [vmem:[%s8 + $0x28] sm:$0xff] %v12271
  %12349 = vst [vmem:[%s8 + $0x30] sm:$0xff] %v12272
  %12350 = vst [vmem:[%s8 + $0x38] sm:$0xff] %v12273
  %12351 = vst [vmem:[%s8 + $0x40] sm:$0xff] %v12274
  %12352 = vst [vmem:[%s8 + $0x48] sm:$0xff] %v12275
  %12353 = vst [vmem:[%s8 + $0x50] sm:$0xff] %v12276
  %12354 = vst [vmem:[%s8 + $0x58] sm:$0xff] %v12277
  %12355 = vst [vmem:[%s8 + $0x60] sm:$0xff] %v12278
  %12356 = vst [vmem:[%s8 + $0x68] sm:$0xff] %v12279
  %12357 = vst [vmem:[%s8 + $0x70] sm:$0xff] %v12280
  %12358 = vst [vmem:[%s8 + $0x78] sm:$0xff] %v12281
  %12359 = vst [vmem:[%s8 + $0x80] sm:$0xff] %v12282
  %12360 = vst [vmem:[%s8 + $0x88] sm:$0xff] %v12283
  %12361 = vst [vmem:[%s8 + $0x90] sm:$0xff] %v12284
  %12362 = vst [vmem:[%s8 + $0x98] sm:$0xff] %v12285
  %12363 = vst [vmem:[%s8 + $0xa0] sm:$0xff] %v12286
  %12364 = vst [vmem:[%s8 + $0xa8] sm:$0xff] %v12287
  %12365 = vst [vmem:[%s8 + $0xb0] sm:$0xff] %v12288
  %12366 = vst [vmem:[%s8 + $0xb8] sm:$0xff] %v12289
  %12367 = vst [vmem:[%s8 + $0xc0] sm:$0xff] %v12290
  %12368 = vst [vmem:[%s8 + $0xc8] sm:$0xff] %v12291
  %12369 = vst [vmem:[%s8 + $0xd0] sm:$0xff] %v12292
  %12370 = vst [vmem:[%s8 + $0xd8] sm:$0xff] %v12293
  %12371 = vst [vmem:[%s8 + $0xe0] sm:$0xff] %v12294
  %12372 = vst [vmem:[%s8 + $0xe8] sm:$0xff] %v12295
  %12373 = vst [vmem:[%s8 + $0xf0] sm:$0xff] %v12296
  %12374 = vst [vmem:[%s8 + $0xf8] sm:$0xff] %v12297
  %12375 = vst [vmem:[%s8 + $0x100] sm:$0xff] %v12298
  %12376 = vst [vmem:[%s8 + $0x108] sm:$0xff] %v12299
  %12377 = vst [vmem:[%s8 + $0x110] sm:$0xff] %v12300
  %12378 = vst [vmem:[%s8 + $0x118] sm:$0xff] %v12301
  %12379 = vst [vmem:[%s8 + $0x120] sm:$0xff] %v12302
  %12380 = vst [vmem:[%s8 + $0x128] sm:$0xff] %v12303
  %12381 = vst [vmem:[%s8 + $0x130] sm:$0xff] %v12304
  %12382 = vst [vmem:[%s8 + $0x138] sm:$0xff] %v12305
  %12383 = vst [vmem:[%s8 + $0x140] sm:$0xff] %v12306
  %12384 = vst [vmem:[%s8 + $0x148] sm:$0xff] %v12307
  %12385 = vst [vmem:[%s8 + $0x150] sm:$0xff] %v12308
  %12386 = vst [vmem:[%s8 + $0x158] sm:$0xff] %v12309
  %12387 = vst [vmem:[%s8 + $0x160] sm:$0xff] %v12310
  %12388 = vst [vmem:[%s8 + $0x168] sm:$0xff] %v12311
  %12389 = vst [vmem:[%s8 + $0x170] sm:$0xff] %v12312
  %12390 = vst [vmem:[%s8 + $0x178] sm:$0xff] %v12313
  %12391 = vst [vmem:[%s8 + $0x180] sm:$0xff] %v12314
  %12392 = vst [vmem:[%s8 + $0x188] sm:$0xff] %v12315
  %12393 = vst [vmem:[%s8 + $0x190] sm:$0xff] %v12316
  %12394 = vst [vmem:[%s8 + $0x198] sm:$0xff] %v12317
  %12395 = vst [vmem:[%s8 + $0x1a0] sm:$0xff] %v12318
  %12396 = vst [vmem:[%s8 + $0x1a8] sm:$0xff] %v12319
  %12397 = vst [vmem:[%s8 + $0x1b0] sm:$0xff] %v12320
  %12398 = vst [vmem:[%s8 + $0x1b8] sm:$0xff] %v12321
  %12399 = vst [vmem:[%s8 + $0x1c0] sm:$0xff] %v12322
  %12400 = vst [vmem:[%s8 + $0x1c8] sm:$0xff] %v12323
  %12401 = vst [vmem:[%s8 + $0x1d0] sm:$0xff] %v12324
  %12402 = vst [vmem:[%s8 + $0x1d8] sm:$0xff] %v12325
  %12403 = vst [vmem:[%s8 + $0x1e0] sm:$0xff] %v12326
  %12404 = vst [vmem:[%s8 + $0x1e8] sm:$0xff] %v12327
  %12405 = vst [vmem:[%s8 + $0x1f0] sm:$0xff] %v12328
  %12406 = vst [vmem:[%s8 + $0x1f8] sm:$0xff] %v12329
  %12407 = vst [vmem:[%s8 + $0x200] sm:$0xff] %v12330
  %12408 = vst [vmem:[%s8 + $0x208] sm:$0xff] %v12331
  %12409 = vst [vmem:[%s8 + $0x210] sm:$0xff] %v12332
  %12410 = vst [vmem:[%s8 + $0x218] sm:$0xff] %v12333
  %12411 = vst [vmem:[%s8 + $0x220] sm:$0xff] %v12334
  %12412 = vst [vmem:[%s8 + $0x228] sm:$0xff] %v12335
  %12413 = vst [vmem:[%s8 + $0x230] sm:$0xff] %v12336
  %12414 = vst [vmem:[%s8 + $0x238] sm:$0xff] %v12337
  %12415 = vst [vmem:[%s8 + $0x240] sm:$0xff] %v12338
  %12416 = vst [vmem:[%s8 + $0x248] sm:$0xff] %v12339
  %12417 = vst [vmem:[%s8 + $0x250] sm:$0xff] %v12340
  %12418 = vst [vmem:[%s8 + $0x258] sm:$0xff] %v12341
  %12419 = vst [vmem:[%s8 + $0x260] sm:$0xff] %v12342
  // Predicated region
  $region34: #{resnet_basicblock.1} parent=0 // pred_check
    _
  $region35: #{resnet_basicblock.1} parent=0 // pred_check_branch
    %12421 = sbr.rel (0) target = $region37
  $region36: #{resnet_basicblock.1} parent=0 // pred_region
    _
  $region37: #{resnet_basicblock.1} parent=0 // pred_fallthru
    _
  // Predicated region
  $region38: #{resnet_basicblock.1} parent=0 // pred_check
    _
  $region39: #{resnet_basicblock.1} parent=0 // pred_check_branch
    %12423 = sbr.rel (0) target = $region41
  $region40: #{resnet_basicblock.1} parent=0 // pred_region
    _
  $region41: #{resnet_basicblock.1} parent=0 // pred_fallthru
    _

</llo_original>
